<compile_context>
chip_gen: v7x
topology: tpu7x:2x2x1
jax: 0.10.0
libtpu: 0.0.40
codegen_flags: <defaults>
</compile_context>

<pallas_src>
import functools

import numpy as np
import jax
import jax.numpy as jnp
from jax.experimental import pallas as pl
from jax.experimental.pallas import tpu as pltpu

LEAK = 0.01       # RecNet.DEFAULT_RELU_LEAKINESS
KSIZE = 3


# ----------------------------------------------------------------------------
# Fused RecNet kernel (one batch element per grid step)
# ----------------------------------------------------------------------------
def _make_recnet_kernel(H, W, K, blocks_meta, dil_order, leak, cmax):
    """blocks_meta: tuple over blocks of tuples of (dilation, has_act) per conv.
    dil_order:   tuple of distinct dilations, indexing the border-mask input."""
    HW = H * W
    KC = (K - 1) // 2

    def kernel(x_ref, k0_ref, samp_ref, w_ref, b_ref, bm_ref, mr_ref, mi_ref,
               o_ref, fs_ref):
        f32 = jnp.float32

        def dot32(a, b):
            return jnp.dot(a, b, preferred_element_type=f32)

        samp = samp_ref[0].astype(f32)            # (1, HW) k-space sampling mask
        keep = 1.0 - samp
        k0r = k0_ref[0, 0:1, :].astype(f32)       # (1, HW)
        k0i = k0_ref[0, 1:2, :].astype(f32)       # (1, HW)

        # Feature scratch: (cmax, 2*HW).  Every feature plane is written twice
        # (lanes [0:HW] and [HW:2HW]) so a static slice [:, s:s+HW] is a
        # wrap-around spatial shift; out-of-image taps are zeroed with the
        # precomputed border masks (this replaces jnp.pad / halo handling).
        fs_ref[...] = jnp.zeros_like(fs_ref)
        x0 = x_ref[0].astype(f32)                 # (2, HW)
        fs_ref[0:2, 0:HW] = x0
        fs_ref[0:2, HW:2 * HW] = x0

        li = 0
        for block in blocks_meta:
            # ---- ConvBlock: KxK convs as shifted-plane MXU matmuls ----------
            for (dil, act) in block:
                di = dil_order.index(dil)
                acc = jnp.zeros((cmax, HW), f32)
                for kh in range(K):
                    for kw in range(K):
                        tap = kh * K + kw
                        dh, dw = (kh - KC) * dil, (kw - KC) * dil
                        start = (dh * W + dw) % HW
                        xs = fs_ref[:, start:start + HW]      # shifted planes
                        if dh != 0 or dw != 0:
                            xs = xs * bm_ref[di, tap]         # zero padding
                        acc = acc + dot32(w_ref[li, tap], xs)
                acc = acc + b_ref[li]                         # (cmax, 1) bias
                if act:
                    acc = jnp.where(acc >= 0, acc, leak * acc)
                fs_ref[:, 0:HW] = acc
                fs_ref[:, HW:2 * HW] = acc
                li += 1

            # ---- Data consistency in k-space (ortho DFT via kron(F_H,F_W)) --
            xr = fs_ref[0:1, 0:HW]
            xi = fs_ref[1:2, 0:HW]
            kr = dot32(xr, mr_ref[...]) - dot32(xi, mi_ref[...])
            ki = dot32(xr, mi_ref[...]) + dot32(xi, mr_ref[...])
            kr = keep * kr + samp * k0r
            ki = keep * ki + samp * k0i
            # inverse ortho DFT: multiply by conj(M) = Mr - i*Mi
            outr = dot32(kr, mr_ref[...]) + dot32(ki, mi_ref[...])
            outi = dot32(ki, mr_ref[...]) - dot32(kr, mi_ref[...])
            fs_ref[0:1, 0:HW] = outr
            fs_ref[0:1, HW:2 * HW] = outr
            fs_ref[1:2, 0:HW] = outi
            fs_ref[1:2, HW:2 * HW] = outi
            # channels 2..cmax-1 are exactly zero here (zero-padded weights and
            # biases), which is the state the next block's first conv expects.

        o_ref[0] = fs_ref[0:2, 0:HW].astype(o_ref.dtype)

    return kernel


def _border_masks(H, W, K, dil_order):
    """(n_dil, K*K, 1, H*W) f32 validity masks: 1 where a shifted tap stays
    inside the image (i.e. where zero padding does NOT apply)."""
    KC = (K - 1) // 2
    hh, ww = np.meshgrid(np.arange(H), np.arange(W), indexing="ij")
    out = np.zeros((len(dil_order), K * K, 1, H * W), np.float32)
    for di, d in enumerate(dil_order):
        for kh in range(K):
            for kw in range(K):
                dh, dw = (kh - KC) * d, (kw - KC) * d
                valid = ((hh + dh >= 0) & (hh + dh < H) &
                         (ww + dw >= 0) & (ww + dw < W))
                out[di, kh * K + kw, 0, :] = valid.reshape(-1)
    return out


@functools.partial(jax.jit, static_argnames=("blocks_meta",))
def recnet_forward_pallas(x, kspace, mask, w_all, b_all, mr, mi, *, blocks_meta):
    B, _, H, W = x.shape
    HW = H * W
    nl, kk, cmax, _ = w_all.shape
    K = int(round(kk ** 0.5))
    dil_order = tuple(dict.fromkeys(d for blk in blocks_meta for (d, _) in blk))
    bm = jnp.asarray(_border_masks(H, W, K, dil_order))

    # Lane-dense presentation: flatten each image plane to H*W lanes.
    x_f = x.reshape(B, 2, HW)
    k_f = kspace.reshape(B, 2, HW)
    m_f = jnp.broadcast_to(mask, (B, 1, H, W)).reshape(B, 1, HW)

    kernel = _make_recnet_kernel(H, W, K, blocks_meta, dil_order, LEAK, cmax)
    out = pl.pallas_call(
        kernel,
        out_shape=jax.ShapeDtypeStruct((B, 2, HW), x.dtype),
        grid_spec=pltpu.PrefetchScalarGridSpec(
            num_scalar_prefetch=0,
            grid=(B,),
            in_specs=[
                pl.BlockSpec((1, 2, HW), lambda n: (n, 0, 0)),      # x
                pl.BlockSpec((1, 2, HW), lambda n: (n, 0, 0)),      # kspace
                pl.BlockSpec((1, 1, HW), lambda n: (n, 0, 0)),      # sampling mask
                pl.BlockSpec(w_all.shape, lambda n: (0, 0, 0, 0)),  # conv weights
                pl.BlockSpec(b_all.shape, lambda n: (0, 0, 0)),     # conv biases
                pl.BlockSpec(bm.shape, lambda n: (0, 0, 0, 0)),     # border masks
                pl.BlockSpec((HW, HW), lambda n: (0, 0)),           # Re kron DFT
                pl.BlockSpec((HW, HW), lambda n: (0, 0)),           # Im kron DFT
            ],
            out_specs=pl.BlockSpec((1, 2, HW), lambda n: (n, 0, 0)),
            scratch_shapes=[pltpu.VMEM((cmax, 2 * HW), jnp.float32)],
        ),
        compiler_params=pltpu.CompilerParams(
            dimension_semantics=("parallel",)),
    )(x_f, k_f, m_f, w_all, b_all, bm, mr, mi)
    return out.reshape(B, 2, H, W)


# ----------------------------------------------------------------------------
# Parameters / packing / DFT operator
# ----------------------------------------------------------------------------
def init_params(key, num_blocks, num_convs, num_filters, dilations,
                num_final_outputs=2, K=KSIZE):
    """He-like init; mirrors ConvBlock layer shapes (zero padding only)."""
    params = []
    for b in range(num_blocks):
        in_ch = 2
        n_out_block = 2 if b < num_blocks - 1 else num_final_outputs
        layers = []
        for i in range(num_convs):
            last = i == num_convs - 1
            out_ch = n_out_block if last else num_filters
            key, kw_, kb_ = jax.random.split(key, 3)
            fan_in = in_ch * K * K
            w = jax.random.normal(kw_, (out_ch, in_ch, K, K), jnp.float32)
            w = w * jnp.sqrt(2.0 / fan_in)
            bb = jax.random.normal(kb_, (out_ch,), jnp.float32) * 0.01
            # final_act=False in ConvBlock -> no activation after last conv
            layers.append((w, bb, dilations[i], not last))
            in_ch = out_ch
        params.append(layers)
    return params


def pack_params(params, K=KSIZE):
    """Zero-pad every layer to a fixed channel width and pack into
    (num_layers, K*K, cmax, cmax) weights + (num_layers, cmax, 1) biases."""
    cmax = 2
    for layers in params:
        for (w, _, _, _) in layers:
            cmax = max(cmax, w.shape[0], w.shape[1])
    cmax = max(8, -(-cmax // 8) * 8)             # round up to a sublane multiple
    nl = sum(len(layers) for layers in params)
    w_all = np.zeros((nl, K * K, cmax, cmax), np.float32)
    b_all = np.zeros((nl, cmax, 1), np.float32)
    blocks_meta = []
    li = 0
    for layers in params:
        meta = []
        for (w, b, d, act) in layers:
            w = np.asarray(w, np.float32)
            b = np.asarray(b, np.float32)
            co, ci = w.shape[:2]
            w_all[li, :, :co, :ci] = np.transpose(w, (2, 3, 0, 1)).reshape(K * K, co, ci)
            b_all[li, :co, 0] = b
            meta.append((int(d), bool(act)))
            li += 1
        blocks_meta.append(tuple(meta))
    return jnp.asarray(w_all), jnp.asarray(b_all), tuple(blocks_meta)


def combined_dft_matrix(H, W):
    """Ortho 2-D DFT as one (H*W, H*W) symmetric matrix M = kron(F_H, F_W)
    acting on row-major-flattened images: k_row = x_row @ M; inverse = conj(M).
    # TODO(synk): for large H*W (> ~4k) fall back to separable F_H/F_W matmuls
    # so the operand fits v7x's 64 MiB VMEM (combined matrix is O((H*W)^2)).
    """
    jh, jw = np.arange(H), np.arange(W)
    fh = np.exp(-2j * np.pi * np.outer(jh, jh) / H) / np.sqrt(H)
    fw = np.exp(-2j * np.pi * np.outer(jw, jw) / W) / np.sqrt(W)
    m = np.kron(fh, fw)
    return jnp.asarray(m.real, jnp.float32), jnp.asarray(m.imag, jnp.float32)


# ----------------------------------------------------------------------------
# Pure-JAX reference of the same forward pass
# ----------------------------------------------------------------------------
def recnet_forward_ref(x, kspace, mask, params):
    for layers in params:
        h = x
        for (w, b, d, act) in layers:
            h = jax.lax.conv_general_dilated(
                h, w, window_strides=(1, 1), padding="SAME",
                rhs_dilation=(d, d),
                dimension_numbers=("NCHW", "OIHW", "NCHW"),
                precision=jax.lax.Precision.HIGHEST,
            ) + b[None, :, None, None]
            if act:
                h = jnp.where(h >= 0, h, LEAK * h)
        x = h
        xc = x[:, 0] + 1j * x[:, 1]
        k = jnp.fft.fft2(xc, norm="ortho")
        k0 = kspace[:, 0] + 1j * kspace[:, 1]
        m = mask[:, 0]
        kout = (1.0 - m) * k + m * k0
        xo = jnp.fft.ifft2(kout, norm="ortho")
        x = jnp.stack([xo.real, xo.imag], axis=1).astype(jnp.float32)
    return x


if __name__ == "__main__":
    B, C, H, W = 2, 2, 16, 16
    num_blocks, num_convs, num_filters = 2, 3, 8
    dilations = (1,) * num_convs

    key = jax.random.PRNGKey(0)
    kx, kk, km, kp = jax.random.split(key, 4)
    x = jax.random.normal(kx, (B, C, H, W), jnp.float32)
    kspace = jax.random.normal(kk, (B, C, H, W), jnp.float32)
    cols = (jax.random.uniform(km, (B, 1, 1, W)) < 0.4).astype(jnp.float32)
    mask = jnp.broadcast_to(cols, (B, 1, H, W)) + 0.0    # column-sampling mask

    params = init_params(kp, num_blocks, num_convs, num_filters, dilations)
    w_all, b_all, blocks_meta = pack_params(params)
    mr, mi = combined_dft_matrix(H, W)

    out = recnet_forward_pallas(x, kspace, mask, w_all, b_all, mr, mi,
                                blocks_meta=blocks_meta)
    out = jax.block_until_ready(out)

    ref = recnet_forward_ref(x, kspace, mask, params)
    # Tolerance absorbs MXU multi-pass f32 matmul error (conv-as-matmul and
    # DFT-as-matmul) vs. the jnp.fft / HIGHEST-precision reference.
    np.testing.assert_allclose(np.asarray(out), np.asarray(ref),
                               rtol=3e-2, atol=3e-2)
    print("KERNEL_OK")
</pallas_src>

<mosaic_0001>
module attributes {stable_mosaic.version = 11 : i64} {
  func.func @kernel(%arg0: i32, %arg1: memref<1x2x256xf32, #tpu.memory_space<vmem>>, %arg2: memref<1x2x256xf32, #tpu.memory_space<vmem>>, %arg3: memref<1x1x256xf32, #tpu.memory_space<vmem>>, %arg4: memref<6x9x8x8xf32, #tpu.memory_space<vmem>>, %arg5: memref<6x8x1xf32, #tpu.memory_space<vmem>>, %arg6: memref<1x9x1x256xf32, #tpu.memory_space<vmem>>, %arg7: memref<256x256xf32, #tpu.memory_space<vmem>>, %arg8: memref<256x256xf32, #tpu.memory_space<vmem>>, %arg9: memref<1x2x256xf32, #tpu.memory_space<vmem>>, %arg10: memref<8x512xf32, #tpu.memory_space<vmem>>) attributes {dimension_semantics = [#tpu.dimension_semantics<parallel>], iteration_bounds = array<i64: 2>, scalar_prefetch = 0 : i64, scratch_operands = 1 : i64, tpu.core_type = #tpu.core_type<tc>, window_params = [{transform_indices = @transform_0, window_bounds = array<i64: 1, 2, 256>}, {transform_indices = @transform_1, window_bounds = array<i64: 1, 2, 256>}, {transform_indices = @transform_2, window_bounds = array<i64: 1, 1, 256>}, {pipeline_mode = #tpu.pipeline_mode<synchronous>, transform_indices = @transform_3, window_bounds = array<i64: 6, 9, 8, 8>}, {pipeline_mode = #tpu.pipeline_mode<synchronous>, transform_indices = @transform_4, window_bounds = array<i64: 6, 8, 1>}, {pipeline_mode = #tpu.pipeline_mode<synchronous>, transform_indices = @transform_5, window_bounds = array<i64: 1, 9, 1, 256>}, {pipeline_mode = #tpu.pipeline_mode<synchronous>, transform_indices = @transform_6, window_bounds = array<i64: 256, 256>}, {pipeline_mode = #tpu.pipeline_mode<synchronous>, transform_indices = @transform_7, window_bounds = array<i64: 256, 256>}, {transform_indices = @transform_8, window_bounds = array<i64: 1, 2, 256>}]} {
    %c0 = arith.constant 0 : index
    %c0_0 = arith.constant 0 : index
    %c0_1 = arith.constant 0 : index
    %0 = vector.load %arg3[%c0, %c0_0, %c0_1] : memref<1x1x256xf32, #tpu.memory_space<vmem>>, vector<1x1x256xf32>
    %1 = vector.shape_cast %0 : vector<1x1x256xf32> to vector<1x256xf32>
    %cst = arith.constant 1.000000e+00 : f32
    %2 = vector.broadcast %cst : f32 to vector<1x256xf32>
    %3 = arith.subf %2, %1 : vector<1x256xf32>
    %c0_2 = arith.constant 0 : index
    %c0_3 = arith.constant 0 : index
    %c0_4 = arith.constant 0 : index
    %4 = vector.load %arg2[%c0_2, %c0_3, %c0_4] : memref<1x2x256xf32, #tpu.memory_space<vmem>>, vector<1x1x256xf32>
    %5 = vector.shape_cast %4 : vector<1x1x256xf32> to vector<1x256xf32>
    %c0_5 = arith.constant 0 : index
    %c1 = arith.constant 1 : index
    %c0_6 = arith.constant 0 : index
    %6 = vector.load %arg2[%c0_5, %c1, %c0_6] : memref<1x2x256xf32, #tpu.memory_space<vmem>>, vector<1x1x256xf32>
    %7 = vector.shape_cast %6 : vector<1x1x256xf32> to vector<1x256xf32>
    %cst_7 = arith.constant 0.000000e+00 : f32
    %8 = vector.broadcast %cst_7 : f32 to vector<8x512xf32>
    %c0_8 = arith.constant 0 : index
    %c0_9 = arith.constant 0 : index
    %9 = vector.load %arg10[%c0_8, %c0_9] : memref<8x512xf32, #tpu.memory_space<vmem>>, vector<8x512xf32>
    tpu.vector_store %arg10[%c0_8, %c0_9], %8 {strides = array<i32>} : memref<8x512xf32, #tpu.memory_space<vmem>>, vector<8x512xf32>,
    %c0_10 = arith.constant 0 : index
    %c0_11 = arith.constant 0 : index
    %c0_12 = arith.constant 0 : index
    %10 = vector.load %arg1[%c0_10, %c0_11, %c0_12] : memref<1x2x256xf32, #tpu.memory_space<vmem>>, vector<1x2x256xf32>
    %11 = vector.shape_cast %10 : vector<1x2x256xf32> to vector<2x256xf32>
    %c0_13 = arith.constant 0 : index
    %c0_14 = arith.constant 0 : index
    %12 = vector.load %arg10[%c0_13, %c0_14] : memref<8x512xf32, #tpu.memory_space<vmem>>, vector<2x256xf32>
    tpu.vector_store %arg10[%c0_13, %c0_14], %11 {strides = array<i32>} : memref<8x512xf32, #tpu.memory_space<vmem>>, vector<2x256xf32>,
    %c0_15 = arith.constant 0 : index
    %c256 = arith.constant 256 : index
    %13 = vector.load %arg10[%c0_15, %c256] : memref<8x512xf32, #tpu.memory_space<vmem>>, vector<2x256xf32>
    tpu.vector_store %arg10[%c0_15, %c256], %11 {strides = array<i32>} : memref<8x512xf32, #tpu.memory_space<vmem>>, vector<2x256xf32>,
    %cst_16 = arith.constant 0.000000e+00 : f32
    %14 = vector.broadcast %cst_16 : f32 to vector<8x256xf32>
    %c0_17 = arith.constant 0 : index
    %c239 = arith.constant 239 : index
    %15 = vector.load %arg10[%c0_17, %c239] : memref<8x512xf32, #tpu.memory_space<vmem>>, vector<8x256xf32>
    %c0_18 = arith.constant 0 : index
    %c0_19 = arith.constant 0 : index
    %c0_20 = arith.constant 0 : index
    %c0_21 = arith.constant 0 : index
    %16 = vector.load %arg6[%c0_18, %c0_19, %c0_20, %c0_21] : memref<1x9x1x256xf32, #tpu.memory_space<vmem>>, vector<1x1x1x256xf32>
    %17 = vector.shape_cast %16 : vector<1x1x1x256xf32> to vector<1x256xf32>
    %18 = vector.broadcast %17 : vector<1x256xf32> to vector<8x256xf32>
    %19 = arith.mulf %15, %18 : vector<8x256xf32>
    %c0_22 = arith.constant 0 : index
    %c0_23 = arith.constant 0 : index
    %c0_24 = arith.constant 0 : index
    %c0_25 = arith.constant 0 : index
    %20 = vector.load %arg4[%c0_22, %c0_23, %c0_24, %c0_25] : memref<6x9x8x8xf32, #tpu.memory_space<vmem>>, vector<1x1x8x8xf32>
    %21 = vector.shape_cast %20 : vector<1x1x8x8xf32> to vector<8x8xf32>
    %cst_26 = arith.constant dense<0.000000e+00> : vector<8x256xf32>
    %22 = tpu.matmul %21, %19, %cst_26 {dimension_numbers = #tpu.dot_dimension_numbers<[1], [0], [0], [1], [0, 0, 1, 1], [], []>} : vector<8x8xf32>, vector<8x256xf32>, vector<8x256xf32> -> vector<8x256xf32>
    %23 = arith.addf %14, %22 : vector<8x256xf32>
    %c0_27 = arith.constant 0 : index
    %c240 = arith.constant 240 : index
    %24 = vector.load %arg10[%c0_27, %c240] : memref<8x512xf32, #tpu.memory_space<vmem>>, vector<8x256xf32>
    %c0_28 = arith.constant 0 : index
    %c1_29 = arith.constant 1 : index
    %c0_30 = arith.constant 0 : index
    %c0_31 = arith.constant 0 : index
    %25 = vector.load %arg6[%c0_28, %c1_29, %c0_30, %c0_31] : memref<1x9x1x256xf32, #tpu.memory_space<vmem>>, vector<1x1x1x256xf32>
    %26 = vector.shape_cast %25 : vector<1x1x1x256xf32> to vector<1x256xf32>
    %27 = vector.broadcast %26 : vector<1x256xf32> to vector<8x256xf32>
    %28 = arith.mulf %24, %27 : vector<8x256xf32>
    %c0_32 = arith.constant 0 : index
    %c1_33 = arith.constant 1 : index
    %c0_34 = arith.constant 0 : index
    %c0_35 = arith.constant 0 : index
    %29 = vector.load %arg4[%c0_32, %c1_33, %c0_34, %c0_35] : memref<6x9x8x8xf32, #tpu.memory_space<vmem>>, vector<1x1x8x8xf32>
    %30 = vector.shape_cast %29 : vector<1x1x8x8xf32> to vector<8x8xf32>
    %cst_36 = arith.constant dense<0.000000e+00> : vector<8x256xf32>
    %31 = tpu.matmul %30, %28, %cst_36 {dimension_numbers = #tpu.dot_dimension_numbers<[1], [0], [0], [1], [0, 0, 1, 1], [], []>} : vector<8x8xf32>, vector<8x256xf32>, vector<8x256xf32> -> vector<8x256xf32>
    %32 = arith.addf %23, %31 : vector<8x256xf32>
    %c0_37 = arith.constant 0 : index
    %c241 = arith.constant 241 : index
    %33 = vector.load %arg10[%c0_37, %c241] : memref<8x512xf32, #tpu.memory_space<vmem>>, vector<8x256xf32>
    %c0_38 = arith.constant 0 : index
    %c2 = arith.constant 2 : index
    %c0_39 = arith.constant 0 : index
    %c0_40 = arith.constant 0 : index
    %34 = vector.load %arg6[%c0_38, %c2, %c0_39, %c0_40] : memref<1x9x1x256xf32, #tpu.memory_space<vmem>>, vector<1x1x1x256xf32>
    %35 = vector.shape_cast %34 : vector<1x1x1x256xf32> to vector<1x256xf32>
    %36 = vector.broadcast %35 : vector<1x256xf32> to vector<8x256xf32>
    %37 = arith.mulf %33, %36 : vector<8x256xf32>
    %c0_41 = arith.constant 0 : index
    %c2_42 = arith.constant 2 : index
    %c0_43 = arith.constant 0 : index
    %c0_44 = arith.constant 0 : index
    %38 = vector.load %arg4[%c0_41, %c2_42, %c0_43, %c0_44] : memref<6x9x8x8xf32, #tpu.memory_space<vmem>>, vector<1x1x8x8xf32>
    %39 = vector.shape_cast %38 : vector<1x1x8x8xf32> to vector<8x8xf32>
    %cst_45 = arith.constant dense<0.000000e+00> : vector<8x256xf32>
    %40 = tpu.matmul %39, %37, %cst_45 {dimension_numbers = #tpu.dot_dimension_numbers<[1], [0], [0], [1], [0, 0, 1, 1], [], []>} : vector<8x8xf32>, vector<8x256xf32>, vector<8x256xf32> -> vector<8x256xf32>
    %41 = arith.addf %32, %40 : vector<8x256xf32>
    %c0_46 = arith.constant 0 : index
    %c255 = arith.constant 255 : index
    %42 = vector.load %arg10[%c0_46, %c255] : memref<8x512xf32, #tpu.memory_space<vmem>>, vector<8x256xf32>
    %c0_47 = arith.constant 0 : index
    %c3 = arith.constant 3 : index
    %c0_48 = arith.constant 0 : index
    %c0_49 = arith.constant 0 : index
    %43 = vector.load %arg6[%c0_47, %c3, %c0_48, %c0_49] : memref<1x9x1x256xf32, #tpu.memory_space<vmem>>, vector<1x1x1x256xf32>
    %44 = vector.shape_cast %43 : vector<1x1x1x256xf32> to vector<1x256xf32>
    %45 = vector.broadcast %44 : vector<1x256xf32> to vector<8x256xf32>
    %46 = arith.mulf %42, %45 : vector<8x256xf32>
    %c0_50 = arith.constant 0 : index
    %c3_51 = arith.constant 3 : index
    %c0_52 = arith.constant 0 : index
    %c0_53 = arith.constant 0 : index
    %47 = vector.load %arg4[%c0_50, %c3_51, %c0_52, %c0_53] : memref<6x9x8x8xf32, #tpu.memory_space<vmem>>, vector<1x1x8x8xf32>
    %48 = vector.shape_cast %47 : vector<1x1x8x8xf32> to vector<8x8xf32>
    %cst_54 = arith.constant dense<0.000000e+00> : vector<8x256xf32>
    %49 = tpu.matmul %48, %46, %cst_54 {dimension_numbers = #tpu.dot_dimension_numbers<[1], [0], [0], [1], [0, 0, 1, 1], [], []>} : vector<8x8xf32>, vector<8x256xf32>, vector<8x256xf32> -> vector<8x256xf32>
    %50 = arith.addf %41, %49 : vector<8x256xf32>
    %c0_55 = arith.constant 0 : index
    %c0_56 = arith.constant 0 : index
    %51 = vector.load %arg10[%c0_55, %c0_56] : memref<8x512xf32, #tpu.memory_space<vmem>>, vector<8x256xf32>
    %c0_57 = arith.constant 0 : index
    %c4 = arith.constant 4 : index
    %c0_58 = arith.constant 0 : index
    %c0_59 = arith.constant 0 : index
    %52 = vector.load %arg4[%c0_57, %c4, %c0_58, %c0_59] : memref<6x9x8x8xf32, #tpu.memory_space<vmem>>, vector<1x1x8x8xf32>
    %53 = vector.shape_cast %52 : vector<1x1x8x8xf32> to vector<8x8xf32>
    %cst_60 = arith.constant dense<0.000000e+00> : vector<8x256xf32>
    %54 = tpu.matmul %53, %51, %cst_60 {dimension_numbers = #tpu.dot_dimension_numbers<[1], [0], [0], [1], [0, 0, 1, 1], [], []>} : vector<8x8xf32>, vector<8x256xf32>, vector<8x256xf32> -> vector<8x256xf32>
    %55 = arith.addf %50, %54 : vector<8x256xf32>
    %c0_61 = arith.constant 0 : index
    %c1_62 = arith.constant 1 : index
    %56 = vector.load %arg10[%c0_61, %c1_62] : memref<8x512xf32, #tpu.memory_space<vmem>>, vector<8x256xf32>
    %c0_63 = arith.constant 0 : index
    %c5 = arith.constant 5 : index
    %c0_64 = arith.constant 0 : index
    %c0_65 = arith.constant 0 : index
    %57 = vector.load %arg6[%c0_63, %c5, %c0_64, %c0_65] : memref<1x9x1x256xf32, #tpu.memory_space<vmem>>, vector<1x1x1x256xf32>
    %58 = vector.shape_cast %57 : vector<1x1x1x256xf32> to vector<1x256xf32>
    %59 = vector.broadcast %58 : vector<1x256xf32> to vector<8x256xf32>
    %60 = arith.mulf %56, %59 : vector<8x256xf32>
    %c0_66 = arith.constant 0 : index
    %c5_67 = arith.constant 5 : index
    %c0_68 = arith.constant 0 : index
    %c0_69 = arith.constant 0 : index
    %61 = vector.load %arg4[%c0_66, %c5_67, %c0_68, %c0_69] : memref<6x9x8x8xf32, #tpu.memory_space<vmem>>, vector<1x1x8x8xf32>
    %62 = vector.shape_cast %61 : vector<1x1x8x8xf32> to vector<8x8xf32>
    %cst_70 = arith.constant dense<0.000000e+00> : vector<8x256xf32>
    %63 = tpu.matmul %62, %60, %cst_70 {dimension_numbers = #tpu.dot_dimension_numbers<[1], [0], [0], [1], [0, 0, 1, 1], [], []>} : vector<8x8xf32>, vector<8x256xf32>, vector<8x256xf32> -> vector<8x256xf32>
    %64 = arith.addf %55, %63 : vector<8x256xf32>
    %c0_71 = arith.constant 0 : index
    %c15 = arith.constant 15 : index
    %65 = vector.load %arg10[%c0_71, %c15] : memref<8x512xf32, #tpu.memory_space<vmem>>, vector<8x256xf32>
    %c0_72 = arith.constant 0 : index
    %c6 = arith.constant 6 : index
    %c0_73 = arith.constant 0 : index
    %c0_74 = arith.constant 0 : index
    %66 = vector.load %arg6[%c0_72, %c6, %c0_73, %c0_74] : memref<1x9x1x256xf32, #tpu.memory_space<vmem>>, vector<1x1x1x256xf32>
    %67 = vector.shape_cast %66 : vector<1x1x1x256xf32> to vector<1x256xf32>
    %68 = vector.broadcast %67 : vector<1x256xf32> to vector<8x256xf32>
    %69 = arith.mulf %65, %68 : vector<8x256xf32>
    %c0_75 = arith.constant 0 : index
    %c6_76 = arith.constant 6 : index
    %c0_77 = arith.constant 0 : index
    %c0_78 = arith.constant 0 : index
    %70 = vector.load %arg4[%c0_75, %c6_76, %c0_77, %c0_78] : memref<6x9x8x8xf32, #tpu.memory_space<vmem>>, vector<1x1x8x8xf32>
    %71 = vector.shape_cast %70 : vector<1x1x8x8xf32> to vector<8x8xf32>
    %cst_79 = arith.constant dense<0.000000e+00> : vector<8x256xf32>
    %72 = tpu.matmul %71, %69, %cst_79 {dimension_numbers = #tpu.dot_dimension_numbers<[1], [0], [0], [1], [0, 0, 1, 1], [], []>} : vector<8x8xf32>, vector<8x256xf32>, vector<8x256xf32> -> vector<8x256xf32>
    %73 = arith.addf %64, %72 : vector<8x256xf32>
    %c0_80 = arith.constant 0 : index
    %c16 = arith.constant 16 : index
    %74 = vector.load %arg10[%c0_80, %c16] : memref<8x512xf32, #tpu.memory_space<vmem>>, vector<8x256xf32>
    %c0_81 = arith.constant 0 : index
    %c7 = arith.constant 7 : index
    %c0_82 = arith.constant 0 : index
    %c0_83 = arith.constant 0 : index
    %75 = vector.load %arg6[%c0_81, %c7, %c0_82, %c0_83] : memref<1x9x1x256xf32, #tpu.memory_space<vmem>>, vector<1x1x1x256xf32>
    %76 = vector.shape_cast %75 : vector<1x1x1x256xf32> to vector<1x256xf32>
    %77 = vector.broadcast %76 : vector<1x256xf32> to vector<8x256xf32>
    %78 = arith.mulf %74, %77 : vector<8x256xf32>
    %c0_84 = arith.constant 0 : index
    %c7_85 = arith.constant 7 : index
    %c0_86 = arith.constant 0 : index
    %c0_87 = arith.constant 0 : index
    %79 = vector.load %arg4[%c0_84, %c7_85, %c0_86, %c0_87] : memref<6x9x8x8xf32, #tpu.memory_space<vmem>>, vector<1x1x8x8xf32>
    %80 = vector.shape_cast %79 : vector<1x1x8x8xf32> to vector<8x8xf32>
    %cst_88 = arith.constant dense<0.000000e+00> : vector<8x256xf32>
    %81 = tpu.matmul %80, %78, %cst_88 {dimension_numbers = #tpu.dot_dimension_numbers<[1], [0], [0], [1], [0, 0, 1, 1], [], []>} : vector<8x8xf32>, vector<8x256xf32>, vector<8x256xf32> -> vector<8x256xf32>
    %82 = arith.addf %73, %81 : vector<8x256xf32>
    %c0_89 = arith.constant 0 : index
    %c17 = arith.constant 17 : index
    %83 = vector.load %arg10[%c0_89, %c17] : memref<8x512xf32, #tpu.memory_space<vmem>>, vector<8x256xf32>
    %c0_90 = arith.constant 0 : index
    %c8 = arith.constant 8 : index
    %c0_91 = arith.constant 0 : index
    %c0_92 = arith.constant 0 : index
    %84 = vector.load %arg6[%c0_90, %c8, %c0_91, %c0_92] : memref<1x9x1x256xf32, #tpu.memory_space<vmem>>, vector<1x1x1x256xf32>
    %85 = vector.shape_cast %84 : vector<1x1x1x256xf32> to vector<1x256xf32>
    %86 = vector.broadcast %85 : vector<1x256xf32> to vector<8x256xf32>
    %87 = arith.mulf %83, %86 : vector<8x256xf32>
    %c0_93 = arith.constant 0 : index
    %c8_94 = arith.constant 8 : index
    %c0_95 = arith.constant 0 : index
    %c0_96 = arith.constant 0 : index
    %88 = vector.load %arg4[%c0_93, %c8_94, %c0_95, %c0_96] : memref<6x9x8x8xf32, #tpu.memory_space<vmem>>, vector<1x1x8x8xf32>
    %89 = vector.shape_cast %88 : vector<1x1x8x8xf32> to vector<8x8xf32>
    %cst_97 = arith.constant dense<0.000000e+00> : vector<8x256xf32>
    %90 = tpu.matmul %89, %87, %cst_97 {dimension_numbers = #tpu.dot_dimension_numbers<[1], [0], [0], [1], [0, 0, 1, 1], [], []>} : vector<8x8xf32>, vector<8x256xf32>, vector<8x256xf32> -> vector<8x256xf32>
    %91 = arith.addf %82, %90 : vector<8x256xf32>
    %c0_98 = arith.constant 0 : index
    %c0_99 = arith.constant 0 : index
    %c0_100 = arith.constant 0 : index
    %92 = vector.load %arg5[%c0_98, %c0_99, %c0_100] : memref<6x8x1xf32, #tpu.memory_space<vmem>>, vector<1x8x1xf32>
    %93 = vector.shape_cast %92 : vector<1x8x1xf32> to vector<8x1xf32>
    %94 = vector.broadcast %93 : vector<8x1xf32> to vector<8x256xf32>
    %95 = arith.addf %91, %94 : vector<8x256xf32>
    %cst_101 = arith.constant 0.000000e+00 : f32
    %96 = vector.broadcast %cst_101 : f32 to vector<8x256xf32>
    %97 = arith.cmpf oge, %95, %96 : vector<8x256xf32>
    %cst_102 = arith.constant 0.00999999977 : f32
    %98 = vector.broadcast %cst_102 : f32 to vector<8x256xf32>
    %99 = arith.mulf %98, %95 : vector<8x256xf32>
    %100 = arith.select %97, %95, %99 : vector<8x256xi1>, vector<8x256xf32>
    %c0_103 = arith.constant 0 : index
    %c0_104 = arith.constant 0 : index
    %101 = vector.load %arg10[%c0_103, %c0_104] : memref<8x512xf32, #tpu.memory_space<vmem>>, vector<8x256xf32>
    tpu.vector_store %arg10[%c0_103, %c0_104], %100 {strides = array<i32>} : memref<8x512xf32, #tpu.memory_space<vmem>>, vector<8x256xf32>,
    %c0_105 = arith.constant 0 : index
    %c256_106 = arith.constant 256 : index
    %102 = vector.load %arg10[%c0_105, %c256_106] : memref<8x512xf32, #tpu.memory_space<vmem>>, vector<8x256xf32>
    tpu.vector_store %arg10[%c0_105, %c256_106], %100 {strides = array<i32>} : memref<8x512xf32, #tpu.memory_space<vmem>>, vector<8x256xf32>,
    %cst_107 = arith.constant 0.000000e+00 : f32
    %103 = vector.broadcast %cst_107 : f32 to vector<8x256xf32>
    %c0_108 = arith.constant 0 : index
    %c239_109 = arith.constant 239 : index
    %104 = vector.load %arg10[%c0_108, %c239_109] : memref<8x512xf32, #tpu.memory_space<vmem>>, vector<8x256xf32>
    %c0_110 = arith.constant 0 : index
    %c0_111 = arith.constant 0 : index
    %c0_112 = arith.constant 0 : index
    %c0_113 = arith.constant 0 : index
    %105 = vector.load %arg6[%c0_110, %c0_111, %c0_112, %c0_113] : memref<1x9x1x256xf32, #tpu.memory_space<vmem>>, vector<1x1x1x256xf32>
    %106 = vector.shape_cast %105 : vector<1x1x1x256xf32> to vector<1x256xf32>
    %107 = vector.broadcast %106 : vector<1x256xf32> to vector<8x256xf32>
    %108 = arith.mulf %104, %107 : vector<8x256xf32>
    %c1_114 = arith.constant 1 : index
    %c0_115 = arith.constant 0 : index
    %c0_116 = arith.constant 0 : index
    %c0_117 = arith.constant 0 : index
    %109 = vector.load %arg4[%c1_114, %c0_115, %c0_116, %c0_117] : memref<6x9x8x8xf32, #tpu.memory_space<vmem>>, vector<1x1x8x8xf32>
    %110 = vector.shape_cast %109 : vector<1x1x8x8xf32> to vector<8x8xf32>
    %cst_118 = arith.constant dense<0.000000e+00> : vector<8x256xf32>
    %111 = tpu.matmul %110, %108, %cst_118 {dimension_numbers = #tpu.dot_dimension_numbers<[1], [0], [0], [1], [0, 0, 1, 1], [], []>} : vector<8x8xf32>, vector<8x256xf32>, vector<8x256xf32> -> vector<8x256xf32>
    %112 = arith.addf %103, %111 : vector<8x256xf32>
    %c0_119 = arith.constant 0 : index
    %c240_120 = arith.constant 240 : index
    %113 = vector.load %arg10[%c0_119, %c240_120] : memref<8x512xf32, #tpu.memory_space<vmem>>, vector<8x256xf32>
    %c0_121 = arith.constant 0 : index
    %c1_122 = arith.constant 1 : index
    %c0_123 = arith.constant 0 : index
    %c0_124 = arith.constant 0 : index
    %114 = vector.load %arg6[%c0_121, %c1_122, %c0_123, %c0_124] : memref<1x9x1x256xf32, #tpu.memory_space<vmem>>, vector<1x1x1x256xf32>
    %115 = vector.shape_cast %114 : vector<1x1x1x256xf32> to vector<1x256xf32>
    %116 = vector.broadcast %115 : vector<1x256xf32> to vector<8x256xf32>
    %117 = arith.mulf %113, %116 : vector<8x256xf32>
    %c1_125 = arith.constant 1 : index
    %c1_126 = arith.constant 1 : index
    %c0_127 = arith.constant 0 : index
    %c0_128 = arith.constant 0 : index
    %118 = vector.load %arg4[%c1_125, %c1_126, %c0_127, %c0_128] : memref<6x9x8x8xf32, #tpu.memory_space<vmem>>, vector<1x1x8x8xf32>
    %119 = vector.shape_cast %118 : vector<1x1x8x8xf32> to vector<8x8xf32>
    %cst_129 = arith.constant dense<0.000000e+00> : vector<8x256xf32>
    %120 = tpu.matmul %119, %117, %cst_129 {dimension_numbers = #tpu.dot_dimension_numbers<[1], [0], [0], [1], [0, 0, 1, 1], [], []>} : vector<8x8xf32>, vector<8x256xf32>, vector<8x256xf32> -> vector<8x256xf32>
    %121 = arith.addf %112, %120 : vector<8x256xf32>
    %c0_130 = arith.constant 0 : index
    %c241_131 = arith.constant 241 : index
    %122 = vector.load %arg10[%c0_130, %c241_131] : memref<8x512xf32, #tpu.memory_space<vmem>>, vector<8x256xf32>
    %c0_132 = arith.constant 0 : index
    %c2_133 = arith.constant 2 : index
    %c0_134 = arith.constant 0 : index
    %c0_135 = arith.constant 0 : index
    %123 = vector.load %arg6[%c0_132, %c2_133, %c0_134, %c0_135] : memref<1x9x1x256xf32, #tpu.memory_space<vmem>>, vector<1x1x1x256xf32>
    %124 = vector.shape_cast %123 : vector<1x1x1x256xf32> to vector<1x256xf32>
    %125 = vector.broadcast %124 : vector<1x256xf32> to vector<8x256xf32>
    %126 = arith.mulf %122, %125 : vector<8x256xf32>
    %c1_136 = arith.constant 1 : index
    %c2_137 = arith.constant 2 : index
    %c0_138 = arith.constant 0 : index
    %c0_139 = arith.constant 0 : index
    %127 = vector.load %arg4[%c1_136, %c2_137, %c0_138, %c0_139] : memref<6x9x8x8xf32, #tpu.memory_space<vmem>>, vector<1x1x8x8xf32>
    %128 = vector.shape_cast %127 : vector<1x1x8x8xf32> to vector<8x8xf32>
    %cst_140 = arith.constant dense<0.000000e+00> : vector<8x256xf32>
    %129 = tpu.matmul %128, %126, %cst_140 {dimension_numbers = #tpu.dot_dimension_numbers<[1], [0], [0], [1], [0, 0, 1, 1], [], []>} : vector<8x8xf32>, vector<8x256xf32>, vector<8x256xf32> -> vector<8x256xf32>
    %130 = arith.addf %121, %129 : vector<8x256xf32>
    %c0_141 = arith.constant 0 : index
    %c255_142 = arith.constant 255 : index
    %131 = vector.load %arg10[%c0_141, %c255_142] : memref<8x512xf32, #tpu.memory_space<vmem>>, vector<8x256xf32>
    %c0_143 = arith.constant 0 : index
    %c3_144 = arith.constant 3 : index
    %c0_145 = arith.constant 0 : index
    %c0_146 = arith.constant 0 : index
    %132 = vector.load %arg6[%c0_143, %c3_144, %c0_145, %c0_146] : memref<1x9x1x256xf32, #tpu.memory_space<vmem>>, vector<1x1x1x256xf32>
    %133 = vector.shape_cast %132 : vector<1x1x1x256xf32> to vector<1x256xf32>
    %134 = vector.broadcast %133 : vector<1x256xf32> to vector<8x256xf32>
    %135 = arith.mulf %131, %134 : vector<8x256xf32>
    %c1_147 = arith.constant 1 : index
    %c3_148 = arith.constant 3 : index
    %c0_149 = arith.constant 0 : index
    %c0_150 = arith.constant 0 : index
    %136 = vector.load %arg4[%c1_147, %c3_148, %c0_149, %c0_150] : memref<6x9x8x8xf32, #tpu.memory_space<vmem>>, vector<1x1x8x8xf32>
    %137 = vector.shape_cast %136 : vector<1x1x8x8xf32> to vector<8x8xf32>
    %cst_151 = arith.constant dense<0.000000e+00> : vector<8x256xf32>
    %138 = tpu.matmul %137, %135, %cst_151 {dimension_numbers = #tpu.dot_dimension_numbers<[1], [0], [0], [1], [0, 0, 1, 1], [], []>} : vector<8x8xf32>, vector<8x256xf32>, vector<8x256xf32> -> vector<8x256xf32>
    %139 = arith.addf %130, %138 : vector<8x256xf32>
    %c0_152 = arith.constant 0 : index
    %c0_153 = arith.constant 0 : index
    %140 = vector.load %arg10[%c0_152, %c0_153] : memref<8x512xf32, #tpu.memory_space<vmem>>, vector<8x256xf32>
    %c1_154 = arith.constant 1 : index
    %c4_155 = arith.constant 4 : index
    %c0_156 = arith.constant 0 : index
    %c0_157 = arith.constant 0 : index
    %141 = vector.load %arg4[%c1_154, %c4_155, %c0_156, %c0_157] : memref<6x9x8x8xf32, #tpu.memory_space<vmem>>, vector<1x1x8x8xf32>
    %142 = vector.shape_cast %141 : vector<1x1x8x8xf32> to vector<8x8xf32>
    %cst_158 = arith.constant dense<0.000000e+00> : vector<8x256xf32>
    %143 = tpu.matmul %142, %140, %cst_158 {dimension_numbers = #tpu.dot_dimension_numbers<[1], [0], [0], [1], [0, 0, 1, 1], [], []>} : vector<8x8xf32>, vector<8x256xf32>, vector<8x256xf32> -> vector<8x256xf32>
    %144 = arith.addf %139, %143 : vector<8x256xf32>
    %c0_159 = arith.constant 0 : index
    %c1_160 = arith.constant 1 : index
    %145 = vector.load %arg10[%c0_159, %c1_160] : memref<8x512xf32, #tpu.memory_space<vmem>>, vector<8x256xf32>
    %c0_161 = arith.constant 0 : index
    %c5_162 = arith.constant 5 : index
    %c0_163 = arith.constant 0 : index
    %c0_164 = arith.constant 0 : index
    %146 = vector.load %arg6[%c0_161, %c5_162, %c0_163, %c0_164] : memref<1x9x1x256xf32, #tpu.memory_space<vmem>>, vector<1x1x1x256xf32>
    %147 = vector.shape_cast %146 : vector<1x1x1x256xf32> to vector<1x256xf32>
    %148 = vector.broadcast %147 : vector<1x256xf32> to vector<8x256xf32>
    %149 = arith.mulf %145, %148 : vector<8x256xf32>
    %c1_165 = arith.constant 1 : index
    %c5_166 = arith.constant 5 : index
    %c0_167 = arith.constant 0 : index
    %c0_168 = arith.constant 0 : index
    %150 = vector.load %arg4[%c1_165, %c5_166, %c0_167, %c0_168] : memref<6x9x8x8xf32, #tpu.memory_space<vmem>>, vector<1x1x8x8xf32>
    %151 = vector.shape_cast %150 : vector<1x1x8x8xf32> to vector<8x8xf32>
    %cst_169 = arith.constant dense<0.000000e+00> : vector<8x256xf32>
    %152 = tpu.matmul %151, %149, %cst_169 {dimension_numbers = #tpu.dot_dimension_numbers<[1], [0], [0], [1], [0, 0, 1, 1], [], []>} : vector<8x8xf32>, vector<8x256xf32>, vector<8x256xf32> -> vector<8x256xf32>
    %153 = arith.addf %144, %152 : vector<8x256xf32>
    %c0_170 = arith.constant 0 : index
    %c15_171 = arith.constant 15 : index
    %154 = vector.load %arg10[%c0_170, %c15_171] : memref<8x512xf32, #tpu.memory_space<vmem>>, vector<8x256xf32>
    %c0_172 = arith.constant 0 : index
    %c6_173 = arith.constant 6 : index
    %c0_174 = arith.constant 0 : index
    %c0_175 = arith.constant 0 : index
    %155 = vector.load %arg6[%c0_172, %c6_173, %c0_174, %c0_175] : memref<1x9x1x256xf32, #tpu.memory_space<vmem>>, vector<1x1x1x256xf32>
    %156 = vector.shape_cast %155 : vector<1x1x1x256xf32> to vector<1x256xf32>
    %157 = vector.broadcast %156 : vector<1x256xf32> to vector<8x256xf32>
    %158 = arith.mulf %154, %157 : vector<8x256xf32>
    %c1_176 = arith.constant 1 : index
    %c6_177 = arith.constant 6 : index
    %c0_178 = arith.constant 0 : index
    %c0_179 = arith.constant 0 : index
    %159 = vector.load %arg4[%c1_176, %c6_177, %c0_178, %c0_179] : memref<6x9x8x8xf32, #tpu.memory_space<vmem>>, vector<1x1x8x8xf32>
    %160 = vector.shape_cast %159 : vector<1x1x8x8xf32> to vector<8x8xf32>
    %cst_180 = arith.constant dense<0.000000e+00> : vector<8x256xf32>
    %161 = tpu.matmul %160, %158, %cst_180 {dimension_numbers = #tpu.dot_dimension_numbers<[1], [0], [0], [1], [0, 0, 1, 1], [], []>} : vector<8x8xf32>, vector<8x256xf32>, vector<8x256xf32> -> vector<8x256xf32>
    %162 = arith.addf %153, %161 : vector<8x256xf32>
    %c0_181 = arith.constant 0 : index
    %c16_182 = arith.constant 16 : index
    %163 = vector.load %arg10[%c0_181, %c16_182] : memref<8x512xf32, #tpu.memory_space<vmem>>, vector<8x256xf32>
    %c0_183 = arith.constant 0 : index
    %c7_184 = arith.constant 7 : index
    %c0_185 = arith.constant 0 : index
    %c0_186 = arith.constant 0 : index
    %164 = vector.load %arg6[%c0_183, %c7_184, %c0_185, %c0_186] : memref<1x9x1x256xf32, #tpu.memory_space<vmem>>, vector<1x1x1x256xf32>
    %165 = vector.shape_cast %164 : vector<1x1x1x256xf32> to vector<1x256xf32>
    %166 = vector.broadcast %165 : vector<1x256xf32> to vector<8x256xf32>
    %167 = arith.mulf %163, %166 : vector<8x256xf32>
    %c1_187 = arith.constant 1 : index
    %c7_188 = arith.constant 7 : index
    %c0_189 = arith.constant 0 : index
    %c0_190 = arith.constant 0 : index
    %168 = vector.load %arg4[%c1_187, %c7_188, %c0_189, %c0_190] : memref<6x9x8x8xf32, #tpu.memory_space<vmem>>, vector<1x1x8x8xf32>
    %169 = vector.shape_cast %168 : vector<1x1x8x8xf32> to vector<8x8xf32>
    %cst_191 = arith.constant dense<0.000000e+00> : vector<8x256xf32>
    %170 = tpu.matmul %169, %167, %cst_191 {dimension_numbers = #tpu.dot_dimension_numbers<[1], [0], [0], [1], [0, 0, 1, 1], [], []>} : vector<8x8xf32>, vector<8x256xf32>, vector<8x256xf32> -> vector<8x256xf32>
    %171 = arith.addf %162, %170 : vector<8x256xf32>
    %c0_192 = arith.constant 0 : index
    %c17_193 = arith.constant 17 : index
    %172 = vector.load %arg10[%c0_192, %c17_193] : memref<8x512xf32, #tpu.memory_space<vmem>>, vector<8x256xf32>
    %c0_194 = arith.constant 0 : index
    %c8_195 = arith.constant 8 : index
    %c0_196 = arith.constant 0 : index
    %c0_197 = arith.constant 0 : index
    %173 = vector.load %arg6[%c0_194, %c8_195, %c0_196, %c0_197] : memref<1x9x1x256xf32, #tpu.memory_space<vmem>>, vector<1x1x1x256xf32>
    %174 = vector.shape_cast %173 : vector<1x1x1x256xf32> to vector<1x256xf32>
    %175 = vector.broadcast %174 : vector<1x256xf32> to vector<8x256xf32>
    %176 = arith.mulf %172, %175 : vector<8x256xf32>
    %c1_198 = arith.constant 1 : index
    %c8_199 = arith.constant 8 : index
    %c0_200 = arith.constant 0 : index
    %c0_201 = arith.constant 0 : index
    %177 = vector.load %arg4[%c1_198, %c8_199, %c0_200, %c0_201] : memref<6x9x8x8xf32, #tpu.memory_space<vmem>>, vector<1x1x8x8xf32>
    %178 = vector.shape_cast %177 : vector<1x1x8x8xf32> to vector<8x8xf32>
    %cst_202 = arith.constant dense<0.000000e+00> : vector<8x256xf32>
    %179 = tpu.matmul %178, %176, %cst_202 {dimension_numbers = #tpu.dot_dimension_numbers<[1], [0], [0], [1], [0, 0, 1, 1], [], []>} : vector<8x8xf32>, vector<8x256xf32>, vector<8x256xf32> -> vector<8x256xf32>
    %180 = arith.addf %171, %179 : vector<8x256xf32>
    %c1_203 = arith.constant 1 : index
    %c0_204 = arith.constant 0 : index
    %c0_205 = arith.constant 0 : index
    %181 = vector.load %arg5[%c1_203, %c0_204, %c0_205] : memref<6x8x1xf32, #tpu.memory_space<vmem>>, vector<1x8x1xf32>
    %182 = vector.shape_cast %181 : vector<1x8x1xf32> to vector<8x1xf32>
    %183 = vector.broadcast %182 : vector<8x1xf32> to vector<8x256xf32>
    %184 = arith.addf %180, %183 : vector<8x256xf32>
    %cst_206 = arith.constant 0.000000e+00 : f32
    %185 = vector.broadcast %cst_206 : f32 to vector<8x256xf32>
    %186 = arith.cmpf oge, %184, %185 : vector<8x256xf32>
    %cst_207 = arith.constant 0.00999999977 : f32
    %187 = vector.broadcast %cst_207 : f32 to vector<8x256xf32>
    %188 = arith.mulf %187, %184 : vector<8x256xf32>
    %189 = arith.select %186, %184, %188 : vector<8x256xi1>, vector<8x256xf32>
    %c0_208 = arith.constant 0 : index
    %c0_209 = arith.constant 0 : index
    %190 = vector.load %arg10[%c0_208, %c0_209] : memref<8x512xf32, #tpu.memory_space<vmem>>, vector<8x256xf32>
    tpu.vector_store %arg10[%c0_208, %c0_209], %189 {strides = array<i32>} : memref<8x512xf32, #tpu.memory_space<vmem>>, vector<8x256xf32>,
    %c0_210 = arith.constant 0 : index
    %c256_211 = arith.constant 256 : index
    %191 = vector.load %arg10[%c0_210, %c256_211] : memref<8x512xf32, #tpu.memory_space<vmem>>, vector<8x256xf32>
    tpu.vector_store %arg10[%c0_210, %c256_211], %189 {strides = array<i32>} : memref<8x512xf32, #tpu.memory_space<vmem>>, vector<8x256xf32>,
    %cst_212 = arith.constant 0.000000e+00 : f32
    %192 = vector.broadcast %cst_212 : f32 to vector<8x256xf32>
    %c0_213 = arith.constant 0 : index
    %c239_214 = arith.constant 239 : index
    %193 = vector.load %arg10[%c0_213, %c239_214] : memref<8x512xf32, #tpu.memory_space<vmem>>, vector<8x256xf32>
    %c0_215 = arith.constant 0 : index
    %c0_216 = arith.constant 0 : index
    %c0_217 = arith.constant 0 : index
    %c0_218 = arith.constant 0 : index
    %194 = vector.load %arg6[%c0_215, %c0_216, %c0_217, %c0_218] : memref<1x9x1x256xf32, #tpu.memory_space<vmem>>, vector<1x1x1x256xf32>
    %195 = vector.shape_cast %194 : vector<1x1x1x256xf32> to vector<1x256xf32>
    %196 = vector.broadcast %195 : vector<1x256xf32> to vector<8x256xf32>
    %197 = arith.mulf %193, %196 : vector<8x256xf32>
    %c2_219 = arith.constant 2 : index
    %c0_220 = arith.constant 0 : index
    %c0_221 = arith.constant 0 : index
    %c0_222 = arith.constant 0 : index
    %198 = vector.load %arg4[%c2_219, %c0_220, %c0_221, %c0_222] : memref<6x9x8x8xf32, #tpu.memory_space<vmem>>, vector<1x1x8x8xf32>
    %199 = vector.shape_cast %198 : vector<1x1x8x8xf32> to vector<8x8xf32>
    %cst_223 = arith.constant dense<0.000000e+00> : vector<8x256xf32>
    %200 = tpu.matmul %199, %197, %cst_223 {dimension_numbers = #tpu.dot_dimension_numbers<[1], [0], [0], [1], [0, 0, 1, 1], [], []>} : vector<8x8xf32>, vector<8x256xf32>, vector<8x256xf32> -> vector<8x256xf32>
    %201 = arith.addf %192, %200 : vector<8x256xf32>
    %c0_224 = arith.constant 0 : index
    %c240_225 = arith.constant 240 : index
    %202 = vector.load %arg10[%c0_224, %c240_225] : memref<8x512xf32, #tpu.memory_space<vmem>>, vector<8x256xf32>
    %c0_226 = arith.constant 0 : index
    %c1_227 = arith.constant 1 : index
    %c0_228 = arith.constant 0 : index
    %c0_229 = arith.constant 0 : index
    %203 = vector.load %arg6[%c0_226, %c1_227, %c0_228, %c0_229] : memref<1x9x1x256xf32, #tpu.memory_space<vmem>>, vector<1x1x1x256xf32>
    %204 = vector.shape_cast %203 : vector<1x1x1x256xf32> to vector<1x256xf32>
    %205 = vector.broadcast %204 : vector<1x256xf32> to vector<8x256xf32>
    %206 = arith.mulf %202, %205 : vector<8x256xf32>
    %c2_230 = arith.constant 2 : index
    %c1_231 = arith.constant 1 : index
    %c0_232 = arith.constant 0 : index
    %c0_233 = arith.constant 0 : index
    %207 = vector.load %arg4[%c2_230, %c1_231, %c0_232, %c0_233] : memref<6x9x8x8xf32, #tpu.memory_space<vmem>>, vector<1x1x8x8xf32>
    %208 = vector.shape_cast %207 : vector<1x1x8x8xf32> to vector<8x8xf32>
    %cst_234 = arith.constant dense<0.000000e+00> : vector<8x256xf32>
    %209 = tpu.matmul %208, %206, %cst_234 {dimension_numbers = #tpu.dot_dimension_numbers<[1], [0], [0], [1], [0, 0, 1, 1], [], []>} : vector<8x8xf32>, vector<8x256xf32>, vector<8x256xf32> -> vector<8x256xf32>
    %210 = arith.addf %201, %209 : vector<8x256xf32>
    %c0_235 = arith.constant 0 : index
    %c241_236 = arith.constant 241 : index
    %211 = vector.load %arg10[%c0_235, %c241_236] : memref<8x512xf32, #tpu.memory_space<vmem>>, vector<8x256xf32>
    %c0_237 = arith.constant 0 : index
    %c2_238 = arith.constant 2 : index
    %c0_239 = arith.constant 0 : index
    %c0_240 = arith.constant 0 : index
    %212 = vector.load %arg6[%c0_237, %c2_238, %c0_239, %c0_240] : memref<1x9x1x256xf32, #tpu.memory_space<vmem>>, vector<1x1x1x256xf32>
    %213 = vector.shape_cast %212 : vector<1x1x1x256xf32> to vector<1x256xf32>
    %214 = vector.broadcast %213 : vector<1x256xf32> to vector<8x256xf32>
    %215 = arith.mulf %211, %214 : vector<8x256xf32>
    %c2_241 = arith.constant 2 : index
    %c2_242 = arith.constant 2 : index
    %c0_243 = arith.constant 0 : index
    %c0_244 = arith.constant 0 : index
    %216 = vector.load %arg4[%c2_241, %c2_242, %c0_243, %c0_244] : memref<6x9x8x8xf32, #tpu.memory_space<vmem>>, vector<1x1x8x8xf32>
    %217 = vector.shape_cast %216 : vector<1x1x8x8xf32> to vector<8x8xf32>
    %cst_245 = arith.constant dense<0.000000e+00> : vector<8x256xf32>
    %218 = tpu.matmul %217, %215, %cst_245 {dimension_numbers = #tpu.dot_dimension_numbers<[1], [0], [0], [1], [0, 0, 1, 1], [], []>} : vector<8x8xf32>, vector<8x256xf32>, vector<8x256xf32> -> vector<8x256xf32>
    %219 = arith.addf %210, %218 : vector<8x256xf32>
    %c0_246 = arith.constant 0 : index
    %c255_247 = arith.constant 255 : index
    %220 = vector.load %arg10[%c0_246, %c255_247] : memref<8x512xf32, #tpu.memory_space<vmem>>, vector<8x256xf32>
    %c0_248 = arith.constant 0 : index
    %c3_249 = arith.constant 3 : index
    %c0_250 = arith.constant 0 : index
    %c0_251 = arith.constant 0 : index
    %221 = vector.load %arg6[%c0_248, %c3_249, %c0_250, %c0_251] : memref<1x9x1x256xf32, #tpu.memory_space<vmem>>, vector<1x1x1x256xf32>
    %222 = vector.shape_cast %221 : vector<1x1x1x256xf32> to vector<1x256xf32>
    %223 = vector.broadcast %222 : vector<1x256xf32> to vector<8x256xf32>
    %224 = arith.mulf %220, %223 : vector<8x256xf32>
    %c2_252 = arith.constant 2 : index
    %c3_253 = arith.constant 3 : index
    %c0_254 = arith.constant 0 : index
    %c0_255 = arith.constant 0 : index
    %225 = vector.load %arg4[%c2_252, %c3_253, %c0_254, %c0_255] : memref<6x9x8x8xf32, #tpu.memory_space<vmem>>, vector<1x1x8x8xf32>
    %226 = vector.shape_cast %225 : vector<1x1x8x8xf32> to vector<8x8xf32>
    %cst_256 = arith.constant dense<0.000000e+00> : vector<8x256xf32>
    %227 = tpu.matmul %226, %224, %cst_256 {dimension_numbers = #tpu.dot_dimension_numbers<[1], [0], [0], [1], [0, 0, 1, 1], [], []>} : vector<8x8xf32>, vector<8x256xf32>, vector<8x256xf32> -> vector<8x256xf32>
    %228 = arith.addf %219, %227 : vector<8x256xf32>
    %c0_257 = arith.constant 0 : index
    %c0_258 = arith.constant 0 : index
    %229 = vector.load %arg10[%c0_257, %c0_258] : memref<8x512xf32, #tpu.memory_space<vmem>>, vector<8x256xf32>
    %c2_259 = arith.constant 2 : index
    %c4_260 = arith.constant 4 : index
    %c0_261 = arith.constant 0 : index
    %c0_262 = arith.constant 0 : index
    %230 = vector.load %arg4[%c2_259, %c4_260, %c0_261, %c0_262] : memref<6x9x8x8xf32, #tpu.memory_space<vmem>>, vector<1x1x8x8xf32>
    %231 = vector.shape_cast %230 : vector<1x1x8x8xf32> to vector<8x8xf32>
    %cst_263 = arith.constant dense<0.000000e+00> : vector<8x256xf32>
    %232 = tpu.matmul %231, %229, %cst_263 {dimension_numbers = #tpu.dot_dimension_numbers<[1], [0], [0], [1], [0, 0, 1, 1], [], []>} : vector<8x8xf32>, vector<8x256xf32>, vector<8x256xf32> -> vector<8x256xf32>
    %233 = arith.addf %228, %232 : vector<8x256xf32>
    %c0_264 = arith.constant 0 : index
    %c1_265 = arith.constant 1 : index
    %234 = vector.load %arg10[%c0_264, %c1_265] : memref<8x512xf32, #tpu.memory_space<vmem>>, vector<8x256xf32>
    %c0_266 = arith.constant 0 : index
    %c5_267 = arith.constant 5 : index
    %c0_268 = arith.constant 0 : index
    %c0_269 = arith.constant 0 : index
    %235 = vector.load %arg6[%c0_266, %c5_267, %c0_268, %c0_269] : memref<1x9x1x256xf32, #tpu.memory_space<vmem>>, vector<1x1x1x256xf32>
    %236 = vector.shape_cast %235 : vector<1x1x1x256xf32> to vector<1x256xf32>
    %237 = vector.broadcast %236 : vector<1x256xf32> to vector<8x256xf32>
    %238 = arith.mulf %234, %237 : vector<8x256xf32>
    %c2_270 = arith.constant 2 : index
    %c5_271 = arith.constant 5 : index
    %c0_272 = arith.constant 0 : index
    %c0_273 = arith.constant 0 : index
    %239 = vector.load %arg4[%c2_270, %c5_271, %c0_272, %c0_273] : memref<6x9x8x8xf32, #tpu.memory_space<vmem>>, vector<1x1x8x8xf32>
    %240 = vector.shape_cast %239 : vector<1x1x8x8xf32> to vector<8x8xf32>
    %cst_274 = arith.constant dense<0.000000e+00> : vector<8x256xf32>
    %241 = tpu.matmul %240, %238, %cst_274 {dimension_numbers = #tpu.dot_dimension_numbers<[1], [0], [0], [1], [0, 0, 1, 1], [], []>} : vector<8x8xf32>, vector<8x256xf32>, vector<8x256xf32> -> vector<8x256xf32>
    %242 = arith.addf %233, %241 : vector<8x256xf32>
    %c0_275 = arith.constant 0 : index
    %c15_276 = arith.constant 15 : index
    %243 = vector.load %arg10[%c0_275, %c15_276] : memref<8x512xf32, #tpu.memory_space<vmem>>, vector<8x256xf32>
    %c0_277 = arith.constant 0 : index
    %c6_278 = arith.constant 6 : index
    %c0_279 = arith.constant 0 : index
    %c0_280 = arith.constant 0 : index
    %244 = vector.load %arg6[%c0_277, %c6_278, %c0_279, %c0_280] : memref<1x9x1x256xf32, #tpu.memory_space<vmem>>, vector<1x1x1x256xf32>
    %245 = vector.shape_cast %244 : vector<1x1x1x256xf32> to vector<1x256xf32>
    %246 = vector.broadcast %245 : vector<1x256xf32> to vector<8x256xf32>
    %247 = arith.mulf %243, %246 : vector<8x256xf32>
    %c2_281 = arith.constant 2 : index
    %c6_282 = arith.constant 6 : index
    %c0_283 = arith.constant 0 : index
    %c0_284 = arith.constant 0 : index
    %248 = vector.load %arg4[%c2_281, %c6_282, %c0_283, %c0_284] : memref<6x9x8x8xf32, #tpu.memory_space<vmem>>, vector<1x1x8x8xf32>
    %249 = vector.shape_cast %248 : vector<1x1x8x8xf32> to vector<8x8xf32>
    %cst_285 = arith.constant dense<0.000000e+00> : vector<8x256xf32>
    %250 = tpu.matmul %249, %247, %cst_285 {dimension_numbers = #tpu.dot_dimension_numbers<[1], [0], [0], [1], [0, 0, 1, 1], [], []>} : vector<8x8xf32>, vector<8x256xf32>, vector<8x256xf32> -> vector<8x256xf32>
    %251 = arith.addf %242, %250 : vector<8x256xf32>
    %c0_286 = arith.constant 0 : index
    %c16_287 = arith.constant 16 : index
    %252 = vector.load %arg10[%c0_286, %c16_287] : memref<8x512xf32, #tpu.memory_space<vmem>>, vector<8x256xf32>
    %c0_288 = arith.constant 0 : index
    %c7_289 = arith.constant 7 : index
    %c0_290 = arith.constant 0 : index
    %c0_291 = arith.constant 0 : index
    %253 = vector.load %arg6[%c0_288, %c7_289, %c0_290, %c0_291] : memref<1x9x1x256xf32, #tpu.memory_space<vmem>>, vector<1x1x1x256xf32>
    %254 = vector.shape_cast %253 : vector<1x1x1x256xf32> to vector<1x256xf32>
    %255 = vector.broadcast %254 : vector<1x256xf32> to vector<8x256xf32>
    %256 = arith.mulf %252, %255 : vector<8x256xf32>
    %c2_292 = arith.constant 2 : index
    %c7_293 = arith.constant 7 : index
    %c0_294 = arith.constant 0 : index
    %c0_295 = arith.constant 0 : index
    %257 = vector.load %arg4[%c2_292, %c7_293, %c0_294, %c0_295] : memref<6x9x8x8xf32, #tpu.memory_space<vmem>>, vector<1x1x8x8xf32>
    %258 = vector.shape_cast %257 : vector<1x1x8x8xf32> to vector<8x8xf32>
    %cst_296 = arith.constant dense<0.000000e+00> : vector<8x256xf32>
    %259 = tpu.matmul %258, %256, %cst_296 {dimension_numbers = #tpu.dot_dimension_numbers<[1], [0], [0], [1], [0, 0, 1, 1], [], []>} : vector<8x8xf32>, vector<8x256xf32>, vector<8x256xf32> -> vector<8x256xf32>
    %260 = arith.addf %251, %259 : vector<8x256xf32>
    %c0_297 = arith.constant 0 : index
    %c17_298 = arith.constant 17 : index
    %261 = vector.load %arg10[%c0_297, %c17_298] : memref<8x512xf32, #tpu.memory_space<vmem>>, vector<8x256xf32>
    %c0_299 = arith.constant 0 : index
    %c8_300 = arith.constant 8 : index
    %c0_301 = arith.constant 0 : index
    %c0_302 = arith.constant 0 : index
    %262 = vector.load %arg6[%c0_299, %c8_300, %c0_301, %c0_302] : memref<1x9x1x256xf32, #tpu.memory_space<vmem>>, vector<1x1x1x256xf32>
    %263 = vector.shape_cast %262 : vector<1x1x1x256xf32> to vector<1x256xf32>
    %264 = vector.broadcast %263 : vector<1x256xf32> to vector<8x256xf32>
    %265 = arith.mulf %261, %264 : vector<8x256xf32>
    %c2_303 = arith.constant 2 : index
    %c8_304 = arith.constant 8 : index
    %c0_305 = arith.constant 0 : index
    %c0_306 = arith.constant 0 : index
    %266 = vector.load %arg4[%c2_303, %c8_304, %c0_305, %c0_306] : memref<6x9x8x8xf32, #tpu.memory_space<vmem>>, vector<1x1x8x8xf32>
    %267 = vector.shape_cast %266 : vector<1x1x8x8xf32> to vector<8x8xf32>
    %cst_307 = arith.constant dense<0.000000e+00> : vector<8x256xf32>
    %268 = tpu.matmul %267, %265, %cst_307 {dimension_numbers = #tpu.dot_dimension_numbers<[1], [0], [0], [1], [0, 0, 1, 1], [], []>} : vector<8x8xf32>, vector<8x256xf32>, vector<8x256xf32> -> vector<8x256xf32>
    %269 = arith.addf %260, %268 : vector<8x256xf32>
    %c2_308 = arith.constant 2 : index
    %c0_309 = arith.constant 0 : index
    %c0_310 = arith.constant 0 : index
    %270 = vector.load %arg5[%c2_308, %c0_309, %c0_310] : memref<6x8x1xf32, #tpu.memory_space<vmem>>, vector<1x8x1xf32>
    %271 = vector.shape_cast %270 : vector<1x8x1xf32> to vector<8x1xf32>
    %272 = vector.broadcast %271 : vector<8x1xf32> to vector<8x256xf32>
    %273 = arith.addf %269, %272 : vector<8x256xf32>
    %c0_311 = arith.constant 0 : index
    %c0_312 = arith.constant 0 : index
    %274 = vector.load %arg10[%c0_311, %c0_312] : memref<8x512xf32, #tpu.memory_space<vmem>>, vector<8x256xf32>
    tpu.vector_store %arg10[%c0_311, %c0_312], %273 {strides = array<i32>} : memref<8x512xf32, #tpu.memory_space<vmem>>, vector<8x256xf32>,
    %c0_313 = arith.constant 0 : index
    %c256_314 = arith.constant 256 : index
    %275 = vector.load %arg10[%c0_313, %c256_314] : memref<8x512xf32, #tpu.memory_space<vmem>>, vector<8x256xf32>
    tpu.vector_store %arg10[%c0_313, %c256_314], %273 {strides = array<i32>} : memref<8x512xf32, #tpu.memory_space<vmem>>, vector<8x256xf32>,
    %c0_315 = arith.constant 0 : index
    %c0_316 = arith.constant 0 : index
    %276 = vector.load %arg10[%c0_315, %c0_316] : memref<8x512xf32, #tpu.memory_space<vmem>>, vector<1x256xf32>
    %c1_317 = arith.constant 1 : index
    %c0_318 = arith.constant 0 : index
    %277 = vector.load %arg10[%c1_317, %c0_318] : memref<8x512xf32, #tpu.memory_space<vmem>>, vector<1x256xf32>
    %c0_319 = arith.constant 0 : index
    %c0_320 = arith.constant 0 : index
    %278 = vector.load %arg7[%c0_319, %c0_320] : memref<256x256xf32, #tpu.memory_space<vmem>>, vector<256x256xf32>
    %cst_321 = arith.constant dense<0.000000e+00> : vector<1x256xf32>
    %279 = tpu.matmul %276, %278, %cst_321 {dimension_numbers = #tpu.dot_dimension_numbers<[1], [0], [0], [1], [0, 0, 1, 1], [], []>} : vector<1x256xf32>, vector<256x256xf32>, vector<1x256xf32> -> vector<1x256xf32>
    %c0_322 = arith.constant 0 : index
    %c0_323 = arith.constant 0 : index
    %280 = vector.load %arg8[%c0_322, %c0_323] : memref<256x256xf32, #tpu.memory_space<vmem>>, vector<256x256xf32>
    %cst_324 = arith.constant dense<0.000000e+00> : vector<1x256xf32>
    %281 = tpu.matmul %277, %280, %cst_324 {dimension_numbers = #tpu.dot_dimension_numbers<[1], [0], [0], [1], [0, 0, 1, 1], [], []>} : vector<1x256xf32>, vector<256x256xf32>, vector<1x256xf32> -> vector<1x256xf32>
    %282 = arith.subf %279, %281 : vector<1x256xf32>
    %c0_325 = arith.constant 0 : index
    %c0_326 = arith.constant 0 : index
    %283 = vector.load %arg8[%c0_325, %c0_326] : memref<256x256xf32, #tpu.memory_space<vmem>>, vector<256x256xf32>
    %cst_327 = arith.constant dense<0.000000e+00> : vector<1x256xf32>
    %284 = tpu.matmul %276, %283, %cst_327 {dimension_numbers = #tpu.dot_dimension_numbers<[1], [0], [0], [1], [0, 0, 1, 1], [], []>} : vector<1x256xf32>, vector<256x256xf32>, vector<1x256xf32> -> vector<1x256xf32>
    %c0_328 = arith.constant 0 : index
    %c0_329 = arith.constant 0 : index
    %285 = vector.load %arg7[%c0_328, %c0_329] : memref<256x256xf32, #tpu.memory_space<vmem>>, vector<256x256xf32>
    %cst_330 = arith.constant dense<0.000000e+00> : vector<1x256xf32>
    %286 = tpu.matmul %277, %285, %cst_330 {dimension_numbers = #tpu.dot_dimension_numbers<[1], [0], [0], [1], [0, 0, 1, 1], [], []>} : vector<1x256xf32>, vector<256x256xf32>, vector<1x256xf32> -> vector<1x256xf32>
    %287 = arith.addf %284, %286 : vector<1x256xf32>
    %288 = arith.mulf %3, %282 : vector<1x256xf32>
    %289 = arith.mulf %1, %5 : vector<1x256xf32>
    %290 = arith.addf %288, %289 : vector<1x256xf32>
    %291 = arith.mulf %3, %287 : vector<1x256xf32>
    %292 = arith.mulf %1, %7 : vector<1x256xf32>
    %293 = arith.addf %291, %292 : vector<1x256xf32>
    %c0_331 = arith.constant 0 : index
    %c0_332 = arith.constant 0 : index
    %294 = vector.load %arg7[%c0_331, %c0_332] : memref<256x256xf32, #tpu.memory_space<vmem>>, vector<256x256xf32>
    %cst_333 = arith.constant dense<0.000000e+00> : vector<1x256xf32>
    %295 = tpu.matmul %290, %294, %cst_333 {dimension_numbers = #tpu.dot_dimension_numbers<[1], [0], [0], [1], [0, 0, 1, 1], [], []>} : vector<1x256xf32>, vector<256x256xf32>, vector<1x256xf32> -> vector<1x256xf32>
    %c0_334 = arith.constant 0 : index
    %c0_335 = arith.constant 0 : index
    %296 = vector.load %arg8[%c0_334, %c0_335] : memref<256x256xf32, #tpu.memory_space<vmem>>, vector<256x256xf32>
    %cst_336 = arith.constant dense<0.000000e+00> : vector<1x256xf32>
    %297 = tpu.matmul %293, %296, %cst_336 {dimension_numbers = #tpu.dot_dimension_numbers<[1], [0], [0], [1], [0, 0, 1, 1], [], []>} : vector<1x256xf32>, vector<256x256xf32>, vector<1x256xf32> -> vector<1x256xf32>
    %298 = arith.addf %295, %297 : vector<1x256xf32>
    %c0_337 = arith.constant 0 : index
    %c0_338 = arith.constant 0 : index
    %299 = vector.load %arg7[%c0_337, %c0_338] : memref<256x256xf32, #tpu.memory_space<vmem>>, vector<256x256xf32>
    %cst_339 = arith.constant dense<0.000000e+00> : vector<1x256xf32>
    %300 = tpu.matmul %293, %299, %cst_339 {dimension_numbers = #tpu.dot_dimension_numbers<[1], [0], [0], [1], [0, 0, 1, 1], [], []>} : vector<1x256xf32>, vector<256x256xf32>, vector<1x256xf32> -> vector<1x256xf32>
    %c0_340 = arith.constant 0 : index
    %c0_341 = arith.constant 0 : index
    %301 = vector.load %arg8[%c0_340, %c0_341] : memref<256x256xf32, #tpu.memory_space<vmem>>, vector<256x256xf32>
    %cst_342 = arith.constant dense<0.000000e+00> : vector<1x256xf32>
    %302 = tpu.matmul %290, %301, %cst_342 {dimension_numbers = #tpu.dot_dimension_numbers<[1], [0], [0], [1], [0, 0, 1, 1], [], []>} : vector<1x256xf32>, vector<256x256xf32>, vector<1x256xf32> -> vector<1x256xf32>
    %303 = arith.subf %300, %302 : vector<1x256xf32>
    %c0_343 = arith.constant 0 : index
    %c0_344 = arith.constant 0 : index
    %304 = vector.load %arg10[%c0_343, %c0_344] : memref<8x512xf32, #tpu.memory_space<vmem>>, vector<1x256xf32>
    tpu.vector_store %arg10[%c0_343, %c0_344], %298 {strides = array<i32>} : memref<8x512xf32, #tpu.memory_space<vmem>>, vector<1x256xf32>,
    %c0_345 = arith.constant 0 : index
    %c256_346 = arith.constant 256 : index
    %305 = vector.load %arg10[%c0_345, %c256_346] : memref<8x512xf32, #tpu.memory_space<vmem>>, vector<1x256xf32>
    tpu.vector_store %arg10[%c0_345, %c256_346], %298 {strides = array<i32>} : memref<8x512xf32, #tpu.memory_space<vmem>>, vector<1x256xf32>,
    %c1_347 = arith.constant 1 : index
    %c0_348 = arith.constant 0 : index
    %306 = vector.load %arg10[%c1_347, %c0_348] : memref<8x512xf32, #tpu.memory_space<vmem>>, vector<1x256xf32>
    tpu.vector_store %arg10[%c1_347, %c0_348], %303 {strides = array<i32>} : memref<8x512xf32, #tpu.memory_space<vmem>>, vector<1x256xf32>,
    %c1_349 = arith.constant 1 : index
    %c256_350 = arith.constant 256 : index
    %307 = vector.load %arg10[%c1_349, %c256_350] : memref<8x512xf32, #tpu.memory_space<vmem>>, vector<1x256xf32>
    tpu.vector_store %arg10[%c1_349, %c256_350], %303 {strides = array<i32>} : memref<8x512xf32, #tpu.memory_space<vmem>>, vector<1x256xf32>,
    %cst_351 = arith.constant 0.000000e+00 : f32
    %308 = vector.broadcast %cst_351 : f32 to vector<8x256xf32>
    %c0_352 = arith.constant 0 : index
    %c239_353 = arith.constant 239 : index
    %309 = vector.load %arg10[%c0_352, %c239_353] : memref<8x512xf32, #tpu.memory_space<vmem>>, vector<8x256xf32>
    %c0_354 = arith.constant 0 : index
    %c0_355 = arith.constant 0 : index
    %c0_356 = arith.constant 0 : index
    %c0_357 = arith.constant 0 : index
    %310 = vector.load %arg6[%c0_354, %c0_355, %c0_356, %c0_357] : memref<1x9x1x256xf32, #tpu.memory_space<vmem>>, vector<1x1x1x256xf32>
    %311 = vector.shape_cast %310 : vector<1x1x1x256xf32> to vector<1x256xf32>
    %312 = vector.broadcast %311 : vector<1x256xf32> to vector<8x256xf32>
    %313 = arith.mulf %309, %312 : vector<8x256xf32>
    %c3_358 = arith.constant 3 : index
    %c0_359 = arith.constant 0 : index
    %c0_360 = arith.constant 0 : index
    %c0_361 = arith.constant 0 : index
    %314 = vector.load %arg4[%c3_358, %c0_359, %c0_360, %c0_361] : memref<6x9x8x8xf32, #tpu.memory_space<vmem>>, vector<1x1x8x8xf32>
    %315 = vector.shape_cast %314 : vector<1x1x8x8xf32> to vector<8x8xf32>
    %cst_362 = arith.constant dense<0.000000e+00> : vector<8x256xf32>
    %316 = tpu.matmul %315, %313, %cst_362 {dimension_numbers = #tpu.dot_dimension_numbers<[1], [0], [0], [1], [0, 0, 1, 1], [], []>} : vector<8x8xf32>, vector<8x256xf32>, vector<8x256xf32> -> vector<8x256xf32>
    %317 = arith.addf %308, %316 : vector<8x256xf32>
    %c0_363 = arith.constant 0 : index
    %c240_364 = arith.constant 240 : index
    %318 = vector.load %arg10[%c0_363, %c240_364] : memref<8x512xf32, #tpu.memory_space<vmem>>, vector<8x256xf32>
    %c0_365 = arith.constant 0 : index
    %c1_366 = arith.constant 1 : index
    %c0_367 = arith.constant 0 : index
    %c0_368 = arith.constant 0 : index
    %319 = vector.load %arg6[%c0_365, %c1_366, %c0_367, %c0_368] : memref<1x9x1x256xf32, #tpu.memory_space<vmem>>, vector<1x1x1x256xf32>
    %320 = vector.shape_cast %319 : vector<1x1x1x256xf32> to vector<1x256xf32>
    %321 = vector.broadcast %320 : vector<1x256xf32> to vector<8x256xf32>
    %322 = arith.mulf %318, %321 : vector<8x256xf32>
    %c3_369 = arith.constant 3 : index
    %c1_370 = arith.constant 1 : index
    %c0_371 = arith.constant 0 : index
    %c0_372 = arith.constant 0 : index
    %323 = vector.load %arg4[%c3_369, %c1_370, %c0_371, %c0_372] : memref<6x9x8x8xf32, #tpu.memory_space<vmem>>, vector<1x1x8x8xf32>
    %324 = vector.shape_cast %323 : vector<1x1x8x8xf32> to vector<8x8xf32>
    %cst_373 = arith.constant dense<0.000000e+00> : vector<8x256xf32>
    %325 = tpu.matmul %324, %322, %cst_373 {dimension_numbers = #tpu.dot_dimension_numbers<[1], [0], [0], [1], [0, 0, 1, 1], [], []>} : vector<8x8xf32>, vector<8x256xf32>, vector<8x256xf32> -> vector<8x256xf32>
    %326 = arith.addf %317, %325 : vector<8x256xf32>
    %c0_374 = arith.constant 0 : index
    %c241_375 = arith.constant 241 : index
    %327 = vector.load %arg10[%c0_374, %c241_375] : memref<8x512xf32, #tpu.memory_space<vmem>>, vector<8x256xf32>
    %c0_376 = arith.constant 0 : index
    %c2_377 = arith.constant 2 : index
    %c0_378 = arith.constant 0 : index
    %c0_379 = arith.constant 0 : index
    %328 = vector.load %arg6[%c0_376, %c2_377, %c0_378, %c0_379] : memref<1x9x1x256xf32, #tpu.memory_space<vmem>>, vector<1x1x1x256xf32>
    %329 = vector.shape_cast %328 : vector<1x1x1x256xf32> to vector<1x256xf32>
    %330 = vector.broadcast %329 : vector<1x256xf32> to vector<8x256xf32>
    %331 = arith.mulf %327, %330 : vector<8x256xf32>
    %c3_380 = arith.constant 3 : index
    %c2_381 = arith.constant 2 : index
    %c0_382 = arith.constant 0 : index
    %c0_383 = arith.constant 0 : index
    %332 = vector.load %arg4[%c3_380, %c2_381, %c0_382, %c0_383] : memref<6x9x8x8xf32, #tpu.memory_space<vmem>>, vector<1x1x8x8xf32>
    %333 = vector.shape_cast %332 : vector<1x1x8x8xf32> to vector<8x8xf32>
    %cst_384 = arith.constant dense<0.000000e+00> : vector<8x256xf32>
    %334 = tpu.matmul %333, %331, %cst_384 {dimension_numbers = #tpu.dot_dimension_numbers<[1], [0], [0], [1], [0, 0, 1, 1], [], []>} : vector<8x8xf32>, vector<8x256xf32>, vector<8x256xf32> -> vector<8x256xf32>
    %335 = arith.addf %326, %334 : vector<8x256xf32>
    %c0_385 = arith.constant 0 : index
    %c255_386 = arith.constant 255 : index
    %336 = vector.load %arg10[%c0_385, %c255_386] : memref<8x512xf32, #tpu.memory_space<vmem>>, vector<8x256xf32>
    %c0_387 = arith.constant 0 : index
    %c3_388 = arith.constant 3 : index
    %c0_389 = arith.constant 0 : index
    %c0_390 = arith.constant 0 : index
    %337 = vector.load %arg6[%c0_387, %c3_388, %c0_389, %c0_390] : memref<1x9x1x256xf32, #tpu.memory_space<vmem>>, vector<1x1x1x256xf32>
    %338 = vector.shape_cast %337 : vector<1x1x1x256xf32> to vector<1x256xf32>
    %339 = vector.broadcast %338 : vector<1x256xf32> to vector<8x256xf32>
    %340 = arith.mulf %336, %339 : vector<8x256xf32>
    %c3_391 = arith.constant 3 : index
    %c3_392 = arith.constant 3 : index
    %c0_393 = arith.constant 0 : index
    %c0_394 = arith.constant 0 : index
    %341 = vector.load %arg4[%c3_391, %c3_392, %c0_393, %c0_394] : memref<6x9x8x8xf32, #tpu.memory_space<vmem>>, vector<1x1x8x8xf32>
    %342 = vector.shape_cast %341 : vector<1x1x8x8xf32> to vector<8x8xf32>
    %cst_395 = arith.constant dense<0.000000e+00> : vector<8x256xf32>
    %343 = tpu.matmul %342, %340, %cst_395 {dimension_numbers = #tpu.dot_dimension_numbers<[1], [0], [0], [1], [0, 0, 1, 1], [], []>} : vector<8x8xf32>, vector<8x256xf32>, vector<8x256xf32> -> vector<8x256xf32>
    %344 = arith.addf %335, %343 : vector<8x256xf32>
    %c0_396 = arith.constant 0 : index
    %c0_397 = arith.constant 0 : index
    %345 = vector.load %arg10[%c0_396, %c0_397] : memref<8x512xf32, #tpu.memory_space<vmem>>, vector<8x256xf32>
    %c3_398 = arith.constant 3 : index
    %c4_399 = arith.constant 4 : index
    %c0_400 = arith.constant 0 : index
    %c0_401 = arith.constant 0 : index
    %346 = vector.load %arg4[%c3_398, %c4_399, %c0_400, %c0_401] : memref<6x9x8x8xf32, #tpu.memory_space<vmem>>, vector<1x1x8x8xf32>
    %347 = vector.shape_cast %346 : vector<1x1x8x8xf32> to vector<8x8xf32>
    %cst_402 = arith.constant dense<0.000000e+00> : vector<8x256xf32>
    %348 = tpu.matmul %347, %345, %cst_402 {dimension_numbers = #tpu.dot_dimension_numbers<[1], [0], [0], [1], [0, 0, 1, 1], [], []>} : vector<8x8xf32>, vector<8x256xf32>, vector<8x256xf32> -> vector<8x256xf32>
    %349 = arith.addf %344, %348 : vector<8x256xf32>
    %c0_403 = arith.constant 0 : index
    %c1_404 = arith.constant 1 : index
    %350 = vector.load %arg10[%c0_403, %c1_404] : memref<8x512xf32, #tpu.memory_space<vmem>>, vector<8x256xf32>
    %c0_405 = arith.constant 0 : index
    %c5_406 = arith.constant 5 : index
    %c0_407 = arith.constant 0 : index
    %c0_408 = arith.constant 0 : index
    %351 = vector.load %arg6[%c0_405, %c5_406, %c0_407, %c0_408] : memref<1x9x1x256xf32, #tpu.memory_space<vmem>>, vector<1x1x1x256xf32>
    %352 = vector.shape_cast %351 : vector<1x1x1x256xf32> to vector<1x256xf32>
    %353 = vector.broadcast %352 : vector<1x256xf32> to vector<8x256xf32>
    %354 = arith.mulf %350, %353 : vector<8x256xf32>
    %c3_409 = arith.constant 3 : index
    %c5_410 = arith.constant 5 : index
    %c0_411 = arith.constant 0 : index
    %c0_412 = arith.constant 0 : index
    %355 = vector.load %arg4[%c3_409, %c5_410, %c0_411, %c0_412] : memref<6x9x8x8xf32, #tpu.memory_space<vmem>>, vector<1x1x8x8xf32>
    %356 = vector.shape_cast %355 : vector<1x1x8x8xf32> to vector<8x8xf32>
    %cst_413 = arith.constant dense<0.000000e+00> : vector<8x256xf32>
    %357 = tpu.matmul %356, %354, %cst_413 {dimension_numbers = #tpu.dot_dimension_numbers<[1], [0], [0], [1], [0, 0, 1, 1], [], []>} : vector<8x8xf32>, vector<8x256xf32>, vector<8x256xf32> -> vector<8x256xf32>
    %358 = arith.addf %349, %357 : vector<8x256xf32>
    %c0_414 = arith.constant 0 : index
    %c15_415 = arith.constant 15 : index
    %359 = vector.load %arg10[%c0_414, %c15_415] : memref<8x512xf32, #tpu.memory_space<vmem>>, vector<8x256xf32>
    %c0_416 = arith.constant 0 : index
    %c6_417 = arith.constant 6 : index
    %c0_418 = arith.constant 0 : index
    %c0_419 = arith.constant 0 : index
    %360 = vector.load %arg6[%c0_416, %c6_417, %c0_418, %c0_419] : memref<1x9x1x256xf32, #tpu.memory_space<vmem>>, vector<1x1x1x256xf32>
    %361 = vector.shape_cast %360 : vector<1x1x1x256xf32> to vector<1x256xf32>
    %362 = vector.broadcast %361 : vector<1x256xf32> to vector<8x256xf32>
    %363 = arith.mulf %359, %362 : vector<8x256xf32>
    %c3_420 = arith.constant 3 : index
    %c6_421 = arith.constant 6 : index
    %c0_422 = arith.constant 0 : index
    %c0_423 = arith.constant 0 : index
    %364 = vector.load %arg4[%c3_420, %c6_421, %c0_422, %c0_423] : memref<6x9x8x8xf32, #tpu.memory_space<vmem>>, vector<1x1x8x8xf32>
    %365 = vector.shape_cast %364 : vector<1x1x8x8xf32> to vector<8x8xf32>
    %cst_424 = arith.constant dense<0.000000e+00> : vector<8x256xf32>
    %366 = tpu.matmul %365, %363, %cst_424 {dimension_numbers = #tpu.dot_dimension_numbers<[1], [0], [0], [1], [0, 0, 1, 1], [], []>} : vector<8x8xf32>, vector<8x256xf32>, vector<8x256xf32> -> vector<8x256xf32>
    %367 = arith.addf %358, %366 : vector<8x256xf32>
    %c0_425 = arith.constant 0 : index
    %c16_426 = arith.constant 16 : index
    %368 = vector.load %arg10[%c0_425, %c16_426] : memref<8x512xf32, #tpu.memory_space<vmem>>, vector<8x256xf32>
    %c0_427 = arith.constant 0 : index
    %c7_428 = arith.constant 7 : index
    %c0_429 = arith.constant 0 : index
    %c0_430 = arith.constant 0 : index
    %369 = vector.load %arg6[%c0_427, %c7_428, %c0_429, %c0_430] : memref<1x9x1x256xf32, #tpu.memory_space<vmem>>, vector<1x1x1x256xf32>
    %370 = vector.shape_cast %369 : vector<1x1x1x256xf32> to vector<1x256xf32>
    %371 = vector.broadcast %370 : vector<1x256xf32> to vector<8x256xf32>
    %372 = arith.mulf %368, %371 : vector<8x256xf32>
    %c3_431 = arith.constant 3 : index
    %c7_432 = arith.constant 7 : index
    %c0_433 = arith.constant 0 : index
    %c0_434 = arith.constant 0 : index
    %373 = vector.load %arg4[%c3_431, %c7_432, %c0_433, %c0_434] : memref<6x9x8x8xf32, #tpu.memory_space<vmem>>, vector<1x1x8x8xf32>
    %374 = vector.shape_cast %373 : vector<1x1x8x8xf32> to vector<8x8xf32>
    %cst_435 = arith.constant dense<0.000000e+00> : vector<8x256xf32>
    %375 = tpu.matmul %374, %372, %cst_435 {dimension_numbers = #tpu.dot_dimension_numbers<[1], [0], [0], [1], [0, 0, 1, 1], [], []>} : vector<8x8xf32>, vector<8x256xf32>, vector<8x256xf32> -> vector<8x256xf32>
    %376 = arith.addf %367, %375 : vector<8x256xf32>
    %c0_436 = arith.constant 0 : index
    %c17_437 = arith.constant 17 : index
    %377 = vector.load %arg10[%c0_436, %c17_437] : memref<8x512xf32, #tpu.memory_space<vmem>>, vector<8x256xf32>
    %c0_438 = arith.constant 0 : index
    %c8_439 = arith.constant 8 : index
    %c0_440 = arith.constant 0 : index
    %c0_441 = arith.constant 0 : index
    %378 = vector.load %arg6[%c0_438, %c8_439, %c0_440, %c0_441] : memref<1x9x1x256xf32, #tpu.memory_space<vmem>>, vector<1x1x1x256xf32>
    %379 = vector.shape_cast %378 : vector<1x1x1x256xf32> to vector<1x256xf32>
    %380 = vector.broadcast %379 : vector<1x256xf32> to vector<8x256xf32>
    %381 = arith.mulf %377, %380 : vector<8x256xf32>
    %c3_442 = arith.constant 3 : index
    %c8_443 = arith.constant 8 : index
    %c0_444 = arith.constant 0 : index
    %c0_445 = arith.constant 0 : index
    %382 = vector.load %arg4[%c3_442, %c8_443, %c0_444, %c0_445] : memref<6x9x8x8xf32, #tpu.memory_space<vmem>>, vector<1x1x8x8xf32>
    %383 = vector.shape_cast %382 : vector<1x1x8x8xf32> to vector<8x8xf32>
    %cst_446 = arith.constant dense<0.000000e+00> : vector<8x256xf32>
    %384 = tpu.matmul %383, %381, %cst_446 {dimension_numbers = #tpu.dot_dimension_numbers<[1], [0], [0], [1], [0, 0, 1, 1], [], []>} : vector<8x8xf32>, vector<8x256xf32>, vector<8x256xf32> -> vector<8x256xf32>
    %385 = arith.addf %376, %384 : vector<8x256xf32>
    %c3_447 = arith.constant 3 : index
    %c0_448 = arith.constant 0 : index
    %c0_449 = arith.constant 0 : index
    %386 = vector.load %arg5[%c3_447, %c0_448, %c0_449] : memref<6x8x1xf32, #tpu.memory_space<vmem>>, vector<1x8x1xf32>
    %387 = vector.shape_cast %386 : vector<1x8x1xf32> to vector<8x1xf32>
    %388 = vector.broadcast %387 : vector<8x1xf32> to vector<8x256xf32>
    %389 = arith.addf %385, %388 : vector<8x256xf32>
    %cst_450 = arith.constant 0.000000e+00 : f32
    %390 = vector.broadcast %cst_450 : f32 to vector<8x256xf32>
    %391 = arith.cmpf oge, %389, %390 : vector<8x256xf32>
    %cst_451 = arith.constant 0.00999999977 : f32
    %392 = vector.broadcast %cst_451 : f32 to vector<8x256xf32>
    %393 = arith.mulf %392, %389 : vector<8x256xf32>
    %394 = arith.select %391, %389, %393 : vector<8x256xi1>, vector<8x256xf32>
    %c0_452 = arith.constant 0 : index
    %c0_453 = arith.constant 0 : index
    %395 = vector.load %arg10[%c0_452, %c0_453] : memref<8x512xf32, #tpu.memory_space<vmem>>, vector<8x256xf32>
    tpu.vector_store %arg10[%c0_452, %c0_453], %394 {strides = array<i32>} : memref<8x512xf32, #tpu.memory_space<vmem>>, vector<8x256xf32>,
    %c0_454 = arith.constant 0 : index
    %c256_455 = arith.constant 256 : index
    %396 = vector.load %arg10[%c0_454, %c256_455] : memref<8x512xf32, #tpu.memory_space<vmem>>, vector<8x256xf32>
    tpu.vector_store %arg10[%c0_454, %c256_455], %394 {strides = array<i32>} : memref<8x512xf32, #tpu.memory_space<vmem>>, vector<8x256xf32>,
    %cst_456 = arith.constant 0.000000e+00 : f32
    %397 = vector.broadcast %cst_456 : f32 to vector<8x256xf32>
    %c0_457 = arith.constant 0 : index
    %c239_458 = arith.constant 239 : index
    %398 = vector.load %arg10[%c0_457, %c239_458] : memref<8x512xf32, #tpu.memory_space<vmem>>, vector<8x256xf32>
    %c0_459 = arith.constant 0 : index
    %c0_460 = arith.constant 0 : index
    %c0_461 = arith.constant 0 : index
    %c0_462 = arith.constant 0 : index
    %399 = vector.load %arg6[%c0_459, %c0_460, %c0_461, %c0_462] : memref<1x9x1x256xf32, #tpu.memory_space<vmem>>, vector<1x1x1x256xf32>
    %400 = vector.shape_cast %399 : vector<1x1x1x256xf32> to vector<1x256xf32>
    %401 = vector.broadcast %400 : vector<1x256xf32> to vector<8x256xf32>
    %402 = arith.mulf %398, %401 : vector<8x256xf32>
    %c4_463 = arith.constant 4 : index
    %c0_464 = arith.constant 0 : index
    %c0_465 = arith.constant 0 : index
    %c0_466 = arith.constant 0 : index
    %403 = vector.load %arg4[%c4_463, %c0_464, %c0_465, %c0_466] : memref<6x9x8x8xf32, #tpu.memory_space<vmem>>, vector<1x1x8x8xf32>
    %404 = vector.shape_cast %403 : vector<1x1x8x8xf32> to vector<8x8xf32>
    %cst_467 = arith.constant dense<0.000000e+00> : vector<8x256xf32>
    %405 = tpu.matmul %404, %402, %cst_467 {dimension_numbers = #tpu.dot_dimension_numbers<[1], [0], [0], [1], [0, 0, 1, 1], [], []>} : vector<8x8xf32>, vector<8x256xf32>, vector<8x256xf32> -> vector<8x256xf32>
    %406 = arith.addf %397, %405 : vector<8x256xf32>
    %c0_468 = arith.constant 0 : index
    %c240_469 = arith.constant 240 : index
    %407 = vector.load %arg10[%c0_468, %c240_469] : memref<8x512xf32, #tpu.memory_space<vmem>>, vector<8x256xf32>
    %c0_470 = arith.constant 0 : index
    %c1_471 = arith.constant 1 : index
    %c0_472 = arith.constant 0 : index
    %c0_473 = arith.constant 0 : index
    %408 = vector.load %arg6[%c0_470, %c1_471, %c0_472, %c0_473] : memref<1x9x1x256xf32, #tpu.memory_space<vmem>>, vector<1x1x1x256xf32>
    %409 = vector.shape_cast %408 : vector<1x1x1x256xf32> to vector<1x256xf32>
    %410 = vector.broadcast %409 : vector<1x256xf32> to vector<8x256xf32>
    %411 = arith.mulf %407, %410 : vector<8x256xf32>
    %c4_474 = arith.constant 4 : index
    %c1_475 = arith.constant 1 : index
    %c0_476 = arith.constant 0 : index
    %c0_477 = arith.constant 0 : index
    %412 = vector.load %arg4[%c4_474, %c1_475, %c0_476, %c0_477] : memref<6x9x8x8xf32, #tpu.memory_space<vmem>>, vector<1x1x8x8xf32>
    %413 = vector.shape_cast %412 : vector<1x1x8x8xf32> to vector<8x8xf32>
    %cst_478 = arith.constant dense<0.000000e+00> : vector<8x256xf32>
    %414 = tpu.matmul %413, %411, %cst_478 {dimension_numbers = #tpu.dot_dimension_numbers<[1], [0], [0], [1], [0, 0, 1, 1], [], []>} : vector<8x8xf32>, vector<8x256xf32>, vector<8x256xf32> -> vector<8x256xf32>
    %415 = arith.addf %406, %414 : vector<8x256xf32>
    %c0_479 = arith.constant 0 : index
    %c241_480 = arith.constant 241 : index
    %416 = vector.load %arg10[%c0_479, %c241_480] : memref<8x512xf32, #tpu.memory_space<vmem>>, vector<8x256xf32>
    %c0_481 = arith.constant 0 : index
    %c2_482 = arith.constant 2 : index
    %c0_483 = arith.constant 0 : index
    %c0_484 = arith.constant 0 : index
    %417 = vector.load %arg6[%c0_481, %c2_482, %c0_483, %c0_484] : memref<1x9x1x256xf32, #tpu.memory_space<vmem>>, vector<1x1x1x256xf32>
    %418 = vector.shape_cast %417 : vector<1x1x1x256xf32> to vector<1x256xf32>
    %419 = vector.broadcast %418 : vector<1x256xf32> to vector<8x256xf32>
    %420 = arith.mulf %416, %419 : vector<8x256xf32>
    %c4_485 = arith.constant 4 : index
    %c2_486 = arith.constant 2 : index
    %c0_487 = arith.constant 0 : index
    %c0_488 = arith.constant 0 : index
    %421 = vector.load %arg4[%c4_485, %c2_486, %c0_487, %c0_488] : memref<6x9x8x8xf32, #tpu.memory_space<vmem>>, vector<1x1x8x8xf32>
    %422 = vector.shape_cast %421 : vector<1x1x8x8xf32> to vector<8x8xf32>
    %cst_489 = arith.constant dense<0.000000e+00> : vector<8x256xf32>
    %423 = tpu.matmul %422, %420, %cst_489 {dimension_numbers = #tpu.dot_dimension_numbers<[1], [0], [0], [1], [0, 0, 1, 1], [], []>} : vector<8x8xf32>, vector<8x256xf32>, vector<8x256xf32> -> vector<8x256xf32>
    %424 = arith.addf %415, %423 : vector<8x256xf32>
    %c0_490 = arith.constant 0 : index
    %c255_491 = arith.constant 255 : index
    %425 = vector.load %arg10[%c0_490, %c255_491] : memref<8x512xf32, #tpu.memory_space<vmem>>, vector<8x256xf32>
    %c0_492 = arith.constant 0 : index
    %c3_493 = arith.constant 3 : index
    %c0_494 = arith.constant 0 : index
    %c0_495 = arith.constant 0 : index
    %426 = vector.load %arg6[%c0_492, %c3_493, %c0_494, %c0_495] : memref<1x9x1x256xf32, #tpu.memory_space<vmem>>, vector<1x1x1x256xf32>
    %427 = vector.shape_cast %426 : vector<1x1x1x256xf32> to vector<1x256xf32>
    %428 = vector.broadcast %427 : vector<1x256xf32> to vector<8x256xf32>
    %429 = arith.mulf %425, %428 : vector<8x256xf32>
    %c4_496 = arith.constant 4 : index
    %c3_497 = arith.constant 3 : index
    %c0_498 = arith.constant 0 : index
    %c0_499 = arith.constant 0 : index
    %430 = vector.load %arg4[%c4_496, %c3_497, %c0_498, %c0_499] : memref<6x9x8x8xf32, #tpu.memory_space<vmem>>, vector<1x1x8x8xf32>
    %431 = vector.shape_cast %430 : vector<1x1x8x8xf32> to vector<8x8xf32>
    %cst_500 = arith.constant dense<0.000000e+00> : vector<8x256xf32>
    %432 = tpu.matmul %431, %429, %cst_500 {dimension_numbers = #tpu.dot_dimension_numbers<[1], [0], [0], [1], [0, 0, 1, 1], [], []>} : vector<8x8xf32>, vector<8x256xf32>, vector<8x256xf32> -> vector<8x256xf32>
    %433 = arith.addf %424, %432 : vector<8x256xf32>
    %c0_501 = arith.constant 0 : index
    %c0_502 = arith.constant 0 : index
    %434 = vector.load %arg10[%c0_501, %c0_502] : memref<8x512xf32, #tpu.memory_space<vmem>>, vector<8x256xf32>
    %c4_503 = arith.constant 4 : index
    %c4_504 = arith.constant 4 : index
    %c0_505 = arith.constant 0 : index
    %c0_506 = arith.constant 0 : index
    %435 = vector.load %arg4[%c4_503, %c4_504, %c0_505, %c0_506] : memref<6x9x8x8xf32, #tpu.memory_space<vmem>>, vector<1x1x8x8xf32>
    %436 = vector.shape_cast %435 : vector<1x1x8x8xf32> to vector<8x8xf32>
    %cst_507 = arith.constant dense<0.000000e+00> : vector<8x256xf32>
    %437 = tpu.matmul %436, %434, %cst_507 {dimension_numbers = #tpu.dot_dimension_numbers<[1], [0], [0], [1], [0, 0, 1, 1], [], []>} : vector<8x8xf32>, vector<8x256xf32>, vector<8x256xf32> -> vector<8x256xf32>
    %438 = arith.addf %433, %437 : vector<8x256xf32>
    %c0_508 = arith.constant 0 : index
    %c1_509 = arith.constant 1 : index
    %439 = vector.load %arg10[%c0_508, %c1_509] : memref<8x512xf32, #tpu.memory_space<vmem>>, vector<8x256xf32>
    %c0_510 = arith.constant 0 : index
    %c5_511 = arith.constant 5 : index
    %c0_512 = arith.constant 0 : index
    %c0_513 = arith.constant 0 : index
    %440 = vector.load %arg6[%c0_510, %c5_511, %c0_512, %c0_513] : memref<1x9x1x256xf32, #tpu.memory_space<vmem>>, vector<1x1x1x256xf32>
    %441 = vector.shape_cast %440 : vector<1x1x1x256xf32> to vector<1x256xf32>
    %442 = vector.broadcast %441 : vector<1x256xf32> to vector<8x256xf32>
    %443 = arith.mulf %439, %442 : vector<8x256xf32>
    %c4_514 = arith.constant 4 : index
    %c5_515 = arith.constant 5 : index
    %c0_516 = arith.constant 0 : index
    %c0_517 = arith.constant 0 : index
    %444 = vector.load %arg4[%c4_514, %c5_515, %c0_516, %c0_517] : memref<6x9x8x8xf32, #tpu.memory_space<vmem>>, vector<1x1x8x8xf32>
    %445 = vector.shape_cast %444 : vector<1x1x8x8xf32> to vector<8x8xf32>
    %cst_518 = arith.constant dense<0.000000e+00> : vector<8x256xf32>
    %446 = tpu.matmul %445, %443, %cst_518 {dimension_numbers = #tpu.dot_dimension_numbers<[1], [0], [0], [1], [0, 0, 1, 1], [], []>} : vector<8x8xf32>, vector<8x256xf32>, vector<8x256xf32> -> vector<8x256xf32>
    %447 = arith.addf %438, %446 : vector<8x256xf32>
    %c0_519 = arith.constant 0 : index
    %c15_520 = arith.constant 15 : index
    %448 = vector.load %arg10[%c0_519, %c15_520] : memref<8x512xf32, #tpu.memory_space<vmem>>, vector<8x256xf32>
    %c0_521 = arith.constant 0 : index
    %c6_522 = arith.constant 6 : index
    %c0_523 = arith.constant 0 : index
    %c0_524 = arith.constant 0 : index
    %449 = vector.load %arg6[%c0_521, %c6_522, %c0_523, %c0_524] : memref<1x9x1x256xf32, #tpu.memory_space<vmem>>, vector<1x1x1x256xf32>
    %450 = vector.shape_cast %449 : vector<1x1x1x256xf32> to vector<1x256xf32>
    %451 = vector.broadcast %450 : vector<1x256xf32> to vector<8x256xf32>
    %452 = arith.mulf %448, %451 : vector<8x256xf32>
    %c4_525 = arith.constant 4 : index
    %c6_526 = arith.constant 6 : index
    %c0_527 = arith.constant 0 : index
    %c0_528 = arith.constant 0 : index
    %453 = vector.load %arg4[%c4_525, %c6_526, %c0_527, %c0_528] : memref<6x9x8x8xf32, #tpu.memory_space<vmem>>, vector<1x1x8x8xf32>
    %454 = vector.shape_cast %453 : vector<1x1x8x8xf32> to vector<8x8xf32>
    %cst_529 = arith.constant dense<0.000000e+00> : vector<8x256xf32>
    %455 = tpu.matmul %454, %452, %cst_529 {dimension_numbers = #tpu.dot_dimension_numbers<[1], [0], [0], [1], [0, 0, 1, 1], [], []>} : vector<8x8xf32>, vector<8x256xf32>, vector<8x256xf32> -> vector<8x256xf32>
    %456 = arith.addf %447, %455 : vector<8x256xf32>
    %c0_530 = arith.constant 0 : index
    %c16_531 = arith.constant 16 : index
    %457 = vector.load %arg10[%c0_530, %c16_531] : memref<8x512xf32, #tpu.memory_space<vmem>>, vector<8x256xf32>
    %c0_532 = arith.constant 0 : index
    %c7_533 = arith.constant 7 : index
    %c0_534 = arith.constant 0 : index
    %c0_535 = arith.constant 0 : index
    %458 = vector.load %arg6[%c0_532, %c7_533, %c0_534, %c0_535] : memref<1x9x1x256xf32, #tpu.memory_space<vmem>>, vector<1x1x1x256xf32>
    %459 = vector.shape_cast %458 : vector<1x1x1x256xf32> to vector<1x256xf32>
    %460 = vector.broadcast %459 : vector<1x256xf32> to vector<8x256xf32>
    %461 = arith.mulf %457, %460 : vector<8x256xf32>
    %c4_536 = arith.constant 4 : index
    %c7_537 = arith.constant 7 : index
    %c0_538 = arith.constant 0 : index
    %c0_539 = arith.constant 0 : index
    %462 = vector.load %arg4[%c4_536, %c7_537, %c0_538, %c0_539] : memref<6x9x8x8xf32, #tpu.memory_space<vmem>>, vector<1x1x8x8xf32>
    %463 = vector.shape_cast %462 : vector<1x1x8x8xf32> to vector<8x8xf32>
    %cst_540 = arith.constant dense<0.000000e+00> : vector<8x256xf32>
    %464 = tpu.matmul %463, %461, %cst_540 {dimension_numbers = #tpu.dot_dimension_numbers<[1], [0], [0], [1], [0, 0, 1, 1], [], []>} : vector<8x8xf32>, vector<8x256xf32>, vector<8x256xf32> -> vector<8x256xf32>
    %465 = arith.addf %456, %464 : vector<8x256xf32>
    %c0_541 = arith.constant 0 : index
    %c17_542 = arith.constant 17 : index
    %466 = vector.load %arg10[%c0_541, %c17_542] : memref<8x512xf32, #tpu.memory_space<vmem>>, vector<8x256xf32>
    %c0_543 = arith.constant 0 : index
    %c8_544 = arith.constant 8 : index
    %c0_545 = arith.constant 0 : index
    %c0_546 = arith.constant 0 : index
    %467 = vector.load %arg6[%c0_543, %c8_544, %c0_545, %c0_546] : memref<1x9x1x256xf32, #tpu.memory_space<vmem>>, vector<1x1x1x256xf32>
    %468 = vector.shape_cast %467 : vector<1x1x1x256xf32> to vector<1x256xf32>
    %469 = vector.broadcast %468 : vector<1x256xf32> to vector<8x256xf32>
    %470 = arith.mulf %466, %469 : vector<8x256xf32>
    %c4_547 = arith.constant 4 : index
    %c8_548 = arith.constant 8 : index
    %c0_549 = arith.constant 0 : index
    %c0_550 = arith.constant 0 : index
    %471 = vector.load %arg4[%c4_547, %c8_548, %c0_549, %c0_550] : memref<6x9x8x8xf32, #tpu.memory_space<vmem>>, vector<1x1x8x8xf32>
    %472 = vector.shape_cast %471 : vector<1x1x8x8xf32> to vector<8x8xf32>
    %cst_551 = arith.constant dense<0.000000e+00> : vector<8x256xf32>
    %473 = tpu.matmul %472, %470, %cst_551 {dimension_numbers = #tpu.dot_dimension_numbers<[1], [0], [0], [1], [0, 0, 1, 1], [], []>} : vector<8x8xf32>, vector<8x256xf32>, vector<8x256xf32> -> vector<8x256xf32>
    %474 = arith.addf %465, %473 : vector<8x256xf32>
    %c4_552 = arith.constant 4 : index
    %c0_553 = arith.constant 0 : index
    %c0_554 = arith.constant 0 : index
    %475 = vector.load %arg5[%c4_552, %c0_553, %c0_554] : memref<6x8x1xf32, #tpu.memory_space<vmem>>, vector<1x8x1xf32>
    %476 = vector.shape_cast %475 : vector<1x8x1xf32> to vector<8x1xf32>
    %477 = vector.broadcast %476 : vector<8x1xf32> to vector<8x256xf32>
    %478 = arith.addf %474, %477 : vector<8x256xf32>
    %cst_555 = arith.constant 0.000000e+00 : f32
    %479 = vector.broadcast %cst_555 : f32 to vector<8x256xf32>
    %480 = arith.cmpf oge, %478, %479 : vector<8x256xf32>
    %cst_556 = arith.constant 0.00999999977 : f32
    %481 = vector.broadcast %cst_556 : f32 to vector<8x256xf32>
    %482 = arith.mulf %481, %478 : vector<8x256xf32>
    %483 = arith.select %480, %478, %482 : vector<8x256xi1>, vector<8x256xf32>
    %c0_557 = arith.constant 0 : index
    %c0_558 = arith.constant 0 : index
    %484 = vector.load %arg10[%c0_557, %c0_558] : memref<8x512xf32, #tpu.memory_space<vmem>>, vector<8x256xf32>
    tpu.vector_store %arg10[%c0_557, %c0_558], %483 {strides = array<i32>} : memref<8x512xf32, #tpu.memory_space<vmem>>, vector<8x256xf32>,
    %c0_559 = arith.constant 0 : index
    %c256_560 = arith.constant 256 : index
    %485 = vector.load %arg10[%c0_559, %c256_560] : memref<8x512xf32, #tpu.memory_space<vmem>>, vector<8x256xf32>
    tpu.vector_store %arg10[%c0_559, %c256_560], %483 {strides = array<i32>} : memref<8x512xf32, #tpu.memory_space<vmem>>, vector<8x256xf32>,
    %cst_561 = arith.constant 0.000000e+00 : f32
    %486 = vector.broadcast %cst_561 : f32 to vector<8x256xf32>
    %c0_562 = arith.constant 0 : index
    %c239_563 = arith.constant 239 : index
    %487 = vector.load %arg10[%c0_562, %c239_563] : memref<8x512xf32, #tpu.memory_space<vmem>>, vector<8x256xf32>
    %c0_564 = arith.constant 0 : index
    %c0_565 = arith.constant 0 : index
    %c0_566 = arith.constant 0 : index
    %c0_567 = arith.constant 0 : index
    %488 = vector.load %arg6[%c0_564, %c0_565, %c0_566, %c0_567] : memref<1x9x1x256xf32, #tpu.memory_space<vmem>>, vector<1x1x1x256xf32>
    %489 = vector.shape_cast %488 : vector<1x1x1x256xf32> to vector<1x256xf32>
    %490 = vector.broadcast %489 : vector<1x256xf32> to vector<8x256xf32>
    %491 = arith.mulf %487, %490 : vector<8x256xf32>
    %c5_568 = arith.constant 5 : index
    %c0_569 = arith.constant 0 : index
    %c0_570 = arith.constant 0 : index
    %c0_571 = arith.constant 0 : index
    %492 = vector.load %arg4[%c5_568, %c0_569, %c0_570, %c0_571] : memref<6x9x8x8xf32, #tpu.memory_space<vmem>>, vector<1x1x8x8xf32>
    %493 = vector.shape_cast %492 : vector<1x1x8x8xf32> to vector<8x8xf32>
    %cst_572 = arith.constant dense<0.000000e+00> : vector<8x256xf32>
    %494 = tpu.matmul %493, %491, %cst_572 {dimension_numbers = #tpu.dot_dimension_numbers<[1], [0], [0], [1], [0, 0, 1, 1], [], []>} : vector<8x8xf32>, vector<8x256xf32>, vector<8x256xf32> -> vector<8x256xf32>
    %495 = arith.addf %486, %494 : vector<8x256xf32>
    %c0_573 = arith.constant 0 : index
    %c240_574 = arith.constant 240 : index
    %496 = vector.load %arg10[%c0_573, %c240_574] : memref<8x512xf32, #tpu.memory_space<vmem>>, vector<8x256xf32>
    %c0_575 = arith.constant 0 : index
    %c1_576 = arith.constant 1 : index
    %c0_577 = arith.constant 0 : index
    %c0_578 = arith.constant 0 : index
    %497 = vector.load %arg6[%c0_575, %c1_576, %c0_577, %c0_578] : memref<1x9x1x256xf32, #tpu.memory_space<vmem>>, vector<1x1x1x256xf32>
    %498 = vector.shape_cast %497 : vector<1x1x1x256xf32> to vector<1x256xf32>
    %499 = vector.broadcast %498 : vector<1x256xf32> to vector<8x256xf32>
    %500 = arith.mulf %496, %499 : vector<8x256xf32>
    %c5_579 = arith.constant 5 : index
    %c1_580 = arith.constant 1 : index
    %c0_581 = arith.constant 0 : index
    %c0_582 = arith.constant 0 : index
    %501 = vector.load %arg4[%c5_579, %c1_580, %c0_581, %c0_582] : memref<6x9x8x8xf32, #tpu.memory_space<vmem>>, vector<1x1x8x8xf32>
    %502 = vector.shape_cast %501 : vector<1x1x8x8xf32> to vector<8x8xf32>
    %cst_583 = arith.constant dense<0.000000e+00> : vector<8x256xf32>
    %503 = tpu.matmul %502, %500, %cst_583 {dimension_numbers = #tpu.dot_dimension_numbers<[1], [0], [0], [1], [0, 0, 1, 1], [], []>} : vector<8x8xf32>, vector<8x256xf32>, vector<8x256xf32> -> vector<8x256xf32>
    %504 = arith.addf %495, %503 : vector<8x256xf32>
    %c0_584 = arith.constant 0 : index
    %c241_585 = arith.constant 241 : index
    %505 = vector.load %arg10[%c0_584, %c241_585] : memref<8x512xf32, #tpu.memory_space<vmem>>, vector<8x256xf32>
    %c0_586 = arith.constant 0 : index
    %c2_587 = arith.constant 2 : index
    %c0_588 = arith.constant 0 : index
    %c0_589 = arith.constant 0 : index
    %506 = vector.load %arg6[%c0_586, %c2_587, %c0_588, %c0_589] : memref<1x9x1x256xf32, #tpu.memory_space<vmem>>, vector<1x1x1x256xf32>
    %507 = vector.shape_cast %506 : vector<1x1x1x256xf32> to vector<1x256xf32>
    %508 = vector.broadcast %507 : vector<1x256xf32> to vector<8x256xf32>
    %509 = arith.mulf %505, %508 : vector<8x256xf32>
    %c5_590 = arith.constant 5 : index
    %c2_591 = arith.constant 2 : index
    %c0_592 = arith.constant 0 : index
    %c0_593 = arith.constant 0 : index
    %510 = vector.load %arg4[%c5_590, %c2_591, %c0_592, %c0_593] : memref<6x9x8x8xf32, #tpu.memory_space<vmem>>, vector<1x1x8x8xf32>
    %511 = vector.shape_cast %510 : vector<1x1x8x8xf32> to vector<8x8xf32>
    %cst_594 = arith.constant dense<0.000000e+00> : vector<8x256xf32>
    %512 = tpu.matmul %511, %509, %cst_594 {dimension_numbers = #tpu.dot_dimension_numbers<[1], [0], [0], [1], [0, 0, 1, 1], [], []>} : vector<8x8xf32>, vector<8x256xf32>, vector<8x256xf32> -> vector<8x256xf32>
    %513 = arith.addf %504, %512 : vector<8x256xf32>
    %c0_595 = arith.constant 0 : index
    %c255_596 = arith.constant 255 : index
    %514 = vector.load %arg10[%c0_595, %c255_596] : memref<8x512xf32, #tpu.memory_space<vmem>>, vector<8x256xf32>
    %c0_597 = arith.constant 0 : index
    %c3_598 = arith.constant 3 : index
    %c0_599 = arith.constant 0 : index
    %c0_600 = arith.constant 0 : index
    %515 = vector.load %arg6[%c0_597, %c3_598, %c0_599, %c0_600] : memref<1x9x1x256xf32, #tpu.memory_space<vmem>>, vector<1x1x1x256xf32>
    %516 = vector.shape_cast %515 : vector<1x1x1x256xf32> to vector<1x256xf32>
    %517 = vector.broadcast %516 : vector<1x256xf32> to vector<8x256xf32>
    %518 = arith.mulf %514, %517 : vector<8x256xf32>
    %c5_601 = arith.constant 5 : index
    %c3_602 = arith.constant 3 : index
    %c0_603 = arith.constant 0 : index
    %c0_604 = arith.constant 0 : index
    %519 = vector.load %arg4[%c5_601, %c3_602, %c0_603, %c0_604] : memref<6x9x8x8xf32, #tpu.memory_space<vmem>>, vector<1x1x8x8xf32>
    %520 = vector.shape_cast %519 : vector<1x1x8x8xf32> to vector<8x8xf32>
    %cst_605 = arith.constant dense<0.000000e+00> : vector<8x256xf32>
    %521 = tpu.matmul %520, %518, %cst_605 {dimension_numbers = #tpu.dot_dimension_numbers<[1], [0], [0], [1], [0, 0, 1, 1], [], []>} : vector<8x8xf32>, vector<8x256xf32>, vector<8x256xf32> -> vector<8x256xf32>
    %522 = arith.addf %513, %521 : vector<8x256xf32>
    %c0_606 = arith.constant 0 : index
    %c0_607 = arith.constant 0 : index
    %523 = vector.load %arg10[%c0_606, %c0_607] : memref<8x512xf32, #tpu.memory_space<vmem>>, vector<8x256xf32>
    %c5_608 = arith.constant 5 : index
    %c4_609 = arith.constant 4 : index
    %c0_610 = arith.constant 0 : index
    %c0_611 = arith.constant 0 : index
    %524 = vector.load %arg4[%c5_608, %c4_609, %c0_610, %c0_611] : memref<6x9x8x8xf32, #tpu.memory_space<vmem>>, vector<1x1x8x8xf32>
    %525 = vector.shape_cast %524 : vector<1x1x8x8xf32> to vector<8x8xf32>
    %cst_612 = arith.constant dense<0.000000e+00> : vector<8x256xf32>
    %526 = tpu.matmul %525, %523, %cst_612 {dimension_numbers = #tpu.dot_dimension_numbers<[1], [0], [0], [1], [0, 0, 1, 1], [], []>} : vector<8x8xf32>, vector<8x256xf32>, vector<8x256xf32> -> vector<8x256xf32>
    %527 = arith.addf %522, %526 : vector<8x256xf32>
    %c0_613 = arith.constant 0 : index
    %c1_614 = arith.constant 1 : index
    %528 = vector.load %arg10[%c0_613, %c1_614] : memref<8x512xf32, #tpu.memory_space<vmem>>, vector<8x256xf32>
    %c0_615 = arith.constant 0 : index
    %c5_616 = arith.constant 5 : index
    %c0_617 = arith.constant 0 : index
    %c0_618 = arith.constant 0 : index
    %529 = vector.load %arg6[%c0_615, %c5_616, %c0_617, %c0_618] : memref<1x9x1x256xf32, #tpu.memory_space<vmem>>, vector<1x1x1x256xf32>
    %530 = vector.shape_cast %529 : vector<1x1x1x256xf32> to vector<1x256xf32>
    %531 = vector.broadcast %530 : vector<1x256xf32> to vector<8x256xf32>
    %532 = arith.mulf %528, %531 : vector<8x256xf32>
    %c5_619 = arith.constant 5 : index
    %c5_620 = arith.constant 5 : index
    %c0_621 = arith.constant 0 : index
    %c0_622 = arith.constant 0 : index
    %533 = vector.load %arg4[%c5_619, %c5_620, %c0_621, %c0_622] : memref<6x9x8x8xf32, #tpu.memory_space<vmem>>, vector<1x1x8x8xf32>
    %534 = vector.shape_cast %533 : vector<1x1x8x8xf32> to vector<8x8xf32>
    %cst_623 = arith.constant dense<0.000000e+00> : vector<8x256xf32>
    %535 = tpu.matmul %534, %532, %cst_623 {dimension_numbers = #tpu.dot_dimension_numbers<[1], [0], [0], [1], [0, 0, 1, 1], [], []>} : vector<8x8xf32>, vector<8x256xf32>, vector<8x256xf32> -> vector<8x256xf32>
    %536 = arith.addf %527, %535 : vector<8x256xf32>
    %c0_624 = arith.constant 0 : index
    %c15_625 = arith.constant 15 : index
    %537 = vector.load %arg10[%c0_624, %c15_625] : memref<8x512xf32, #tpu.memory_space<vmem>>, vector<8x256xf32>
    %c0_626 = arith.constant 0 : index
    %c6_627 = arith.constant 6 : index
    %c0_628 = arith.constant 0 : index
    %c0_629 = arith.constant 0 : index
    %538 = vector.load %arg6[%c0_626, %c6_627, %c0_628, %c0_629] : memref<1x9x1x256xf32, #tpu.memory_space<vmem>>, vector<1x1x1x256xf32>
    %539 = vector.shape_cast %538 : vector<1x1x1x256xf32> to vector<1x256xf32>
    %540 = vector.broadcast %539 : vector<1x256xf32> to vector<8x256xf32>
    %541 = arith.mulf %537, %540 : vector<8x256xf32>
    %c5_630 = arith.constant 5 : index
    %c6_631 = arith.constant 6 : index
    %c0_632 = arith.constant 0 : index
    %c0_633 = arith.constant 0 : index
    %542 = vector.load %arg4[%c5_630, %c6_631, %c0_632, %c0_633] : memref<6x9x8x8xf32, #tpu.memory_space<vmem>>, vector<1x1x8x8xf32>
    %543 = vector.shape_cast %542 : vector<1x1x8x8xf32> to vector<8x8xf32>
    %cst_634 = arith.constant dense<0.000000e+00> : vector<8x256xf32>
    %544 = tpu.matmul %543, %541, %cst_634 {dimension_numbers = #tpu.dot_dimension_numbers<[1], [0], [0], [1], [0, 0, 1, 1], [], []>} : vector<8x8xf32>, vector<8x256xf32>, vector<8x256xf32> -> vector<8x256xf32>
    %545 = arith.addf %536, %544 : vector<8x256xf32>
    %c0_635 = arith.constant 0 : index
    %c16_636 = arith.constant 16 : index
    %546 = vector.load %arg10[%c0_635, %c16_636] : memref<8x512xf32, #tpu.memory_space<vmem>>, vector<8x256xf32>
    %c0_637 = arith.constant 0 : index
    %c7_638 = arith.constant 7 : index
    %c0_639 = arith.constant 0 : index
    %c0_640 = arith.constant 0 : index
    %547 = vector.load %arg6[%c0_637, %c7_638, %c0_639, %c0_640] : memref<1x9x1x256xf32, #tpu.memory_space<vmem>>, vector<1x1x1x256xf32>
    %548 = vector.shape_cast %547 : vector<1x1x1x256xf32> to vector<1x256xf32>
    %549 = vector.broadcast %548 : vector<1x256xf32> to vector<8x256xf32>
    %550 = arith.mulf %546, %549 : vector<8x256xf32>
    %c5_641 = arith.constant 5 : index
    %c7_642 = arith.constant 7 : index
    %c0_643 = arith.constant 0 : index
    %c0_644 = arith.constant 0 : index
    %551 = vector.load %arg4[%c5_641, %c7_642, %c0_643, %c0_644] : memref<6x9x8x8xf32, #tpu.memory_space<vmem>>, vector<1x1x8x8xf32>
    %552 = vector.shape_cast %551 : vector<1x1x8x8xf32> to vector<8x8xf32>
    %cst_645 = arith.constant dense<0.000000e+00> : vector<8x256xf32>
    %553 = tpu.matmul %552, %550, %cst_645 {dimension_numbers = #tpu.dot_dimension_numbers<[1], [0], [0], [1], [0, 0, 1, 1], [], []>} : vector<8x8xf32>, vector<8x256xf32>, vector<8x256xf32> -> vector<8x256xf32>
    %554 = arith.addf %545, %553 : vector<8x256xf32>
    %c0_646 = arith.constant 0 : index
    %c17_647 = arith.constant 17 : index
    %555 = vector.load %arg10[%c0_646, %c17_647] : memref<8x512xf32, #tpu.memory_space<vmem>>, vector<8x256xf32>
    %c0_648 = arith.constant 0 : index
    %c8_649 = arith.constant 8 : index
    %c0_650 = arith.constant 0 : index
    %c0_651 = arith.constant 0 : index
    %556 = vector.load %arg6[%c0_648, %c8_649, %c0_650, %c0_651] : memref<1x9x1x256xf32, #tpu.memory_space<vmem>>, vector<1x1x1x256xf32>
    %557 = vector.shape_cast %556 : vector<1x1x1x256xf32> to vector<1x256xf32>
    %558 = vector.broadcast %557 : vector<1x256xf32> to vector<8x256xf32>
    %559 = arith.mulf %555, %558 : vector<8x256xf32>
    %c5_652 = arith.constant 5 : index
    %c8_653 = arith.constant 8 : index
    %c0_654 = arith.constant 0 : index
    %c0_655 = arith.constant 0 : index
    %560 = vector.load %arg4[%c5_652, %c8_653, %c0_654, %c0_655] : memref<6x9x8x8xf32, #tpu.memory_space<vmem>>, vector<1x1x8x8xf32>
    %561 = vector.shape_cast %560 : vector<1x1x8x8xf32> to vector<8x8xf32>
    %cst_656 = arith.constant dense<0.000000e+00> : vector<8x256xf32>
    %562 = tpu.matmul %561, %559, %cst_656 {dimension_numbers = #tpu.dot_dimension_numbers<[1], [0], [0], [1], [0, 0, 1, 1], [], []>} : vector<8x8xf32>, vector<8x256xf32>, vector<8x256xf32> -> vector<8x256xf32>
    %563 = arith.addf %554, %562 : vector<8x256xf32>
    %c5_657 = arith.constant 5 : index
    %c0_658 = arith.constant 0 : index
    %c0_659 = arith.constant 0 : index
    %564 = vector.load %arg5[%c5_657, %c0_658, %c0_659] : memref<6x8x1xf32, #tpu.memory_space<vmem>>, vector<1x8x1xf32>
    %565 = vector.shape_cast %564 : vector<1x8x1xf32> to vector<8x1xf32>
    %566 = vector.broadcast %565 : vector<8x1xf32> to vector<8x256xf32>
    %567 = arith.addf %563, %566 : vector<8x256xf32>
    %c0_660 = arith.constant 0 : index
    %c0_661 = arith.constant 0 : index
    %568 = vector.load %arg10[%c0_660, %c0_661] : memref<8x512xf32, #tpu.memory_space<vmem>>, vector<8x256xf32>
    tpu.vector_store %arg10[%c0_660, %c0_661], %567 {strides = array<i32>} : memref<8x512xf32, #tpu.memory_space<vmem>>, vector<8x256xf32>,
    %c0_662 = arith.constant 0 : index
    %c256_663 = arith.constant 256 : index
    %569 = vector.load %arg10[%c0_662, %c256_663] : memref<8x512xf32, #tpu.memory_space<vmem>>, vector<8x256xf32>
    tpu.vector_store %arg10[%c0_662, %c256_663], %567 {strides = array<i32>} : memref<8x512xf32, #tpu.memory_space<vmem>>, vector<8x256xf32>,
    %c0_664 = arith.constant 0 : index
    %c0_665 = arith.constant 0 : index
    %570 = vector.load %arg10[%c0_664, %c0_665] : memref<8x512xf32, #tpu.memory_space<vmem>>, vector<1x256xf32>
    %c1_666 = arith.constant 1 : index
    %c0_667 = arith.constant 0 : index
    %571 = vector.load %arg10[%c1_666, %c0_667] : memref<8x512xf32, #tpu.memory_space<vmem>>, vector<1x256xf32>
    %c0_668 = arith.constant 0 : index
    %c0_669 = arith.constant 0 : index
    %572 = vector.load %arg7[%c0_668, %c0_669] : memref<256x256xf32, #tpu.memory_space<vmem>>, vector<256x256xf32>
    %cst_670 = arith.constant dense<0.000000e+00> : vector<1x256xf32>
    %573 = tpu.matmul %570, %572, %cst_670 {dimension_numbers = #tpu.dot_dimension_numbers<[1], [0], [0], [1], [0, 0, 1, 1], [], []>} : vector<1x256xf32>, vector<256x256xf32>, vector<1x256xf32> -> vector<1x256xf32>
    %c0_671 = arith.constant 0 : index
    %c0_672 = arith.constant 0 : index
    %574 = vector.load %arg8[%c0_671, %c0_672] : memref<256x256xf32, #tpu.memory_space<vmem>>, vector<256x256xf32>
    %cst_673 = arith.constant dense<0.000000e+00> : vector<1x256xf32>
    %575 = tpu.matmul %571, %574, %cst_673 {dimension_numbers = #tpu.dot_dimension_numbers<[1], [0], [0], [1], [0, 0, 1, 1], [], []>} : vector<1x256xf32>, vector<256x256xf32>, vector<1x256xf32> -> vector<1x256xf32>
    %576 = arith.subf %573, %575 : vector<1x256xf32>
    %c0_674 = arith.constant 0 : index
    %c0_675 = arith.constant 0 : index
    %577 = vector.load %arg8[%c0_674, %c0_675] : memref<256x256xf32, #tpu.memory_space<vmem>>, vector<256x256xf32>
    %cst_676 = arith.constant dense<0.000000e+00> : vector<1x256xf32>
    %578 = tpu.matmul %570, %577, %cst_676 {dimension_numbers = #tpu.dot_dimension_numbers<[1], [0], [0], [1], [0, 0, 1, 1], [], []>} : vector<1x256xf32>, vector<256x256xf32>, vector<1x256xf32> -> vector<1x256xf32>
    %c0_677 = arith.constant 0 : index
    %c0_678 = arith.constant 0 : index
    %579 = vector.load %arg7[%c0_677, %c0_678] : memref<256x256xf32, #tpu.memory_space<vmem>>, vector<256x256xf32>
    %cst_679 = arith.constant dense<0.000000e+00> : vector<1x256xf32>
    %580 = tpu.matmul %571, %579, %cst_679 {dimension_numbers = #tpu.dot_dimension_numbers<[1], [0], [0], [1], [0, 0, 1, 1], [], []>} : vector<1x256xf32>, vector<256x256xf32>, vector<1x256xf32> -> vector<1x256xf32>
    %581 = arith.addf %578, %580 : vector<1x256xf32>
    %582 = arith.mulf %3, %576 : vector<1x256xf32>
    %583 = arith.mulf %1, %5 : vector<1x256xf32>
    %584 = arith.addf %582, %583 : vector<1x256xf32>
    %585 = arith.mulf %3, %581 : vector<1x256xf32>
    %586 = arith.mulf %1, %7 : vector<1x256xf32>
    %587 = arith.addf %585, %586 : vector<1x256xf32>
    %c0_680 = arith.constant 0 : index
    %c0_681 = arith.constant 0 : index
    %588 = vector.load %arg7[%c0_680, %c0_681] : memref<256x256xf32, #tpu.memory_space<vmem>>, vector<256x256xf32>
    %cst_682 = arith.constant dense<0.000000e+00> : vector<1x256xf32>
    %589 = tpu.matmul %584, %588, %cst_682 {dimension_numbers = #tpu.dot_dimension_numbers<[1], [0], [0], [1], [0, 0, 1, 1], [], []>} : vector<1x256xf32>, vector<256x256xf32>, vector<1x256xf32> -> vector<1x256xf32>
    %c0_683 = arith.constant 0 : index
    %c0_684 = arith.constant 0 : index
    %590 = vector.load %arg8[%c0_683, %c0_684] : memref<256x256xf32, #tpu.memory_space<vmem>>, vector<256x256xf32>
    %cst_685 = arith.constant dense<0.000000e+00> : vector<1x256xf32>
    %591 = tpu.matmul %587, %590, %cst_685 {dimension_numbers = #tpu.dot_dimension_numbers<[1], [0], [0], [1], [0, 0, 1, 1], [], []>} : vector<1x256xf32>, vector<256x256xf32>, vector<1x256xf32> -> vector<1x256xf32>
    %592 = arith.addf %589, %591 : vector<1x256xf32>
    %c0_686 = arith.constant 0 : index
    %c0_687 = arith.constant 0 : index
    %593 = vector.load %arg7[%c0_686, %c0_687] : memref<256x256xf32, #tpu.memory_space<vmem>>, vector<256x256xf32>
    %cst_688 = arith.constant dense<0.000000e+00> : vector<1x256xf32>
    %594 = tpu.matmul %587, %593, %cst_688 {dimension_numbers = #tpu.dot_dimension_numbers<[1], [0], [0], [1], [0, 0, 1, 1], [], []>} : vector<1x256xf32>, vector<256x256xf32>, vector<1x256xf32> -> vector<1x256xf32>
    %c0_689 = arith.constant 0 : index
    %c0_690 = arith.constant 0 : index
    %595 = vector.load %arg8[%c0_689, %c0_690] : memref<256x256xf32, #tpu.memory_space<vmem>>, vector<256x256xf32>
    %cst_691 = arith.constant dense<0.000000e+00> : vector<1x256xf32>
    %596 = tpu.matmul %584, %595, %cst_691 {dimension_numbers = #tpu.dot_dimension_numbers<[1], [0], [0], [1], [0, 0, 1, 1], [], []>} : vector<1x256xf32>, vector<256x256xf32>, vector<1x256xf32> -> vector<1x256xf32>
    %597 = arith.subf %594, %596 : vector<1x256xf32>
    %c0_692 = arith.constant 0 : index
    %c0_693 = arith.constant 0 : index
    %598 = vector.load %arg10[%c0_692, %c0_693] : memref<8x512xf32, #tpu.memory_space<vmem>>, vector<1x256xf32>
    tpu.vector_store %arg10[%c0_692, %c0_693], %592 {strides = array<i32>} : memref<8x512xf32, #tpu.memory_space<vmem>>, vector<1x256xf32>,
    %c0_694 = arith.constant 0 : index
    %c256_695 = arith.constant 256 : index
    %599 = vector.load %arg10[%c0_694, %c256_695] : memref<8x512xf32, #tpu.memory_space<vmem>>, vector<1x256xf32>
    tpu.vector_store %arg10[%c0_694, %c256_695], %592 {strides = array<i32>} : memref<8x512xf32, #tpu.memory_space<vmem>>, vector<1x256xf32>,
    %c1_696 = arith.constant 1 : index
    %c0_697 = arith.constant 0 : index
    %600 = vector.load %arg10[%c1_696, %c0_697] : memref<8x512xf32, #tpu.memory_space<vmem>>, vector<1x256xf32>
    tpu.vector_store %arg10[%c1_696, %c0_697], %597 {strides = array<i32>} : memref<8x512xf32, #tpu.memory_space<vmem>>, vector<1x256xf32>,
    %c1_698 = arith.constant 1 : index
    %c256_699 = arith.constant 256 : index
    %601 = vector.load %arg10[%c1_698, %c256_699] : memref<8x512xf32, #tpu.memory_space<vmem>>, vector<1x256xf32>
    tpu.vector_store %arg10[%c1_698, %c256_699], %597 {strides = array<i32>} : memref<8x512xf32, #tpu.memory_space<vmem>>, vector<1x256xf32>,
    %c0_700 = arith.constant 0 : index
    %c0_701 = arith.constant 0 : index
    %602 = vector.load %arg10[%c0_700, %c0_701] : memref<8x512xf32, #tpu.memory_space<vmem>>, vector<2x256xf32>
    %c0_702 = arith.constant 0 : index
    %c0_703 = arith.constant 0 : index
    %c0_704 = arith.constant 0 : index
    %603 = vector.load %arg9[%c0_702, %c0_703, %c0_704] : memref<1x2x256xf32, #tpu.memory_space<vmem>>, vector<1x2x256xf32>
    %604 = vector.shape_cast %603 : vector<1x2x256xf32> to vector<2x256xf32>
    %605 = vector.shape_cast %602 : vector<2x256xf32> to vector<1x2x256xf32>
    tpu.vector_store %arg9[%c0_702, %c0_703, %c0_704], %605 {strides = array<i32>} : memref<1x2x256xf32, #tpu.memory_space<vmem>>, vector<1x2x256xf32>,
    return
  }
  func.func @transform_0(%arg0: i32) -> (i32, i32, i32) {
    %c0_i32 = arith.constant 0 : i32
    %c0_i32_0 = arith.constant 0 : i32
    %c0_i32_1 = arith.constant 0 : i32
    return %arg0, %c0_i32, %c0_i32_0 : i32, i32, i32
  }
  func.func @transform_1(%arg0: i32) -> (i32, i32, i32) {
    %c0_i32 = arith.constant 0 : i32
    %c0_i32_0 = arith.constant 0 : i32
    %c0_i32_1 = arith.constant 0 : i32
    return %arg0, %c0_i32, %c0_i32_0 : i32, i32, i32
  }
  func.func @transform_2(%arg0: i32) -> (i32, i32, i32) {
    %c0_i32 = arith.constant 0 : i32
    %c0_i32_0 = arith.constant 0 : i32
    %c0_i32_1 = arith.constant 0 : i32
    return %arg0, %c0_i32, %c0_i32_0 : i32, i32, i32
  }
  func.func @transform_3(%arg0: i32) -> (i32, i32, i32, i32) {
    %c0_i32 = arith.constant 0 : i32
    %c0_i32_0 = arith.constant 0 : i32
    %c0_i32_1 = arith.constant 0 : i32
    %c0_i32_2 = arith.constant 0 : i32
    %c0_i32_3 = arith.constant 0 : i32
    return %c0_i32, %c0_i32_0, %c0_i32_1, %c0_i32_2 : i32, i32, i32, i32
  }
  func.func @transform_4(%arg0: i32) -> (i32, i32, i32) {
    %c0_i32 = arith.constant 0 : i32
    %c0_i32_0 = arith.constant 0 : i32
    %c0_i32_1 = arith.constant 0 : i32
    %c0_i32_2 = arith.constant 0 : i32
    return %c0_i32, %c0_i32_0, %c0_i32_1 : i32, i32, i32
  }
  func.func @transform_5(%arg0: i32) -> (i32, i32, i32, i32) {
    %c0_i32 = arith.constant 0 : i32
    %c0_i32_0 = arith.constant 0 : i32
    %c0_i32_1 = arith.constant 0 : i32
    %c0_i32_2 = arith.constant 0 : i32
    %c0_i32_3 = arith.constant 0 : i32
    return %c0_i32, %c0_i32_0, %c0_i32_1, %c0_i32_2 : i32, i32, i32, i32
  }
  func.func @transform_6(%arg0: i32) -> (i32, i32) {
    %c0_i32 = arith.constant 0 : i32
    %c0_i32_0 = arith.constant 0 : i32
    %c0_i32_1 = arith.constant 0 : i32
    return %c0_i32, %c0_i32_0 : i32, i32
  }
  func.func @transform_7(%arg0: i32) -> (i32, i32) {
    %c0_i32 = arith.constant 0 : i32
    %c0_i32_0 = arith.constant 0 : i32
    %c0_i32_1 = arith.constant 0 : i32
    return %c0_i32, %c0_i32_0 : i32, i32
  }
  func.func @transform_8(%arg0: i32) -> (i32, i32, i32) {
    %c0_i32 = arith.constant 0 : i32
    %c0_i32_0 = arith.constant 0 : i32
    %c0_i32_1 = arith.constant 0 : i32
    return %arg0, %c0_i32, %c0_i32_0 : i32, i32, i32
  }
}

</mosaic_0001>

<llo_original>
// kernel: recnet_forward_pallas.1
$region0: #{recnet_forward_pallas.1}
  #allocation0 [shape = 'u32[]', space=smem, size = 0x4, offset = 0x4, fixed_abs, tag = 'smem constant byte address 0x4 - core index']
  #allocation1 [shape = 'u32[144,128]{1,0:T(1,128)}', space=vmem, size = 0x12000, scoped, tag = 'internal scratch']
  #allocation2 [shape = 'f32[8,512]{1,0:T(8,128)}', space=vmem, size = 0x4000, scoped, tag = 'scratch operand']
  %s0 = inlined_call_operand.vmem [shape: f32[2,2,256], index: 0, kind: input, shape index: {}]
  %s1 = inlined_call_operand.vmem [shape: f32[2,2,256], index: 1, kind: input, shape index: {}]
  %s2 = inlined_call_operand.vmem [shape: f32[2,1,256], index: 2, kind: input, shape index: {}]
  %s3 = inlined_call_operand.vmem [shape: f32[6,9,8,8], index: 3, kind: input, shape index: {}]
  %s4 = inlined_call_operand.vmem [shape: f32[6,8,1], index: 4, kind: input, shape index: {}]
  %s5 = inlined_call_operand.vmem [shape: f32[1,9,1,256], index: 5, kind: input, shape index: {}]
  %s6 = inlined_call_operand.vmem [shape: f32[256,256], index: 6, kind: input, shape index: {}]
  %s7 = inlined_call_operand.vmem [shape: f32[256,256], index: 7, kind: input, shape index: {}]
  %s8 = inlined_call_operand.vmem [shape: f32[2,2,256], index: 8, kind: output, shape index: {}]
  %s9 = sld [smem:[#allocation0]]
  $region65: #{recnet_forward_pallas.1} parent=0
    _
  %s11 = ssub.s32 1, %s9
  %s12 = scalar_select 0, %s11, %s9
  loop: start=0, step=1, limit=4
  $region2: #{recnet_forward_pallas.1} parent=0 // loop_pre_header
    _
  $region3: #{recnet_forward_pallas.1} parent=0 // loop_header
    %s14 = sphi 0, %s18
    %p15 = scmp.ge.s32.totalorder %s14, 4
    %s24 = sphi 0, %s26
    %s27 = sphi 0, %s24
    %s28 = sphi 0, %s27
    %s44 = sphi 0, %s28
    %s50 = sphi 0, %s52
    %s53 = sphi 0, %s50
    %s54 = sphi 0, %s53
    %s70 = sphi 0, %s54
    %s76 = sphi 0, %s78
    %s79 = sphi 0, %s76
    %s80 = sphi 0, %s79
    %s96 = sphi 0, %s80
    %s100 = sphi 0, %s100
    %s102 = sphi 0, %s100
    %s103 = sphi 0, %s102
    %s117 = sphi 0, %s103
    %s121 = sphi 0, %s121
    %s123 = sphi 0, %s121
    %s124 = sphi 0, %s123
    %s138 = sphi 0, %s124
    %s142 = sphi 0, %s142
    %s144 = sphi 0, %s142
    %s145 = sphi 0, %s144
    %s159 = sphi 0, %s145
    %s163 = sphi 0, %s163
    %s165 = sphi 0, %s163
    %s166 = sphi 0, %s165
    %s180 = sphi 0, %s166
    %s184 = sphi 0, %s184
    %s186 = sphi 0, %s184
    %s187 = sphi 0, %s186
    %s201 = sphi 0, %s187
    %s207 = sphi 0, %s209
    %s210 = sphi 0, %s207
    %s211 = sphi 0, %s210
    %s227 = sphi 0, %s211
  $region4: #{recnet_forward_pallas.1} parent=0 // loop_header_branch
    %17 = sbr.rel (%p15) target = $region8
  $region5: #{recnet_forward_pallas.1} parent=0 // loop_body
    %s19 = ssub.s32 %s14, 1
    %s20 = ssub.s32 %s14, 2
    %s21 = sadd.s32 %s14, 1
    %s22 = ssub.s32 %s14, %s21
    %p23 = scmp.eq.s32.totalorder %s22, 0
    %s25 = sadd.s32 %s24, 1
    %s26 = scalar_select %p23, %s24, %s25
    %p29 = pneg %p23
    %p30 = scmp.eq.s32.totalorder %s14, 1
    %p31 = por %p29, %p30
    %p32 = scmp.ne.s32.totalorder %s24, %s27
    %p33 = scmp.eq.s32.totalorder %s14, 0
    %p34 = por %p32, %p33
    %p35 = scmp.ne.s32.totalorder %s24, %s27
    %p36 = scmp.eq.s32.totalorder %s19, 1
    %p37 = por %p35, %p36
    %p38 = scmp.ne.s32.totalorder %s27, %s28
    %p39 = scmp.eq.s32.totalorder %s19, 0
    %p40 = por %p38, %p39
    %p41 = scmp.ne.s32.totalorder %s27, %s28
    %p42 = scmp.eq.s32.totalorder %s20, 1
    %p43 = por %p41, %p42
    %p45 = scmp.ne.s32.totalorder %s28, %s44
    %p46 = scmp.eq.s32.totalorder %s20, 0
    %p47 = por %p45, %p46
    %s48 = ssub.s32 %s14, %s21
    %p49 = scmp.eq.s32.totalorder %s48, 0
    %s51 = sadd.s32 %s50, 1
    %s52 = scalar_select %p49, %s50, %s51
    %p55 = pneg %p49
    %p56 = scmp.eq.s32.totalorder %s14, 1
    %p57 = por %p55, %p56
    %p58 = scmp.ne.s32.totalorder %s50, %s53
    %p59 = scmp.eq.s32.totalorder %s14, 0
    %p60 = por %p58, %p59
    %p61 = scmp.ne.s32.totalorder %s50, %s53
    %p62 = scmp.eq.s32.totalorder %s19, 1
    %p63 = por %p61, %p62
    %p64 = scmp.ne.s32.totalorder %s53, %s54
    %p65 = scmp.eq.s32.totalorder %s19, 0
    %p66 = por %p64, %p65
    %p67 = scmp.ne.s32.totalorder %s53, %s54
    %p68 = scmp.eq.s32.totalorder %s20, 1
    %p69 = por %p67, %p68
    %p71 = scmp.ne.s32.totalorder %s54, %s70
    %p72 = scmp.eq.s32.totalorder %s20, 0
    %p73 = por %p71, %p72
    %s74 = ssub.s32 %s14, %s21
    %p75 = scmp.eq.s32.totalorder %s74, 0
    %s77 = sadd.s32 %s76, 1
    %s78 = scalar_select %p75, %s76, %s77
    %p81 = pneg %p75
    %p82 = scmp.eq.s32.totalorder %s14, 1
    %p83 = por %p81, %p82
    %p84 = scmp.ne.s32.totalorder %s76, %s79
    %p85 = scmp.eq.s32.totalorder %s14, 0
    %p86 = por %p84, %p85
    %p87 = scmp.ne.s32.totalorder %s76, %s79
    %p88 = scmp.eq.s32.totalorder %s19, 1
    %p89 = por %p87, %p88
    %p90 = scmp.ne.s32.totalorder %s79, %s80
    %p91 = scmp.eq.s32.totalorder %s19, 0
    %p92 = por %p90, %p91
    %p93 = scmp.ne.s32.totalorder %s79, %s80
    %p94 = scmp.eq.s32.totalorder %s20, 1
    %p95 = por %p93, %p94
    %p97 = scmp.ne.s32.totalorder %s80, %s96
    %p98 = scmp.eq.s32.totalorder %s20, 0
    %p99 = por %p97, %p98
    %s101 = sadd.s32 %s100, 1
    %p104 = scmp.eq.s32.totalorder %s14, 1
    %p105 = scmp.ne.s32.totalorder %s100, %s102
    %p106 = scmp.eq.s32.totalorder %s14, 0
    %p107 = por %p105, %p106
    %p108 = scmp.ne.s32.totalorder %s100, %s102
    %p109 = scmp.eq.s32.totalorder %s19, 1
    %p110 = por %p108, %p109
    %p111 = scmp.ne.s32.totalorder %s102, %s103
    %p112 = scmp.eq.s32.totalorder %s19, 0
    %p113 = por %p111, %p112
    %p114 = scmp.ne.s32.totalorder %s102, %s103
    %p115 = scmp.eq.s32.totalorder %s20, 1
    %p116 = por %p114, %p115
    %p118 = scmp.ne.s32.totalorder %s103, %s117
    %p119 = scmp.eq.s32.totalorder %s20, 0
    %p120 = por %p118, %p119
    %s122 = sadd.s32 %s121, 1
    %p125 = scmp.eq.s32.totalorder %s14, 1
    %p126 = scmp.ne.s32.totalorder %s121, %s123
    %p127 = scmp.eq.s32.totalorder %s14, 0
    %p128 = por %p126, %p127
    %p129 = scmp.ne.s32.totalorder %s121, %s123
    %p130 = scmp.eq.s32.totalorder %s19, 1
    %p131 = por %p129, %p130
    %p132 = scmp.ne.s32.totalorder %s123, %s124
    %p133 = scmp.eq.s32.totalorder %s19, 0
    %p134 = por %p132, %p133
    %p135 = scmp.ne.s32.totalorder %s123, %s124
    %p136 = scmp.eq.s32.totalorder %s20, 1
    %p137 = por %p135, %p136
    %p139 = scmp.ne.s32.totalorder %s124, %s138
    %p140 = scmp.eq.s32.totalorder %s20, 0
    %p141 = por %p139, %p140
    %s143 = sadd.s32 %s142, 1
    %p146 = scmp.eq.s32.totalorder %s14, 1
    %p147 = scmp.ne.s32.totalorder %s142, %s144
    %p148 = scmp.eq.s32.totalorder %s14, 0
    %p149 = por %p147, %p148
    %p150 = scmp.ne.s32.totalorder %s142, %s144
    %p151 = scmp.eq.s32.totalorder %s19, 1
    %p152 = por %p150, %p151
    %p153 = scmp.ne.s32.totalorder %s144, %s145
    %p154 = scmp.eq.s32.totalorder %s19, 0
    %p155 = por %p153, %p154
    %p156 = scmp.ne.s32.totalorder %s144, %s145
    %p157 = scmp.eq.s32.totalorder %s20, 1
    %p158 = por %p156, %p157
    %p160 = scmp.ne.s32.totalorder %s145, %s159
    %p161 = scmp.eq.s32.totalorder %s20, 0
    %p162 = por %p160, %p161
    %s164 = sadd.s32 %s163, 1
    %p167 = scmp.eq.s32.totalorder %s14, 1
    %p168 = scmp.ne.s32.totalorder %s163, %s165
    %p169 = scmp.eq.s32.totalorder %s14, 0
    %p170 = por %p168, %p169
    %p171 = scmp.ne.s32.totalorder %s163, %s165
    %p172 = scmp.eq.s32.totalorder %s19, 1
    %p173 = por %p171, %p172
    %p174 = scmp.ne.s32.totalorder %s165, %s166
    %p175 = scmp.eq.s32.totalorder %s19, 0
    %p176 = por %p174, %p175
    %p177 = scmp.ne.s32.totalorder %s165, %s166
    %p178 = scmp.eq.s32.totalorder %s20, 1
    %p179 = por %p177, %p178
    %p181 = scmp.ne.s32.totalorder %s166, %s180
    %p182 = scmp.eq.s32.totalorder %s20, 0
    %p183 = por %p181, %p182
    %s185 = sadd.s32 %s184, 1
    %p188 = scmp.eq.s32.totalorder %s14, 1
    %p189 = scmp.ne.s32.totalorder %s184, %s186
    %p190 = scmp.eq.s32.totalorder %s14, 0
    %p191 = por %p189, %p190
    %p192 = scmp.ne.s32.totalorder %s184, %s186
    %p193 = scmp.eq.s32.totalorder %s19, 1
    %p194 = por %p192, %p193
    %p195 = scmp.ne.s32.totalorder %s186, %s187
    %p196 = scmp.eq.s32.totalorder %s19, 0
    %p197 = por %p195, %p196
    %p198 = scmp.ne.s32.totalorder %s186, %s187
    %p199 = scmp.eq.s32.totalorder %s20, 1
    %p200 = por %p198, %p199
    %p202 = scmp.ne.s32.totalorder %s187, %s201
    %p203 = scmp.eq.s32.totalorder %s20, 0
    %p204 = por %p202, %p203
    %s205 = ssub.s32 %s14, %s21
    %p206 = scmp.eq.s32.totalorder %s205, 0
    %s208 = sadd.s32 %s207, 1
    %s209 = scalar_select %p206, %s207, %s208
    %p212 = pneg %p206
    %p213 = scmp.eq.s32.totalorder %s14, 1
    %p214 = por %p212, %p213
    %p215 = scmp.ne.s32.totalorder %s207, %s210
    %p216 = scmp.eq.s32.totalorder %s14, 0
    %p217 = por %p215, %p216
    %p218 = scmp.ne.s32.totalorder %s207, %s210
    %p219 = scmp.eq.s32.totalorder %s19, 1
    %p220 = por %p218, %p219
    %p221 = scmp.ne.s32.totalorder %s210, %s211
    %p222 = scmp.eq.s32.totalorder %s19, 0
    %p223 = por %p221, %p222
    %p224 = scmp.ne.s32.totalorder %s210, %s211
    %p225 = scmp.eq.s32.totalorder %s20, 1
    %p226 = por %p224, %p225
    %p228 = scmp.ne.s32.totalorder %s211, %s227
    %p229 = scmp.eq.s32.totalorder %s20, 0
    %p230 = por %p228, %p229
    %p231 = scmp.le.s32.totalorder 1, %s14
    %p232 = scmp.lt.s32.totalorder %s14, 3
    %p233 = pnand %p231, %p232
    %p234 = pneg %p233
    // Predicated region
    $region9: #{recnet_forward_pallas.1} parent=5 // pred_check
      _
    $region10: #{recnet_forward_pallas.1} parent=5 // pred_check_branch
      %236 = sbr.rel (%p233) target = $region12
    $region11: #{recnet_forward_pallas.1} parent=5 // pred_region
      %s237 = ssub.s32 %s14, 1
      // Predicated region
      $region13: #{recnet_forward_pallas.1} parent=11 // pred_check
        %p238 = pneg %p113
      $region14: #{recnet_forward_pallas.1} parent=11 // pred_check_branch
        %240 = sbr.rel (%p238) target = $region16
      $region15: #{recnet_forward_pallas.1} parent=11 // pred_region
        _
      $region16: #{recnet_forward_pallas.1} parent=11 // pred_fallthru
        _
      // Predicated region
      $region17: #{recnet_forward_pallas.1} parent=11 // pred_check
        %p241 = pneg %p134
      $region18: #{recnet_forward_pallas.1} parent=11 // pred_check_branch
        %243 = sbr.rel (%p241) target = $region20
      $region19: #{recnet_forward_pallas.1} parent=11 // pred_region
        _
      $region20: #{recnet_forward_pallas.1} parent=11 // pred_fallthru
        _
      // Predicated region
      $region21: #{recnet_forward_pallas.1} parent=11 // pred_check
        %p244 = pneg %p155
      $region22: #{recnet_forward_pallas.1} parent=11 // pred_check_branch
        %246 = sbr.rel (%p244) target = $region24
      $region23: #{recnet_forward_pallas.1} parent=11 // pred_region
        _
      $region24: #{recnet_forward_pallas.1} parent=11 // pred_fallthru
        _
      // Predicated region
      $region25: #{recnet_forward_pallas.1} parent=11 // pred_check
        %p247 = pneg %p176
      $region26: #{recnet_forward_pallas.1} parent=11 // pred_check_branch
        %249 = sbr.rel (%p247) target = $region28
      $region27: #{recnet_forward_pallas.1} parent=11 // pred_region
        _
      $region28: #{recnet_forward_pallas.1} parent=11 // pred_fallthru
        _
      // Predicated region
      $region29: #{recnet_forward_pallas.1} parent=11 // pred_check
        %p250 = pneg %p197
      $region30: #{recnet_forward_pallas.1} parent=11 // pred_check_branch
        %252 = sbr.rel (%p250) target = $region32
      $region31: #{recnet_forward_pallas.1} parent=11 // pred_region
        _
      $region32: #{recnet_forward_pallas.1} parent=11 // pred_fallthru
        _
    $region12: #{recnet_forward_pallas.1} parent=5 // pred_fallthru
      _
    %p253 = scmp.lt.s32.totalorder %s14, 2
    // Predicated region
    $region33: #{recnet_forward_pallas.1} parent=5 // pred_check
      %p254 = pneg %p253
    $region34: #{recnet_forward_pallas.1} parent=5 // pred_check_branch
      %256 = sbr.rel (%p254) target = $region36
    $region35: #{recnet_forward_pallas.1} parent=5 // pred_region
      // Predicated region
      $region37: #{recnet_forward_pallas.1} parent=35 // pred_check
        %p257 = pneg %p34
      $region38: #{recnet_forward_pallas.1} parent=35 // pred_check_branch
        %259 = sbr.rel (%p257) target = $region40
      $region39: #{recnet_forward_pallas.1} parent=35 // pred_region
        %p260 = scmp.lt.s32.totalorder %s14, 1
        %s261 = scalar_select %p260, %s14, 1
        %s262 = smul.addr %s261, 2
        %s263 = smul.addr %s262, 2
        %s264 = scalar_lea.vmem %s0, %s263
      $region40: #{recnet_forward_pallas.1} parent=35 // pred_fallthru
        _
      // Predicated region
      $region41: #{recnet_forward_pallas.1} parent=35 // pred_check
        %p265 = pneg %p60
      $region42: #{recnet_forward_pallas.1} parent=35 // pred_check_branch
        %267 = sbr.rel (%p265) target = $region44
      $region43: #{recnet_forward_pallas.1} parent=35 // pred_region
        %p268 = scmp.lt.s32.totalorder %s14, 1
        %s269 = scalar_select %p268, %s14, 1
        %s270 = smul.addr %s269, 2
        %s271 = smul.addr %s270, 2
        %s272 = scalar_lea.vmem %s1, %s271
      $region44: #{recnet_forward_pallas.1} parent=35 // pred_fallthru
        _
      // Predicated region
      $region45: #{recnet_forward_pallas.1} parent=35 // pred_check
        %p273 = pneg %p86
      $region46: #{recnet_forward_pallas.1} parent=35 // pred_check_branch
        %275 = sbr.rel (%p273) target = $region48
      $region47: #{recnet_forward_pallas.1} parent=35 // pred_region
        %p276 = scmp.lt.s32.totalorder %s14, 1
        %s277 = scalar_select %p276, %s14, 1
        %s278 = smul.addr %s277, 2
        %s279 = scalar_lea.vmem %s2, %s278
      $region48: #{recnet_forward_pallas.1} parent=35 // pred_fallthru
        _
    $region36: #{recnet_forward_pallas.1} parent=5 // pred_fallthru
      _
    %p280 = scmp.le.s32.totalorder 1, %s14
    %p281 = scmp.lt.s32.totalorder %s14, 3
    %p282 = pnand %p280, %p281
    %p283 = pneg %p282
    // Predicated region
    $region49: #{recnet_forward_pallas.1} parent=5 // pred_check
      _
    $region50: #{recnet_forward_pallas.1} parent=5 // pred_check_branch
      %285 = sbr.rel (%p282) target = $region52
    $region51: #{recnet_forward_pallas.1} parent=5 // pred_region
      %s286 = ssub.s32 %s14, 1
      %p287 = scmp.lt.s32.totalorder %s19, 1
      %s288 = scalar_select %p287, %s19, 1
      %s289 = smul.addr %s288, 2
      %s290 = smul.addr %s289, 2
      %s291 = scalar_lea.vmem %s0, %s290
      %p292 = pneg %p40
      %p293 = pneg %p37
      %p294 = scmp.lt.s32.totalorder %s19, 1
      %s295 = scalar_select %p294, %s19, 1
      %s296 = smul.addr %s295, 2
      %s297 = smul.addr %s296, 2
      %s298 = scalar_lea.vmem %s1, %s297
      %p299 = pneg %p66
      %p300 = pneg %p63
      %p301 = scmp.lt.s32.totalorder %s19, 1
      %s302 = scalar_select %p301, %s19, 1
      %s303 = smul.addr %s302, 2
      %s304 = scalar_lea.vmem %s2, %s303
      %p305 = pneg %p92
      %p306 = pneg %p89
      %p307 = pneg %p113
      %p308 = pneg %p110
      %p309 = pneg %p134
      %p310 = pneg %p131
      %p311 = pneg %p155
      %p312 = pneg %p152
      %p313 = pneg %p176
      %p314 = pneg %p173
      %p315 = pneg %p197
      %p316 = pneg %p194
      %p317 = pneg %p223
      %p318 = pneg %p220
      %p319 = scmp.lt.s32.totalorder %s19, 1
      %s320 = scalar_select %p319, %s19, 1
      %s321 = smul.addr %s320, 2
      %s322 = smul.addr %s321, 2
      %s323 = scalar_lea.vmem %s8, %s322
      %p324 = scmp.lt.s32.totalorder %s19, 1
      %s325 = scalar_select %p324, %s19, 1
      %s326 = smul.addr %s325, 2
      %s327 = smul.addr %s326, 2
      %s328 = scalar_lea.vmem %s0, %s327
      %p329 = scmp.lt.s32.totalorder %s19, 1
      %s330 = scalar_select %p329, %s19, 1
      %s331 = smul.addr %s330, 2
      %s332 = smul.addr %s331, 2
      %s333 = scalar_lea.vmem %s1, %s332
      %p334 = scmp.lt.s32.totalorder %s19, 1
      %s335 = scalar_select %p334, %s19, 1
      %s336 = smul.addr %s335, 2
      %s337 = scalar_lea.vmem %s2, %s336
      %p338 = scmp.lt.s32.totalorder %s19, 1
      %s339 = scalar_select %p338, %s19, 1
      %s340 = smul.addr %s339, 2
      %s341 = smul.addr %s340, 2
      %s342 = scalar_lea.vmem %s8, %s341
      %v343 = vld [vmem:[%s337] sm:$0x3]
      %v344 = vsub.f32 1.0, %v343
      %v345 = vld [vmem:[%s333] ss:$2 sm:$0x3]
      %s346 = scalar_lea.vmem %s333, 1
      %v347 = vld [vmem:[%s346] ss:$2 sm:$0x3]
      %348 = vst [vmem:[#allocation2] sm:$0xff] 0.0
      %349 = vst [vmem:[#allocation2 + $0x8] sm:$0xff] 0.0
      %350 = vst [vmem:[#allocation2 + $0x10] sm:$0xff] 0.0
      %351 = vst [vmem:[#allocation2 + $0x18] sm:$0xff] 0.0
      %v352 = vld [vmem:[%s328] sm:$0xf]
      %v355 = vunpack.c.l.s4 1983009808
      %v356 = vunpack.c.0.s8 %v355
      %v357 = vlaneseq
      %v358 = vshrl.u32 %v357, 7
      %v359 = vsub.s32 %v356, %v358
      %v360 = vrot.slane %v352, %v359
      %v361 = vcombine.high %v360, %v360
      %364 = vst [vmem:[#allocation2] sm:$0x3] %v360
      %365 = vst [vmem:[#allocation2 + $0x8] sm:$0x3] %v361
      %366 = vst [vmem:[#allocation2 + $0x10] sm:$0x3] %v360
      %367 = vst [vmem:[#allocation2 + $0x18] sm:$0x3] %v361
      %v368 = vld [vmem:[#allocation2 + $0x8] sm:$0xff]
      %v369 = vld [vmem:[#allocation2 + $0x10] sm:$0xff]
      %v370 = vld [vmem:[#allocation2 + $0x18] sm:$0xff]
      %v371 = vld [vmem:[%s5] sm:$0x3]
      %v373 = vlaneseq
      %v374 = vshrl.u32 %v373, 7
      %v375 = vsub.s32 0, %v374
      %v376 = vrot.slane %v371, %v375
      %v377 = vlaneseq
      %v378 = vshrl.u32 %v377, 7
      %v379 = vsub.s32 1, %v378
      %v380 = vrot.slane %v371, %v379
      %381 = vrot.lane.b32.xlu0 %v376, 111
      %v382 = vpop.permute.xlu0 %381
      %383 = vrot.lane.b32.xlu0 %v380, 111
      %v384 = vpop.permute.xlu0 %383
      %vm385 = vcmask 908288
      %v386 = vsel %vm385, %v382, %v384
      %v390 = vmul.f32 %v368, %v382
      %v391 = vmul.f32 %v369, %v386
      %v392 = vmul.f32 %v370, %v384
      %v393 = vld [vmem:[%s3] sm:$0xff]
      %s394 = scalar_lea.vmem %s5, 2
      %v395 = vld [vmem:[%s394] sm:$0x3]
      %v397 = vlaneseq
      %v398 = vshrl.u32 %v397, 7
      %v399 = vsub.s32 0, %v398
      %v400 = vrot.slane %v395, %v399
      %v401 = vlaneseq
      %v402 = vshrl.u32 %v401, 7
      %v403 = vsub.s32 1, %v402
      %v404 = vrot.slane %v395, %v403
      %405 = vrot.lane.b32.xlu0 %v400, 112
      %v406 = vpop.permute.xlu0 %405
      %407 = vrot.lane.b32.xlu0 %v404, 112
      %v408 = vpop.permute.xlu0 %407
      %vm409 = vcmask 916480
      %v410 = vsel %vm409, %v406, %v408
      %v414 = vmul.f32 %v368, %v406
      %v415 = vmul.f32 %v369, %v410
      %v416 = vmul.f32 %v370, %v408
      %s417 = scalar_lea.vmem %s3, 8
      %v418 = vld [vmem:[%s417] sm:$0xff]
      %422 = vrot.lane.b32.xlu0 %v414, 16
      %v423 = vpop.permute.xlu0 %422
      %424 = vrot.lane.b32.xlu0 %v415, 16
      %v425 = vpop.permute.xlu0 %424
      %426 = vrot.lane.b32.xlu0 %v416, 16
      %v427 = vpop.permute.xlu0 %426
      %vm428 = vcmask 130048
      %v429 = vsel %vm428, %v423, %v425
      %v430 = vsel %vm428, %v425, %v427
      %vm433 = vcmask 64512
      %v435 = vsel %vm433, %v418, 0
      %437 = vmatprep.subr.mxu0 %v430
      %438 = vmatpush1.msra.mxu0 %v429
      %439 = vmatprep.subr.mxu0 0.0
      %440 = vmatpush1.msra.mxu0 0.0
      %441 = vmatprep.subr.mxu0 0.0
      %442 = vmatpush1.msra.mxu0 0.0
      %443 = vmatprep.subr.mxu0 0.0
      %444 = vmatpush1.msra.mxu0 0.0
      %445 = vmatprep.subr.mxu0 0.0
      %446 = vmatpush1.msra.mxu0 0.0
      %447 = vmatprep.subr.mxu0 0.0
      %448 = vmatpush1.msra.mxu0 0.0
      %449 = vmatprep.subr.mxu0 0.0
      %450 = vmatpush1.msra.mxu0 0.0
      %451 = vmatprep.subr.mxu0 0.0
      %452 = vmatpush1.msra.mxu0 0.0
      %453 = vmatprep.subr.mxu0 0.0
      %454 = vmatpush1.msra.mxu0 0.0
      %455 = vmatprep.subr.mxu0 0.0
      %456 = vmatpush1.msra.mxu0 0.0
      %457 = vmatprep.subr.mxu0 0.0
      %458 = vmatpush1.msra.mxu0 0.0
      %459 = vmatprep.subr.mxu0 0.0
      %460 = vmatpush1.msra.mxu0 0.0
      %461 = vmatprep.subr.mxu0 0.0
      %462 = vmatpush1.msra.mxu0 0.0
      %463 = vmatprep.subr.mxu0 0.0
      %464 = vmatpush1.msra.mxu0 0.0
      %465 = vmatprep.subr.mxu0 0.0
      %466 = vmatpush1.msra.mxu0 0.0
      %467 = vmatprep.subr.mxu0 0.0
      %468 = vmatpush1.msra.mxu0 0.0
      %469 = vmatprep.subr.mxu0 0.0
      %470 = vmatpush1.msra.mxu0 0.0
      %471 = vmatprep.subr.mxu0 0.0
      %472 = vmatpush1.msra.mxu0 0.0
      %473 = vmatprep.subr.mxu0 0.0
      %474 = vmatpush1.msra.mxu0 0.0
      %475 = vmatprep.subr.mxu0 0.0
      %476 = vmatpush1.msra.mxu0 0.0
      %477 = vmatprep.subr.mxu0 0.0
      %478 = vmatpush1.msra.mxu0 0.0
      %479 = vmatprep.subr.mxu0 0.0
      %480 = vmatpush1.msra.mxu0 0.0
      %481 = vmatprep.subr.mxu0 0.0
      %482 = vmatpush1.msra.mxu0 0.0
      %483 = vmatprep.subr.mxu0 0.0
      %484 = vmatpush1.msra.mxu0 0.0
      %485 = vmatprep.subr.mxu0 0.0
      %486 = vmatpush1.msra.mxu0 0.0
      %487 = vmatprep.subr.mxu0 0.0
      %488 = vmatpush1.msra.mxu0 0.0
      %489 = vmatprep.subr.mxu0 0.0
      %490 = vmatpush1.msra.mxu0 0.0
      %491 = vmatprep.subr.mxu0 0.0
      %492 = vmatpush1.msra.mxu0 0.0
      %493 = vmatprep.subr.mxu0 0.0
      %494 = vmatpush1.msra.mxu0 0.0
      %495 = vmatprep.subr.mxu0 0.0
      %496 = vmatpush1.msra.mxu0 0.0
      %497 = vmatprep.subr.mxu0 0.0
      %498 = vmatpush1.msra.mxu0 0.0
      %499 = vmatprep.subr.mxu0 0.0
      %500 = vmatpush1.msra.mxu0 0.0
      %501 = vmatprep.mubr.f32.mxu0 0.0
      %502 = vmatmul.mubr.f32.gmra.mrb[0].mxu0 %v435
      %v503 = vpop.f32.mrb[0].mxu0
      %v504 = vadd.f32 0.0, %v503
      %v505 = vpop.f32.mrb[0].mxu0
      %v506 = vadd.f32 0.0, %v505
      %507 = vdwg.mxu0
      %511 = vrot.lane.b32.xlu0 %v390, 17
      %v512 = vpop.permute.xlu0 %511
      %513 = vrot.lane.b32.xlu0 %v391, 17
      %v514 = vpop.permute.xlu0 %513
      %515 = vrot.lane.b32.xlu0 %v392, 17
      %v516 = vpop.permute.xlu0 %515
      %vm517 = vcmask 138240
      %v518 = vsel %vm517, %v512, %v514
      %v519 = vsel %vm517, %v514, %v516
      %v523 = vsel %vm433, %v393, 0
      %525 = vmatprep.subr.mxu0 %v519
      %526 = vmatpush1.msra.mxu0 %v518
      %527 = vmatprep.subr.mxu0 0.0
      %528 = vmatpush1.msra.mxu0 0.0
      %529 = vmatprep.subr.mxu0 0.0
      %530 = vmatpush1.msra.mxu0 0.0
      %531 = vmatprep.subr.mxu0 0.0
      %532 = vmatpush1.msra.mxu0 0.0
      %533 = vmatprep.subr.mxu0 0.0
      %534 = vmatpush1.msra.mxu0 0.0
      %535 = vmatprep.subr.mxu0 0.0
      %536 = vmatpush1.msra.mxu0 0.0
      %537 = vmatprep.subr.mxu0 0.0
      %538 = vmatpush1.msra.mxu0 0.0
      %539 = vmatprep.subr.mxu0 0.0
      %540 = vmatpush1.msra.mxu0 0.0
      %541 = vmatprep.subr.mxu0 0.0
      %542 = vmatpush1.msra.mxu0 0.0
      %543 = vmatprep.subr.mxu0 0.0
      %544 = vmatpush1.msra.mxu0 0.0
      %545 = vmatprep.subr.mxu0 0.0
      %546 = vmatpush1.msra.mxu0 0.0
      %547 = vmatprep.subr.mxu0 0.0
      %548 = vmatpush1.msra.mxu0 0.0
      %549 = vmatprep.subr.mxu0 0.0
      %550 = vmatpush1.msra.mxu0 0.0
      %551 = vmatprep.subr.mxu0 0.0
      %552 = vmatpush1.msra.mxu0 0.0
      %553 = vmatprep.subr.mxu0 0.0
      %554 = vmatpush1.msra.mxu0 0.0
      %555 = vmatprep.subr.mxu0 0.0
      %556 = vmatpush1.msra.mxu0 0.0
      %557 = vmatprep.subr.mxu0 0.0
      %558 = vmatpush1.msra.mxu0 0.0
      %559 = vmatprep.subr.mxu0 0.0
      %560 = vmatpush1.msra.mxu0 0.0
      %561 = vmatprep.subr.mxu0 0.0
      %562 = vmatpush1.msra.mxu0 0.0
      %563 = vmatprep.subr.mxu0 0.0
      %564 = vmatpush1.msra.mxu0 0.0
      %565 = vmatprep.subr.mxu0 0.0
      %566 = vmatpush1.msra.mxu0 0.0
      %567 = vmatprep.subr.mxu0 0.0
      %568 = vmatpush1.msra.mxu0 0.0
      %569 = vmatprep.subr.mxu0 0.0
      %570 = vmatpush1.msra.mxu0 0.0
      %571 = vmatprep.subr.mxu0 0.0
      %572 = vmatpush1.msra.mxu0 0.0
      %573 = vmatprep.subr.mxu0 0.0
      %574 = vmatpush1.msra.mxu0 0.0
      %575 = vmatprep.subr.mxu0 0.0
      %576 = vmatpush1.msra.mxu0 0.0
      %577 = vmatprep.subr.mxu0 0.0
      %578 = vmatpush1.msra.mxu0 0.0
      %579 = vmatprep.subr.mxu0 0.0
      %580 = vmatpush1.msra.mxu0 0.0
      %581 = vmatprep.subr.mxu0 0.0
      %582 = vmatpush1.msra.mxu0 0.0
      %583 = vmatprep.subr.mxu0 0.0
      %584 = vmatpush1.msra.mxu0 0.0
      %585 = vmatprep.subr.mxu0 0.0
      %586 = vmatpush1.msra.mxu0 0.0
      %587 = vmatprep.subr.mxu0 0.0
      %588 = vmatpush1.msra.mxu0 0.0
      %589 = vmatprep.mubr.f32.mxu0 0.0
      %590 = vmatmul.mubr.f32.gmra.mrb[0].mxu0 %v523
      %v591 = vpop.f32.mrb[0].mxu0
      %v592 = vadd.f32 %v504, %v591
      %v593 = vpop.f32.mrb[0].mxu0
      %v594 = vadd.f32 %v506, %v593
      %595 = vdwg.mxu0
      %s596 = scalar_lea.vmem %s5, 4
      %v597 = vld [vmem:[%s596] sm:$0x3]
      %v599 = vlaneseq
      %v600 = vshrl.u32 %v599, 7
      %v601 = vsub.s32 0, %v600
      %v602 = vrot.slane %v597, %v601
      %v603 = vlaneseq
      %v604 = vshrl.u32 %v603, 7
      %v605 = vsub.s32 1, %v604
      %v606 = vrot.slane %v597, %v605
      %607 = vrot.lane.b32.xlu0 %v602, 113
      %v608 = vpop.permute.xlu0 %607
      %609 = vrot.lane.b32.xlu0 %v606, 113
      %v610 = vpop.permute.xlu0 %609
      %vm611 = vcmask 924672
      %v612 = vsel %vm611, %v608, %v610
      %v616 = vmul.f32 %v368, %v608
      %v617 = vmul.f32 %v369, %v612
      %v618 = vmul.f32 %v370, %v610
      %s619 = scalar_lea.vmem %s3, 16
      %v620 = vld [vmem:[%s619] sm:$0xff]
      %624 = vrot.lane.b32.xlu0 %v616, 15
      %v625 = vpop.permute.xlu0 %624
      %626 = vrot.lane.b32.xlu0 %v617, 15
      %v627 = vpop.permute.xlu0 %626
      %628 = vrot.lane.b32.xlu0 %v618, 15
      %v629 = vpop.permute.xlu0 %628
      %vm630 = vcmask 121856
      %v631 = vsel %vm630, %v625, %v627
      %v632 = vsel %vm630, %v627, %v629
      %v636 = vsel %vm433, %v620, 0
      %638 = vmatprep.subr.mxu0 %v632
      %639 = vmatpush1.msra.mxu0 %v631
      %640 = vmatprep.subr.mxu0 0.0
      %641 = vmatpush1.msra.mxu0 0.0
      %642 = vmatprep.subr.mxu0 0.0
      %643 = vmatpush1.msra.mxu0 0.0
      %644 = vmatprep.subr.mxu0 0.0
      %645 = vmatpush1.msra.mxu0 0.0
      %646 = vmatprep.subr.mxu0 0.0
      %647 = vmatpush1.msra.mxu0 0.0
      %648 = vmatprep.subr.mxu0 0.0
      %649 = vmatpush1.msra.mxu0 0.0
      %650 = vmatprep.subr.mxu0 0.0
      %651 = vmatpush1.msra.mxu0 0.0
      %652 = vmatprep.subr.mxu0 0.0
      %653 = vmatpush1.msra.mxu0 0.0
      %654 = vmatprep.subr.mxu0 0.0
      %655 = vmatpush1.msra.mxu0 0.0
      %656 = vmatprep.subr.mxu0 0.0
      %657 = vmatpush1.msra.mxu0 0.0
      %658 = vmatprep.subr.mxu0 0.0
      %659 = vmatpush1.msra.mxu0 0.0
      %660 = vmatprep.subr.mxu0 0.0
      %661 = vmatpush1.msra.mxu0 0.0
      %662 = vmatprep.subr.mxu0 0.0
      %663 = vmatpush1.msra.mxu0 0.0
      %664 = vmatprep.subr.mxu0 0.0
      %665 = vmatpush1.msra.mxu0 0.0
      %666 = vmatprep.subr.mxu0 0.0
      %667 = vmatpush1.msra.mxu0 0.0
      %668 = vmatprep.subr.mxu0 0.0
      %669 = vmatpush1.msra.mxu0 0.0
      %670 = vmatprep.subr.mxu0 0.0
      %671 = vmatpush1.msra.mxu0 0.0
      %672 = vmatprep.subr.mxu0 0.0
      %673 = vmatpush1.msra.mxu0 0.0
      %674 = vmatprep.subr.mxu0 0.0
      %675 = vmatpush1.msra.mxu0 0.0
      %676 = vmatprep.subr.mxu0 0.0
      %677 = vmatpush1.msra.mxu0 0.0
      %678 = vmatprep.subr.mxu0 0.0
      %679 = vmatpush1.msra.mxu0 0.0
      %680 = vmatprep.subr.mxu0 0.0
      %681 = vmatpush1.msra.mxu0 0.0
      %682 = vmatprep.subr.mxu0 0.0
      %683 = vmatpush1.msra.mxu0 0.0
      %684 = vmatprep.subr.mxu0 0.0
      %685 = vmatpush1.msra.mxu0 0.0
      %686 = vmatprep.subr.mxu0 0.0
      %687 = vmatpush1.msra.mxu0 0.0
      %688 = vmatprep.subr.mxu0 0.0
      %689 = vmatpush1.msra.mxu0 0.0
      %690 = vmatprep.subr.mxu0 0.0
      %691 = vmatpush1.msra.mxu0 0.0
      %692 = vmatprep.subr.mxu0 0.0
      %693 = vmatpush1.msra.mxu0 0.0
      %694 = vmatprep.subr.mxu0 0.0
      %695 = vmatpush1.msra.mxu0 0.0
      %696 = vmatprep.subr.mxu0 0.0
      %697 = vmatpush1.msra.mxu0 0.0
      %698 = vmatprep.subr.mxu0 0.0
      %699 = vmatpush1.msra.mxu0 0.0
      %700 = vmatprep.subr.mxu0 0.0
      %701 = vmatpush1.msra.mxu0 0.0
      %702 = vmatprep.mubr.f32.mxu0 0.0
      %703 = vmatmul.mubr.f32.gmra.mrb[0].mxu0 %v636
      %v704 = vpop.f32.mrb[0].mxu0
      %v705 = vadd.f32 0.0, %v704
      %v706 = vpop.f32.mrb[0].mxu0
      %v707 = vadd.f32 0.0, %v706
      %708 = vdwg.mxu0
      %v709 = vadd.f32 %v592, %v705
      %v710 = vadd.f32 %v594, %v707
      %s711 = scalar_lea.vmem %s5, 6
      %v712 = vld [vmem:[%s711] sm:$0x3]
      %v714 = vlaneseq
      %v715 = vshrl.u32 %v714, 7
      %v716 = vsub.s32 0, %v715
      %v717 = vrot.slane %v712, %v716
      %v718 = vlaneseq
      %v719 = vshrl.u32 %v718, 7
      %v720 = vsub.s32 1, %v719
      %v721 = vrot.slane %v712, %v720
      %722 = vrot.lane.b32.xlu0 %v717, 127
      %v723 = vpop.permute.xlu0 %722
      %724 = vrot.lane.b32.xlu0 %v721, 127
      %v725 = vpop.permute.xlu0 %724
      %vm726 = vcmask 1039360
      %v727 = vsel %vm726, %v723, %v725
      %v731 = vmul.f32 %v368, %v723
      %v732 = vmul.f32 %v369, %v727
      %v733 = vmul.f32 %v370, %v725
      %s734 = scalar_lea.vmem %s3, 24
      %v735 = vld [vmem:[%s734] sm:$0xff]
      %739 = vrot.lane.b32.xlu0 %v731, 1
      %v740 = vpop.permute.xlu0 %739
      %741 = vrot.lane.b32.xlu0 %v732, 1
      %v742 = vpop.permute.xlu0 %741
      %743 = vrot.lane.b32.xlu0 %v733, 1
      %v744 = vpop.permute.xlu0 %743
      %vm745 = vcmask 7168
      %v746 = vsel %vm745, %v740, %v742
      %v747 = vsel %vm745, %v742, %v744
      %v751 = vsel %vm433, %v735, 0
      %753 = vmatprep.subr.mxu0 %v747
      %754 = vmatpush1.msra.mxu0 %v746
      %755 = vmatprep.subr.mxu0 0.0
      %756 = vmatpush1.msra.mxu0 0.0
      %757 = vmatprep.subr.mxu0 0.0
      %758 = vmatpush1.msra.mxu0 0.0
      %759 = vmatprep.subr.mxu0 0.0
      %760 = vmatpush1.msra.mxu0 0.0
      %761 = vmatprep.subr.mxu0 0.0
      %762 = vmatpush1.msra.mxu0 0.0
      %763 = vmatprep.subr.mxu0 0.0
      %764 = vmatpush1.msra.mxu0 0.0
      %765 = vmatprep.subr.mxu0 0.0
      %766 = vmatpush1.msra.mxu0 0.0
      %767 = vmatprep.subr.mxu0 0.0
      %768 = vmatpush1.msra.mxu0 0.0
      %769 = vmatprep.subr.mxu0 0.0
      %770 = vmatpush1.msra.mxu0 0.0
      %771 = vmatprep.subr.mxu0 0.0
      %772 = vmatpush1.msra.mxu0 0.0
      %773 = vmatprep.subr.mxu0 0.0
      %774 = vmatpush1.msra.mxu0 0.0
      %775 = vmatprep.subr.mxu0 0.0
      %776 = vmatpush1.msra.mxu0 0.0
      %777 = vmatprep.subr.mxu0 0.0
      %778 = vmatpush1.msra.mxu0 0.0
      %779 = vmatprep.subr.mxu0 0.0
      %780 = vmatpush1.msra.mxu0 0.0
      %781 = vmatprep.subr.mxu0 0.0
      %782 = vmatpush1.msra.mxu0 0.0
      %783 = vmatprep.subr.mxu0 0.0
      %784 = vmatpush1.msra.mxu0 0.0
      %785 = vmatprep.subr.mxu0 0.0
      %786 = vmatpush1.msra.mxu0 0.0
      %787 = vmatprep.subr.mxu0 0.0
      %788 = vmatpush1.msra.mxu0 0.0
      %789 = vmatprep.subr.mxu0 0.0
      %790 = vmatpush1.msra.mxu0 0.0
      %791 = vmatprep.subr.mxu0 0.0
      %792 = vmatpush1.msra.mxu0 0.0
      %793 = vmatprep.subr.mxu0 0.0
      %794 = vmatpush1.msra.mxu0 0.0
      %795 = vmatprep.subr.mxu0 0.0
      %796 = vmatpush1.msra.mxu0 0.0
      %797 = vmatprep.subr.mxu0 0.0
      %798 = vmatpush1.msra.mxu0 0.0
      %799 = vmatprep.subr.mxu0 0.0
      %800 = vmatpush1.msra.mxu0 0.0
      %801 = vmatprep.subr.mxu0 0.0
      %802 = vmatpush1.msra.mxu0 0.0
      %803 = vmatprep.subr.mxu0 0.0
      %804 = vmatpush1.msra.mxu0 0.0
      %805 = vmatprep.subr.mxu0 0.0
      %806 = vmatpush1.msra.mxu0 0.0
      %807 = vmatprep.subr.mxu0 0.0
      %808 = vmatpush1.msra.mxu0 0.0
      %809 = vmatprep.subr.mxu0 0.0
      %810 = vmatpush1.msra.mxu0 0.0
      %811 = vmatprep.subr.mxu0 0.0
      %812 = vmatpush1.msra.mxu0 0.0
      %813 = vmatprep.subr.mxu0 0.0
      %814 = vmatpush1.msra.mxu0 0.0
      %815 = vmatprep.subr.mxu0 0.0
      %816 = vmatpush1.msra.mxu0 0.0
      %817 = vmatprep.mubr.f32.mxu0 0.0
      %818 = vmatmul.mubr.f32.gmra.mrb[0].mxu0 %v751
      %v819 = vpop.f32.mrb[0].mxu0
      %v820 = vadd.f32 0.0, %v819
      %v821 = vpop.f32.mrb[0].mxu0
      %v822 = vadd.f32 0.0, %v821
      %823 = vdwg.mxu0
      %v824 = vadd.f32 %v709, %v820
      %v825 = vadd.f32 %v710, %v822
      %v826 = vld [vmem:[#allocation2] sm:$0xff]
      %v827 = vld [vmem:[#allocation2 + $0x8] sm:$0xff]
      %s828 = scalar_lea.vmem %s3, 32
      %v829 = vld [vmem:[%s828] sm:$0xff]
      %v831 = vsel %vm433, %v829, 0
      %833 = vmatprep.subr.mxu0 %v827
      %834 = vmatpush1.msra.mxu0 %v826
      %835 = vmatprep.subr.mxu0 0.0
      %836 = vmatpush1.msra.mxu0 0.0
      %837 = vmatprep.subr.mxu0 0.0
      %838 = vmatpush1.msra.mxu0 0.0
      %839 = vmatprep.subr.mxu0 0.0
      %840 = vmatpush1.msra.mxu0 0.0
      %841 = vmatprep.subr.mxu0 0.0
      %842 = vmatpush1.msra.mxu0 0.0
      %843 = vmatprep.subr.mxu0 0.0
      %844 = vmatpush1.msra.mxu0 0.0
      %845 = vmatprep.subr.mxu0 0.0
      %846 = vmatpush1.msra.mxu0 0.0
      %847 = vmatprep.subr.mxu0 0.0
      %848 = vmatpush1.msra.mxu0 0.0
      %849 = vmatprep.subr.mxu0 0.0
      %850 = vmatpush1.msra.mxu0 0.0
      %851 = vmatprep.subr.mxu0 0.0
      %852 = vmatpush1.msra.mxu0 0.0
      %853 = vmatprep.subr.mxu0 0.0
      %854 = vmatpush1.msra.mxu0 0.0
      %855 = vmatprep.subr.mxu0 0.0
      %856 = vmatpush1.msra.mxu0 0.0
      %857 = vmatprep.subr.mxu0 0.0
      %858 = vmatpush1.msra.mxu0 0.0
      %859 = vmatprep.subr.mxu0 0.0
      %860 = vmatpush1.msra.mxu0 0.0
      %861 = vmatprep.subr.mxu0 0.0
      %862 = vmatpush1.msra.mxu0 0.0
      %863 = vmatprep.subr.mxu0 0.0
      %864 = vmatpush1.msra.mxu0 0.0
      %865 = vmatprep.subr.mxu0 0.0
      %866 = vmatpush1.msra.mxu0 0.0
      %867 = vmatprep.subr.mxu0 0.0
      %868 = vmatpush1.msra.mxu0 0.0
      %869 = vmatprep.subr.mxu0 0.0
      %870 = vmatpush1.msra.mxu0 0.0
      %871 = vmatprep.subr.mxu0 0.0
      %872 = vmatpush1.msra.mxu0 0.0
      %873 = vmatprep.subr.mxu0 0.0
      %874 = vmatpush1.msra.mxu0 0.0
      %875 = vmatprep.subr.mxu0 0.0
      %876 = vmatpush1.msra.mxu0 0.0
      %877 = vmatprep.subr.mxu0 0.0
      %878 = vmatpush1.msra.mxu0 0.0
      %879 = vmatprep.subr.mxu0 0.0
      %880 = vmatpush1.msra.mxu0 0.0
      %881 = vmatprep.subr.mxu0 0.0
      %882 = vmatpush1.msra.mxu0 0.0
      %883 = vmatprep.subr.mxu0 0.0
      %884 = vmatpush1.msra.mxu0 0.0
      %885 = vmatprep.subr.mxu0 0.0
      %886 = vmatpush1.msra.mxu0 0.0
      %887 = vmatprep.subr.mxu0 0.0
      %888 = vmatpush1.msra.mxu0 0.0
      %889 = vmatprep.subr.mxu0 0.0
      %890 = vmatpush1.msra.mxu0 0.0
      %891 = vmatprep.subr.mxu0 0.0
      %892 = vmatpush1.msra.mxu0 0.0
      %893 = vmatprep.subr.mxu0 0.0
      %894 = vmatpush1.msra.mxu0 0.0
      %895 = vmatprep.subr.mxu0 0.0
      %896 = vmatpush1.msra.mxu0 0.0
      %897 = vmatprep.mubr.f32.mxu0 0.0
      %898 = vmatmul.mubr.f32.gmra.mrb[0].mxu0 %v831
      %v899 = vpop.f32.mrb[0].mxu0
      %v900 = vadd.f32 0.0, %v899
      %v901 = vpop.f32.mrb[0].mxu0
      %v902 = vadd.f32 0.0, %v901
      %903 = vdwg.mxu0
      %v904 = vadd.f32 %v824, %v900
      %v905 = vadd.f32 %v825, %v902
      %v906 = vld [vmem:[#allocation2] sm:$0xff]
      %v907 = vld [vmem:[#allocation2 + $0x8] sm:$0xff]
      %v908 = vld [vmem:[#allocation2 + $0x10] sm:$0xff]
      %s909 = scalar_lea.vmem %s5, 10
      %v910 = vld [vmem:[%s909] sm:$0x3]
      %v912 = vlaneseq
      %v913 = vshrl.u32 %v912, 7
      %v914 = vsub.s32 0, %v913
      %v915 = vrot.slane %v910, %v914
      %v916 = vlaneseq
      %v917 = vshrl.u32 %v916, 7
      %v918 = vsub.s32 1, %v917
      %v919 = vrot.slane %v910, %v918
      %920 = vrot.lane.b32.xlu0 %v915, 1
      %v921 = vpop.permute.xlu0 %920
      %922 = vrot.lane.b32.xlu0 %v919, 1
      %v923 = vpop.permute.xlu0 %922
      %v924 = vsel %vm745, %v921, %v923
      %v928 = vmul.f32 %v906, %v921
      %v929 = vmul.f32 %v907, %v924
      %v930 = vmul.f32 %v908, %v923
      %s931 = scalar_lea.vmem %s3, 40
      %v932 = vld [vmem:[%s931] sm:$0xff]
      %936 = vrot.lane.b32.xlu0 %v928, 127
      %v937 = vpop.permute.xlu0 %936
      %938 = vrot.lane.b32.xlu0 %v929, 127
      %v939 = vpop.permute.xlu0 %938
      %940 = vrot.lane.b32.xlu0 %v930, 127
      %v941 = vpop.permute.xlu0 %940
      %v942 = vsel %vm726, %v937, %v939
      %v943 = vsel %vm726, %v939, %v941
      %v947 = vsel %vm433, %v932, 0
      %949 = vmatprep.subr.mxu0 %v943
      %950 = vmatpush1.msra.mxu0 %v942
      %951 = vmatprep.subr.mxu0 0.0
      %952 = vmatpush1.msra.mxu0 0.0
      %953 = vmatprep.subr.mxu0 0.0
      %954 = vmatpush1.msra.mxu0 0.0
      %955 = vmatprep.subr.mxu0 0.0
      %956 = vmatpush1.msra.mxu0 0.0
      %957 = vmatprep.subr.mxu0 0.0
      %958 = vmatpush1.msra.mxu0 0.0
      %959 = vmatprep.subr.mxu0 0.0
      %960 = vmatpush1.msra.mxu0 0.0
      %961 = vmatprep.subr.mxu0 0.0
      %962 = vmatpush1.msra.mxu0 0.0
      %963 = vmatprep.subr.mxu0 0.0
      %964 = vmatpush1.msra.mxu0 0.0
      %965 = vmatprep.subr.mxu0 0.0
      %966 = vmatpush1.msra.mxu0 0.0
      %967 = vmatprep.subr.mxu0 0.0
      %968 = vmatpush1.msra.mxu0 0.0
      %969 = vmatprep.subr.mxu0 0.0
      %970 = vmatpush1.msra.mxu0 0.0
      %971 = vmatprep.subr.mxu0 0.0
      %972 = vmatpush1.msra.mxu0 0.0
      %973 = vmatprep.subr.mxu0 0.0
      %974 = vmatpush1.msra.mxu0 0.0
      %975 = vmatprep.subr.mxu0 0.0
      %976 = vmatpush1.msra.mxu0 0.0
      %977 = vmatprep.subr.mxu0 0.0
      %978 = vmatpush1.msra.mxu0 0.0
      %979 = vmatprep.subr.mxu0 0.0
      %980 = vmatpush1.msra.mxu0 0.0
      %981 = vmatprep.subr.mxu0 0.0
      %982 = vmatpush1.msra.mxu0 0.0
      %983 = vmatprep.subr.mxu0 0.0
      %984 = vmatpush1.msra.mxu0 0.0
      %985 = vmatprep.subr.mxu0 0.0
      %986 = vmatpush1.msra.mxu0 0.0
      %987 = vmatprep.subr.mxu0 0.0
      %988 = vmatpush1.msra.mxu0 0.0
      %989 = vmatprep.subr.mxu0 0.0
      %990 = vmatpush1.msra.mxu0 0.0
      %991 = vmatprep.subr.mxu0 0.0
      %992 = vmatpush1.msra.mxu0 0.0
      %993 = vmatprep.subr.mxu0 0.0
      %994 = vmatpush1.msra.mxu0 0.0
      %995 = vmatprep.subr.mxu0 0.0
      %996 = vmatpush1.msra.mxu0 0.0
      %997 = vmatprep.subr.mxu0 0.0
      %998 = vmatpush1.msra.mxu0 0.0
      %999 = vmatprep.subr.mxu0 0.0
      %1000 = vmatpush1.msra.mxu0 0.0
      %1001 = vmatprep.subr.mxu0 0.0
      %1002 = vmatpush1.msra.mxu0 0.0
      %1003 = vmatprep.subr.mxu0 0.0
      %1004 = vmatpush1.msra.mxu0 0.0
      %1005 = vmatprep.subr.mxu0 0.0
      %1006 = vmatpush1.msra.mxu0 0.0
      %1007 = vmatprep.subr.mxu0 0.0
      %1008 = vmatpush1.msra.mxu0 0.0
      %1009 = vmatprep.subr.mxu0 0.0
      %1010 = vmatpush1.msra.mxu0 0.0
      %1011 = vmatprep.subr.mxu0 0.0
      %1012 = vmatpush1.msra.mxu0 0.0
      %1013 = vmatprep.mubr.f32.mxu0 0.0
      %1014 = vmatmul.mubr.f32.gmra.mrb[0].mxu0 %v947
      %v1015 = vpop.f32.mrb[0].mxu0
      %v1016 = vadd.f32 0.0, %v1015
      %v1017 = vpop.f32.mrb[0].mxu0
      %v1018 = vadd.f32 0.0, %v1017
      %1019 = vdwg.mxu0
      %v1020 = vadd.f32 %v904, %v1016
      %v1021 = vadd.f32 %v905, %v1018
      %s1022 = scalar_lea.vmem %s5, 12
      %v1023 = vld [vmem:[%s1022] sm:$0x3]
      %v1025 = vlaneseq
      %v1026 = vshrl.u32 %v1025, 7
      %v1027 = vsub.s32 0, %v1026
      %v1028 = vrot.slane %v1023, %v1027
      %v1029 = vlaneseq
      %v1030 = vshrl.u32 %v1029, 7
      %v1031 = vsub.s32 1, %v1030
      %v1032 = vrot.slane %v1023, %v1031
      %1033 = vrot.lane.b32.xlu0 %v1028, 15
      %v1034 = vpop.permute.xlu0 %1033
      %1035 = vrot.lane.b32.xlu0 %v1032, 15
      %v1036 = vpop.permute.xlu0 %1035
      %v1037 = vsel %vm630, %v1034, %v1036
      %v1041 = vmul.f32 %v906, %v1034
      %v1042 = vmul.f32 %v907, %v1037
      %v1043 = vmul.f32 %v908, %v1036
      %s1044 = scalar_lea.vmem %s3, 48
      %v1045 = vld [vmem:[%s1044] sm:$0xff]
      %1049 = vrot.lane.b32.xlu0 %v1041, 113
      %v1050 = vpop.permute.xlu0 %1049
      %1051 = vrot.lane.b32.xlu0 %v1042, 113
      %v1052 = vpop.permute.xlu0 %1051
      %1053 = vrot.lane.b32.xlu0 %v1043, 113
      %v1054 = vpop.permute.xlu0 %1053
      %v1055 = vsel %vm611, %v1050, %v1052
      %v1056 = vsel %vm611, %v1052, %v1054
      %v1060 = vsel %vm433, %v1045, 0
      %1062 = vmatprep.subr.mxu0 %v1056
      %1063 = vmatpush1.msra.mxu0 %v1055
      %1064 = vmatprep.subr.mxu0 0.0
      %1065 = vmatpush1.msra.mxu0 0.0
      %1066 = vmatprep.subr.mxu0 0.0
      %1067 = vmatpush1.msra.mxu0 0.0
      %1068 = vmatprep.subr.mxu0 0.0
      %1069 = vmatpush1.msra.mxu0 0.0
      %1070 = vmatprep.subr.mxu0 0.0
      %1071 = vmatpush1.msra.mxu0 0.0
      %1072 = vmatprep.subr.mxu0 0.0
      %1073 = vmatpush1.msra.mxu0 0.0
      %1074 = vmatprep.subr.mxu0 0.0
      %1075 = vmatpush1.msra.mxu0 0.0
      %1076 = vmatprep.subr.mxu0 0.0
      %1077 = vmatpush1.msra.mxu0 0.0
      %1078 = vmatprep.subr.mxu0 0.0
      %1079 = vmatpush1.msra.mxu0 0.0
      %1080 = vmatprep.subr.mxu0 0.0
      %1081 = vmatpush1.msra.mxu0 0.0
      %1082 = vmatprep.subr.mxu0 0.0
      %1083 = vmatpush1.msra.mxu0 0.0
      %1084 = vmatprep.subr.mxu0 0.0
      %1085 = vmatpush1.msra.mxu0 0.0
      %1086 = vmatprep.subr.mxu0 0.0
      %1087 = vmatpush1.msra.mxu0 0.0
      %1088 = vmatprep.subr.mxu0 0.0
      %1089 = vmatpush1.msra.mxu0 0.0
      %1090 = vmatprep.subr.mxu0 0.0
      %1091 = vmatpush1.msra.mxu0 0.0
      %1092 = vmatprep.subr.mxu0 0.0
      %1093 = vmatpush1.msra.mxu0 0.0
      %1094 = vmatprep.subr.mxu0 0.0
      %1095 = vmatpush1.msra.mxu0 0.0
      %1096 = vmatprep.subr.mxu0 0.0
      %1097 = vmatpush1.msra.mxu0 0.0
      %1098 = vmatprep.subr.mxu0 0.0
      %1099 = vmatpush1.msra.mxu0 0.0
      %1100 = vmatprep.subr.mxu0 0.0
      %1101 = vmatpush1.msra.mxu0 0.0
      %1102 = vmatprep.subr.mxu0 0.0
      %1103 = vmatpush1.msra.mxu0 0.0
      %1104 = vmatprep.subr.mxu0 0.0
      %1105 = vmatpush1.msra.mxu0 0.0
      %1106 = vmatprep.subr.mxu0 0.0
      %1107 = vmatpush1.msra.mxu0 0.0
      %1108 = vmatprep.subr.mxu0 0.0
      %1109 = vmatpush1.msra.mxu0 0.0
      %1110 = vmatprep.subr.mxu0 0.0
      %1111 = vmatpush1.msra.mxu0 0.0
      %1112 = vmatprep.subr.mxu0 0.0
      %1113 = vmatpush1.msra.mxu0 0.0
      %1114 = vmatprep.subr.mxu0 0.0
      %1115 = vmatpush1.msra.mxu0 0.0
      %1116 = vmatprep.subr.mxu0 0.0
      %1117 = vmatpush1.msra.mxu0 0.0
      %1118 = vmatprep.subr.mxu0 0.0
      %1119 = vmatpush1.msra.mxu0 0.0
      %1120 = vmatprep.subr.mxu0 0.0
      %1121 = vmatpush1.msra.mxu0 0.0
      %1122 = vmatprep.subr.mxu0 0.0
      %1123 = vmatpush1.msra.mxu0 0.0
      %1124 = vmatprep.subr.mxu0 0.0
      %1125 = vmatpush1.msra.mxu0 0.0
      %1126 = vmatprep.mubr.f32.mxu0 0.0
      %1127 = vmatmul.mubr.f32.gmra.mrb[0].mxu0 %v1060
      %v1128 = vpop.f32.mrb[0].mxu0
      %v1129 = vadd.f32 0.0, %v1128
      %v1130 = vpop.f32.mrb[0].mxu0
      %v1131 = vadd.f32 0.0, %v1130
      %1132 = vdwg.mxu0
      %v1133 = vadd.f32 %v1020, %v1129
      %v1134 = vadd.f32 %v1021, %v1131
      %s1135 = scalar_lea.vmem %s5, 14
      %v1136 = vld [vmem:[%s1135] sm:$0x3]
      %v1138 = vlaneseq
      %v1139 = vshrl.u32 %v1138, 7
      %v1140 = vsub.s32 0, %v1139
      %v1141 = vrot.slane %v1136, %v1140
      %v1142 = vlaneseq
      %v1143 = vshrl.u32 %v1142, 7
      %v1144 = vsub.s32 1, %v1143
      %v1145 = vrot.slane %v1136, %v1144
      %1146 = vrot.lane.b32.xlu0 %v1141, 16
      %v1147 = vpop.permute.xlu0 %1146
      %1148 = vrot.lane.b32.xlu0 %v1145, 16
      %v1149 = vpop.permute.xlu0 %1148
      %v1150 = vsel %vm428, %v1147, %v1149
      %v1154 = vmul.f32 %v906, %v1147
      %v1155 = vmul.f32 %v907, %v1150
      %v1156 = vmul.f32 %v908, %v1149
      %s1157 = scalar_lea.vmem %s3, 56
      %v1158 = vld [vmem:[%s1157] sm:$0xff]
      %1162 = vrot.lane.b32.xlu0 %v1154, 112
      %v1163 = vpop.permute.xlu0 %1162
      %1164 = vrot.lane.b32.xlu0 %v1155, 112
      %v1165 = vpop.permute.xlu0 %1164
      %1166 = vrot.lane.b32.xlu0 %v1156, 112
      %v1167 = vpop.permute.xlu0 %1166
      %v1168 = vsel %vm409, %v1163, %v1165
      %v1169 = vsel %vm409, %v1165, %v1167
      %v1173 = vsel %vm433, %v1158, 0
      %1175 = vmatprep.subr.mxu0 %v1169
      %1176 = vmatpush1.msra.mxu0 %v1168
      %1177 = vmatprep.subr.mxu0 0.0
      %1178 = vmatpush1.msra.mxu0 0.0
      %1179 = vmatprep.subr.mxu0 0.0
      %1180 = vmatpush1.msra.mxu0 0.0
      %1181 = vmatprep.subr.mxu0 0.0
      %1182 = vmatpush1.msra.mxu0 0.0
      %1183 = vmatprep.subr.mxu0 0.0
      %1184 = vmatpush1.msra.mxu0 0.0
      %1185 = vmatprep.subr.mxu0 0.0
      %1186 = vmatpush1.msra.mxu0 0.0
      %1187 = vmatprep.subr.mxu0 0.0
      %1188 = vmatpush1.msra.mxu0 0.0
      %1189 = vmatprep.subr.mxu0 0.0
      %1190 = vmatpush1.msra.mxu0 0.0
      %1191 = vmatprep.subr.mxu0 0.0
      %1192 = vmatpush1.msra.mxu0 0.0
      %1193 = vmatprep.subr.mxu0 0.0
      %1194 = vmatpush1.msra.mxu0 0.0
      %1195 = vmatprep.subr.mxu0 0.0
      %1196 = vmatpush1.msra.mxu0 0.0
      %1197 = vmatprep.subr.mxu0 0.0
      %1198 = vmatpush1.msra.mxu0 0.0
      %1199 = vmatprep.subr.mxu0 0.0
      %1200 = vmatpush1.msra.mxu0 0.0
      %1201 = vmatprep.subr.mxu0 0.0
      %1202 = vmatpush1.msra.mxu0 0.0
      %1203 = vmatprep.subr.mxu0 0.0
      %1204 = vmatpush1.msra.mxu0 0.0
      %1205 = vmatprep.subr.mxu0 0.0
      %1206 = vmatpush1.msra.mxu0 0.0
      %1207 = vmatprep.subr.mxu0 0.0
      %1208 = vmatpush1.msra.mxu0 0.0
      %1209 = vmatprep.subr.mxu0 0.0
      %1210 = vmatpush1.msra.mxu0 0.0
      %1211 = vmatprep.subr.mxu0 0.0
      %1212 = vmatpush1.msra.mxu0 0.0
      %1213 = vmatprep.subr.mxu0 0.0
      %1214 = vmatpush1.msra.mxu0 0.0
      %1215 = vmatprep.subr.mxu0 0.0
      %1216 = vmatpush1.msra.mxu0 0.0
      %1217 = vmatprep.subr.mxu0 0.0
      %1218 = vmatpush1.msra.mxu0 0.0
      %1219 = vmatprep.subr.mxu0 0.0
      %1220 = vmatpush1.msra.mxu0 0.0
      %1221 = vmatprep.subr.mxu0 0.0
      %1222 = vmatpush1.msra.mxu0 0.0
      %1223 = vmatprep.subr.mxu0 0.0
      %1224 = vmatpush1.msra.mxu0 0.0
      %1225 = vmatprep.subr.mxu0 0.0
      %1226 = vmatpush1.msra.mxu0 0.0
      %1227 = vmatprep.subr.mxu0 0.0
      %1228 = vmatpush1.msra.mxu0 0.0
      %1229 = vmatprep.subr.mxu0 0.0
      %1230 = vmatpush1.msra.mxu0 0.0
      %1231 = vmatprep.subr.mxu0 0.0
      %1232 = vmatpush1.msra.mxu0 0.0
      %1233 = vmatprep.subr.mxu0 0.0
      %1234 = vmatpush1.msra.mxu0 0.0
      %1235 = vmatprep.subr.mxu0 0.0
      %1236 = vmatpush1.msra.mxu0 0.0
      %1237 = vmatprep.subr.mxu0 0.0
      %1238 = vmatpush1.msra.mxu0 0.0
      %1239 = vmatprep.mubr.f32.mxu0 0.0
      %1240 = vmatmul.mubr.f32.gmra.mrb[0].mxu0 %v1173
      %v1241 = vpop.f32.mrb[0].mxu0
      %v1242 = vadd.f32 0.0, %v1241
      %v1243 = vpop.f32.mrb[0].mxu0
      %v1244 = vadd.f32 0.0, %v1243
      %1245 = vdwg.mxu0
      %v1246 = vadd.f32 %v1133, %v1242
      %v1247 = vadd.f32 %v1134, %v1244
      %s1248 = scalar_lea.vmem %s5, 16
      %v1249 = vld [vmem:[%s1248] sm:$0x3]
      %v1251 = vlaneseq
      %v1252 = vshrl.u32 %v1251, 7
      %v1253 = vsub.s32 0, %v1252
      %v1254 = vrot.slane %v1249, %v1253
      %v1255 = vlaneseq
      %v1256 = vshrl.u32 %v1255, 7
      %v1257 = vsub.s32 1, %v1256
      %v1258 = vrot.slane %v1249, %v1257
      %1259 = vrot.lane.b32.xlu0 %v1254, 17
      %v1260 = vpop.permute.xlu0 %1259
      %1261 = vrot.lane.b32.xlu0 %v1258, 17
      %v1262 = vpop.permute.xlu0 %1261
      %v1263 = vsel %vm517, %v1260, %v1262
      %v1267 = vmul.f32 %v906, %v1260
      %v1268 = vmul.f32 %v907, %v1263
      %v1269 = vmul.f32 %v908, %v1262
      %s1270 = scalar_lea.vmem %s3, 64
      %v1271 = vld [vmem:[%s1270] sm:$0xff]
      %1275 = vrot.lane.b32.xlu0 %v1267, 111
      %v1276 = vpop.permute.xlu0 %1275
      %1277 = vrot.lane.b32.xlu0 %v1268, 111
      %v1278 = vpop.permute.xlu0 %1277
      %1279 = vrot.lane.b32.xlu0 %v1269, 111
      %v1280 = vpop.permute.xlu0 %1279
      %v1281 = vsel %vm385, %v1276, %v1278
      %v1282 = vsel %vm385, %v1278, %v1280
      %v1286 = vsel %vm433, %v1271, 0
      %1288 = vmatprep.subr.mxu0 %v1282
      %1289 = vmatpush1.msra.mxu0 %v1281
      %1290 = vmatprep.subr.mxu0 0.0
      %1291 = vmatpush1.msra.mxu0 0.0
      %1292 = vmatprep.subr.mxu0 0.0
      %1293 = vmatpush1.msra.mxu0 0.0
      %1294 = vmatprep.subr.mxu0 0.0
      %1295 = vmatpush1.msra.mxu0 0.0
      %1296 = vmatprep.subr.mxu0 0.0
      %1297 = vmatpush1.msra.mxu0 0.0
      %1298 = vmatprep.subr.mxu0 0.0
      %1299 = vmatpush1.msra.mxu0 0.0
      %1300 = vmatprep.subr.mxu0 0.0
      %1301 = vmatpush1.msra.mxu0 0.0
      %1302 = vmatprep.subr.mxu0 0.0
      %1303 = vmatpush1.msra.mxu0 0.0
      %1304 = vmatprep.subr.mxu0 0.0
      %1305 = vmatpush1.msra.mxu0 0.0
      %1306 = vmatprep.subr.mxu0 0.0
      %1307 = vmatpush1.msra.mxu0 0.0
      %1308 = vmatprep.subr.mxu0 0.0
      %1309 = vmatpush1.msra.mxu0 0.0
      %1310 = vmatprep.subr.mxu0 0.0
      %1311 = vmatpush1.msra.mxu0 0.0
      %1312 = vmatprep.subr.mxu0 0.0
      %1313 = vmatpush1.msra.mxu0 0.0
      %1314 = vmatprep.subr.mxu0 0.0
      %1315 = vmatpush1.msra.mxu0 0.0
      %1316 = vmatprep.subr.mxu0 0.0
      %1317 = vmatpush1.msra.mxu0 0.0
      %1318 = vmatprep.subr.mxu0 0.0
      %1319 = vmatpush1.msra.mxu0 0.0
      %1320 = vmatprep.subr.mxu0 0.0
      %1321 = vmatpush1.msra.mxu0 0.0
      %1322 = vmatprep.subr.mxu0 0.0
      %1323 = vmatpush1.msra.mxu0 0.0
      %1324 = vmatprep.subr.mxu0 0.0
      %1325 = vmatpush1.msra.mxu0 0.0
      %1326 = vmatprep.subr.mxu0 0.0
      %1327 = vmatpush1.msra.mxu0 0.0
      %1328 = vmatprep.subr.mxu0 0.0
      %1329 = vmatpush1.msra.mxu0 0.0
      %1330 = vmatprep.subr.mxu0 0.0
      %1331 = vmatpush1.msra.mxu0 0.0
      %1332 = vmatprep.subr.mxu0 0.0
      %1333 = vmatpush1.msra.mxu0 0.0
      %1334 = vmatprep.subr.mxu0 0.0
      %1335 = vmatpush1.msra.mxu0 0.0
      %1336 = vmatprep.subr.mxu0 0.0
      %1337 = vmatpush1.msra.mxu0 0.0
      %1338 = vmatprep.subr.mxu0 0.0
      %1339 = vmatpush1.msra.mxu0 0.0
      %1340 = vmatprep.subr.mxu0 0.0
      %1341 = vmatpush1.msra.mxu0 0.0
      %1342 = vmatprep.subr.mxu0 0.0
      %1343 = vmatpush1.msra.mxu0 0.0
      %1344 = vmatprep.subr.mxu0 0.0
      %1345 = vmatpush1.msra.mxu0 0.0
      %1346 = vmatprep.subr.mxu0 0.0
      %1347 = vmatpush1.msra.mxu0 0.0
      %1348 = vmatprep.subr.mxu0 0.0
      %1349 = vmatpush1.msra.mxu0 0.0
      %1350 = vmatprep.subr.mxu0 0.0
      %1351 = vmatpush1.msra.mxu0 0.0
      %1352 = vmatprep.mubr.f32.mxu0 0.0
      %1353 = vmatmul.mubr.f32.gmra.mrb[0].mxu0 %v1286
      %v1354 = vpop.f32.mrb[0].mxu0
      %v1355 = vadd.f32 0.0, %v1354
      %v1356 = vpop.f32.mrb[0].mxu0
      %v1357 = vadd.f32 0.0, %v1356
      %1358 = vdwg.mxu0
      %v1359 = vadd.f32 %v1246, %v1355
      %v1360 = vadd.f32 %v1247, %v1357
      %v1361 = vld [vmem:[%s4] sm:$0xff]
      %1363 = vset.pattern.permute.xlu0 0
      %1364 = vperm.xlu0 %1363, %v1361
      %v1365 = vpop.permute.xlu0 %1364
      %v1367 = vadd.f32 %v1359, %v1365
      %v1368 = vadd.f32 %v1360, %v1365
      %vm1369 = vcmp.ge.f32.partialorder %v1367, 0.0
      %vm1370 = vcmp.ge.f32.partialorder %v1368, 0.0
      %v1371 = vmul.f32 %v1367, 0.01
      %v1372 = vmul.f32 %v1368, 0.01
      %v1373 = vsel %vm1369, %v1367, %v1371
      %v1374 = vsel %vm1370, %v1368, %v1372
      %1375 = vst [vmem:[#allocation2] sm:$0xff] %v1373
      %1376 = vst [vmem:[#allocation2 + $0x8] sm:$0xff] %v1374
      %1377 = vst [vmem:[#allocation2 + $0x10] sm:$0xff] %v1373
      %1378 = vst [vmem:[#allocation2 + $0x18] sm:$0xff] %v1374
      %v1379 = vld [vmem:[#allocation2 + $0x8] sm:$0xff]
      %v1380 = vld [vmem:[#allocation2 + $0x10] sm:$0xff]
      %v1381 = vld [vmem:[#allocation2 + $0x18] sm:$0xff]
      %v1382 = vld [vmem:[%s5] sm:$0x3]
      %v1384 = vlaneseq
      %v1385 = vshrl.u32 %v1384, 7
      %v1386 = vsub.s32 0, %v1385
      %v1387 = vrot.slane %v1382, %v1386
      %v1388 = vlaneseq
      %v1389 = vshrl.u32 %v1388, 7
      %v1390 = vsub.s32 1, %v1389
      %v1391 = vrot.slane %v1382, %v1390
      %1392 = vrot.lane.b32.xlu0 %v1387, 111
      %v1393 = vpop.permute.xlu0 %1392
      %1394 = vrot.lane.b32.xlu0 %v1391, 111
      %v1395 = vpop.permute.xlu0 %1394
      %v1396 = vsel %vm385, %v1393, %v1395
      %v1400 = vmul.f32 %v1379, %v1393
      %v1401 = vmul.f32 %v1380, %v1396
      %v1402 = vmul.f32 %v1381, %v1395
      %s1403 = scalar_lea.vmem %s3, 72
      %v1404 = vld [vmem:[%s1403] sm:$0xff]
      %v1405 = vld [vmem:[%s394] sm:$0x3]
      %v1407 = vlaneseq
      %v1408 = vshrl.u32 %v1407, 7
      %v1409 = vsub.s32 0, %v1408
      %v1410 = vrot.slane %v1405, %v1409
      %v1411 = vlaneseq
      %v1412 = vshrl.u32 %v1411, 7
      %v1413 = vsub.s32 1, %v1412
      %v1414 = vrot.slane %v1405, %v1413
      %1415 = vrot.lane.b32.xlu0 %v1410, 112
      %v1416 = vpop.permute.xlu0 %1415
      %1417 = vrot.lane.b32.xlu0 %v1414, 112
      %v1418 = vpop.permute.xlu0 %1417
      %v1419 = vsel %vm409, %v1416, %v1418
      %v1423 = vmul.f32 %v1379, %v1416
      %v1424 = vmul.f32 %v1380, %v1419
      %v1425 = vmul.f32 %v1381, %v1418
      %s1426 = scalar_lea.vmem %s3, 80
      %v1427 = vld [vmem:[%s1426] sm:$0xff]
      %1431 = vrot.lane.b32.xlu0 %v1423, 16
      %v1432 = vpop.permute.xlu0 %1431
      %1433 = vrot.lane.b32.xlu0 %v1424, 16
      %v1434 = vpop.permute.xlu0 %1433
      %1435 = vrot.lane.b32.xlu0 %v1425, 16
      %v1436 = vpop.permute.xlu0 %1435
      %v1437 = vsel %vm428, %v1432, %v1434
      %v1438 = vsel %vm428, %v1434, %v1436
      %v1442 = vsel %vm433, %v1427, 0
      %1444 = vmatprep.subr.mxu0 %v1438
      %1445 = vmatpush1.msra.mxu0 %v1437
      %1446 = vmatprep.subr.mxu0 0.0
      %1447 = vmatpush1.msra.mxu0 0.0
      %1448 = vmatprep.subr.mxu0 0.0
      %1449 = vmatpush1.msra.mxu0 0.0
      %1450 = vmatprep.subr.mxu0 0.0
      %1451 = vmatpush1.msra.mxu0 0.0
      %1452 = vmatprep.subr.mxu0 0.0
      %1453 = vmatpush1.msra.mxu0 0.0
      %1454 = vmatprep.subr.mxu0 0.0
      %1455 = vmatpush1.msra.mxu0 0.0
      %1456 = vmatprep.subr.mxu0 0.0
      %1457 = vmatpush1.msra.mxu0 0.0
      %1458 = vmatprep.subr.mxu0 0.0
      %1459 = vmatpush1.msra.mxu0 0.0
      %1460 = vmatprep.subr.mxu0 0.0
      %1461 = vmatpush1.msra.mxu0 0.0
      %1462 = vmatprep.subr.mxu0 0.0
      %1463 = vmatpush1.msra.mxu0 0.0
      %1464 = vmatprep.subr.mxu0 0.0
      %1465 = vmatpush1.msra.mxu0 0.0
      %1466 = vmatprep.subr.mxu0 0.0
      %1467 = vmatpush1.msra.mxu0 0.0
      %1468 = vmatprep.subr.mxu0 0.0
      %1469 = vmatpush1.msra.mxu0 0.0
      %1470 = vmatprep.subr.mxu0 0.0
      %1471 = vmatpush1.msra.mxu0 0.0
      %1472 = vmatprep.subr.mxu0 0.0
      %1473 = vmatpush1.msra.mxu0 0.0
      %1474 = vmatprep.subr.mxu0 0.0
      %1475 = vmatpush1.msra.mxu0 0.0
      %1476 = vmatprep.subr.mxu0 0.0
      %1477 = vmatpush1.msra.mxu0 0.0
      %1478 = vmatprep.subr.mxu0 0.0
      %1479 = vmatpush1.msra.mxu0 0.0
      %1480 = vmatprep.subr.mxu0 0.0
      %1481 = vmatpush1.msra.mxu0 0.0
      %1482 = vmatprep.subr.mxu0 0.0
      %1483 = vmatpush1.msra.mxu0 0.0
      %1484 = vmatprep.subr.mxu0 0.0
      %1485 = vmatpush1.msra.mxu0 0.0
      %1486 = vmatprep.subr.mxu0 0.0
      %1487 = vmatpush1.msra.mxu0 0.0
      %1488 = vmatprep.subr.mxu0 0.0
      %1489 = vmatpush1.msra.mxu0 0.0
      %1490 = vmatprep.subr.mxu0 0.0
      %1491 = vmatpush1.msra.mxu0 0.0
      %1492 = vmatprep.subr.mxu0 0.0
      %1493 = vmatpush1.msra.mxu0 0.0
      %1494 = vmatprep.subr.mxu0 0.0
      %1495 = vmatpush1.msra.mxu0 0.0
      %1496 = vmatprep.subr.mxu0 0.0
      %1497 = vmatpush1.msra.mxu0 0.0
      %1498 = vmatprep.subr.mxu0 0.0
      %1499 = vmatpush1.msra.mxu0 0.0
      %1500 = vmatprep.subr.mxu0 0.0
      %1501 = vmatpush1.msra.mxu0 0.0
      %1502 = vmatprep.subr.mxu0 0.0
      %1503 = vmatpush1.msra.mxu0 0.0
      %1504 = vmatprep.subr.mxu0 0.0
      %1505 = vmatpush1.msra.mxu0 0.0
      %1506 = vmatprep.subr.mxu0 0.0
      %1507 = vmatpush1.msra.mxu0 0.0
      %1508 = vmatprep.mubr.f32.mxu0 0.0
      %1509 = vmatmul.mubr.f32.gmra.mrb[0].mxu0 %v1442
      %v1510 = vpop.f32.mrb[0].mxu0
      %v1511 = vadd.f32 0.0, %v1510
      %v1512 = vpop.f32.mrb[0].mxu0
      %v1513 = vadd.f32 0.0, %v1512
      %1514 = vdwg.mxu0
      %1518 = vrot.lane.b32.xlu0 %v1400, 17
      %v1519 = vpop.permute.xlu0 %1518
      %1520 = vrot.lane.b32.xlu0 %v1401, 17
      %v1521 = vpop.permute.xlu0 %1520
      %1522 = vrot.lane.b32.xlu0 %v1402, 17
      %v1523 = vpop.permute.xlu0 %1522
      %v1524 = vsel %vm517, %v1519, %v1521
      %v1525 = vsel %vm517, %v1521, %v1523
      %v1529 = vsel %vm433, %v1404, 0
      %1531 = vmatprep.subr.mxu0 %v1525
      %1532 = vmatpush1.msra.mxu0 %v1524
      %1533 = vmatprep.subr.mxu0 0.0
      %1534 = vmatpush1.msra.mxu0 0.0
      %1535 = vmatprep.subr.mxu0 0.0
      %1536 = vmatpush1.msra.mxu0 0.0
      %1537 = vmatprep.subr.mxu0 0.0
      %1538 = vmatpush1.msra.mxu0 0.0
      %1539 = vmatprep.subr.mxu0 0.0
      %1540 = vmatpush1.msra.mxu0 0.0
      %1541 = vmatprep.subr.mxu0 0.0
      %1542 = vmatpush1.msra.mxu0 0.0
      %1543 = vmatprep.subr.mxu0 0.0
      %1544 = vmatpush1.msra.mxu0 0.0
      %1545 = vmatprep.subr.mxu0 0.0
      %1546 = vmatpush1.msra.mxu0 0.0
      %1547 = vmatprep.subr.mxu0 0.0
      %1548 = vmatpush1.msra.mxu0 0.0
      %1549 = vmatprep.subr.mxu0 0.0
      %1550 = vmatpush1.msra.mxu0 0.0
      %1551 = vmatprep.subr.mxu0 0.0
      %1552 = vmatpush1.msra.mxu0 0.0
      %1553 = vmatprep.subr.mxu0 0.0
      %1554 = vmatpush1.msra.mxu0 0.0
      %1555 = vmatprep.subr.mxu0 0.0
      %1556 = vmatpush1.msra.mxu0 0.0
      %1557 = vmatprep.subr.mxu0 0.0
      %1558 = vmatpush1.msra.mxu0 0.0
      %1559 = vmatprep.subr.mxu0 0.0
      %1560 = vmatpush1.msra.mxu0 0.0
      %1561 = vmatprep.subr.mxu0 0.0
      %1562 = vmatpush1.msra.mxu0 0.0
      %1563 = vmatprep.subr.mxu0 0.0
      %1564 = vmatpush1.msra.mxu0 0.0
      %1565 = vmatprep.subr.mxu0 0.0
      %1566 = vmatpush1.msra.mxu0 0.0
      %1567 = vmatprep.subr.mxu0 0.0
      %1568 = vmatpush1.msra.mxu0 0.0
      %1569 = vmatprep.subr.mxu0 0.0
      %1570 = vmatpush1.msra.mxu0 0.0
      %1571 = vmatprep.subr.mxu0 0.0
      %1572 = vmatpush1.msra.mxu0 0.0
      %1573 = vmatprep.subr.mxu0 0.0
      %1574 = vmatpush1.msra.mxu0 0.0
      %1575 = vmatprep.subr.mxu0 0.0
      %1576 = vmatpush1.msra.mxu0 0.0
      %1577 = vmatprep.subr.mxu0 0.0
      %1578 = vmatpush1.msra.mxu0 0.0
      %1579 = vmatprep.subr.mxu0 0.0
      %1580 = vmatpush1.msra.mxu0 0.0
      %1581 = vmatprep.subr.mxu0 0.0
      %1582 = vmatpush1.msra.mxu0 0.0
      %1583 = vmatprep.subr.mxu0 0.0
      %1584 = vmatpush1.msra.mxu0 0.0
      %1585 = vmatprep.subr.mxu0 0.0
      %1586 = vmatpush1.msra.mxu0 0.0
      %1587 = vmatprep.subr.mxu0 0.0
      %1588 = vmatpush1.msra.mxu0 0.0
      %1589 = vmatprep.subr.mxu0 0.0
      %1590 = vmatpush1.msra.mxu0 0.0
      %1591 = vmatprep.subr.mxu0 0.0
      %1592 = vmatpush1.msra.mxu0 0.0
      %1593 = vmatprep.subr.mxu0 0.0
      %1594 = vmatpush1.msra.mxu0 0.0
      %1595 = vmatprep.mubr.f32.mxu0 0.0
      %1596 = vmatmul.mubr.f32.gmra.mrb[0].mxu0 %v1529
      %v1597 = vpop.f32.mrb[0].mxu0
      %v1598 = vadd.f32 %v1511, %v1597
      %v1599 = vpop.f32.mrb[0].mxu0
      %v1600 = vadd.f32 %v1513, %v1599
      %1601 = vdwg.mxu0
      %v1602 = vld [vmem:[%s596] sm:$0x3]
      %v1604 = vlaneseq
      %v1605 = vshrl.u32 %v1604, 7
      %v1606 = vsub.s32 0, %v1605
      %v1607 = vrot.slane %v1602, %v1606
      %v1608 = vlaneseq
      %v1609 = vshrl.u32 %v1608, 7
      %v1610 = vsub.s32 1, %v1609
      %v1611 = vrot.slane %v1602, %v1610
      %1612 = vrot.lane.b32.xlu0 %v1607, 113
      %v1613 = vpop.permute.xlu0 %1612
      %1614 = vrot.lane.b32.xlu0 %v1611, 113
      %v1615 = vpop.permute.xlu0 %1614
      %v1616 = vsel %vm611, %v1613, %v1615
      %v1620 = vmul.f32 %v1379, %v1613
      %v1621 = vmul.f32 %v1380, %v1616
      %v1622 = vmul.f32 %v1381, %v1615
      %s1623 = scalar_lea.vmem %s3, 88
      %v1624 = vld [vmem:[%s1623] sm:$0xff]
      %1628 = vrot.lane.b32.xlu0 %v1620, 15
      %v1629 = vpop.permute.xlu0 %1628
      %1630 = vrot.lane.b32.xlu0 %v1621, 15
      %v1631 = vpop.permute.xlu0 %1630
      %1632 = vrot.lane.b32.xlu0 %v1622, 15
      %v1633 = vpop.permute.xlu0 %1632
      %v1634 = vsel %vm630, %v1629, %v1631
      %v1635 = vsel %vm630, %v1631, %v1633
      %v1639 = vsel %vm433, %v1624, 0
      %1641 = vmatprep.subr.mxu0 %v1635
      %1642 = vmatpush1.msra.mxu0 %v1634
      %1643 = vmatprep.subr.mxu0 0.0
      %1644 = vmatpush1.msra.mxu0 0.0
      %1645 = vmatprep.subr.mxu0 0.0
      %1646 = vmatpush1.msra.mxu0 0.0
      %1647 = vmatprep.subr.mxu0 0.0
      %1648 = vmatpush1.msra.mxu0 0.0
      %1649 = vmatprep.subr.mxu0 0.0
      %1650 = vmatpush1.msra.mxu0 0.0
      %1651 = vmatprep.subr.mxu0 0.0
      %1652 = vmatpush1.msra.mxu0 0.0
      %1653 = vmatprep.subr.mxu0 0.0
      %1654 = vmatpush1.msra.mxu0 0.0
      %1655 = vmatprep.subr.mxu0 0.0
      %1656 = vmatpush1.msra.mxu0 0.0
      %1657 = vmatprep.subr.mxu0 0.0
      %1658 = vmatpush1.msra.mxu0 0.0
      %1659 = vmatprep.subr.mxu0 0.0
      %1660 = vmatpush1.msra.mxu0 0.0
      %1661 = vmatprep.subr.mxu0 0.0
      %1662 = vmatpush1.msra.mxu0 0.0
      %1663 = vmatprep.subr.mxu0 0.0
      %1664 = vmatpush1.msra.mxu0 0.0
      %1665 = vmatprep.subr.mxu0 0.0
      %1666 = vmatpush1.msra.mxu0 0.0
      %1667 = vmatprep.subr.mxu0 0.0
      %1668 = vmatpush1.msra.mxu0 0.0
      %1669 = vmatprep.subr.mxu0 0.0
      %1670 = vmatpush1.msra.mxu0 0.0
      %1671 = vmatprep.subr.mxu0 0.0
      %1672 = vmatpush1.msra.mxu0 0.0
      %1673 = vmatprep.subr.mxu0 0.0
      %1674 = vmatpush1.msra.mxu0 0.0
      %1675 = vmatprep.subr.mxu0 0.0
      %1676 = vmatpush1.msra.mxu0 0.0
      %1677 = vmatprep.subr.mxu0 0.0
      %1678 = vmatpush1.msra.mxu0 0.0
      %1679 = vmatprep.subr.mxu0 0.0
      %1680 = vmatpush1.msra.mxu0 0.0
      %1681 = vmatprep.subr.mxu0 0.0
      %1682 = vmatpush1.msra.mxu0 0.0
      %1683 = vmatprep.subr.mxu0 0.0
      %1684 = vmatpush1.msra.mxu0 0.0
      %1685 = vmatprep.subr.mxu0 0.0
      %1686 = vmatpush1.msra.mxu0 0.0
      %1687 = vmatprep.subr.mxu0 0.0
      %1688 = vmatpush1.msra.mxu0 0.0
      %1689 = vmatprep.subr.mxu0 0.0
      %1690 = vmatpush1.msra.mxu0 0.0
      %1691 = vmatprep.subr.mxu0 0.0
      %1692 = vmatpush1.msra.mxu0 0.0
      %1693 = vmatprep.subr.mxu0 0.0
      %1694 = vmatpush1.msra.mxu0 0.0
      %1695 = vmatprep.subr.mxu0 0.0
      %1696 = vmatpush1.msra.mxu0 0.0
      %1697 = vmatprep.subr.mxu0 0.0
      %1698 = vmatpush1.msra.mxu0 0.0
      %1699 = vmatprep.subr.mxu0 0.0
      %1700 = vmatpush1.msra.mxu0 0.0
      %1701 = vmatprep.subr.mxu0 0.0
      %1702 = vmatpush1.msra.mxu0 0.0
      %1703 = vmatprep.subr.mxu0 0.0
      %1704 = vmatpush1.msra.mxu0 0.0
      %1705 = vmatprep.mubr.f32.mxu0 0.0
      %1706 = vmatmul.mubr.f32.gmra.mrb[0].mxu0 %v1639
      %v1707 = vpop.f32.mrb[0].mxu0
      %v1708 = vadd.f32 0.0, %v1707
      %v1709 = vpop.f32.mrb[0].mxu0
      %v1710 = vadd.f32 0.0, %v1709
      %1711 = vdwg.mxu0
      %v1712 = vadd.f32 %v1598, %v1708
      %v1713 = vadd.f32 %v1600, %v1710
      %v1714 = vld [vmem:[%s711] sm:$0x3]
      %v1716 = vlaneseq
      %v1717 = vshrl.u32 %v1716, 7
      %v1718 = vsub.s32 0, %v1717
      %v1719 = vrot.slane %v1714, %v1718
      %v1720 = vlaneseq
      %v1721 = vshrl.u32 %v1720, 7
      %v1722 = vsub.s32 1, %v1721
      %v1723 = vrot.slane %v1714, %v1722
      %1724 = vrot.lane.b32.xlu0 %v1719, 127
      %v1725 = vpop.permute.xlu0 %1724
      %1726 = vrot.lane.b32.xlu0 %v1723, 127
      %v1727 = vpop.permute.xlu0 %1726
      %v1728 = vsel %vm726, %v1725, %v1727
      %v1732 = vmul.f32 %v1379, %v1725
      %v1733 = vmul.f32 %v1380, %v1728
      %v1734 = vmul.f32 %v1381, %v1727
      %s1735 = scalar_lea.vmem %s3, 96
      %v1736 = vld [vmem:[%s1735] sm:$0xff]
      %1740 = vrot.lane.b32.xlu0 %v1732, 1
      %v1741 = vpop.permute.xlu0 %1740
      %1742 = vrot.lane.b32.xlu0 %v1733, 1
      %v1743 = vpop.permute.xlu0 %1742
      %1744 = vrot.lane.b32.xlu0 %v1734, 1
      %v1745 = vpop.permute.xlu0 %1744
      %v1746 = vsel %vm745, %v1741, %v1743
      %v1747 = vsel %vm745, %v1743, %v1745
      %v1751 = vsel %vm433, %v1736, 0
      %1753 = vmatprep.subr.mxu0 %v1747
      %1754 = vmatpush1.msra.mxu0 %v1746
      %1755 = vmatprep.subr.mxu0 0.0
      %1756 = vmatpush1.msra.mxu0 0.0
      %1757 = vmatprep.subr.mxu0 0.0
      %1758 = vmatpush1.msra.mxu0 0.0
      %1759 = vmatprep.subr.mxu0 0.0
      %1760 = vmatpush1.msra.mxu0 0.0
      %1761 = vmatprep.subr.mxu0 0.0
      %1762 = vmatpush1.msra.mxu0 0.0
      %1763 = vmatprep.subr.mxu0 0.0
      %1764 = vmatpush1.msra.mxu0 0.0
      %1765 = vmatprep.subr.mxu0 0.0
      %1766 = vmatpush1.msra.mxu0 0.0
      %1767 = vmatprep.subr.mxu0 0.0
      %1768 = vmatpush1.msra.mxu0 0.0
      %1769 = vmatprep.subr.mxu0 0.0
      %1770 = vmatpush1.msra.mxu0 0.0
      %1771 = vmatprep.subr.mxu0 0.0
      %1772 = vmatpush1.msra.mxu0 0.0
      %1773 = vmatprep.subr.mxu0 0.0
      %1774 = vmatpush1.msra.mxu0 0.0
      %1775 = vmatprep.subr.mxu0 0.0
      %1776 = vmatpush1.msra.mxu0 0.0
      %1777 = vmatprep.subr.mxu0 0.0
      %1778 = vmatpush1.msra.mxu0 0.0
      %1779 = vmatprep.subr.mxu0 0.0
      %1780 = vmatpush1.msra.mxu0 0.0
      %1781 = vmatprep.subr.mxu0 0.0
      %1782 = vmatpush1.msra.mxu0 0.0
      %1783 = vmatprep.subr.mxu0 0.0
      %1784 = vmatpush1.msra.mxu0 0.0
      %1785 = vmatprep.subr.mxu0 0.0
      %1786 = vmatpush1.msra.mxu0 0.0
      %1787 = vmatprep.subr.mxu0 0.0
      %1788 = vmatpush1.msra.mxu0 0.0
      %1789 = vmatprep.subr.mxu0 0.0
      %1790 = vmatpush1.msra.mxu0 0.0
      %1791 = vmatprep.subr.mxu0 0.0
      %1792 = vmatpush1.msra.mxu0 0.0
      %1793 = vmatprep.subr.mxu0 0.0
      %1794 = vmatpush1.msra.mxu0 0.0
      %1795 = vmatprep.subr.mxu0 0.0
      %1796 = vmatpush1.msra.mxu0 0.0
      %1797 = vmatprep.subr.mxu0 0.0
      %1798 = vmatpush1.msra.mxu0 0.0
      %1799 = vmatprep.subr.mxu0 0.0
      %1800 = vmatpush1.msra.mxu0 0.0
      %1801 = vmatprep.subr.mxu0 0.0
      %1802 = vmatpush1.msra.mxu0 0.0
      %1803 = vmatprep.subr.mxu0 0.0
      %1804 = vmatpush1.msra.mxu0 0.0
      %1805 = vmatprep.subr.mxu0 0.0
      %1806 = vmatpush1.msra.mxu0 0.0
      %1807 = vmatprep.subr.mxu0 0.0
      %1808 = vmatpush1.msra.mxu0 0.0
      %1809 = vmatprep.subr.mxu0 0.0
      %1810 = vmatpush1.msra.mxu0 0.0
      %1811 = vmatprep.subr.mxu0 0.0
      %1812 = vmatpush1.msra.mxu0 0.0
      %1813 = vmatprep.subr.mxu0 0.0
      %1814 = vmatpush1.msra.mxu0 0.0
      %1815 = vmatprep.subr.mxu0 0.0
      %1816 = vmatpush1.msra.mxu0 0.0
      %1817 = vmatprep.mubr.f32.mxu0 0.0
      %1818 = vmatmul.mubr.f32.gmra.mrb[0].mxu0 %v1751
      %v1819 = vpop.f32.mrb[0].mxu0
      %v1820 = vadd.f32 0.0, %v1819
      %v1821 = vpop.f32.mrb[0].mxu0
      %v1822 = vadd.f32 0.0, %v1821
      %1823 = vdwg.mxu0
      %v1824 = vadd.f32 %v1712, %v1820
      %v1825 = vadd.f32 %v1713, %v1822
      %v1826 = vld [vmem:[#allocation2] sm:$0xff]
      %v1827 = vld [vmem:[#allocation2 + $0x8] sm:$0xff]
      %s1828 = scalar_lea.vmem %s3, 104
      %v1829 = vld [vmem:[%s1828] sm:$0xff]
      %v1831 = vsel %vm433, %v1829, 0
      %1833 = vmatprep.subr.mxu0 %v1827
      %1834 = vmatpush1.msra.mxu0 %v1826
      %1835 = vmatprep.subr.mxu0 0.0
      %1836 = vmatpush1.msra.mxu0 0.0
      %1837 = vmatprep.subr.mxu0 0.0
      %1838 = vmatpush1.msra.mxu0 0.0
      %1839 = vmatprep.subr.mxu0 0.0
      %1840 = vmatpush1.msra.mxu0 0.0
      %1841 = vmatprep.subr.mxu0 0.0
      %1842 = vmatpush1.msra.mxu0 0.0
      %1843 = vmatprep.subr.mxu0 0.0
      %1844 = vmatpush1.msra.mxu0 0.0
      %1845 = vmatprep.subr.mxu0 0.0
      %1846 = vmatpush1.msra.mxu0 0.0
      %1847 = vmatprep.subr.mxu0 0.0
      %1848 = vmatpush1.msra.mxu0 0.0
      %1849 = vmatprep.subr.mxu0 0.0
      %1850 = vmatpush1.msra.mxu0 0.0
      %1851 = vmatprep.subr.mxu0 0.0
      %1852 = vmatpush1.msra.mxu0 0.0
      %1853 = vmatprep.subr.mxu0 0.0
      %1854 = vmatpush1.msra.mxu0 0.0
      %1855 = vmatprep.subr.mxu0 0.0
      %1856 = vmatpush1.msra.mxu0 0.0
      %1857 = vmatprep.subr.mxu0 0.0
      %1858 = vmatpush1.msra.mxu0 0.0
      %1859 = vmatprep.subr.mxu0 0.0
      %1860 = vmatpush1.msra.mxu0 0.0
      %1861 = vmatprep.subr.mxu0 0.0
      %1862 = vmatpush1.msra.mxu0 0.0
      %1863 = vmatprep.subr.mxu0 0.0
      %1864 = vmatpush1.msra.mxu0 0.0
      %1865 = vmatprep.subr.mxu0 0.0
      %1866 = vmatpush1.msra.mxu0 0.0
      %1867 = vmatprep.subr.mxu0 0.0
      %1868 = vmatpush1.msra.mxu0 0.0
      %1869 = vmatprep.subr.mxu0 0.0
      %1870 = vmatpush1.msra.mxu0 0.0
      %1871 = vmatprep.subr.mxu0 0.0
      %1872 = vmatpush1.msra.mxu0 0.0
      %1873 = vmatprep.subr.mxu0 0.0
      %1874 = vmatpush1.msra.mxu0 0.0
      %1875 = vmatprep.subr.mxu0 0.0
      %1876 = vmatpush1.msra.mxu0 0.0
      %1877 = vmatprep.subr.mxu0 0.0
      %1878 = vmatpush1.msra.mxu0 0.0
      %1879 = vmatprep.subr.mxu0 0.0
      %1880 = vmatpush1.msra.mxu0 0.0
      %1881 = vmatprep.subr.mxu0 0.0
      %1882 = vmatpush1.msra.mxu0 0.0
      %1883 = vmatprep.subr.mxu0 0.0
      %1884 = vmatpush1.msra.mxu0 0.0
      %1885 = vmatprep.subr.mxu0 0.0
      %1886 = vmatpush1.msra.mxu0 0.0
      %1887 = vmatprep.subr.mxu0 0.0
      %1888 = vmatpush1.msra.mxu0 0.0
      %1889 = vmatprep.subr.mxu0 0.0
      %1890 = vmatpush1.msra.mxu0 0.0
      %1891 = vmatprep.subr.mxu0 0.0
      %1892 = vmatpush1.msra.mxu0 0.0
      %1893 = vmatprep.subr.mxu0 0.0
      %1894 = vmatpush1.msra.mxu0 0.0
      %1895 = vmatprep.subr.mxu0 0.0
      %1896 = vmatpush1.msra.mxu0 0.0
      %1897 = vmatprep.mubr.f32.mxu0 0.0
      %1898 = vmatmul.mubr.f32.gmra.mrb[0].mxu0 %v1831
      %v1899 = vpop.f32.mrb[0].mxu0
      %v1900 = vadd.f32 0.0, %v1899
      %v1901 = vpop.f32.mrb[0].mxu0
      %v1902 = vadd.f32 0.0, %v1901
      %1903 = vdwg.mxu0
      %v1904 = vadd.f32 %v1824, %v1900
      %v1905 = vadd.f32 %v1825, %v1902
      %v1906 = vld [vmem:[#allocation2] sm:$0xff]
      %v1907 = vld [vmem:[#allocation2 + $0x8] sm:$0xff]
      %v1908 = vld [vmem:[#allocation2 + $0x10] sm:$0xff]
      %v1909 = vld [vmem:[%s909] sm:$0x3]
      %v1911 = vlaneseq
      %v1912 = vshrl.u32 %v1911, 7
      %v1913 = vsub.s32 0, %v1912
      %v1914 = vrot.slane %v1909, %v1913
      %v1915 = vlaneseq
      %v1916 = vshrl.u32 %v1915, 7
      %v1917 = vsub.s32 1, %v1916
      %v1918 = vrot.slane %v1909, %v1917
      %1919 = vrot.lane.b32.xlu0 %v1914, 1
      %v1920 = vpop.permute.xlu0 %1919
      %1921 = vrot.lane.b32.xlu0 %v1918, 1
      %v1922 = vpop.permute.xlu0 %1921
      %v1923 = vsel %vm745, %v1920, %v1922
      %v1927 = vmul.f32 %v1906, %v1920
      %v1928 = vmul.f32 %v1907, %v1923
      %v1929 = vmul.f32 %v1908, %v1922
      %s1930 = scalar_lea.vmem %s3, 112
      %v1931 = vld [vmem:[%s1930] sm:$0xff]
      %1935 = vrot.lane.b32.xlu0 %v1927, 127
      %v1936 = vpop.permute.xlu0 %1935
      %1937 = vrot.lane.b32.xlu0 %v1928, 127
      %v1938 = vpop.permute.xlu0 %1937
      %1939 = vrot.lane.b32.xlu0 %v1929, 127
      %v1940 = vpop.permute.xlu0 %1939
      %v1941 = vsel %vm726, %v1936, %v1938
      %v1942 = vsel %vm726, %v1938, %v1940
      %v1946 = vsel %vm433, %v1931, 0
      %1948 = vmatprep.subr.mxu0 %v1942
      %1949 = vmatpush1.msra.mxu0 %v1941
      %1950 = vmatprep.subr.mxu0 0.0
      %1951 = vmatpush1.msra.mxu0 0.0
      %1952 = vmatprep.subr.mxu0 0.0
      %1953 = vmatpush1.msra.mxu0 0.0
      %1954 = vmatprep.subr.mxu0 0.0
      %1955 = vmatpush1.msra.mxu0 0.0
      %1956 = vmatprep.subr.mxu0 0.0
      %1957 = vmatpush1.msra.mxu0 0.0
      %1958 = vmatprep.subr.mxu0 0.0
      %1959 = vmatpush1.msra.mxu0 0.0
      %1960 = vmatprep.subr.mxu0 0.0
      %1961 = vmatpush1.msra.mxu0 0.0
      %1962 = vmatprep.subr.mxu0 0.0
      %1963 = vmatpush1.msra.mxu0 0.0
      %1964 = vmatprep.subr.mxu0 0.0
      %1965 = vmatpush1.msra.mxu0 0.0
      %1966 = vmatprep.subr.mxu0 0.0
      %1967 = vmatpush1.msra.mxu0 0.0
      %1968 = vmatprep.subr.mxu0 0.0
      %1969 = vmatpush1.msra.mxu0 0.0
      %1970 = vmatprep.subr.mxu0 0.0
      %1971 = vmatpush1.msra.mxu0 0.0
      %1972 = vmatprep.subr.mxu0 0.0
      %1973 = vmatpush1.msra.mxu0 0.0
      %1974 = vmatprep.subr.mxu0 0.0
      %1975 = vmatpush1.msra.mxu0 0.0
      %1976 = vmatprep.subr.mxu0 0.0
      %1977 = vmatpush1.msra.mxu0 0.0
      %1978 = vmatprep.subr.mxu0 0.0
      %1979 = vmatpush1.msra.mxu0 0.0
      %1980 = vmatprep.subr.mxu0 0.0
      %1981 = vmatpush1.msra.mxu0 0.0
      %1982 = vmatprep.subr.mxu0 0.0
      %1983 = vmatpush1.msra.mxu0 0.0
      %1984 = vmatprep.subr.mxu0 0.0
      %1985 = vmatpush1.msra.mxu0 0.0
      %1986 = vmatprep.subr.mxu0 0.0
      %1987 = vmatpush1.msra.mxu0 0.0
      %1988 = vmatprep.subr.mxu0 0.0
      %1989 = vmatpush1.msra.mxu0 0.0
      %1990 = vmatprep.subr.mxu0 0.0
      %1991 = vmatpush1.msra.mxu0 0.0
      %1992 = vmatprep.subr.mxu0 0.0
      %1993 = vmatpush1.msra.mxu0 0.0
      %1994 = vmatprep.subr.mxu0 0.0
      %1995 = vmatpush1.msra.mxu0 0.0
      %1996 = vmatprep.subr.mxu0 0.0
      %1997 = vmatpush1.msra.mxu0 0.0
      %1998 = vmatprep.subr.mxu0 0.0
      %1999 = vmatpush1.msra.mxu0 0.0
      %2000 = vmatprep.subr.mxu0 0.0
      %2001 = vmatpush1.msra.mxu0 0.0
      %2002 = vmatprep.subr.mxu0 0.0
      %2003 = vmatpush1.msra.mxu0 0.0
      %2004 = vmatprep.subr.mxu0 0.0
      %2005 = vmatpush1.msra.mxu0 0.0
      %2006 = vmatprep.subr.mxu0 0.0
      %2007 = vmatpush1.msra.mxu0 0.0
      %2008 = vmatprep.subr.mxu0 0.0
      %2009 = vmatpush1.msra.mxu0 0.0
      %2010 = vmatprep.subr.mxu0 0.0
      %2011 = vmatpush1.msra.mxu0 0.0
      %2012 = vmatprep.mubr.f32.mxu0 0.0
      %2013 = vmatmul.mubr.f32.gmra.mrb[0].mxu0 %v1946
      %v2014 = vpop.f32.mrb[0].mxu0
      %v2015 = vadd.f32 0.0, %v2014
      %v2016 = vpop.f32.mrb[0].mxu0
      %v2017 = vadd.f32 0.0, %v2016
      %2018 = vdwg.mxu0
      %v2019 = vadd.f32 %v1904, %v2015
      %v2020 = vadd.f32 %v1905, %v2017
      %v2021 = vld [vmem:[%s1022] sm:$0x3]
      %v2023 = vlaneseq
      %v2024 = vshrl.u32 %v2023, 7
      %v2025 = vsub.s32 0, %v2024
      %v2026 = vrot.slane %v2021, %v2025
      %v2027 = vlaneseq
      %v2028 = vshrl.u32 %v2027, 7
      %v2029 = vsub.s32 1, %v2028
      %v2030 = vrot.slane %v2021, %v2029
      %2031 = vrot.lane.b32.xlu0 %v2026, 15
      %v2032 = vpop.permute.xlu0 %2031
      %2033 = vrot.lane.b32.xlu0 %v2030, 15
      %v2034 = vpop.permute.xlu0 %2033
      %v2035 = vsel %vm630, %v2032, %v2034
      %v2039 = vmul.f32 %v1906, %v2032
      %v2040 = vmul.f32 %v1907, %v2035
      %v2041 = vmul.f32 %v1908, %v2034
      %s2042 = scalar_lea.vmem %s3, 120
      %v2043 = vld [vmem:[%s2042] sm:$0xff]
      %2047 = vrot.lane.b32.xlu0 %v2039, 113
      %v2048 = vpop.permute.xlu0 %2047
      %2049 = vrot.lane.b32.xlu0 %v2040, 113
      %v2050 = vpop.permute.xlu0 %2049
      %2051 = vrot.lane.b32.xlu0 %v2041, 113
      %v2052 = vpop.permute.xlu0 %2051
      %v2053 = vsel %vm611, %v2048, %v2050
      %v2054 = vsel %vm611, %v2050, %v2052
      %v2058 = vsel %vm433, %v2043, 0
      %2060 = vmatprep.subr.mxu0 %v2054
      %2061 = vmatpush1.msra.mxu0 %v2053
      %2062 = vmatprep.subr.mxu0 0.0
      %2063 = vmatpush1.msra.mxu0 0.0
      %2064 = vmatprep.subr.mxu0 0.0
      %2065 = vmatpush1.msra.mxu0 0.0
      %2066 = vmatprep.subr.mxu0 0.0
      %2067 = vmatpush1.msra.mxu0 0.0
      %2068 = vmatprep.subr.mxu0 0.0
      %2069 = vmatpush1.msra.mxu0 0.0
      %2070 = vmatprep.subr.mxu0 0.0
      %2071 = vmatpush1.msra.mxu0 0.0
      %2072 = vmatprep.subr.mxu0 0.0
      %2073 = vmatpush1.msra.mxu0 0.0
      %2074 = vmatprep.subr.mxu0 0.0
      %2075 = vmatpush1.msra.mxu0 0.0
      %2076 = vmatprep.subr.mxu0 0.0
      %2077 = vmatpush1.msra.mxu0 0.0
      %2078 = vmatprep.subr.mxu0 0.0
      %2079 = vmatpush1.msra.mxu0 0.0
      %2080 = vmatprep.subr.mxu0 0.0
      %2081 = vmatpush1.msra.mxu0 0.0
      %2082 = vmatprep.subr.mxu0 0.0
      %2083 = vmatpush1.msra.mxu0 0.0
      %2084 = vmatprep.subr.mxu0 0.0
      %2085 = vmatpush1.msra.mxu0 0.0
      %2086 = vmatprep.subr.mxu0 0.0
      %2087 = vmatpush1.msra.mxu0 0.0
      %2088 = vmatprep.subr.mxu0 0.0
      %2089 = vmatpush1.msra.mxu0 0.0
      %2090 = vmatprep.subr.mxu0 0.0
      %2091 = vmatpush1.msra.mxu0 0.0
      %2092 = vmatprep.subr.mxu0 0.0
      %2093 = vmatpush1.msra.mxu0 0.0
      %2094 = vmatprep.subr.mxu0 0.0
      %2095 = vmatpush1.msra.mxu0 0.0
      %2096 = vmatprep.subr.mxu0 0.0
      %2097 = vmatpush1.msra.mxu0 0.0
      %2098 = vmatprep.subr.mxu0 0.0
      %2099 = vmatpush1.msra.mxu0 0.0
      %2100 = vmatprep.subr.mxu0 0.0
      %2101 = vmatpush1.msra.mxu0 0.0
      %2102 = vmatprep.subr.mxu0 0.0
      %2103 = vmatpush1.msra.mxu0 0.0
      %2104 = vmatprep.subr.mxu0 0.0
      %2105 = vmatpush1.msra.mxu0 0.0
      %2106 = vmatprep.subr.mxu0 0.0
      %2107 = vmatpush1.msra.mxu0 0.0
      %2108 = vmatprep.subr.mxu0 0.0
      %2109 = vmatpush1.msra.mxu0 0.0
      %2110 = vmatprep.subr.mxu0 0.0
      %2111 = vmatpush1.msra.mxu0 0.0
      %2112 = vmatprep.subr.mxu0 0.0
      %2113 = vmatpush1.msra.mxu0 0.0
      %2114 = vmatprep.subr.mxu0 0.0
      %2115 = vmatpush1.msra.mxu0 0.0
      %2116 = vmatprep.subr.mxu0 0.0
      %2117 = vmatpush1.msra.mxu0 0.0
      %2118 = vmatprep.subr.mxu0 0.0
      %2119 = vmatpush1.msra.mxu0 0.0
      %2120 = vmatprep.subr.mxu0 0.0
      %2121 = vmatpush1.msra.mxu0 0.0
      %2122 = vmatprep.subr.mxu0 0.0
      %2123 = vmatpush1.msra.mxu0 0.0
      %2124 = vmatprep.mubr.f32.mxu0 0.0
      %2125 = vmatmul.mubr.f32.gmra.mrb[0].mxu0 %v2058
      %v2126 = vpop.f32.mrb[0].mxu0
      %v2127 = vadd.f32 0.0, %v2126
      %v2128 = vpop.f32.mrb[0].mxu0
      %v2129 = vadd.f32 0.0, %v2128
      %2130 = vdwg.mxu0
      %v2131 = vadd.f32 %v2019, %v2127
      %v2132 = vadd.f32 %v2020, %v2129
      %v2133 = vld [vmem:[%s1135] sm:$0x3]
      %v2135 = vlaneseq
      %v2136 = vshrl.u32 %v2135, 7
      %v2137 = vsub.s32 0, %v2136
      %v2138 = vrot.slane %v2133, %v2137
      %v2139 = vlaneseq
      %v2140 = vshrl.u32 %v2139, 7
      %v2141 = vsub.s32 1, %v2140
      %v2142 = vrot.slane %v2133, %v2141
      %2143 = vrot.lane.b32.xlu0 %v2138, 16
      %v2144 = vpop.permute.xlu0 %2143
      %2145 = vrot.lane.b32.xlu0 %v2142, 16
      %v2146 = vpop.permute.xlu0 %2145
      %v2147 = vsel %vm428, %v2144, %v2146
      %v2151 = vmul.f32 %v1906, %v2144
      %v2152 = vmul.f32 %v1907, %v2147
      %v2153 = vmul.f32 %v1908, %v2146
      %s2154 = scalar_lea.vmem %s3, 128
      %v2155 = vld [vmem:[%s2154] sm:$0xff]
      %2159 = vrot.lane.b32.xlu0 %v2151, 112
      %v2160 = vpop.permute.xlu0 %2159
      %2161 = vrot.lane.b32.xlu0 %v2152, 112
      %v2162 = vpop.permute.xlu0 %2161
      %2163 = vrot.lane.b32.xlu0 %v2153, 112
      %v2164 = vpop.permute.xlu0 %2163
      %v2165 = vsel %vm409, %v2160, %v2162
      %v2166 = vsel %vm409, %v2162, %v2164
      %v2170 = vsel %vm433, %v2155, 0
      %2172 = vmatprep.subr.mxu0 %v2166
      %2173 = vmatpush1.msra.mxu0 %v2165
      %2174 = vmatprep.subr.mxu0 0.0
      %2175 = vmatpush1.msra.mxu0 0.0
      %2176 = vmatprep.subr.mxu0 0.0
      %2177 = vmatpush1.msra.mxu0 0.0
      %2178 = vmatprep.subr.mxu0 0.0
      %2179 = vmatpush1.msra.mxu0 0.0
      %2180 = vmatprep.subr.mxu0 0.0
      %2181 = vmatpush1.msra.mxu0 0.0
      %2182 = vmatprep.subr.mxu0 0.0
      %2183 = vmatpush1.msra.mxu0 0.0
      %2184 = vmatprep.subr.mxu0 0.0
      %2185 = vmatpush1.msra.mxu0 0.0
      %2186 = vmatprep.subr.mxu0 0.0
      %2187 = vmatpush1.msra.mxu0 0.0
      %2188 = vmatprep.subr.mxu0 0.0
      %2189 = vmatpush1.msra.mxu0 0.0
      %2190 = vmatprep.subr.mxu0 0.0
      %2191 = vmatpush1.msra.mxu0 0.0
      %2192 = vmatprep.subr.mxu0 0.0
      %2193 = vmatpush1.msra.mxu0 0.0
      %2194 = vmatprep.subr.mxu0 0.0
      %2195 = vmatpush1.msra.mxu0 0.0
      %2196 = vmatprep.subr.mxu0 0.0
      %2197 = vmatpush1.msra.mxu0 0.0
      %2198 = vmatprep.subr.mxu0 0.0
      %2199 = vmatpush1.msra.mxu0 0.0
      %2200 = vmatprep.subr.mxu0 0.0
      %2201 = vmatpush1.msra.mxu0 0.0
      %2202 = vmatprep.subr.mxu0 0.0
      %2203 = vmatpush1.msra.mxu0 0.0
      %2204 = vmatprep.subr.mxu0 0.0
      %2205 = vmatpush1.msra.mxu0 0.0
      %2206 = vmatprep.subr.mxu0 0.0
      %2207 = vmatpush1.msra.mxu0 0.0
      %2208 = vmatprep.subr.mxu0 0.0
      %2209 = vmatpush1.msra.mxu0 0.0
      %2210 = vmatprep.subr.mxu0 0.0
      %2211 = vmatpush1.msra.mxu0 0.0
      %2212 = vmatprep.subr.mxu0 0.0
      %2213 = vmatpush1.msra.mxu0 0.0
      %2214 = vmatprep.subr.mxu0 0.0
      %2215 = vmatpush1.msra.mxu0 0.0
      %2216 = vmatprep.subr.mxu0 0.0
      %2217 = vmatpush1.msra.mxu0 0.0
      %2218 = vmatprep.subr.mxu0 0.0
      %2219 = vmatpush1.msra.mxu0 0.0
      %2220 = vmatprep.subr.mxu0 0.0
      %2221 = vmatpush1.msra.mxu0 0.0
      %2222 = vmatprep.subr.mxu0 0.0
      %2223 = vmatpush1.msra.mxu0 0.0
      %2224 = vmatprep.subr.mxu0 0.0
      %2225 = vmatpush1.msra.mxu0 0.0
      %2226 = vmatprep.subr.mxu0 0.0
      %2227 = vmatpush1.msra.mxu0 0.0
      %2228 = vmatprep.subr.mxu0 0.0
      %2229 = vmatpush1.msra.mxu0 0.0
      %2230 = vmatprep.subr.mxu0 0.0
      %2231 = vmatpush1.msra.mxu0 0.0
      %2232 = vmatprep.subr.mxu0 0.0
      %2233 = vmatpush1.msra.mxu0 0.0
      %2234 = vmatprep.subr.mxu0 0.0
      %2235 = vmatpush1.msra.mxu0 0.0
      %2236 = vmatprep.mubr.f32.mxu0 0.0
      %2237 = vmatmul.mubr.f32.gmra.mrb[0].mxu0 %v2170
      %v2238 = vpop.f32.mrb[0].mxu0
      %v2239 = vadd.f32 0.0, %v2238
      %v2240 = vpop.f32.mrb[0].mxu0
      %v2241 = vadd.f32 0.0, %v2240
      %2242 = vdwg.mxu0
      %v2243 = vadd.f32 %v2131, %v2239
      %v2244 = vadd.f32 %v2132, %v2241
      %v2245 = vld [vmem:[%s1248] sm:$0x3]
      %v2247 = vlaneseq
      %v2248 = vshrl.u32 %v2247, 7
      %v2249 = vsub.s32 0, %v2248
      %v2250 = vrot.slane %v2245, %v2249
      %v2251 = vlaneseq
      %v2252 = vshrl.u32 %v2251, 7
      %v2253 = vsub.s32 1, %v2252
      %v2254 = vrot.slane %v2245, %v2253
      %2255 = vrot.lane.b32.xlu0 %v2250, 17
      %v2256 = vpop.permute.xlu0 %2255
      %2257 = vrot.lane.b32.xlu0 %v2254, 17
      %v2258 = vpop.permute.xlu0 %2257
      %v2259 = vsel %vm517, %v2256, %v2258
      %v2263 = vmul.f32 %v1906, %v2256
      %v2264 = vmul.f32 %v1907, %v2259
      %v2265 = vmul.f32 %v1908, %v2258
      %s2266 = scalar_lea.vmem %s3, 136
      %v2267 = vld [vmem:[%s2266] sm:$0xff]
      %2271 = vrot.lane.b32.xlu0 %v2263, 111
      %v2272 = vpop.permute.xlu0 %2271
      %2273 = vrot.lane.b32.xlu0 %v2264, 111
      %v2274 = vpop.permute.xlu0 %2273
      %2275 = vrot.lane.b32.xlu0 %v2265, 111
      %v2276 = vpop.permute.xlu0 %2275
      %v2277 = vsel %vm385, %v2272, %v2274
      %v2278 = vsel %vm385, %v2274, %v2276
      %v2282 = vsel %vm433, %v2267, 0
      %2284 = vmatprep.subr.mxu0 %v2278
      %2285 = vmatpush1.msra.mxu0 %v2277
      %2286 = vmatprep.subr.mxu0 0.0
      %2287 = vmatpush1.msra.mxu0 0.0
      %2288 = vmatprep.subr.mxu0 0.0
      %2289 = vmatpush1.msra.mxu0 0.0
      %2290 = vmatprep.subr.mxu0 0.0
      %2291 = vmatpush1.msra.mxu0 0.0
      %2292 = vmatprep.subr.mxu0 0.0
      %2293 = vmatpush1.msra.mxu0 0.0
      %2294 = vmatprep.subr.mxu0 0.0
      %2295 = vmatpush1.msra.mxu0 0.0
      %2296 = vmatprep.subr.mxu0 0.0
      %2297 = vmatpush1.msra.mxu0 0.0
      %2298 = vmatprep.subr.mxu0 0.0
      %2299 = vmatpush1.msra.mxu0 0.0
      %2300 = vmatprep.subr.mxu0 0.0
      %2301 = vmatpush1.msra.mxu0 0.0
      %2302 = vmatprep.subr.mxu0 0.0
      %2303 = vmatpush1.msra.mxu0 0.0
      %2304 = vmatprep.subr.mxu0 0.0
      %2305 = vmatpush1.msra.mxu0 0.0
      %2306 = vmatprep.subr.mxu0 0.0
      %2307 = vmatpush1.msra.mxu0 0.0
      %2308 = vmatprep.subr.mxu0 0.0
      %2309 = vmatpush1.msra.mxu0 0.0
      %2310 = vmatprep.subr.mxu0 0.0
      %2311 = vmatpush1.msra.mxu0 0.0
      %2312 = vmatprep.subr.mxu0 0.0
      %2313 = vmatpush1.msra.mxu0 0.0
      %2314 = vmatprep.subr.mxu0 0.0
      %2315 = vmatpush1.msra.mxu0 0.0
      %2316 = vmatprep.subr.mxu0 0.0
      %2317 = vmatpush1.msra.mxu0 0.0
      %2318 = vmatprep.subr.mxu0 0.0
      %2319 = vmatpush1.msra.mxu0 0.0
      %2320 = vmatprep.subr.mxu0 0.0
      %2321 = vmatpush1.msra.mxu0 0.0
      %2322 = vmatprep.subr.mxu0 0.0
      %2323 = vmatpush1.msra.mxu0 0.0
      %2324 = vmatprep.subr.mxu0 0.0
      %2325 = vmatpush1.msra.mxu0 0.0
      %2326 = vmatprep.subr.mxu0 0.0
      %2327 = vmatpush1.msra.mxu0 0.0
      %2328 = vmatprep.subr.mxu0 0.0
      %2329 = vmatpush1.msra.mxu0 0.0
      %2330 = vmatprep.subr.mxu0 0.0
      %2331 = vmatpush1.msra.mxu0 0.0
      %2332 = vmatprep.subr.mxu0 0.0
      %2333 = vmatpush1.msra.mxu0 0.0
      %2334 = vmatprep.subr.mxu0 0.0
      %2335 = vmatpush1.msra.mxu0 0.0
      %2336 = vmatprep.subr.mxu0 0.0
      %2337 = vmatpush1.msra.mxu0 0.0
      %2338 = vmatprep.subr.mxu0 0.0
      %2339 = vmatpush1.msra.mxu0 0.0
      %2340 = vmatprep.subr.mxu0 0.0
      %2341 = vmatpush1.msra.mxu0 0.0
      %2342 = vmatprep.subr.mxu0 0.0
      %2343 = vmatpush1.msra.mxu0 0.0
      %2344 = vmatprep.subr.mxu0 0.0
      %2345 = vmatpush1.msra.mxu0 0.0
      %2346 = vmatprep.subr.mxu0 0.0
      %2347 = vmatpush1.msra.mxu0 0.0
      %2348 = vmatprep.mubr.f32.mxu0 0.0
      %2349 = vmatmul.mubr.f32.gmra.mrb[0].mxu0 %v2282
      %v2350 = vpop.f32.mrb[0].mxu0
      %v2351 = vadd.f32 0.0, %v2350
      %v2352 = vpop.f32.mrb[0].mxu0
      %v2353 = vadd.f32 0.0, %v2352
      %2354 = vdwg.mxu0
      %v2355 = vadd.f32 %v2243, %v2351
      %v2356 = vadd.f32 %v2244, %v2353
      %s2357 = scalar_lea.vmem %s4, 8
      %v2358 = vld [vmem:[%s2357] sm:$0xff]
      %2360 = vset.pattern.permute.xlu0 0
      %2361 = vperm.xlu0 %2360, %v2358
      %v2362 = vpop.permute.xlu0 %2361
      %v2364 = vadd.f32 %v2355, %v2362
      %v2365 = vadd.f32 %v2356, %v2362
      %vm2366 = vcmp.ge.f32.partialorder %v2364, 0.0
      %vm2367 = vcmp.ge.f32.partialorder %v2365, 0.0
      %v2368 = vmul.f32 %v2364, 0.01
      %v2369 = vmul.f32 %v2365, 0.01
      %v2370 = vsel %vm2366, %v2364, %v2368
      %v2371 = vsel %vm2367, %v2365, %v2369
      %2372 = vst [vmem:[#allocation2] sm:$0xff] %v2370
      %2373 = vst [vmem:[#allocation2 + $0x8] sm:$0xff] %v2371
      %2374 = vst [vmem:[#allocation2 + $0x10] sm:$0xff] %v2370
      %2375 = vst [vmem:[#allocation2 + $0x18] sm:$0xff] %v2371
      %v2376 = vld [vmem:[#allocation2 + $0x8] sm:$0xff]
      %v2377 = vld [vmem:[#allocation2 + $0x10] sm:$0xff]
      %v2378 = vld [vmem:[#allocation2 + $0x18] sm:$0xff]
      %v2379 = vld [vmem:[%s5] sm:$0x3]
      %v2381 = vlaneseq
      %v2382 = vshrl.u32 %v2381, 7
      %v2383 = vsub.s32 0, %v2382
      %v2384 = vrot.slane %v2379, %v2383
      %v2385 = vlaneseq
      %v2386 = vshrl.u32 %v2385, 7
      %v2387 = vsub.s32 1, %v2386
      %v2388 = vrot.slane %v2379, %v2387
      %2389 = vrot.lane.b32.xlu0 %v2384, 111
      %v2390 = vpop.permute.xlu0 %2389
      %2391 = vrot.lane.b32.xlu0 %v2388, 111
      %v2392 = vpop.permute.xlu0 %2391
      %v2393 = vsel %vm385, %v2390, %v2392
      %v2397 = vmul.f32 %v2376, %v2390
      %v2398 = vmul.f32 %v2377, %v2393
      %v2399 = vmul.f32 %v2378, %v2392
      %s2400 = scalar_lea.vmem %s3, 144
      %v2401 = vld [vmem:[%s2400] sm:$0xff]
      %v2402 = vld [vmem:[%s394] sm:$0x3]
      %v2404 = vlaneseq
      %v2405 = vshrl.u32 %v2404, 7
      %v2406 = vsub.s32 0, %v2405
      %v2407 = vrot.slane %v2402, %v2406
      %v2408 = vlaneseq
      %v2409 = vshrl.u32 %v2408, 7
      %v2410 = vsub.s32 1, %v2409
      %v2411 = vrot.slane %v2402, %v2410
      %2412 = vrot.lane.b32.xlu0 %v2407, 112
      %v2413 = vpop.permute.xlu0 %2412
      %2414 = vrot.lane.b32.xlu0 %v2411, 112
      %v2415 = vpop.permute.xlu0 %2414
      %v2416 = vsel %vm409, %v2413, %v2415
      %v2420 = vmul.f32 %v2376, %v2413
      %v2421 = vmul.f32 %v2377, %v2416
      %v2422 = vmul.f32 %v2378, %v2415
      %s2423 = scalar_lea.vmem %s3, 152
      %v2424 = vld [vmem:[%s2423] sm:$0xff]
      %2428 = vrot.lane.b32.xlu0 %v2420, 16
      %v2429 = vpop.permute.xlu0 %2428
      %2430 = vrot.lane.b32.xlu0 %v2421, 16
      %v2431 = vpop.permute.xlu0 %2430
      %2432 = vrot.lane.b32.xlu0 %v2422, 16
      %v2433 = vpop.permute.xlu0 %2432
      %v2434 = vsel %vm428, %v2429, %v2431
      %v2435 = vsel %vm428, %v2431, %v2433
      %v2439 = vsel %vm433, %v2424, 0
      %2441 = vmatprep.subr.mxu0 %v2435
      %2442 = vmatpush1.msra.mxu0 %v2434
      %2443 = vmatprep.subr.mxu0 0.0
      %2444 = vmatpush1.msra.mxu0 0.0
      %2445 = vmatprep.subr.mxu0 0.0
      %2446 = vmatpush1.msra.mxu0 0.0
      %2447 = vmatprep.subr.mxu0 0.0
      %2448 = vmatpush1.msra.mxu0 0.0
      %2449 = vmatprep.subr.mxu0 0.0
      %2450 = vmatpush1.msra.mxu0 0.0
      %2451 = vmatprep.subr.mxu0 0.0
      %2452 = vmatpush1.msra.mxu0 0.0
      %2453 = vmatprep.subr.mxu0 0.0
      %2454 = vmatpush1.msra.mxu0 0.0
      %2455 = vmatprep.subr.mxu0 0.0
      %2456 = vmatpush1.msra.mxu0 0.0
      %2457 = vmatprep.subr.mxu0 0.0
      %2458 = vmatpush1.msra.mxu0 0.0
      %2459 = vmatprep.subr.mxu0 0.0
      %2460 = vmatpush1.msra.mxu0 0.0
      %2461 = vmatprep.subr.mxu0 0.0
      %2462 = vmatpush1.msra.mxu0 0.0
      %2463 = vmatprep.subr.mxu0 0.0
      %2464 = vmatpush1.msra.mxu0 0.0
      %2465 = vmatprep.subr.mxu0 0.0
      %2466 = vmatpush1.msra.mxu0 0.0
      %2467 = vmatprep.subr.mxu0 0.0
      %2468 = vmatpush1.msra.mxu0 0.0
      %2469 = vmatprep.subr.mxu0 0.0
      %2470 = vmatpush1.msra.mxu0 0.0
      %2471 = vmatprep.subr.mxu0 0.0
      %2472 = vmatpush1.msra.mxu0 0.0
      %2473 = vmatprep.subr.mxu0 0.0
      %2474 = vmatpush1.msra.mxu0 0.0
      %2475 = vmatprep.subr.mxu0 0.0
      %2476 = vmatpush1.msra.mxu0 0.0
      %2477 = vmatprep.subr.mxu0 0.0
      %2478 = vmatpush1.msra.mxu0 0.0
      %2479 = vmatprep.subr.mxu0 0.0
      %2480 = vmatpush1.msra.mxu0 0.0
      %2481 = vmatprep.subr.mxu0 0.0
      %2482 = vmatpush1.msra.mxu0 0.0
      %2483 = vmatprep.subr.mxu0 0.0
      %2484 = vmatpush1.msra.mxu0 0.0
      %2485 = vmatprep.subr.mxu0 0.0
      %2486 = vmatpush1.msra.mxu0 0.0
      %2487 = vmatprep.subr.mxu0 0.0
      %2488 = vmatpush1.msra.mxu0 0.0
      %2489 = vmatprep.subr.mxu0 0.0
      %2490 = vmatpush1.msra.mxu0 0.0
      %2491 = vmatprep.subr.mxu0 0.0
      %2492 = vmatpush1.msra.mxu0 0.0
      %2493 = vmatprep.subr.mxu0 0.0
      %2494 = vmatpush1.msra.mxu0 0.0
      %2495 = vmatprep.subr.mxu0 0.0
      %2496 = vmatpush1.msra.mxu0 0.0
      %2497 = vmatprep.subr.mxu0 0.0
      %2498 = vmatpush1.msra.mxu0 0.0
      %2499 = vmatprep.subr.mxu0 0.0
      %2500 = vmatpush1.msra.mxu0 0.0
      %2501 = vmatprep.subr.mxu0 0.0
      %2502 = vmatpush1.msra.mxu0 0.0
      %2503 = vmatprep.subr.mxu0 0.0
      %2504 = vmatpush1.msra.mxu0 0.0
      %2505 = vmatprep.mubr.f32.mxu0 0.0
      %2506 = vmatmul.mubr.f32.gmra.mrb[0].mxu0 %v2439
      %v2507 = vpop.f32.mrb[0].mxu0
      %v2508 = vadd.f32 0.0, %v2507
      %v2509 = vpop.f32.mrb[0].mxu0
      %v2510 = vadd.f32 0.0, %v2509
      %2511 = vdwg.mxu0
      %2515 = vrot.lane.b32.xlu0 %v2397, 17
      %v2516 = vpop.permute.xlu0 %2515
      %2517 = vrot.lane.b32.xlu0 %v2398, 17
      %v2518 = vpop.permute.xlu0 %2517
      %2519 = vrot.lane.b32.xlu0 %v2399, 17
      %v2520 = vpop.permute.xlu0 %2519
      %v2521 = vsel %vm517, %v2516, %v2518
      %v2522 = vsel %vm517, %v2518, %v2520
      %v2526 = vsel %vm433, %v2401, 0
      %2528 = vmatprep.subr.mxu0 %v2522
      %2529 = vmatpush1.msra.mxu0 %v2521
      %2530 = vmatprep.subr.mxu0 0.0
      %2531 = vmatpush1.msra.mxu0 0.0
      %2532 = vmatprep.subr.mxu0 0.0
      %2533 = vmatpush1.msra.mxu0 0.0
      %2534 = vmatprep.subr.mxu0 0.0
      %2535 = vmatpush1.msra.mxu0 0.0
      %2536 = vmatprep.subr.mxu0 0.0
      %2537 = vmatpush1.msra.mxu0 0.0
      %2538 = vmatprep.subr.mxu0 0.0
      %2539 = vmatpush1.msra.mxu0 0.0
      %2540 = vmatprep.subr.mxu0 0.0
      %2541 = vmatpush1.msra.mxu0 0.0
      %2542 = vmatprep.subr.mxu0 0.0
      %2543 = vmatpush1.msra.mxu0 0.0
      %2544 = vmatprep.subr.mxu0 0.0
      %2545 = vmatpush1.msra.mxu0 0.0
      %2546 = vmatprep.subr.mxu0 0.0
      %2547 = vmatpush1.msra.mxu0 0.0
      %2548 = vmatprep.subr.mxu0 0.0
      %2549 = vmatpush1.msra.mxu0 0.0
      %2550 = vmatprep.subr.mxu0 0.0
      %2551 = vmatpush1.msra.mxu0 0.0
      %2552 = vmatprep.subr.mxu0 0.0
      %2553 = vmatpush1.msra.mxu0 0.0
      %2554 = vmatprep.subr.mxu0 0.0
      %2555 = vmatpush1.msra.mxu0 0.0
      %2556 = vmatprep.subr.mxu0 0.0
      %2557 = vmatpush1.msra.mxu0 0.0
      %2558 = vmatprep.subr.mxu0 0.0
      %2559 = vmatpush1.msra.mxu0 0.0
      %2560 = vmatprep.subr.mxu0 0.0
      %2561 = vmatpush1.msra.mxu0 0.0
      %2562 = vmatprep.subr.mxu0 0.0
      %2563 = vmatpush1.msra.mxu0 0.0
      %2564 = vmatprep.subr.mxu0 0.0
      %2565 = vmatpush1.msra.mxu0 0.0
      %2566 = vmatprep.subr.mxu0 0.0
      %2567 = vmatpush1.msra.mxu0 0.0
      %2568 = vmatprep.subr.mxu0 0.0
      %2569 = vmatpush1.msra.mxu0 0.0
      %2570 = vmatprep.subr.mxu0 0.0
      %2571 = vmatpush1.msra.mxu0 0.0
      %2572 = vmatprep.subr.mxu0 0.0
      %2573 = vmatpush1.msra.mxu0 0.0
      %2574 = vmatprep.subr.mxu0 0.0
      %2575 = vmatpush1.msra.mxu0 0.0
      %2576 = vmatprep.subr.mxu0 0.0
      %2577 = vmatpush1.msra.mxu0 0.0
      %2578 = vmatprep.subr.mxu0 0.0
      %2579 = vmatpush1.msra.mxu0 0.0
      %2580 = vmatprep.subr.mxu0 0.0
      %2581 = vmatpush1.msra.mxu0 0.0
      %2582 = vmatprep.subr.mxu0 0.0
      %2583 = vmatpush1.msra.mxu0 0.0
      %2584 = vmatprep.subr.mxu0 0.0
      %2585 = vmatpush1.msra.mxu0 0.0
      %2586 = vmatprep.subr.mxu0 0.0
      %2587 = vmatpush1.msra.mxu0 0.0
      %2588 = vmatprep.subr.mxu0 0.0
      %2589 = vmatpush1.msra.mxu0 0.0
      %2590 = vmatprep.subr.mxu0 0.0
      %2591 = vmatpush1.msra.mxu0 0.0
      %2592 = vmatprep.mubr.f32.mxu0 0.0
      %2593 = vmatmul.mubr.f32.gmra.mrb[0].mxu0 %v2526
      %v2594 = vpop.f32.mrb[0].mxu0
      %v2595 = vadd.f32 %v2508, %v2594
      %v2596 = vpop.f32.mrb[0].mxu0
      %v2597 = vadd.f32 %v2510, %v2596
      %2598 = vdwg.mxu0
      %v2599 = vld [vmem:[%s596] sm:$0x3]
      %v2601 = vlaneseq
      %v2602 = vshrl.u32 %v2601, 7
      %v2603 = vsub.s32 0, %v2602
      %v2604 = vrot.slane %v2599, %v2603
      %v2605 = vlaneseq
      %v2606 = vshrl.u32 %v2605, 7
      %v2607 = vsub.s32 1, %v2606
      %v2608 = vrot.slane %v2599, %v2607
      %2609 = vrot.lane.b32.xlu0 %v2604, 113
      %v2610 = vpop.permute.xlu0 %2609
      %2611 = vrot.lane.b32.xlu0 %v2608, 113
      %v2612 = vpop.permute.xlu0 %2611
      %v2613 = vsel %vm611, %v2610, %v2612
      %v2617 = vmul.f32 %v2376, %v2610
      %v2618 = vmul.f32 %v2377, %v2613
      %v2619 = vmul.f32 %v2378, %v2612
      %s2620 = scalar_lea.vmem %s3, 160
      %v2621 = vld [vmem:[%s2620] sm:$0xff]
      %2625 = vrot.lane.b32.xlu0 %v2617, 15
      %v2626 = vpop.permute.xlu0 %2625
      %2627 = vrot.lane.b32.xlu0 %v2618, 15
      %v2628 = vpop.permute.xlu0 %2627
      %2629 = vrot.lane.b32.xlu0 %v2619, 15
      %v2630 = vpop.permute.xlu0 %2629
      %v2631 = vsel %vm630, %v2626, %v2628
      %v2632 = vsel %vm630, %v2628, %v2630
      %v2636 = vsel %vm433, %v2621, 0
      %2638 = vmatprep.subr.mxu0 %v2632
      %2639 = vmatpush1.msra.mxu0 %v2631
      %2640 = vmatprep.subr.mxu0 0.0
      %2641 = vmatpush1.msra.mxu0 0.0
      %2642 = vmatprep.subr.mxu0 0.0
      %2643 = vmatpush1.msra.mxu0 0.0
      %2644 = vmatprep.subr.mxu0 0.0
      %2645 = vmatpush1.msra.mxu0 0.0
      %2646 = vmatprep.subr.mxu0 0.0
      %2647 = vmatpush1.msra.mxu0 0.0
      %2648 = vmatprep.subr.mxu0 0.0
      %2649 = vmatpush1.msra.mxu0 0.0
      %2650 = vmatprep.subr.mxu0 0.0
      %2651 = vmatpush1.msra.mxu0 0.0
      %2652 = vmatprep.subr.mxu0 0.0
      %2653 = vmatpush1.msra.mxu0 0.0
      %2654 = vmatprep.subr.mxu0 0.0
      %2655 = vmatpush1.msra.mxu0 0.0
      %2656 = vmatprep.subr.mxu0 0.0
      %2657 = vmatpush1.msra.mxu0 0.0
      %2658 = vmatprep.subr.mxu0 0.0
      %2659 = vmatpush1.msra.mxu0 0.0
      %2660 = vmatprep.subr.mxu0 0.0
      %2661 = vmatpush1.msra.mxu0 0.0
      %2662 = vmatprep.subr.mxu0 0.0
      %2663 = vmatpush1.msra.mxu0 0.0
      %2664 = vmatprep.subr.mxu0 0.0
      %2665 = vmatpush1.msra.mxu0 0.0
      %2666 = vmatprep.subr.mxu0 0.0
      %2667 = vmatpush1.msra.mxu0 0.0
      %2668 = vmatprep.subr.mxu0 0.0
      %2669 = vmatpush1.msra.mxu0 0.0
      %2670 = vmatprep.subr.mxu0 0.0
      %2671 = vmatpush1.msra.mxu0 0.0
      %2672 = vmatprep.subr.mxu0 0.0
      %2673 = vmatpush1.msra.mxu0 0.0
      %2674 = vmatprep.subr.mxu0 0.0
      %2675 = vmatpush1.msra.mxu0 0.0
      %2676 = vmatprep.subr.mxu0 0.0
      %2677 = vmatpush1.msra.mxu0 0.0
      %2678 = vmatprep.subr.mxu0 0.0
      %2679 = vmatpush1.msra.mxu0 0.0
      %2680 = vmatprep.subr.mxu0 0.0
      %2681 = vmatpush1.msra.mxu0 0.0
      %2682 = vmatprep.subr.mxu0 0.0
      %2683 = vmatpush1.msra.mxu0 0.0
      %2684 = vmatprep.subr.mxu0 0.0
      %2685 = vmatpush1.msra.mxu0 0.0
      %2686 = vmatprep.subr.mxu0 0.0
      %2687 = vmatpush1.msra.mxu0 0.0
      %2688 = vmatprep.subr.mxu0 0.0
      %2689 = vmatpush1.msra.mxu0 0.0
      %2690 = vmatprep.subr.mxu0 0.0
      %2691 = vmatpush1.msra.mxu0 0.0
      %2692 = vmatprep.subr.mxu0 0.0
      %2693 = vmatpush1.msra.mxu0 0.0
      %2694 = vmatprep.subr.mxu0 0.0
      %2695 = vmatpush1.msra.mxu0 0.0
      %2696 = vmatprep.subr.mxu0 0.0
      %2697 = vmatpush1.msra.mxu0 0.0
      %2698 = vmatprep.subr.mxu0 0.0
      %2699 = vmatpush1.msra.mxu0 0.0
      %2700 = vmatprep.subr.mxu0 0.0
      %2701 = vmatpush1.msra.mxu0 0.0
      %2702 = vmatprep.mubr.f32.mxu0 0.0
      %2703 = vmatmul.mubr.f32.gmra.mrb[0].mxu0 %v2636
      %v2704 = vpop.f32.mrb[0].mxu0
      %v2705 = vadd.f32 0.0, %v2704
      %v2706 = vpop.f32.mrb[0].mxu0
      %v2707 = vadd.f32 0.0, %v2706
      %2708 = vdwg.mxu0
      %v2709 = vadd.f32 %v2595, %v2705
      %v2710 = vadd.f32 %v2597, %v2707
      %v2711 = vld [vmem:[%s711] sm:$0x3]
      %v2713 = vlaneseq
      %v2714 = vshrl.u32 %v2713, 7
      %v2715 = vsub.s32 0, %v2714
      %v2716 = vrot.slane %v2711, %v2715
      %v2717 = vlaneseq
      %v2718 = vshrl.u32 %v2717, 7
      %v2719 = vsub.s32 1, %v2718
      %v2720 = vrot.slane %v2711, %v2719
      %2721 = vrot.lane.b32.xlu0 %v2716, 127
      %v2722 = vpop.permute.xlu0 %2721
      %2723 = vrot.lane.b32.xlu0 %v2720, 127
      %v2724 = vpop.permute.xlu0 %2723
      %v2725 = vsel %vm726, %v2722, %v2724
      %v2729 = vmul.f32 %v2376, %v2722
      %v2730 = vmul.f32 %v2377, %v2725
      %v2731 = vmul.f32 %v2378, %v2724
      %s2732 = scalar_lea.vmem %s3, 168
      %v2733 = vld [vmem:[%s2732] sm:$0xff]
      %2737 = vrot.lane.b32.xlu0 %v2729, 1
      %v2738 = vpop.permute.xlu0 %2737
      %2739 = vrot.lane.b32.xlu0 %v2730, 1
      %v2740 = vpop.permute.xlu0 %2739
      %2741 = vrot.lane.b32.xlu0 %v2731, 1
      %v2742 = vpop.permute.xlu0 %2741
      %v2743 = vsel %vm745, %v2738, %v2740
      %v2744 = vsel %vm745, %v2740, %v2742
      %v2748 = vsel %vm433, %v2733, 0
      %2750 = vmatprep.subr.mxu0 %v2744
      %2751 = vmatpush1.msra.mxu0 %v2743
      %2752 = vmatprep.subr.mxu0 0.0
      %2753 = vmatpush1.msra.mxu0 0.0
      %2754 = vmatprep.subr.mxu0 0.0
      %2755 = vmatpush1.msra.mxu0 0.0
      %2756 = vmatprep.subr.mxu0 0.0
      %2757 = vmatpush1.msra.mxu0 0.0
      %2758 = vmatprep.subr.mxu0 0.0
      %2759 = vmatpush1.msra.mxu0 0.0
      %2760 = vmatprep.subr.mxu0 0.0
      %2761 = vmatpush1.msra.mxu0 0.0
      %2762 = vmatprep.subr.mxu0 0.0
      %2763 = vmatpush1.msra.mxu0 0.0
      %2764 = vmatprep.subr.mxu0 0.0
      %2765 = vmatpush1.msra.mxu0 0.0
      %2766 = vmatprep.subr.mxu0 0.0
      %2767 = vmatpush1.msra.mxu0 0.0
      %2768 = vmatprep.subr.mxu0 0.0
      %2769 = vmatpush1.msra.mxu0 0.0
      %2770 = vmatprep.subr.mxu0 0.0
      %2771 = vmatpush1.msra.mxu0 0.0
      %2772 = vmatprep.subr.mxu0 0.0
      %2773 = vmatpush1.msra.mxu0 0.0
      %2774 = vmatprep.subr.mxu0 0.0
      %2775 = vmatpush1.msra.mxu0 0.0
      %2776 = vmatprep.subr.mxu0 0.0
      %2777 = vmatpush1.msra.mxu0 0.0
      %2778 = vmatprep.subr.mxu0 0.0
      %2779 = vmatpush1.msra.mxu0 0.0
      %2780 = vmatprep.subr.mxu0 0.0
      %2781 = vmatpush1.msra.mxu0 0.0
      %2782 = vmatprep.subr.mxu0 0.0
      %2783 = vmatpush1.msra.mxu0 0.0
      %2784 = vmatprep.subr.mxu0 0.0
      %2785 = vmatpush1.msra.mxu0 0.0
      %2786 = vmatprep.subr.mxu0 0.0
      %2787 = vmatpush1.msra.mxu0 0.0
      %2788 = vmatprep.subr.mxu0 0.0
      %2789 = vmatpush1.msra.mxu0 0.0
      %2790 = vmatprep.subr.mxu0 0.0
      %2791 = vmatpush1.msra.mxu0 0.0
      %2792 = vmatprep.subr.mxu0 0.0
      %2793 = vmatpush1.msra.mxu0 0.0
      %2794 = vmatprep.subr.mxu0 0.0
      %2795 = vmatpush1.msra.mxu0 0.0
      %2796 = vmatprep.subr.mxu0 0.0
      %2797 = vmatpush1.msra.mxu0 0.0
      %2798 = vmatprep.subr.mxu0 0.0
      %2799 = vmatpush1.msra.mxu0 0.0
      %2800 = vmatprep.subr.mxu0 0.0
      %2801 = vmatpush1.msra.mxu0 0.0
      %2802 = vmatprep.subr.mxu0 0.0
      %2803 = vmatpush1.msra.mxu0 0.0
      %2804 = vmatprep.subr.mxu0 0.0
      %2805 = vmatpush1.msra.mxu0 0.0
      %2806 = vmatprep.subr.mxu0 0.0
      %2807 = vmatpush1.msra.mxu0 0.0
      %2808 = vmatprep.subr.mxu0 0.0
      %2809 = vmatpush1.msra.mxu0 0.0
      %2810 = vmatprep.subr.mxu0 0.0
      %2811 = vmatpush1.msra.mxu0 0.0
      %2812 = vmatprep.subr.mxu0 0.0
      %2813 = vmatpush1.msra.mxu0 0.0
      %2814 = vmatprep.mubr.f32.mxu0 0.0
      %2815 = vmatmul.mubr.f32.gmra.mrb[0].mxu0 %v2748
      %v2816 = vpop.f32.mrb[0].mxu0
      %v2817 = vadd.f32 0.0, %v2816
      %v2818 = vpop.f32.mrb[0].mxu0
      %v2819 = vadd.f32 0.0, %v2818
      %2820 = vdwg.mxu0
      %v2821 = vadd.f32 %v2709, %v2817
      %v2822 = vadd.f32 %v2710, %v2819
      %v2823 = vld [vmem:[#allocation2] sm:$0xff]
      %v2824 = vld [vmem:[#allocation2 + $0x8] sm:$0xff]
      %s2825 = scalar_lea.vmem %s3, 176
      %v2826 = vld [vmem:[%s2825] sm:$0xff]
      %v2828 = vsel %vm433, %v2826, 0
      %2830 = vmatprep.subr.mxu0 %v2824
      %2831 = vmatpush1.msra.mxu0 %v2823
      %2832 = vmatprep.subr.mxu0 0.0
      %2833 = vmatpush1.msra.mxu0 0.0
      %2834 = vmatprep.subr.mxu0 0.0
      %2835 = vmatpush1.msra.mxu0 0.0
      %2836 = vmatprep.subr.mxu0 0.0
      %2837 = vmatpush1.msra.mxu0 0.0
      %2838 = vmatprep.subr.mxu0 0.0
      %2839 = vmatpush1.msra.mxu0 0.0
      %2840 = vmatprep.subr.mxu0 0.0
      %2841 = vmatpush1.msra.mxu0 0.0
      %2842 = vmatprep.subr.mxu0 0.0
      %2843 = vmatpush1.msra.mxu0 0.0
      %2844 = vmatprep.subr.mxu0 0.0
      %2845 = vmatpush1.msra.mxu0 0.0
      %2846 = vmatprep.subr.mxu0 0.0
      %2847 = vmatpush1.msra.mxu0 0.0
      %2848 = vmatprep.subr.mxu0 0.0
      %2849 = vmatpush1.msra.mxu0 0.0
      %2850 = vmatprep.subr.mxu0 0.0
      %2851 = vmatpush1.msra.mxu0 0.0
      %2852 = vmatprep.subr.mxu0 0.0
      %2853 = vmatpush1.msra.mxu0 0.0
      %2854 = vmatprep.subr.mxu0 0.0
      %2855 = vmatpush1.msra.mxu0 0.0
      %2856 = vmatprep.subr.mxu0 0.0
      %2857 = vmatpush1.msra.mxu0 0.0
      %2858 = vmatprep.subr.mxu0 0.0
      %2859 = vmatpush1.msra.mxu0 0.0
      %2860 = vmatprep.subr.mxu0 0.0
      %2861 = vmatpush1.msra.mxu0 0.0
      %2862 = vmatprep.subr.mxu0 0.0
      %2863 = vmatpush1.msra.mxu0 0.0
      %2864 = vmatprep.subr.mxu0 0.0
      %2865 = vmatpush1.msra.mxu0 0.0
      %2866 = vmatprep.subr.mxu0 0.0
      %2867 = vmatpush1.msra.mxu0 0.0
      %2868 = vmatprep.subr.mxu0 0.0
      %2869 = vmatpush1.msra.mxu0 0.0
      %2870 = vmatprep.subr.mxu0 0.0
      %2871 = vmatpush1.msra.mxu0 0.0
      %2872 = vmatprep.subr.mxu0 0.0
      %2873 = vmatpush1.msra.mxu0 0.0
      %2874 = vmatprep.subr.mxu0 0.0
      %2875 = vmatpush1.msra.mxu0 0.0
      %2876 = vmatprep.subr.mxu0 0.0
      %2877 = vmatpush1.msra.mxu0 0.0
      %2878 = vmatprep.subr.mxu0 0.0
      %2879 = vmatpush1.msra.mxu0 0.0
      %2880 = vmatprep.subr.mxu0 0.0
      %2881 = vmatpush1.msra.mxu0 0.0
      %2882 = vmatprep.subr.mxu0 0.0
      %2883 = vmatpush1.msra.mxu0 0.0
      %2884 = vmatprep.subr.mxu0 0.0
      %2885 = vmatpush1.msra.mxu0 0.0
      %2886 = vmatprep.subr.mxu0 0.0
      %2887 = vmatpush1.msra.mxu0 0.0
      %2888 = vmatprep.subr.mxu0 0.0
      %2889 = vmatpush1.msra.mxu0 0.0
      %2890 = vmatprep.subr.mxu0 0.0
      %2891 = vmatpush1.msra.mxu0 0.0
      %2892 = vmatprep.subr.mxu0 0.0
      %2893 = vmatpush1.msra.mxu0 0.0
      %2894 = vmatprep.mubr.f32.mxu0 0.0
      %2895 = vmatmul.mubr.f32.gmra.mrb[0].mxu0 %v2828
      %v2896 = vpop.f32.mrb[0].mxu0
      %v2897 = vadd.f32 0.0, %v2896
      %v2898 = vpop.f32.mrb[0].mxu0
      %v2899 = vadd.f32 0.0, %v2898
      %2900 = vdwg.mxu0
      %v2901 = vadd.f32 %v2821, %v2897
      %v2902 = vadd.f32 %v2822, %v2899
      %v2903 = vld [vmem:[#allocation2] sm:$0xff]
      %v2904 = vld [vmem:[#allocation2 + $0x8] sm:$0xff]
      %v2905 = vld [vmem:[#allocation2 + $0x10] sm:$0xff]
      %v2906 = vld [vmem:[%s909] sm:$0x3]
      %v2908 = vlaneseq
      %v2909 = vshrl.u32 %v2908, 7
      %v2910 = vsub.s32 0, %v2909
      %v2911 = vrot.slane %v2906, %v2910
      %v2912 = vlaneseq
      %v2913 = vshrl.u32 %v2912, 7
      %v2914 = vsub.s32 1, %v2913
      %v2915 = vrot.slane %v2906, %v2914
      %2916 = vrot.lane.b32.xlu0 %v2911, 1
      %v2917 = vpop.permute.xlu0 %2916
      %2918 = vrot.lane.b32.xlu0 %v2915, 1
      %v2919 = vpop.permute.xlu0 %2918
      %v2920 = vsel %vm745, %v2917, %v2919
      %v2924 = vmul.f32 %v2903, %v2917
      %v2925 = vmul.f32 %v2904, %v2920
      %v2926 = vmul.f32 %v2905, %v2919
      %s2927 = scalar_lea.vmem %s3, 184
      %v2928 = vld [vmem:[%s2927] sm:$0xff]
      %2932 = vrot.lane.b32.xlu0 %v2924, 127
      %v2933 = vpop.permute.xlu0 %2932
      %2934 = vrot.lane.b32.xlu0 %v2925, 127
      %v2935 = vpop.permute.xlu0 %2934
      %2936 = vrot.lane.b32.xlu0 %v2926, 127
      %v2937 = vpop.permute.xlu0 %2936
      %v2938 = vsel %vm726, %v2933, %v2935
      %v2939 = vsel %vm726, %v2935, %v2937
      %v2943 = vsel %vm433, %v2928, 0
      %2945 = vmatprep.subr.mxu0 %v2939
      %2946 = vmatpush1.msra.mxu0 %v2938
      %2947 = vmatprep.subr.mxu0 0.0
      %2948 = vmatpush1.msra.mxu0 0.0
      %2949 = vmatprep.subr.mxu0 0.0
      %2950 = vmatpush1.msra.mxu0 0.0
      %2951 = vmatprep.subr.mxu0 0.0
      %2952 = vmatpush1.msra.mxu0 0.0
      %2953 = vmatprep.subr.mxu0 0.0
      %2954 = vmatpush1.msra.mxu0 0.0
      %2955 = vmatprep.subr.mxu0 0.0
      %2956 = vmatpush1.msra.mxu0 0.0
      %2957 = vmatprep.subr.mxu0 0.0
      %2958 = vmatpush1.msra.mxu0 0.0
      %2959 = vmatprep.subr.mxu0 0.0
      %2960 = vmatpush1.msra.mxu0 0.0
      %2961 = vmatprep.subr.mxu0 0.0
      %2962 = vmatpush1.msra.mxu0 0.0
      %2963 = vmatprep.subr.mxu0 0.0
      %2964 = vmatpush1.msra.mxu0 0.0
      %2965 = vmatprep.subr.mxu0 0.0
      %2966 = vmatpush1.msra.mxu0 0.0
      %2967 = vmatprep.subr.mxu0 0.0
      %2968 = vmatpush1.msra.mxu0 0.0
      %2969 = vmatprep.subr.mxu0 0.0
      %2970 = vmatpush1.msra.mxu0 0.0
      %2971 = vmatprep.subr.mxu0 0.0
      %2972 = vmatpush1.msra.mxu0 0.0
      %2973 = vmatprep.subr.mxu0 0.0
      %2974 = vmatpush1.msra.mxu0 0.0
      %2975 = vmatprep.subr.mxu0 0.0
      %2976 = vmatpush1.msra.mxu0 0.0
      %2977 = vmatprep.subr.mxu0 0.0
      %2978 = vmatpush1.msra.mxu0 0.0
      %2979 = vmatprep.subr.mxu0 0.0
      %2980 = vmatpush1.msra.mxu0 0.0
      %2981 = vmatprep.subr.mxu0 0.0
      %2982 = vmatpush1.msra.mxu0 0.0
      %2983 = vmatprep.subr.mxu0 0.0
      %2984 = vmatpush1.msra.mxu0 0.0
      %2985 = vmatprep.subr.mxu0 0.0
      %2986 = vmatpush1.msra.mxu0 0.0
      %2987 = vmatprep.subr.mxu0 0.0
      %2988 = vmatpush1.msra.mxu0 0.0
      %2989 = vmatprep.subr.mxu0 0.0
      %2990 = vmatpush1.msra.mxu0 0.0
      %2991 = vmatprep.subr.mxu0 0.0
      %2992 = vmatpush1.msra.mxu0 0.0
      %2993 = vmatprep.subr.mxu0 0.0
      %2994 = vmatpush1.msra.mxu0 0.0
      %2995 = vmatprep.subr.mxu0 0.0
      %2996 = vmatpush1.msra.mxu0 0.0
      %2997 = vmatprep.subr.mxu0 0.0
      %2998 = vmatpush1.msra.mxu0 0.0
      %2999 = vmatprep.subr.mxu0 0.0
      %3000 = vmatpush1.msra.mxu0 0.0
      %3001 = vmatprep.subr.mxu0 0.0
      %3002 = vmatpush1.msra.mxu0 0.0
      %3003 = vmatprep.subr.mxu0 0.0
      %3004 = vmatpush1.msra.mxu0 0.0
      %3005 = vmatprep.subr.mxu0 0.0
      %3006 = vmatpush1.msra.mxu0 0.0
      %3007 = vmatprep.subr.mxu0 0.0
      %3008 = vmatpush1.msra.mxu0 0.0
      %3009 = vmatprep.mubr.f32.mxu0 0.0
      %3010 = vmatmul.mubr.f32.gmra.mrb[0].mxu0 %v2943
      %v3011 = vpop.f32.mrb[0].mxu0
      %v3012 = vadd.f32 0.0, %v3011
      %v3013 = vpop.f32.mrb[0].mxu0
      %v3014 = vadd.f32 0.0, %v3013
      %3015 = vdwg.mxu0
      %v3016 = vadd.f32 %v2901, %v3012
      %v3017 = vadd.f32 %v2902, %v3014
      %v3018 = vld [vmem:[%s1022] sm:$0x3]
      %v3020 = vlaneseq
      %v3021 = vshrl.u32 %v3020, 7
      %v3022 = vsub.s32 0, %v3021
      %v3023 = vrot.slane %v3018, %v3022
      %v3024 = vlaneseq
      %v3025 = vshrl.u32 %v3024, 7
      %v3026 = vsub.s32 1, %v3025
      %v3027 = vrot.slane %v3018, %v3026
      %3028 = vrot.lane.b32.xlu0 %v3023, 15
      %v3029 = vpop.permute.xlu0 %3028
      %3030 = vrot.lane.b32.xlu0 %v3027, 15
      %v3031 = vpop.permute.xlu0 %3030
      %v3032 = vsel %vm630, %v3029, %v3031
      %v3036 = vmul.f32 %v2903, %v3029
      %v3037 = vmul.f32 %v2904, %v3032
      %v3038 = vmul.f32 %v2905, %v3031
      %s3039 = scalar_lea.vmem %s3, 192
      %v3040 = vld [vmem:[%s3039] sm:$0xff]
      %3044 = vrot.lane.b32.xlu0 %v3036, 113
      %v3045 = vpop.permute.xlu0 %3044
      %3046 = vrot.lane.b32.xlu0 %v3037, 113
      %v3047 = vpop.permute.xlu0 %3046
      %3048 = vrot.lane.b32.xlu0 %v3038, 113
      %v3049 = vpop.permute.xlu0 %3048
      %v3050 = vsel %vm611, %v3045, %v3047
      %v3051 = vsel %vm611, %v3047, %v3049
      %v3055 = vsel %vm433, %v3040, 0
      %3057 = vmatprep.subr.mxu0 %v3051
      %3058 = vmatpush1.msra.mxu0 %v3050
      %3059 = vmatprep.subr.mxu0 0.0
      %3060 = vmatpush1.msra.mxu0 0.0
      %3061 = vmatprep.subr.mxu0 0.0
      %3062 = vmatpush1.msra.mxu0 0.0
      %3063 = vmatprep.subr.mxu0 0.0
      %3064 = vmatpush1.msra.mxu0 0.0
      %3065 = vmatprep.subr.mxu0 0.0
      %3066 = vmatpush1.msra.mxu0 0.0
      %3067 = vmatprep.subr.mxu0 0.0
      %3068 = vmatpush1.msra.mxu0 0.0
      %3069 = vmatprep.subr.mxu0 0.0
      %3070 = vmatpush1.msra.mxu0 0.0
      %3071 = vmatprep.subr.mxu0 0.0
      %3072 = vmatpush1.msra.mxu0 0.0
      %3073 = vmatprep.subr.mxu0 0.0
      %3074 = vmatpush1.msra.mxu0 0.0
      %3075 = vmatprep.subr.mxu0 0.0
      %3076 = vmatpush1.msra.mxu0 0.0
      %3077 = vmatprep.subr.mxu0 0.0
      %3078 = vmatpush1.msra.mxu0 0.0
      %3079 = vmatprep.subr.mxu0 0.0
      %3080 = vmatpush1.msra.mxu0 0.0
      %3081 = vmatprep.subr.mxu0 0.0
      %3082 = vmatpush1.msra.mxu0 0.0
      %3083 = vmatprep.subr.mxu0 0.0
      %3084 = vmatpush1.msra.mxu0 0.0
      %3085 = vmatprep.subr.mxu0 0.0
      %3086 = vmatpush1.msra.mxu0 0.0
      %3087 = vmatprep.subr.mxu0 0.0
      %3088 = vmatpush1.msra.mxu0 0.0
      %3089 = vmatprep.subr.mxu0 0.0
      %3090 = vmatpush1.msra.mxu0 0.0
      %3091 = vmatprep.subr.mxu0 0.0
      %3092 = vmatpush1.msra.mxu0 0.0
      %3093 = vmatprep.subr.mxu0 0.0
      %3094 = vmatpush1.msra.mxu0 0.0
      %3095 = vmatprep.subr.mxu0 0.0
      %3096 = vmatpush1.msra.mxu0 0.0
      %3097 = vmatprep.subr.mxu0 0.0
      %3098 = vmatpush1.msra.mxu0 0.0
      %3099 = vmatprep.subr.mxu0 0.0
      %3100 = vmatpush1.msra.mxu0 0.0
      %3101 = vmatprep.subr.mxu0 0.0
      %3102 = vmatpush1.msra.mxu0 0.0
      %3103 = vmatprep.subr.mxu0 0.0
      %3104 = vmatpush1.msra.mxu0 0.0
      %3105 = vmatprep.subr.mxu0 0.0
      %3106 = vmatpush1.msra.mxu0 0.0
      %3107 = vmatprep.subr.mxu0 0.0
      %3108 = vmatpush1.msra.mxu0 0.0
      %3109 = vmatprep.subr.mxu0 0.0
      %3110 = vmatpush1.msra.mxu0 0.0
      %3111 = vmatprep.subr.mxu0 0.0
      %3112 = vmatpush1.msra.mxu0 0.0
      %3113 = vmatprep.subr.mxu0 0.0
      %3114 = vmatpush1.msra.mxu0 0.0
      %3115 = vmatprep.subr.mxu0 0.0
      %3116 = vmatpush1.msra.mxu0 0.0
      %3117 = vmatprep.subr.mxu0 0.0
      %3118 = vmatpush1.msra.mxu0 0.0
      %3119 = vmatprep.subr.mxu0 0.0
      %3120 = vmatpush1.msra.mxu0 0.0
      %3121 = vmatprep.mubr.f32.mxu0 0.0
      %3122 = vmatmul.mubr.f32.gmra.mrb[0].mxu0 %v3055
      %v3123 = vpop.f32.mrb[0].mxu0
      %v3124 = vadd.f32 0.0, %v3123
      %v3125 = vpop.f32.mrb[0].mxu0
      %v3126 = vadd.f32 0.0, %v3125
      %3127 = vdwg.mxu0
      %v3128 = vadd.f32 %v3016, %v3124
      %v3129 = vadd.f32 %v3017, %v3126
      %v3130 = vld [vmem:[%s1135] sm:$0x3]
      %v3132 = vlaneseq
      %v3133 = vshrl.u32 %v3132, 7
      %v3134 = vsub.s32 0, %v3133
      %v3135 = vrot.slane %v3130, %v3134
      %v3136 = vlaneseq
      %v3137 = vshrl.u32 %v3136, 7
      %v3138 = vsub.s32 1, %v3137
      %v3139 = vrot.slane %v3130, %v3138
      %3140 = vrot.lane.b32.xlu0 %v3135, 16
      %v3141 = vpop.permute.xlu0 %3140
      %3142 = vrot.lane.b32.xlu0 %v3139, 16
      %v3143 = vpop.permute.xlu0 %3142
      %v3144 = vsel %vm428, %v3141, %v3143
      %v3148 = vmul.f32 %v2903, %v3141
      %v3149 = vmul.f32 %v2904, %v3144
      %v3150 = vmul.f32 %v2905, %v3143
      %s3151 = scalar_lea.vmem %s3, 200
      %v3152 = vld [vmem:[%s3151] sm:$0xff]
      %3156 = vrot.lane.b32.xlu0 %v3148, 112
      %v3157 = vpop.permute.xlu0 %3156
      %3158 = vrot.lane.b32.xlu0 %v3149, 112
      %v3159 = vpop.permute.xlu0 %3158
      %3160 = vrot.lane.b32.xlu0 %v3150, 112
      %v3161 = vpop.permute.xlu0 %3160
      %v3162 = vsel %vm409, %v3157, %v3159
      %v3163 = vsel %vm409, %v3159, %v3161
      %v3167 = vsel %vm433, %v3152, 0
      %3169 = vmatprep.subr.mxu0 %v3163
      %3170 = vmatpush1.msra.mxu0 %v3162
      %3171 = vmatprep.subr.mxu0 0.0
      %3172 = vmatpush1.msra.mxu0 0.0
      %3173 = vmatprep.subr.mxu0 0.0
      %3174 = vmatpush1.msra.mxu0 0.0
      %3175 = vmatprep.subr.mxu0 0.0
      %3176 = vmatpush1.msra.mxu0 0.0
      %3177 = vmatprep.subr.mxu0 0.0
      %3178 = vmatpush1.msra.mxu0 0.0
      %3179 = vmatprep.subr.mxu0 0.0
      %3180 = vmatpush1.msra.mxu0 0.0
      %3181 = vmatprep.subr.mxu0 0.0
      %3182 = vmatpush1.msra.mxu0 0.0
      %3183 = vmatprep.subr.mxu0 0.0
      %3184 = vmatpush1.msra.mxu0 0.0
      %3185 = vmatprep.subr.mxu0 0.0
      %3186 = vmatpush1.msra.mxu0 0.0
      %3187 = vmatprep.subr.mxu0 0.0
      %3188 = vmatpush1.msra.mxu0 0.0
      %3189 = vmatprep.subr.mxu0 0.0
      %3190 = vmatpush1.msra.mxu0 0.0
      %3191 = vmatprep.subr.mxu0 0.0
      %3192 = vmatpush1.msra.mxu0 0.0
      %3193 = vmatprep.subr.mxu0 0.0
      %3194 = vmatpush1.msra.mxu0 0.0
      %3195 = vmatprep.subr.mxu0 0.0
      %3196 = vmatpush1.msra.mxu0 0.0
      %3197 = vmatprep.subr.mxu0 0.0
      %3198 = vmatpush1.msra.mxu0 0.0
      %3199 = vmatprep.subr.mxu0 0.0
      %3200 = vmatpush1.msra.mxu0 0.0
      %3201 = vmatprep.subr.mxu0 0.0
      %3202 = vmatpush1.msra.mxu0 0.0
      %3203 = vmatprep.subr.mxu0 0.0
      %3204 = vmatpush1.msra.mxu0 0.0
      %3205 = vmatprep.subr.mxu0 0.0
      %3206 = vmatpush1.msra.mxu0 0.0
      %3207 = vmatprep.subr.mxu0 0.0
      %3208 = vmatpush1.msra.mxu0 0.0
      %3209 = vmatprep.subr.mxu0 0.0
      %3210 = vmatpush1.msra.mxu0 0.0
      %3211 = vmatprep.subr.mxu0 0.0
      %3212 = vmatpush1.msra.mxu0 0.0
      %3213 = vmatprep.subr.mxu0 0.0
      %3214 = vmatpush1.msra.mxu0 0.0
      %3215 = vmatprep.subr.mxu0 0.0
      %3216 = vmatpush1.msra.mxu0 0.0
      %3217 = vmatprep.subr.mxu0 0.0
      %3218 = vmatpush1.msra.mxu0 0.0
      %3219 = vmatprep.subr.mxu0 0.0
      %3220 = vmatpush1.msra.mxu0 0.0
      %3221 = vmatprep.subr.mxu0 0.0
      %3222 = vmatpush1.msra.mxu0 0.0
      %3223 = vmatprep.subr.mxu0 0.0
      %3224 = vmatpush1.msra.mxu0 0.0
      %3225 = vmatprep.subr.mxu0 0.0
      %3226 = vmatpush1.msra.mxu0 0.0
      %3227 = vmatprep.subr.mxu0 0.0
      %3228 = vmatpush1.msra.mxu0 0.0
      %3229 = vmatprep.subr.mxu0 0.0
      %3230 = vmatpush1.msra.mxu0 0.0
      %3231 = vmatprep.subr.mxu0 0.0
      %3232 = vmatpush1.msra.mxu0 0.0
      %3233 = vmatprep.mubr.f32.mxu0 0.0
      %3234 = vmatmul.mubr.f32.gmra.mrb[0].mxu0 %v3167
      %v3235 = vpop.f32.mrb[0].mxu0
      %v3236 = vadd.f32 0.0, %v3235
      %v3237 = vpop.f32.mrb[0].mxu0
      %v3238 = vadd.f32 0.0, %v3237
      %3239 = vdwg.mxu0
      %v3240 = vadd.f32 %v3128, %v3236
      %v3241 = vadd.f32 %v3129, %v3238
      %v3242 = vld [vmem:[%s1248] sm:$0x3]
      %v3244 = vlaneseq
      %v3245 = vshrl.u32 %v3244, 7
      %v3246 = vsub.s32 0, %v3245
      %v3247 = vrot.slane %v3242, %v3246
      %v3248 = vlaneseq
      %v3249 = vshrl.u32 %v3248, 7
      %v3250 = vsub.s32 1, %v3249
      %v3251 = vrot.slane %v3242, %v3250
      %3252 = vrot.lane.b32.xlu0 %v3247, 17
      %v3253 = vpop.permute.xlu0 %3252
      %3254 = vrot.lane.b32.xlu0 %v3251, 17
      %v3255 = vpop.permute.xlu0 %3254
      %v3256 = vsel %vm517, %v3253, %v3255
      %v3260 = vmul.f32 %v2903, %v3253
      %v3261 = vmul.f32 %v2904, %v3256
      %v3262 = vmul.f32 %v2905, %v3255
      %s3263 = scalar_lea.vmem %s3, 208
      %v3264 = vld [vmem:[%s3263] sm:$0xff]
      %3268 = vrot.lane.b32.xlu0 %v3260, 111
      %v3269 = vpop.permute.xlu0 %3268
      %3270 = vrot.lane.b32.xlu0 %v3261, 111
      %v3271 = vpop.permute.xlu0 %3270
      %3272 = vrot.lane.b32.xlu0 %v3262, 111
      %v3273 = vpop.permute.xlu0 %3272
      %v3274 = vsel %vm385, %v3269, %v3271
      %v3275 = vsel %vm385, %v3271, %v3273
      %v3279 = vsel %vm433, %v3264, 0
      %3281 = vmatprep.subr.mxu0 %v3275
      %3282 = vmatpush1.msra.mxu0 %v3274
      %3283 = vmatprep.subr.mxu0 0.0
      %3284 = vmatpush1.msra.mxu0 0.0
      %3285 = vmatprep.subr.mxu0 0.0
      %3286 = vmatpush1.msra.mxu0 0.0
      %3287 = vmatprep.subr.mxu0 0.0
      %3288 = vmatpush1.msra.mxu0 0.0
      %3289 = vmatprep.subr.mxu0 0.0
      %3290 = vmatpush1.msra.mxu0 0.0
      %3291 = vmatprep.subr.mxu0 0.0
      %3292 = vmatpush1.msra.mxu0 0.0
      %3293 = vmatprep.subr.mxu0 0.0
      %3294 = vmatpush1.msra.mxu0 0.0
      %3295 = vmatprep.subr.mxu0 0.0
      %3296 = vmatpush1.msra.mxu0 0.0
      %3297 = vmatprep.subr.mxu0 0.0
      %3298 = vmatpush1.msra.mxu0 0.0
      %3299 = vmatprep.subr.mxu0 0.0
      %3300 = vmatpush1.msra.mxu0 0.0
      %3301 = vmatprep.subr.mxu0 0.0
      %3302 = vmatpush1.msra.mxu0 0.0
      %3303 = vmatprep.subr.mxu0 0.0
      %3304 = vmatpush1.msra.mxu0 0.0
      %3305 = vmatprep.subr.mxu0 0.0
      %3306 = vmatpush1.msra.mxu0 0.0
      %3307 = vmatprep.subr.mxu0 0.0
      %3308 = vmatpush1.msra.mxu0 0.0
      %3309 = vmatprep.subr.mxu0 0.0
      %3310 = vmatpush1.msra.mxu0 0.0
      %3311 = vmatprep.subr.mxu0 0.0
      %3312 = vmatpush1.msra.mxu0 0.0
      %3313 = vmatprep.subr.mxu0 0.0
      %3314 = vmatpush1.msra.mxu0 0.0
      %3315 = vmatprep.subr.mxu0 0.0
      %3316 = vmatpush1.msra.mxu0 0.0
      %3317 = vmatprep.subr.mxu0 0.0
      %3318 = vmatpush1.msra.mxu0 0.0
      %3319 = vmatprep.subr.mxu0 0.0
      %3320 = vmatpush1.msra.mxu0 0.0
      %3321 = vmatprep.subr.mxu0 0.0
      %3322 = vmatpush1.msra.mxu0 0.0
      %3323 = vmatprep.subr.mxu0 0.0
      %3324 = vmatpush1.msra.mxu0 0.0
      %3325 = vmatprep.subr.mxu0 0.0
      %3326 = vmatpush1.msra.mxu0 0.0
      %3327 = vmatprep.subr.mxu0 0.0
      %3328 = vmatpush1.msra.mxu0 0.0
      %3329 = vmatprep.subr.mxu0 0.0
      %3330 = vmatpush1.msra.mxu0 0.0
      %3331 = vmatprep.subr.mxu0 0.0
      %3332 = vmatpush1.msra.mxu0 0.0
      %3333 = vmatprep.subr.mxu0 0.0
      %3334 = vmatpush1.msra.mxu0 0.0
      %3335 = vmatprep.subr.mxu0 0.0
      %3336 = vmatpush1.msra.mxu0 0.0
      %3337 = vmatprep.subr.mxu0 0.0
      %3338 = vmatpush1.msra.mxu0 0.0
      %3339 = vmatprep.subr.mxu0 0.0
      %3340 = vmatpush1.msra.mxu0 0.0
      %3341 = vmatprep.subr.mxu0 0.0
      %3342 = vmatpush1.msra.mxu0 0.0
      %3343 = vmatprep.subr.mxu0 0.0
      %3344 = vmatpush1.msra.mxu0 0.0
      %3345 = vmatprep.mubr.f32.mxu0 0.0
      %3346 = vmatmul.mubr.f32.gmra.mrb[0].mxu0 %v3279
      %v3347 = vpop.f32.mrb[0].mxu0
      %v3348 = vadd.f32 0.0, %v3347
      %v3349 = vpop.f32.mrb[0].mxu0
      %v3350 = vadd.f32 0.0, %v3349
      %3351 = vdwg.mxu0
      %v3352 = vadd.f32 %v3240, %v3348
      %v3353 = vadd.f32 %v3241, %v3350
      %s3354 = scalar_lea.vmem %s4, 16
      %v3355 = vld [vmem:[%s3354] sm:$0xff]
      %3357 = vset.pattern.permute.xlu0 0
      %3358 = vperm.xlu0 %3357, %v3355
      %v3359 = vpop.permute.xlu0 %3358
      %v3361 = vadd.f32 %v3352, %v3359
      %v3362 = vadd.f32 %v3353, %v3359
      %3363 = vst [vmem:[#allocation2] sm:$0xff] %v3361
      %3364 = vst [vmem:[#allocation2 + $0x8] sm:$0xff] %v3362
      %3365 = vst [vmem:[#allocation2 + $0x10] sm:$0xff] %v3361
      %3366 = vst [vmem:[#allocation2 + $0x18] sm:$0xff] %v3362
      %v3367 = vld [vmem:[#allocation2] ss:$8 sm:$0x3]
      %s3368 = scalar_lea.vmem [#allocation2], 1
      %v3369 = vld [vmem:[%s3368] ss:$8 sm:$0x3]
      %v3370 = vld [vmem:[%s6] sm:$0xff]
      %v3371 = vld [vmem:[%s6 + $0x8] sm:$0xff]
      %v3372 = vld [vmem:[%s6 + $0x10] sm:$0xff]
      %v3373 = vld [vmem:[%s6 + $0x18] sm:$0xff]
      %v3374 = vld [vmem:[%s6 + $0x20] sm:$0xff]
      %v3375 = vld [vmem:[%s6 + $0x28] sm:$0xff]
      %v3376 = vld [vmem:[%s6 + $0x30] sm:$0xff]
      %v3377 = vld [vmem:[%s6 + $0x38] sm:$0xff]
      %v3378 = vld [vmem:[%s6 + $0x40] sm:$0xff]
      %v3379 = vld [vmem:[%s6 + $0x48] sm:$0xff]
      %v3380 = vld [vmem:[%s6 + $0x50] sm:$0xff]
      %v3381 = vld [vmem:[%s6 + $0x58] sm:$0xff]
      %v3382 = vld [vmem:[%s6 + $0x60] sm:$0xff]
      %v3383 = vld [vmem:[%s6 + $0x68] sm:$0xff]
      %v3384 = vld [vmem:[%s6 + $0x70] sm:$0xff]
      %v3385 = vld [vmem:[%s6 + $0x78] sm:$0xff]
      %v3386 = vld [vmem:[%s6 + $0x80] sm:$0xff]
      %v3387 = vld [vmem:[%s6 + $0x88] sm:$0xff]
      %v3388 = vld [vmem:[%s6 + $0x90] sm:$0xff]
      %v3389 = vld [vmem:[%s6 + $0x98] sm:$0xff]
      %v3390 = vld [vmem:[%s6 + $0xa0] sm:$0xff]
      %v3391 = vld [vmem:[%s6 + $0xa8] sm:$0xff]
      %v3392 = vld [vmem:[%s6 + $0xb0] sm:$0xff]
      %v3393 = vld [vmem:[%s6 + $0xb8] sm:$0xff]
      %v3394 = vld [vmem:[%s6 + $0xc0] sm:$0xff]
      %v3395 = vld [vmem:[%s6 + $0xc8] sm:$0xff]
      %v3396 = vld [vmem:[%s6 + $0xd0] sm:$0xff]
      %v3397 = vld [vmem:[%s6 + $0xd8] sm:$0xff]
      %v3398 = vld [vmem:[%s6 + $0xe0] sm:$0xff]
      %v3399 = vld [vmem:[%s6 + $0xe8] sm:$0xff]
      %v3400 = vld [vmem:[%s6 + $0xf0] sm:$0xff]
      %v3401 = vld [vmem:[%s6 + $0xf8] sm:$0xff]
      %v3402 = vld [vmem:[%s6 + $0x100] sm:$0xff]
      %v3403 = vld [vmem:[%s6 + $0x108] sm:$0xff]
      %v3404 = vld [vmem:[%s6 + $0x110] sm:$0xff]
      %v3405 = vld [vmem:[%s6 + $0x118] sm:$0xff]
      %v3406 = vld [vmem:[%s6 + $0x120] sm:$0xff]
      %v3407 = vld [vmem:[%s6 + $0x128] sm:$0xff]
      %v3408 = vld [vmem:[%s6 + $0x130] sm:$0xff]
      %v3409 = vld [vmem:[%s6 + $0x138] sm:$0xff]
      %v3410 = vld [vmem:[%s6 + $0x140] sm:$0xff]
      %v3411 = vld [vmem:[%s6 + $0x148] sm:$0xff]
      %v3412 = vld [vmem:[%s6 + $0x150] sm:$0xff]
      %v3413 = vld [vmem:[%s6 + $0x158] sm:$0xff]
      %v3414 = vld [vmem:[%s6 + $0x160] sm:$0xff]
      %v3415 = vld [vmem:[%s6 + $0x168] sm:$0xff]
      %v3416 = vld [vmem:[%s6 + $0x170] sm:$0xff]
      %v3417 = vld [vmem:[%s6 + $0x178] sm:$0xff]
      %v3418 = vld [vmem:[%s6 + $0x180] sm:$0xff]
      %v3419 = vld [vmem:[%s6 + $0x188] sm:$0xff]
      %v3420 = vld [vmem:[%s6 + $0x190] sm:$0xff]
      %v3421 = vld [vmem:[%s6 + $0x198] sm:$0xff]
      %v3422 = vld [vmem:[%s6 + $0x1a0] sm:$0xff]
      %v3423 = vld [vmem:[%s6 + $0x1a8] sm:$0xff]
      %v3424 = vld [vmem:[%s6 + $0x1b0] sm:$0xff]
      %v3425 = vld [vmem:[%s6 + $0x1b8] sm:$0xff]
      %v3426 = vld [vmem:[%s6 + $0x1c0] sm:$0xff]
      %v3427 = vld [vmem:[%s6 + $0x1c8] sm:$0xff]
      %v3428 = vld [vmem:[%s6 + $0x1d0] sm:$0xff]
      %v3429 = vld [vmem:[%s6 + $0x1d8] sm:$0xff]
      %v3430 = vld [vmem:[%s6 + $0x1e0] sm:$0xff]
      %v3431 = vld [vmem:[%s6 + $0x1e8] sm:$0xff]
      %v3432 = vld [vmem:[%s6 + $0x1f0] sm:$0xff]
      %v3433 = vld [vmem:[%s6 + $0x1f8] sm:$0xff]
      %v3435 = vlaneseq
      %v3436 = vshrl.u32 %v3435, 7
      %v3437 = vsub.s32 0, %v3436
      %v3438 = vrot.slane %v3367, %v3437
      %v3439 = vlaneseq
      %v3440 = vshrl.u32 %v3439, 7
      %v3441 = vsub.s32 1, %v3440
      %v3442 = vrot.slane %v3367, %v3441
      %3445 = vmatprep.subr.mxu0 %v3371
      %3446 = vmatpush1.msra.mxu0 %v3370
      %3447 = vmatprep.subr.mxu0 %v3373
      %3448 = vmatpush1.msra.mxu0 %v3372
      %3449 = vmatprep.subr.mxu0 %v3375
      %3450 = vmatpush1.msra.mxu0 %v3374
      %3451 = vmatprep.subr.mxu0 %v3377
      %3452 = vmatpush1.msra.mxu0 %v3376
      %3453 = vmatprep.subr.mxu0 %v3379
      %3454 = vmatpush1.msra.mxu0 %v3378
      %3455 = vmatprep.subr.mxu0 %v3381
      %3456 = vmatpush1.msra.mxu0 %v3380
      %3457 = vmatprep.subr.mxu0 %v3383
      %3458 = vmatpush1.msra.mxu0 %v3382
      %3459 = vmatprep.subr.mxu0 %v3385
      %3460 = vmatpush1.msra.mxu0 %v3384
      %3461 = vmatprep.subr.mxu0 %v3387
      %3462 = vmatpush1.msra.mxu0 %v3386
      %3463 = vmatprep.subr.mxu0 %v3389
      %3464 = vmatpush1.msra.mxu0 %v3388
      %3465 = vmatprep.subr.mxu0 %v3391
      %3466 = vmatpush1.msra.mxu0 %v3390
      %3467 = vmatprep.subr.mxu0 %v3393
      %3468 = vmatpush1.msra.mxu0 %v3392
      %3469 = vmatprep.subr.mxu0 %v3395
      %3470 = vmatpush1.msra.mxu0 %v3394
      %3471 = vmatprep.subr.mxu0 %v3397
      %3472 = vmatpush1.msra.mxu0 %v3396
      %3473 = vmatprep.subr.mxu0 %v3399
      %3474 = vmatpush1.msra.mxu0 %v3398
      %3475 = vmatprep.subr.mxu0 %v3401
      %3476 = vmatpush1.msra.mxu0 %v3400
      %3477 = vmatprep.subr.mxu0 %v3403
      %3478 = vmatpush1.msra.mxu0 %v3402
      %3479 = vmatprep.subr.mxu0 %v3405
      %3480 = vmatpush1.msra.mxu0 %v3404
      %3481 = vmatprep.subr.mxu0 %v3407
      %3482 = vmatpush1.msra.mxu0 %v3406
      %3483 = vmatprep.subr.mxu0 %v3409
      %3484 = vmatpush1.msra.mxu0 %v3408
      %3485 = vmatprep.subr.mxu0 %v3411
      %3486 = vmatpush1.msra.mxu0 %v3410
      %3487 = vmatprep.subr.mxu0 %v3413
      %3488 = vmatpush1.msra.mxu0 %v3412
      %3489 = vmatprep.subr.mxu0 %v3415
      %3490 = vmatpush1.msra.mxu0 %v3414
      %3491 = vmatprep.subr.mxu0 %v3417
      %3492 = vmatpush1.msra.mxu0 %v3416
      %3493 = vmatprep.subr.mxu0 %v3419
      %3494 = vmatpush1.msra.mxu0 %v3418
      %3495 = vmatprep.subr.mxu0 %v3421
      %3496 = vmatpush1.msra.mxu0 %v3420
      %3497 = vmatprep.subr.mxu0 %v3423
      %3498 = vmatpush1.msra.mxu0 %v3422
      %3499 = vmatprep.subr.mxu0 %v3425
      %3500 = vmatpush1.msra.mxu0 %v3424
      %3501 = vmatprep.subr.mxu0 %v3427
      %3502 = vmatpush1.msra.mxu0 %v3426
      %3503 = vmatprep.subr.mxu0 %v3429
      %3504 = vmatpush1.msra.mxu0 %v3428
      %3505 = vmatprep.subr.mxu0 %v3431
      %3506 = vmatpush1.msra.mxu0 %v3430
      %3507 = vmatprep.subr.mxu0 %v3433
      %3508 = vmatpush1.msra.mxu0 %v3432
      %3509 = vmatprep.mubr.f32.mxu0 %v3442
      %3510 = vmatmul.mubr.f32.gmra.mrb[0].mxu0 %v3438
      %v3511 = vpop.f32.mrb[0].mxu0
      %v3512 = vadd.f32 0.0, %v3511
      %v3513 = vpop.f32.mrb[0].mxu0
      %v3514 = vadd.f32 0.0, %v3513
      %3515 = vdwg.mxu0
      %v3516 = vld [vmem:[%s7] sm:$0xff]
      %v3517 = vld [vmem:[%s7 + $0x8] sm:$0xff]
      %v3518 = vld [vmem:[%s7 + $0x10] sm:$0xff]
      %v3519 = vld [vmem:[%s7 + $0x18] sm:$0xff]
      %v3520 = vld [vmem:[%s7 + $0x20] sm:$0xff]
      %v3521 = vld [vmem:[%s7 + $0x28] sm:$0xff]
      %v3522 = vld [vmem:[%s7 + $0x30] sm:$0xff]
      %v3523 = vld [vmem:[%s7 + $0x38] sm:$0xff]
      %v3524 = vld [vmem:[%s7 + $0x40] sm:$0xff]
      %v3525 = vld [vmem:[%s7 + $0x48] sm:$0xff]
      %v3526 = vld [vmem:[%s7 + $0x50] sm:$0xff]
      %v3527 = vld [vmem:[%s7 + $0x58] sm:$0xff]
      %v3528 = vld [vmem:[%s7 + $0x60] sm:$0xff]
      %v3529 = vld [vmem:[%s7 + $0x68] sm:$0xff]
      %v3530 = vld [vmem:[%s7 + $0x70] sm:$0xff]
      %v3531 = vld [vmem:[%s7 + $0x78] sm:$0xff]
      %v3532 = vld [vmem:[%s7 + $0x80] sm:$0xff]
      %v3533 = vld [vmem:[%s7 + $0x88] sm:$0xff]
      %v3534 = vld [vmem:[%s7 + $0x90] sm:$0xff]
      %v3535 = vld [vmem:[%s7 + $0x98] sm:$0xff]
      %v3536 = vld [vmem:[%s7 + $0xa0] sm:$0xff]
      %v3537 = vld [vmem:[%s7 + $0xa8] sm:$0xff]
      %v3538 = vld [vmem:[%s7 + $0xb0] sm:$0xff]
      %v3539 = vld [vmem:[%s7 + $0xb8] sm:$0xff]
      %v3540 = vld [vmem:[%s7 + $0xc0] sm:$0xff]
      %v3541 = vld [vmem:[%s7 + $0xc8] sm:$0xff]
      %v3542 = vld [vmem:[%s7 + $0xd0] sm:$0xff]
      %v3543 = vld [vmem:[%s7 + $0xd8] sm:$0xff]
      %v3544 = vld [vmem:[%s7 + $0xe0] sm:$0xff]
      %v3545 = vld [vmem:[%s7 + $0xe8] sm:$0xff]
      %v3546 = vld [vmem:[%s7 + $0xf0] sm:$0xff]
      %v3547 = vld [vmem:[%s7 + $0xf8] sm:$0xff]
      %v3548 = vld [vmem:[%s7 + $0x100] sm:$0xff]
      %v3549 = vld [vmem:[%s7 + $0x108] sm:$0xff]
      %v3550 = vld [vmem:[%s7 + $0x110] sm:$0xff]
      %v3551 = vld [vmem:[%s7 + $0x118] sm:$0xff]
      %v3552 = vld [vmem:[%s7 + $0x120] sm:$0xff]
      %v3553 = vld [vmem:[%s7 + $0x128] sm:$0xff]
      %v3554 = vld [vmem:[%s7 + $0x130] sm:$0xff]
      %v3555 = vld [vmem:[%s7 + $0x138] sm:$0xff]
      %v3556 = vld [vmem:[%s7 + $0x140] sm:$0xff]
      %v3557 = vld [vmem:[%s7 + $0x148] sm:$0xff]
      %v3558 = vld [vmem:[%s7 + $0x150] sm:$0xff]
      %v3559 = vld [vmem:[%s7 + $0x158] sm:$0xff]
      %v3560 = vld [vmem:[%s7 + $0x160] sm:$0xff]
      %v3561 = vld [vmem:[%s7 + $0x168] sm:$0xff]
      %v3562 = vld [vmem:[%s7 + $0x170] sm:$0xff]
      %v3563 = vld [vmem:[%s7 + $0x178] sm:$0xff]
      %v3564 = vld [vmem:[%s7 + $0x180] sm:$0xff]
      %v3565 = vld [vmem:[%s7 + $0x188] sm:$0xff]
      %v3566 = vld [vmem:[%s7 + $0x190] sm:$0xff]
      %v3567 = vld [vmem:[%s7 + $0x198] sm:$0xff]
      %v3568 = vld [vmem:[%s7 + $0x1a0] sm:$0xff]
      %v3569 = vld [vmem:[%s7 + $0x1a8] sm:$0xff]
      %v3570 = vld [vmem:[%s7 + $0x1b0] sm:$0xff]
      %v3571 = vld [vmem:[%s7 + $0x1b8] sm:$0xff]
      %v3572 = vld [vmem:[%s7 + $0x1c0] sm:$0xff]
      %v3573 = vld [vmem:[%s7 + $0x1c8] sm:$0xff]
      %v3574 = vld [vmem:[%s7 + $0x1d0] sm:$0xff]
      %v3575 = vld [vmem:[%s7 + $0x1d8] sm:$0xff]
      %v3576 = vld [vmem:[%s7 + $0x1e0] sm:$0xff]
      %v3577 = vld [vmem:[%s7 + $0x1e8] sm:$0xff]
      %v3578 = vld [vmem:[%s7 + $0x1f0] sm:$0xff]
      %v3579 = vld [vmem:[%s7 + $0x1f8] sm:$0xff]
      %v3581 = vlaneseq
      %v3582 = vshrl.u32 %v3581, 7
      %v3583 = vsub.s32 0, %v3582
      %v3584 = vrot.slane %v3369, %v3583
      %v3585 = vlaneseq
      %v3586 = vshrl.u32 %v3585, 7
      %v3587 = vsub.s32 1, %v3586
      %v3588 = vrot.slane %v3369, %v3587
      %3591 = vmatprep.subr.mxu0 %v3517
      %3592 = vmatpush1.msra.mxu0 %v3516
      %3593 = vmatprep.subr.mxu0 %v3519
      %3594 = vmatpush1.msra.mxu0 %v3518
      %3595 = vmatprep.subr.mxu0 %v3521
      %3596 = vmatpush1.msra.mxu0 %v3520
      %3597 = vmatprep.subr.mxu0 %v3523
      %3598 = vmatpush1.msra.mxu0 %v3522
      %3599 = vmatprep.subr.mxu0 %v3525
      %3600 = vmatpush1.msra.mxu0 %v3524
      %3601 = vmatprep.subr.mxu0 %v3527
      %3602 = vmatpush1.msra.mxu0 %v3526
      %3603 = vmatprep.subr.mxu0 %v3529
      %3604 = vmatpush1.msra.mxu0 %v3528
      %3605 = vmatprep.subr.mxu0 %v3531
      %3606 = vmatpush1.msra.mxu0 %v3530
      %3607 = vmatprep.subr.mxu0 %v3533
      %3608 = vmatpush1.msra.mxu0 %v3532
      %3609 = vmatprep.subr.mxu0 %v3535
      %3610 = vmatpush1.msra.mxu0 %v3534
      %3611 = vmatprep.subr.mxu0 %v3537
      %3612 = vmatpush1.msra.mxu0 %v3536
      %3613 = vmatprep.subr.mxu0 %v3539
      %3614 = vmatpush1.msra.mxu0 %v3538
      %3615 = vmatprep.subr.mxu0 %v3541
      %3616 = vmatpush1.msra.mxu0 %v3540
      %3617 = vmatprep.subr.mxu0 %v3543
      %3618 = vmatpush1.msra.mxu0 %v3542
      %3619 = vmatprep.subr.mxu0 %v3545
      %3620 = vmatpush1.msra.mxu0 %v3544
      %3621 = vmatprep.subr.mxu0 %v3547
      %3622 = vmatpush1.msra.mxu0 %v3546
      %3623 = vmatprep.subr.mxu0 %v3549
      %3624 = vmatpush1.msra.mxu0 %v3548
      %3625 = vmatprep.subr.mxu0 %v3551
      %3626 = vmatpush1.msra.mxu0 %v3550
      %3627 = vmatprep.subr.mxu0 %v3553
      %3628 = vmatpush1.msra.mxu0 %v3552
      %3629 = vmatprep.subr.mxu0 %v3555
      %3630 = vmatpush1.msra.mxu0 %v3554
      %3631 = vmatprep.subr.mxu0 %v3557
      %3632 = vmatpush1.msra.mxu0 %v3556
      %3633 = vmatprep.subr.mxu0 %v3559
      %3634 = vmatpush1.msra.mxu0 %v3558
      %3635 = vmatprep.subr.mxu0 %v3561
      %3636 = vmatpush1.msra.mxu0 %v3560
      %3637 = vmatprep.subr.mxu0 %v3563
      %3638 = vmatpush1.msra.mxu0 %v3562
      %3639 = vmatprep.subr.mxu0 %v3565
      %3640 = vmatpush1.msra.mxu0 %v3564
      %3641 = vmatprep.subr.mxu0 %v3567
      %3642 = vmatpush1.msra.mxu0 %v3566
      %3643 = vmatprep.subr.mxu0 %v3569
      %3644 = vmatpush1.msra.mxu0 %v3568
      %3645 = vmatprep.subr.mxu0 %v3571
      %3646 = vmatpush1.msra.mxu0 %v3570
      %3647 = vmatprep.subr.mxu0 %v3573
      %3648 = vmatpush1.msra.mxu0 %v3572
      %3649 = vmatprep.subr.mxu0 %v3575
      %3650 = vmatpush1.msra.mxu0 %v3574
      %3651 = vmatprep.subr.mxu0 %v3577
      %3652 = vmatpush1.msra.mxu0 %v3576
      %3653 = vmatprep.subr.mxu0 %v3579
      %3654 = vmatpush1.msra.mxu0 %v3578
      %3655 = vmatprep.mubr.f32.mxu0 %v3588
      %3656 = vmatmul.mubr.f32.gmra.mrb[0].mxu0 %v3584
      %v3657 = vpop.f32.mrb[0].mxu0
      %v3658 = vadd.f32 0.0, %v3657
      %v3659 = vpop.f32.mrb[0].mxu0
      %v3660 = vadd.f32 0.0, %v3659
      %3661 = vdwg.mxu0
      %v3662 = vsub.f32 %v3512, %v3658
      %v3663 = vsub.f32 %v3514, %v3660
      %3664 = vmatprep.subr.mxu0 %v3371
      %3665 = vmatpush1.msra.mxu0 %v3370
      %3666 = vmatprep.subr.mxu0 %v3373
      %3667 = vmatpush1.msra.mxu0 %v3372
      %3668 = vmatprep.subr.mxu0 %v3375
      %3669 = vmatpush1.msra.mxu0 %v3374
      %3670 = vmatprep.subr.mxu0 %v3377
      %3671 = vmatpush1.msra.mxu0 %v3376
      %3672 = vmatprep.subr.mxu0 %v3379
      %3673 = vmatpush1.msra.mxu0 %v3378
      %3674 = vmatprep.subr.mxu0 %v3381
      %3675 = vmatpush1.msra.mxu0 %v3380
      %3676 = vmatprep.subr.mxu0 %v3383
      %3677 = vmatpush1.msra.mxu0 %v3382
      %3678 = vmatprep.subr.mxu0 %v3385
      %3679 = vmatpush1.msra.mxu0 %v3384
      %3680 = vmatprep.subr.mxu0 %v3387
      %3681 = vmatpush1.msra.mxu0 %v3386
      %3682 = vmatprep.subr.mxu0 %v3389
      %3683 = vmatpush1.msra.mxu0 %v3388
      %3684 = vmatprep.subr.mxu0 %v3391
      %3685 = vmatpush1.msra.mxu0 %v3390
      %3686 = vmatprep.subr.mxu0 %v3393
      %3687 = vmatpush1.msra.mxu0 %v3392
      %3688 = vmatprep.subr.mxu0 %v3395
      %3689 = vmatpush1.msra.mxu0 %v3394
      %3690 = vmatprep.subr.mxu0 %v3397
      %3691 = vmatpush1.msra.mxu0 %v3396
      %3692 = vmatprep.subr.mxu0 %v3399
      %3693 = vmatpush1.msra.mxu0 %v3398
      %3694 = vmatprep.subr.mxu0 %v3401
      %3695 = vmatpush1.msra.mxu0 %v3400
      %3696 = vmatprep.subr.mxu0 %v3403
      %3697 = vmatpush1.msra.mxu0 %v3402
      %3698 = vmatprep.subr.mxu0 %v3405
      %3699 = vmatpush1.msra.mxu0 %v3404
      %3700 = vmatprep.subr.mxu0 %v3407
      %3701 = vmatpush1.msra.mxu0 %v3406
      %3702 = vmatprep.subr.mxu0 %v3409
      %3703 = vmatpush1.msra.mxu0 %v3408
      %3704 = vmatprep.subr.mxu0 %v3411
      %3705 = vmatpush1.msra.mxu0 %v3410
      %3706 = vmatprep.subr.mxu0 %v3413
      %3707 = vmatpush1.msra.mxu0 %v3412
      %3708 = vmatprep.subr.mxu0 %v3415
      %3709 = vmatpush1.msra.mxu0 %v3414
      %3710 = vmatprep.subr.mxu0 %v3417
      %3711 = vmatpush1.msra.mxu0 %v3416
      %3712 = vmatprep.subr.mxu0 %v3419
      %3713 = vmatpush1.msra.mxu0 %v3418
      %3714 = vmatprep.subr.mxu0 %v3421
      %3715 = vmatpush1.msra.mxu0 %v3420
      %3716 = vmatprep.subr.mxu0 %v3423
      %3717 = vmatpush1.msra.mxu0 %v3422
      %3718 = vmatprep.subr.mxu0 %v3425
      %3719 = vmatpush1.msra.mxu0 %v3424
      %3720 = vmatprep.subr.mxu0 %v3427
      %3721 = vmatpush1.msra.mxu0 %v3426
      %3722 = vmatprep.subr.mxu0 %v3429
      %3723 = vmatpush1.msra.mxu0 %v3428
      %3724 = vmatprep.subr.mxu0 %v3431
      %3725 = vmatpush1.msra.mxu0 %v3430
      %3726 = vmatprep.subr.mxu0 %v3433
      %3727 = vmatpush1.msra.mxu0 %v3432
      %3728 = vmatprep.mubr.f32.mxu0 %v3588
      %3729 = vmatmul.mubr.f32.gmra.mrb[0].mxu0 %v3584
      %v3730 = vpop.f32.mrb[0].mxu0
      %v3731 = vadd.f32 0.0, %v3730
      %v3732 = vpop.f32.mrb[0].mxu0
      %v3733 = vadd.f32 0.0, %v3732
      %3734 = vdwg.mxu0
      %3735 = vmatprep.subr.mxu0 %v3517
      %3736 = vmatpush1.msra.mxu0 %v3516
      %3737 = vmatprep.subr.mxu0 %v3519
      %3738 = vmatpush1.msra.mxu0 %v3518
      %3739 = vmatprep.subr.mxu0 %v3521
      %3740 = vmatpush1.msra.mxu0 %v3520
      %3741 = vmatprep.subr.mxu0 %v3523
      %3742 = vmatpush1.msra.mxu0 %v3522
      %3743 = vmatprep.subr.mxu0 %v3525
      %3744 = vmatpush1.msra.mxu0 %v3524
      %3745 = vmatprep.subr.mxu0 %v3527
      %3746 = vmatpush1.msra.mxu0 %v3526
      %3747 = vmatprep.subr.mxu0 %v3529
      %3748 = vmatpush1.msra.mxu0 %v3528
      %3749 = vmatprep.subr.mxu0 %v3531
      %3750 = vmatpush1.msra.mxu0 %v3530
      %3751 = vmatprep.subr.mxu0 %v3533
      %3752 = vmatpush1.msra.mxu0 %v3532
      %3753 = vmatprep.subr.mxu0 %v3535
      %3754 = vmatpush1.msra.mxu0 %v3534
      %3755 = vmatprep.subr.mxu0 %v3537
      %3756 = vmatpush1.msra.mxu0 %v3536
      %3757 = vmatprep.subr.mxu0 %v3539
      %3758 = vmatpush1.msra.mxu0 %v3538
      %3759 = vmatprep.subr.mxu0 %v3541
      %3760 = vmatpush1.msra.mxu0 %v3540
      %3761 = vmatprep.subr.mxu0 %v3543
      %3762 = vmatpush1.msra.mxu0 %v3542
      %3763 = vmatprep.subr.mxu0 %v3545
      %3764 = vmatpush1.msra.mxu0 %v3544
      %3765 = vmatprep.subr.mxu0 %v3547
      %3766 = vmatpush1.msra.mxu0 %v3546
      %3767 = vmatprep.subr.mxu0 %v3549
      %3768 = vmatpush1.msra.mxu0 %v3548
      %3769 = vmatprep.subr.mxu0 %v3551
      %3770 = vmatpush1.msra.mxu0 %v3550
      %3771 = vmatprep.subr.mxu0 %v3553
      %3772 = vmatpush1.msra.mxu0 %v3552
      %3773 = vmatprep.subr.mxu0 %v3555
      %3774 = vmatpush1.msra.mxu0 %v3554
      %3775 = vmatprep.subr.mxu0 %v3557
      %3776 = vmatpush1.msra.mxu0 %v3556
      %3777 = vmatprep.subr.mxu0 %v3559
      %3778 = vmatpush1.msra.mxu0 %v3558
      %3779 = vmatprep.subr.mxu0 %v3561
      %3780 = vmatpush1.msra.mxu0 %v3560
      %3781 = vmatprep.subr.mxu0 %v3563
      %3782 = vmatpush1.msra.mxu0 %v3562
      %3783 = vmatprep.subr.mxu0 %v3565
      %3784 = vmatpush1.msra.mxu0 %v3564
      %3785 = vmatprep.subr.mxu0 %v3567
      %3786 = vmatpush1.msra.mxu0 %v3566
      %3787 = vmatprep.subr.mxu0 %v3569
      %3788 = vmatpush1.msra.mxu0 %v3568
      %3789 = vmatprep.subr.mxu0 %v3571
      %3790 = vmatpush1.msra.mxu0 %v3570
      %3791 = vmatprep.subr.mxu0 %v3573
      %3792 = vmatpush1.msra.mxu0 %v3572
      %3793 = vmatprep.subr.mxu0 %v3575
      %3794 = vmatpush1.msra.mxu0 %v3574
      %3795 = vmatprep.subr.mxu0 %v3577
      %3796 = vmatpush1.msra.mxu0 %v3576
      %3797 = vmatprep.subr.mxu0 %v3579
      %3798 = vmatpush1.msra.mxu0 %v3578
      %3799 = vmatprep.mubr.f32.mxu0 %v3442
      %3800 = vmatmul.mubr.f32.gmra.mrb[0].mxu0 %v3438
      %v3801 = vpop.f32.mrb[0].mxu0
      %v3802 = vadd.f32 %v3731, %v3801
      %v3803 = vpop.f32.mrb[0].mxu0
      %v3804 = vadd.f32 %v3733, %v3803
      %3805 = vdwg.mxu0
      %v3808 = vcombine.low %v3662, %v3663
      %v3810 = vunpack.c.l.s4 1966171168
      %v3811 = vunpack.c.0.s8 %v3810
      %v3812 = vlaneseq
      %v3813 = vshrl.u32 %v3812, 7
      %v3814 = vsub.s32 %v3811, %v3813
      %v3815 = vrot.slane %v3808, %v3814
      %v3817 = vunpack.c.l.s4 1966171168
      %v3818 = vunpack.c.0.s8 %v3817
      %v3819 = vlaneseq
      %v3820 = vshrl.u32 %v3819, 7
      %v3821 = vsub.s32 %v3818, %v3820
      %v3822 = vrot.slane %v3815, %v3821
      %v3824 = vmul.f32 %v344, %v3822
      %v3825 = vmul.f32 %v343, %v345
      %v3826 = vadd.f32 %v3824, %v3825
      %v3829 = vcombine.low %v3802, %v3804
      %v3831 = vunpack.c.l.s4 1966171168
      %v3832 = vunpack.c.0.s8 %v3831
      %v3833 = vlaneseq
      %v3834 = vshrl.u32 %v3833, 7
      %v3835 = vsub.s32 %v3832, %v3834
      %v3836 = vrot.slane %v3829, %v3835
      %v3838 = vunpack.c.l.s4 1966171168
      %v3839 = vunpack.c.0.s8 %v3838
      %v3840 = vlaneseq
      %v3841 = vshrl.u32 %v3840, 7
      %v3842 = vsub.s32 %v3839, %v3841
      %v3843 = vrot.slane %v3836, %v3842
      %v3845 = vmul.f32 %v344, %v3843
      %v3846 = vmul.f32 %v343, %v347
      %v3847 = vadd.f32 %v3845, %v3846
      %v3849 = vlaneseq
      %v3850 = vshrl.u32 %v3849, 7
      %v3851 = vsub.s32 0, %v3850
      %v3852 = vrot.slane %v3847, %v3851
      %v3853 = vlaneseq
      %v3854 = vshrl.u32 %v3853, 7
      %v3855 = vsub.s32 1, %v3854
      %v3856 = vrot.slane %v3847, %v3855
      %3859 = vmatprep.subr.mxu0 %v3517
      %3860 = vmatpush1.msra.mxu0 %v3516
      %3861 = vmatprep.subr.mxu0 %v3519
      %3862 = vmatpush1.msra.mxu0 %v3518
      %3863 = vmatprep.subr.mxu0 %v3521
      %3864 = vmatpush1.msra.mxu0 %v3520
      %3865 = vmatprep.subr.mxu0 %v3523
      %3866 = vmatpush1.msra.mxu0 %v3522
      %3867 = vmatprep.subr.mxu0 %v3525
      %3868 = vmatpush1.msra.mxu0 %v3524
      %3869 = vmatprep.subr.mxu0 %v3527
      %3870 = vmatpush1.msra.mxu0 %v3526
      %3871 = vmatprep.subr.mxu0 %v3529
      %3872 = vmatpush1.msra.mxu0 %v3528
      %3873 = vmatprep.subr.mxu0 %v3531
      %3874 = vmatpush1.msra.mxu0 %v3530
      %3875 = vmatprep.subr.mxu0 %v3533
      %3876 = vmatpush1.msra.mxu0 %v3532
      %3877 = vmatprep.subr.mxu0 %v3535
      %3878 = vmatpush1.msra.mxu0 %v3534
      %3879 = vmatprep.subr.mxu0 %v3537
      %3880 = vmatpush1.msra.mxu0 %v3536
      %3881 = vmatprep.subr.mxu0 %v3539
      %3882 = vmatpush1.msra.mxu0 %v3538
      %3883 = vmatprep.subr.mxu0 %v3541
      %3884 = vmatpush1.msra.mxu0 %v3540
      %3885 = vmatprep.subr.mxu0 %v3543
      %3886 = vmatpush1.msra.mxu0 %v3542
      %3887 = vmatprep.subr.mxu0 %v3545
      %3888 = vmatpush1.msra.mxu0 %v3544
      %3889 = vmatprep.subr.mxu0 %v3547
      %3890 = vmatpush1.msra.mxu0 %v3546
      %3891 = vmatprep.subr.mxu0 %v3549
      %3892 = vmatpush1.msra.mxu0 %v3548
      %3893 = vmatprep.subr.mxu0 %v3551
      %3894 = vmatpush1.msra.mxu0 %v3550
      %3895 = vmatprep.subr.mxu0 %v3553
      %3896 = vmatpush1.msra.mxu0 %v3552
      %3897 = vmatprep.subr.mxu0 %v3555
      %3898 = vmatpush1.msra.mxu0 %v3554
      %3899 = vmatprep.subr.mxu0 %v3557
      %3900 = vmatpush1.msra.mxu0 %v3556
      %3901 = vmatprep.subr.mxu0 %v3559
      %3902 = vmatpush1.msra.mxu0 %v3558
      %3903 = vmatprep.subr.mxu0 %v3561
      %3904 = vmatpush1.msra.mxu0 %v3560
      %3905 = vmatprep.subr.mxu0 %v3563
      %3906 = vmatpush1.msra.mxu0 %v3562
      %3907 = vmatprep.subr.mxu0 %v3565
      %3908 = vmatpush1.msra.mxu0 %v3564
      %3909 = vmatprep.subr.mxu0 %v3567
      %3910 = vmatpush1.msra.mxu0 %v3566
      %3911 = vmatprep.subr.mxu0 %v3569
      %3912 = vmatpush1.msra.mxu0 %v3568
      %3913 = vmatprep.subr.mxu0 %v3571
      %3914 = vmatpush1.msra.mxu0 %v3570
      %3915 = vmatprep.subr.mxu0 %v3573
      %3916 = vmatpush1.msra.mxu0 %v3572
      %3917 = vmatprep.subr.mxu0 %v3575
      %3918 = vmatpush1.msra.mxu0 %v3574
      %3919 = vmatprep.subr.mxu0 %v3577
      %3920 = vmatpush1.msra.mxu0 %v3576
      %3921 = vmatprep.subr.mxu0 %v3579
      %3922 = vmatpush1.msra.mxu0 %v3578
      %3923 = vmatprep.mubr.f32.mxu0 %v3856
      %3924 = vmatmul.mubr.f32.gmra.mrb[0].mxu0 %v3852
      %v3925 = vpop.f32.mrb[0].mxu0
      %v3926 = vadd.f32 0.0, %v3925
      %v3927 = vpop.f32.mrb[0].mxu0
      %v3928 = vadd.f32 0.0, %v3927
      %3929 = vdwg.mxu0
      %v3931 = vlaneseq
      %v3932 = vshrl.u32 %v3931, 7
      %v3933 = vsub.s32 0, %v3932
      %v3934 = vrot.slane %v3826, %v3933
      %v3935 = vlaneseq
      %v3936 = vshrl.u32 %v3935, 7
      %v3937 = vsub.s32 1, %v3936
      %v3938 = vrot.slane %v3826, %v3937
      %3941 = vmatprep.subr.mxu0 %v3371
      %3942 = vmatpush1.msra.mxu0 %v3370
      %3943 = vmatprep.subr.mxu0 %v3373
      %3944 = vmatpush1.msra.mxu0 %v3372
      %3945 = vmatprep.subr.mxu0 %v3375
      %3946 = vmatpush1.msra.mxu0 %v3374
      %3947 = vmatprep.subr.mxu0 %v3377
      %3948 = vmatpush1.msra.mxu0 %v3376
      %3949 = vmatprep.subr.mxu0 %v3379
      %3950 = vmatpush1.msra.mxu0 %v3378
      %3951 = vmatprep.subr.mxu0 %v3381
      %3952 = vmatpush1.msra.mxu0 %v3380
      %3953 = vmatprep.subr.mxu0 %v3383
      %3954 = vmatpush1.msra.mxu0 %v3382
      %3955 = vmatprep.subr.mxu0 %v3385
      %3956 = vmatpush1.msra.mxu0 %v3384
      %3957 = vmatprep.subr.mxu0 %v3387
      %3958 = vmatpush1.msra.mxu0 %v3386
      %3959 = vmatprep.subr.mxu0 %v3389
      %3960 = vmatpush1.msra.mxu0 %v3388
      %3961 = vmatprep.subr.mxu0 %v3391
      %3962 = vmatpush1.msra.mxu0 %v3390
      %3963 = vmatprep.subr.mxu0 %v3393
      %3964 = vmatpush1.msra.mxu0 %v3392
      %3965 = vmatprep.subr.mxu0 %v3395
      %3966 = vmatpush1.msra.mxu0 %v3394
      %3967 = vmatprep.subr.mxu0 %v3397
      %3968 = vmatpush1.msra.mxu0 %v3396
      %3969 = vmatprep.subr.mxu0 %v3399
      %3970 = vmatpush1.msra.mxu0 %v3398
      %3971 = vmatprep.subr.mxu0 %v3401
      %3972 = vmatpush1.msra.mxu0 %v3400
      %3973 = vmatprep.subr.mxu0 %v3403
      %3974 = vmatpush1.msra.mxu0 %v3402
      %3975 = vmatprep.subr.mxu0 %v3405
      %3976 = vmatpush1.msra.mxu0 %v3404
      %3977 = vmatprep.subr.mxu0 %v3407
      %3978 = vmatpush1.msra.mxu0 %v3406
      %3979 = vmatprep.subr.mxu0 %v3409
      %3980 = vmatpush1.msra.mxu0 %v3408
      %3981 = vmatprep.subr.mxu0 %v3411
      %3982 = vmatpush1.msra.mxu0 %v3410
      %3983 = vmatprep.subr.mxu0 %v3413
      %3984 = vmatpush1.msra.mxu0 %v3412
      %3985 = vmatprep.subr.mxu0 %v3415
      %3986 = vmatpush1.msra.mxu0 %v3414
      %3987 = vmatprep.subr.mxu0 %v3417
      %3988 = vmatpush1.msra.mxu0 %v3416
      %3989 = vmatprep.subr.mxu0 %v3419
      %3990 = vmatpush1.msra.mxu0 %v3418
      %3991 = vmatprep.subr.mxu0 %v3421
      %3992 = vmatpush1.msra.mxu0 %v3420
      %3993 = vmatprep.subr.mxu0 %v3423
      %3994 = vmatpush1.msra.mxu0 %v3422
      %3995 = vmatprep.subr.mxu0 %v3425
      %3996 = vmatpush1.msra.mxu0 %v3424
      %3997 = vmatprep.subr.mxu0 %v3427
      %3998 = vmatpush1.msra.mxu0 %v3426
      %3999 = vmatprep.subr.mxu0 %v3429
      %4000 = vmatpush1.msra.mxu0 %v3428
      %4001 = vmatprep.subr.mxu0 %v3431
      %4002 = vmatpush1.msra.mxu0 %v3430
      %4003 = vmatprep.subr.mxu0 %v3433
      %4004 = vmatpush1.msra.mxu0 %v3432
      %4005 = vmatprep.mubr.f32.mxu0 %v3938
      %4006 = vmatmul.mubr.f32.gmra.mrb[0].mxu0 %v3934
      %v4007 = vpop.f32.mrb[0].mxu0
      %v4008 = vadd.f32 %v3926, %v4007
      %v4009 = vpop.f32.mrb[0].mxu0
      %v4010 = vadd.f32 %v3928, %v4009
      %4011 = vdwg.mxu0
      %4012 = vmatprep.subr.mxu0 %v3371
      %4013 = vmatpush1.msra.mxu0 %v3370
      %4014 = vmatprep.subr.mxu0 %v3373
      %4015 = vmatpush1.msra.mxu0 %v3372
      %4016 = vmatprep.subr.mxu0 %v3375
      %4017 = vmatpush1.msra.mxu0 %v3374
      %4018 = vmatprep.subr.mxu0 %v3377
      %4019 = vmatpush1.msra.mxu0 %v3376
      %4020 = vmatprep.subr.mxu0 %v3379
      %4021 = vmatpush1.msra.mxu0 %v3378
      %4022 = vmatprep.subr.mxu0 %v3381
      %4023 = vmatpush1.msra.mxu0 %v3380
      %4024 = vmatprep.subr.mxu0 %v3383
      %4025 = vmatpush1.msra.mxu0 %v3382
      %4026 = vmatprep.subr.mxu0 %v3385
      %4027 = vmatpush1.msra.mxu0 %v3384
      %4028 = vmatprep.subr.mxu0 %v3387
      %4029 = vmatpush1.msra.mxu0 %v3386
      %4030 = vmatprep.subr.mxu0 %v3389
      %4031 = vmatpush1.msra.mxu0 %v3388
      %4032 = vmatprep.subr.mxu0 %v3391
      %4033 = vmatpush1.msra.mxu0 %v3390
      %4034 = vmatprep.subr.mxu0 %v3393
      %4035 = vmatpush1.msra.mxu0 %v3392
      %4036 = vmatprep.subr.mxu0 %v3395
      %4037 = vmatpush1.msra.mxu0 %v3394
      %4038 = vmatprep.subr.mxu0 %v3397
      %4039 = vmatpush1.msra.mxu0 %v3396
      %4040 = vmatprep.subr.mxu0 %v3399
      %4041 = vmatpush1.msra.mxu0 %v3398
      %4042 = vmatprep.subr.mxu0 %v3401
      %4043 = vmatpush1.msra.mxu0 %v3400
      %4044 = vmatprep.subr.mxu0 %v3403
      %4045 = vmatpush1.msra.mxu0 %v3402
      %4046 = vmatprep.subr.mxu0 %v3405
      %4047 = vmatpush1.msra.mxu0 %v3404
      %4048 = vmatprep.subr.mxu0 %v3407
      %4049 = vmatpush1.msra.mxu0 %v3406
      %4050 = vmatprep.subr.mxu0 %v3409
      %4051 = vmatpush1.msra.mxu0 %v3408
      %4052 = vmatprep.subr.mxu0 %v3411
      %4053 = vmatpush1.msra.mxu0 %v3410
      %4054 = vmatprep.subr.mxu0 %v3413
      %4055 = vmatpush1.msra.mxu0 %v3412
      %4056 = vmatprep.subr.mxu0 %v3415
      %4057 = vmatpush1.msra.mxu0 %v3414
      %4058 = vmatprep.subr.mxu0 %v3417
      %4059 = vmatpush1.msra.mxu0 %v3416
      %4060 = vmatprep.subr.mxu0 %v3419
      %4061 = vmatpush1.msra.mxu0 %v3418
      %4062 = vmatprep.subr.mxu0 %v3421
      %4063 = vmatpush1.msra.mxu0 %v3420
      %4064 = vmatprep.subr.mxu0 %v3423
      %4065 = vmatpush1.msra.mxu0 %v3422
      %4066 = vmatprep.subr.mxu0 %v3425
      %4067 = vmatpush1.msra.mxu0 %v3424
      %4068 = vmatprep.subr.mxu0 %v3427
      %4069 = vmatpush1.msra.mxu0 %v3426
      %4070 = vmatprep.subr.mxu0 %v3429
      %4071 = vmatpush1.msra.mxu0 %v3428
      %4072 = vmatprep.subr.mxu0 %v3431
      %4073 = vmatpush1.msra.mxu0 %v3430
      %4074 = vmatprep.subr.mxu0 %v3433
      %4075 = vmatpush1.msra.mxu0 %v3432
      %4076 = vmatprep.mubr.f32.mxu0 %v3856
      %4077 = vmatmul.mubr.f32.gmra.mrb[0].mxu0 %v3852
      %v4078 = vpop.f32.mrb[0].mxu0
      %v4079 = vadd.f32 0.0, %v4078
      %v4080 = vpop.f32.mrb[0].mxu0
      %v4081 = vadd.f32 0.0, %v4080
      %4082 = vdwg.mxu0
      %4083 = vmatprep.subr.mxu0 %v3517
      %4084 = vmatpush1.msra.mxu0 %v3516
      %4085 = vmatprep.subr.mxu0 %v3519
      %4086 = vmatpush1.msra.mxu0 %v3518
      %4087 = vmatprep.subr.mxu0 %v3521
      %4088 = vmatpush1.msra.mxu0 %v3520
      %4089 = vmatprep.subr.mxu0 %v3523
      %4090 = vmatpush1.msra.mxu0 %v3522
      %4091 = vmatprep.subr.mxu0 %v3525
      %4092 = vmatpush1.msra.mxu0 %v3524
      %4093 = vmatprep.subr.mxu0 %v3527
      %4094 = vmatpush1.msra.mxu0 %v3526
      %4095 = vmatprep.subr.mxu0 %v3529
      %4096 = vmatpush1.msra.mxu0 %v3528
      %4097 = vmatprep.subr.mxu0 %v3531
      %4098 = vmatpush1.msra.mxu0 %v3530
      %4099 = vmatprep.subr.mxu0 %v3533
      %4100 = vmatpush1.msra.mxu0 %v3532
      %4101 = vmatprep.subr.mxu0 %v3535
      %4102 = vmatpush1.msra.mxu0 %v3534
      %4103 = vmatprep.subr.mxu0 %v3537
      %4104 = vmatpush1.msra.mxu0 %v3536
      %4105 = vmatprep.subr.mxu0 %v3539
      %4106 = vmatpush1.msra.mxu0 %v3538
      %4107 = vmatprep.subr.mxu0 %v3541
      %4108 = vmatpush1.msra.mxu0 %v3540
      %4109 = vmatprep.subr.mxu0 %v3543
      %4110 = vmatpush1.msra.mxu0 %v3542
      %4111 = vmatprep.subr.mxu0 %v3545
      %4112 = vmatpush1.msra.mxu0 %v3544
      %4113 = vmatprep.subr.mxu0 %v3547
      %4114 = vmatpush1.msra.mxu0 %v3546
      %4115 = vmatprep.subr.mxu0 %v3549
      %4116 = vmatpush1.msra.mxu0 %v3548
      %4117 = vmatprep.subr.mxu0 %v3551
      %4118 = vmatpush1.msra.mxu0 %v3550
      %4119 = vmatprep.subr.mxu0 %v3553
      %4120 = vmatpush1.msra.mxu0 %v3552
      %4121 = vmatprep.subr.mxu0 %v3555
      %4122 = vmatpush1.msra.mxu0 %v3554
      %4123 = vmatprep.subr.mxu0 %v3557
      %4124 = vmatpush1.msra.mxu0 %v3556
      %4125 = vmatprep.subr.mxu0 %v3559
      %4126 = vmatpush1.msra.mxu0 %v3558
      %4127 = vmatprep.subr.mxu0 %v3561
      %4128 = vmatpush1.msra.mxu0 %v3560
      %4129 = vmatprep.subr.mxu0 %v3563
      %4130 = vmatpush1.msra.mxu0 %v3562
      %4131 = vmatprep.subr.mxu0 %v3565
      %4132 = vmatpush1.msra.mxu0 %v3564
      %4133 = vmatprep.subr.mxu0 %v3567
      %4134 = vmatpush1.msra.mxu0 %v3566
      %4135 = vmatprep.subr.mxu0 %v3569
      %4136 = vmatpush1.msra.mxu0 %v3568
      %4137 = vmatprep.subr.mxu0 %v3571
      %4138 = vmatpush1.msra.mxu0 %v3570
      %4139 = vmatprep.subr.mxu0 %v3573
      %4140 = vmatpush1.msra.mxu0 %v3572
      %4141 = vmatprep.subr.mxu0 %v3575
      %4142 = vmatpush1.msra.mxu0 %v3574
      %4143 = vmatprep.subr.mxu0 %v3577
      %4144 = vmatpush1.msra.mxu0 %v3576
      %4145 = vmatprep.subr.mxu0 %v3579
      %4146 = vmatpush1.msra.mxu0 %v3578
      %4147 = vmatprep.mubr.f32.mxu0 %v3938
      %4148 = vmatmul.mubr.f32.gmra.mrb[0].mxu0 %v3934
      %v4149 = vpop.f32.mrb[0].mxu0
      %v4150 = vadd.f32 0.0, %v4149
      %v4151 = vpop.f32.mrb[0].mxu0
      %v4152 = vadd.f32 0.0, %v4151
      %4153 = vdwg.mxu0
      %v4154 = vsub.f32 %v4079, %v4150
      %v4155 = vsub.f32 %v4081, %v4152
      %v4158 = vcombine.low %v4008, %v4010
      %v4160 = vunpack.c.l.s4 1966171168
      %v4161 = vunpack.c.0.s8 %v4160
      %v4162 = vlaneseq
      %v4163 = vshrl.u32 %v4162, 7
      %v4164 = vsub.s32 %v4161, %v4163
      %v4165 = vrot.slane %v4158, %v4164
      %v4167 = vunpack.c.l.s4 1966171168
      %v4168 = vunpack.c.0.s8 %v4167
      %v4169 = vlaneseq
      %v4170 = vshrl.u32 %v4169, 7
      %v4171 = vsub.s32 %v4168, %v4170
      %v4172 = vrot.slane %v4165, %v4171
      %v4174 = vlaneseq
      %vm4175 = vcmp.ge.s32.totalorder %v4174, 0
      %vm4176 = vcmp.lt.s32.totalorder %v4174, 256
      %vm4177 = vmand %vm4175, %vm4176
      %4178 = vst.msk [vmem:[#allocation2] ss:$8 sm:$0x3] %vm4177, %v4172
      %4179 = vst.msk [vmem:[#allocation2] ss:$8 sm:$0x0] %vm4177, %v4172
      %s4180 = scalar_lea.vmem [#allocation2], 16
      %4181 = vst.msk [vmem:[%s4180] ss:$8 sm:$0x3] %vm4177, %v4172
      %4182 = vst.msk [vmem:[%s4180] ss:$8 sm:$0x0] %vm4177, %v4172
      %v4185 = vcombine.low %v4154, %v4155
      %v4187 = vunpack.c.l.s4 1966171168
      %v4188 = vunpack.c.0.s8 %v4187
      %v4189 = vlaneseq
      %v4190 = vshrl.u32 %v4189, 7
      %v4191 = vsub.s32 %v4188, %v4190
      %v4192 = vrot.slane %v4185, %v4191
      %v4194 = vunpack.c.l.s4 1966171168
      %v4195 = vunpack.c.0.s8 %v4194
      %v4196 = vlaneseq
      %v4197 = vshrl.u32 %v4196, 7
      %v4198 = vsub.s32 %v4195, %v4197
      %v4199 = vrot.slane %v4192, %v4198
      %4201 = vst.msk [vmem:[%s3368] ss:$8 sm:$0x3] %vm4177, %v4199
      %4202 = vst.msk [vmem:[%s3368] ss:$8 sm:$0x0] %vm4177, %v4199
      %s4203 = scalar_lea.vmem [#allocation2], 17
      %4204 = vst.msk [vmem:[%s4203] ss:$8 sm:$0x3] %vm4177, %v4199
      %4205 = vst.msk [vmem:[%s4203] ss:$8 sm:$0x0] %vm4177, %v4199
      %v4206 = vld [vmem:[#allocation2 + $0x8] sm:$0xff]
      %v4207 = vld [vmem:[#allocation2 + $0x10] sm:$0xff]
      %v4208 = vld [vmem:[#allocation2 + $0x18] sm:$0xff]
      %v4209 = vld [vmem:[%s5] sm:$0x3]
      %v4211 = vlaneseq
      %v4212 = vshrl.u32 %v4211, 7
      %v4213 = vsub.s32 0, %v4212
      %v4214 = vrot.slane %v4209, %v4213
      %v4215 = vlaneseq
      %v4216 = vshrl.u32 %v4215, 7
      %v4217 = vsub.s32 1, %v4216
      %v4218 = vrot.slane %v4209, %v4217
      %4219 = vrot.lane.b32.xlu0 %v4214, 111
      %v4220 = vpop.permute.xlu0 %4219
      %4221 = vrot.lane.b32.xlu0 %v4218, 111
      %v4222 = vpop.permute.xlu0 %4221
      %v4223 = vsel %vm385, %v4220, %v4222
      %v4227 = vmul.f32 %v4206, %v4220
      %v4228 = vmul.f32 %v4207, %v4223
      %v4229 = vmul.f32 %v4208, %v4222
      %s4230 = scalar_lea.vmem %s3, 216
      %v4231 = vld [vmem:[%s4230] sm:$0xff]
      %v4232 = vld [vmem:[%s394] sm:$0x3]
      %v4234 = vlaneseq
      %v4235 = vshrl.u32 %v4234, 7
      %v4236 = vsub.s32 0, %v4235
      %v4237 = vrot.slane %v4232, %v4236
      %v4238 = vlaneseq
      %v4239 = vshrl.u32 %v4238, 7
      %v4240 = vsub.s32 1, %v4239
      %v4241 = vrot.slane %v4232, %v4240
      %4242 = vrot.lane.b32.xlu0 %v4237, 112
      %v4243 = vpop.permute.xlu0 %4242
      %4244 = vrot.lane.b32.xlu0 %v4241, 112
      %v4245 = vpop.permute.xlu0 %4244
      %v4246 = vsel %vm409, %v4243, %v4245
      %v4250 = vmul.f32 %v4206, %v4243
      %v4251 = vmul.f32 %v4207, %v4246
      %v4252 = vmul.f32 %v4208, %v4245
      %s4253 = scalar_lea.vmem %s3, 224
      %v4254 = vld [vmem:[%s4253] sm:$0xff]
      %4258 = vrot.lane.b32.xlu0 %v4250, 16
      %v4259 = vpop.permute.xlu0 %4258
      %4260 = vrot.lane.b32.xlu0 %v4251, 16
      %v4261 = vpop.permute.xlu0 %4260
      %4262 = vrot.lane.b32.xlu0 %v4252, 16
      %v4263 = vpop.permute.xlu0 %4262
      %v4264 = vsel %vm428, %v4259, %v4261
      %v4265 = vsel %vm428, %v4261, %v4263
      %v4269 = vsel %vm433, %v4254, 0
      %4271 = vmatprep.subr.mxu0 %v4265
      %4272 = vmatpush1.msra.mxu0 %v4264
      %4273 = vmatprep.subr.mxu0 0.0
      %4274 = vmatpush1.msra.mxu0 0.0
      %4275 = vmatprep.subr.mxu0 0.0
      %4276 = vmatpush1.msra.mxu0 0.0
      %4277 = vmatprep.subr.mxu0 0.0
      %4278 = vmatpush1.msra.mxu0 0.0
      %4279 = vmatprep.subr.mxu0 0.0
      %4280 = vmatpush1.msra.mxu0 0.0
      %4281 = vmatprep.subr.mxu0 0.0
      %4282 = vmatpush1.msra.mxu0 0.0
      %4283 = vmatprep.subr.mxu0 0.0
      %4284 = vmatpush1.msra.mxu0 0.0
      %4285 = vmatprep.subr.mxu0 0.0
      %4286 = vmatpush1.msra.mxu0 0.0
      %4287 = vmatprep.subr.mxu0 0.0
      %4288 = vmatpush1.msra.mxu0 0.0
      %4289 = vmatprep.subr.mxu0 0.0
      %4290 = vmatpush1.msra.mxu0 0.0
      %4291 = vmatprep.subr.mxu0 0.0
      %4292 = vmatpush1.msra.mxu0 0.0
      %4293 = vmatprep.subr.mxu0 0.0
      %4294 = vmatpush1.msra.mxu0 0.0
      %4295 = vmatprep.subr.mxu0 0.0
      %4296 = vmatpush1.msra.mxu0 0.0
      %4297 = vmatprep.subr.mxu0 0.0
      %4298 = vmatpush1.msra.mxu0 0.0
      %4299 = vmatprep.subr.mxu0 0.0
      %4300 = vmatpush1.msra.mxu0 0.0
      %4301 = vmatprep.subr.mxu0 0.0
      %4302 = vmatpush1.msra.mxu0 0.0
      %4303 = vmatprep.subr.mxu0 0.0
      %4304 = vmatpush1.msra.mxu0 0.0
      %4305 = vmatprep.subr.mxu0 0.0
      %4306 = vmatpush1.msra.mxu0 0.0
      %4307 = vmatprep.subr.mxu0 0.0
      %4308 = vmatpush1.msra.mxu0 0.0
      %4309 = vmatprep.subr.mxu0 0.0
      %4310 = vmatpush1.msra.mxu0 0.0
      %4311 = vmatprep.subr.mxu0 0.0
      %4312 = vmatpush1.msra.mxu0 0.0
      %4313 = vmatprep.subr.mxu0 0.0
      %4314 = vmatpush1.msra.mxu0 0.0
      %4315 = vmatprep.subr.mxu0 0.0
      %4316 = vmatpush1.msra.mxu0 0.0
      %4317 = vmatprep.subr.mxu0 0.0
      %4318 = vmatpush1.msra.mxu0 0.0
      %4319 = vmatprep.subr.mxu0 0.0
      %4320 = vmatpush1.msra.mxu0 0.0
      %4321 = vmatprep.subr.mxu0 0.0
      %4322 = vmatpush1.msra.mxu0 0.0
      %4323 = vmatprep.subr.mxu0 0.0
      %4324 = vmatpush1.msra.mxu0 0.0
      %4325 = vmatprep.subr.mxu0 0.0
      %4326 = vmatpush1.msra.mxu0 0.0
      %4327 = vmatprep.subr.mxu0 0.0
      %4328 = vmatpush1.msra.mxu0 0.0
      %4329 = vmatprep.subr.mxu0 0.0
      %4330 = vmatpush1.msra.mxu0 0.0
      %4331 = vmatprep.subr.mxu0 0.0
      %4332 = vmatpush1.msra.mxu0 0.0
      %4333 = vmatprep.subr.mxu0 0.0
      %4334 = vmatpush1.msra.mxu0 0.0
      %4335 = vmatprep.mubr.f32.mxu0 0.0
      %4336 = vmatmul.mubr.f32.gmra.mrb[0].mxu0 %v4269
      %v4337 = vpop.f32.mrb[0].mxu0
      %v4338 = vadd.f32 0.0, %v4337
      %v4339 = vpop.f32.mrb[0].mxu0
      %v4340 = vadd.f32 0.0, %v4339
      %4341 = vdwg.mxu0
      %4345 = vrot.lane.b32.xlu0 %v4227, 17
      %v4346 = vpop.permute.xlu0 %4345
      %4347 = vrot.lane.b32.xlu0 %v4228, 17
      %v4348 = vpop.permute.xlu0 %4347
      %4349 = vrot.lane.b32.xlu0 %v4229, 17
      %v4350 = vpop.permute.xlu0 %4349
      %v4351 = vsel %vm517, %v4346, %v4348
      %v4352 = vsel %vm517, %v4348, %v4350
      %v4356 = vsel %vm433, %v4231, 0
      %4358 = vmatprep.subr.mxu0 %v4352
      %4359 = vmatpush1.msra.mxu0 %v4351
      %4360 = vmatprep.subr.mxu0 0.0
      %4361 = vmatpush1.msra.mxu0 0.0
      %4362 = vmatprep.subr.mxu0 0.0
      %4363 = vmatpush1.msra.mxu0 0.0
      %4364 = vmatprep.subr.mxu0 0.0
      %4365 = vmatpush1.msra.mxu0 0.0
      %4366 = vmatprep.subr.mxu0 0.0
      %4367 = vmatpush1.msra.mxu0 0.0
      %4368 = vmatprep.subr.mxu0 0.0
      %4369 = vmatpush1.msra.mxu0 0.0
      %4370 = vmatprep.subr.mxu0 0.0
      %4371 = vmatpush1.msra.mxu0 0.0
      %4372 = vmatprep.subr.mxu0 0.0
      %4373 = vmatpush1.msra.mxu0 0.0
      %4374 = vmatprep.subr.mxu0 0.0
      %4375 = vmatpush1.msra.mxu0 0.0
      %4376 = vmatprep.subr.mxu0 0.0
      %4377 = vmatpush1.msra.mxu0 0.0
      %4378 = vmatprep.subr.mxu0 0.0
      %4379 = vmatpush1.msra.mxu0 0.0
      %4380 = vmatprep.subr.mxu0 0.0
      %4381 = vmatpush1.msra.mxu0 0.0
      %4382 = vmatprep.subr.mxu0 0.0
      %4383 = vmatpush1.msra.mxu0 0.0
      %4384 = vmatprep.subr.mxu0 0.0
      %4385 = vmatpush1.msra.mxu0 0.0
      %4386 = vmatprep.subr.mxu0 0.0
      %4387 = vmatpush1.msra.mxu0 0.0
      %4388 = vmatprep.subr.mxu0 0.0
      %4389 = vmatpush1.msra.mxu0 0.0
      %4390 = vmatprep.subr.mxu0 0.0
      %4391 = vmatpush1.msra.mxu0 0.0
      %4392 = vmatprep.subr.mxu0 0.0
      %4393 = vmatpush1.msra.mxu0 0.0
      %4394 = vmatprep.subr.mxu0 0.0
      %4395 = vmatpush1.msra.mxu0 0.0
      %4396 = vmatprep.subr.mxu0 0.0
      %4397 = vmatpush1.msra.mxu0 0.0
      %4398 = vmatprep.subr.mxu0 0.0
      %4399 = vmatpush1.msra.mxu0 0.0
      %4400 = vmatprep.subr.mxu0 0.0
      %4401 = vmatpush1.msra.mxu0 0.0
      %4402 = vmatprep.subr.mxu0 0.0
      %4403 = vmatpush1.msra.mxu0 0.0
      %4404 = vmatprep.subr.mxu0 0.0
      %4405 = vmatpush1.msra.mxu0 0.0
      %4406 = vmatprep.subr.mxu0 0.0
      %4407 = vmatpush1.msra.mxu0 0.0
      %4408 = vmatprep.subr.mxu0 0.0
      %4409 = vmatpush1.msra.mxu0 0.0
      %4410 = vmatprep.subr.mxu0 0.0
      %4411 = vmatpush1.msra.mxu0 0.0
      %4412 = vmatprep.subr.mxu0 0.0
      %4413 = vmatpush1.msra.mxu0 0.0
      %4414 = vmatprep.subr.mxu0 0.0
      %4415 = vmatpush1.msra.mxu0 0.0
      %4416 = vmatprep.subr.mxu0 0.0
      %4417 = vmatpush1.msra.mxu0 0.0
      %4418 = vmatprep.subr.mxu0 0.0
      %4419 = vmatpush1.msra.mxu0 0.0
      %4420 = vmatprep.subr.mxu0 0.0
      %4421 = vmatpush1.msra.mxu0 0.0
      %4422 = vmatprep.mubr.f32.mxu0 0.0
      %4423 = vmatmul.mubr.f32.gmra.mrb[0].mxu0 %v4356
      %v4424 = vpop.f32.mrb[0].mxu0
      %v4425 = vadd.f32 %v4338, %v4424
      %v4426 = vpop.f32.mrb[0].mxu0
      %v4427 = vadd.f32 %v4340, %v4426
      %4428 = vdwg.mxu0
      %v4429 = vld [vmem:[%s596] sm:$0x3]
      %v4431 = vlaneseq
      %v4432 = vshrl.u32 %v4431, 7
      %v4433 = vsub.s32 0, %v4432
      %v4434 = vrot.slane %v4429, %v4433
      %v4435 = vlaneseq
      %v4436 = vshrl.u32 %v4435, 7
      %v4437 = vsub.s32 1, %v4436
      %v4438 = vrot.slane %v4429, %v4437
      %4439 = vrot.lane.b32.xlu0 %v4434, 113
      %v4440 = vpop.permute.xlu0 %4439
      %4441 = vrot.lane.b32.xlu0 %v4438, 113
      %v4442 = vpop.permute.xlu0 %4441
      %v4443 = vsel %vm611, %v4440, %v4442
      %v4447 = vmul.f32 %v4206, %v4440
      %v4448 = vmul.f32 %v4207, %v4443
      %v4449 = vmul.f32 %v4208, %v4442
      %s4450 = scalar_lea.vmem %s3, 232
      %v4451 = vld [vmem:[%s4450] sm:$0xff]
      %4455 = vrot.lane.b32.xlu0 %v4447, 15
      %v4456 = vpop.permute.xlu0 %4455
      %4457 = vrot.lane.b32.xlu0 %v4448, 15
      %v4458 = vpop.permute.xlu0 %4457
      %4459 = vrot.lane.b32.xlu0 %v4449, 15
      %v4460 = vpop.permute.xlu0 %4459
      %v4461 = vsel %vm630, %v4456, %v4458
      %v4462 = vsel %vm630, %v4458, %v4460
      %v4466 = vsel %vm433, %v4451, 0
      %4468 = vmatprep.subr.mxu0 %v4462
      %4469 = vmatpush1.msra.mxu0 %v4461
      %4470 = vmatprep.subr.mxu0 0.0
      %4471 = vmatpush1.msra.mxu0 0.0
      %4472 = vmatprep.subr.mxu0 0.0
      %4473 = vmatpush1.msra.mxu0 0.0
      %4474 = vmatprep.subr.mxu0 0.0
      %4475 = vmatpush1.msra.mxu0 0.0
      %4476 = vmatprep.subr.mxu0 0.0
      %4477 = vmatpush1.msra.mxu0 0.0
      %4478 = vmatprep.subr.mxu0 0.0
      %4479 = vmatpush1.msra.mxu0 0.0
      %4480 = vmatprep.subr.mxu0 0.0
      %4481 = vmatpush1.msra.mxu0 0.0
      %4482 = vmatprep.subr.mxu0 0.0
      %4483 = vmatpush1.msra.mxu0 0.0
      %4484 = vmatprep.subr.mxu0 0.0
      %4485 = vmatpush1.msra.mxu0 0.0
      %4486 = vmatprep.subr.mxu0 0.0
      %4487 = vmatpush1.msra.mxu0 0.0
      %4488 = vmatprep.subr.mxu0 0.0
      %4489 = vmatpush1.msra.mxu0 0.0
      %4490 = vmatprep.subr.mxu0 0.0
      %4491 = vmatpush1.msra.mxu0 0.0
      %4492 = vmatprep.subr.mxu0 0.0
      %4493 = vmatpush1.msra.mxu0 0.0
      %4494 = vmatprep.subr.mxu0 0.0
      %4495 = vmatpush1.msra.mxu0 0.0
      %4496 = vmatprep.subr.mxu0 0.0
      %4497 = vmatpush1.msra.mxu0 0.0
      %4498 = vmatprep.subr.mxu0 0.0
      %4499 = vmatpush1.msra.mxu0 0.0
      %4500 = vmatprep.subr.mxu0 0.0
      %4501 = vmatpush1.msra.mxu0 0.0
      %4502 = vmatprep.subr.mxu0 0.0
      %4503 = vmatpush1.msra.mxu0 0.0
      %4504 = vmatprep.subr.mxu0 0.0
      %4505 = vmatpush1.msra.mxu0 0.0
      %4506 = vmatprep.subr.mxu0 0.0
      %4507 = vmatpush1.msra.mxu0 0.0
      %4508 = vmatprep.subr.mxu0 0.0
      %4509 = vmatpush1.msra.mxu0 0.0
      %4510 = vmatprep.subr.mxu0 0.0
      %4511 = vmatpush1.msra.mxu0 0.0
      %4512 = vmatprep.subr.mxu0 0.0
      %4513 = vmatpush1.msra.mxu0 0.0
      %4514 = vmatprep.subr.mxu0 0.0
      %4515 = vmatpush1.msra.mxu0 0.0
      %4516 = vmatprep.subr.mxu0 0.0
      %4517 = vmatpush1.msra.mxu0 0.0
      %4518 = vmatprep.subr.mxu0 0.0
      %4519 = vmatpush1.msra.mxu0 0.0
      %4520 = vmatprep.subr.mxu0 0.0
      %4521 = vmatpush1.msra.mxu0 0.0
      %4522 = vmatprep.subr.mxu0 0.0
      %4523 = vmatpush1.msra.mxu0 0.0
      %4524 = vmatprep.subr.mxu0 0.0
      %4525 = vmatpush1.msra.mxu0 0.0
      %4526 = vmatprep.subr.mxu0 0.0
      %4527 = vmatpush1.msra.mxu0 0.0
      %4528 = vmatprep.subr.mxu0 0.0
      %4529 = vmatpush1.msra.mxu0 0.0
      %4530 = vmatprep.subr.mxu0 0.0
      %4531 = vmatpush1.msra.mxu0 0.0
      %4532 = vmatprep.mubr.f32.mxu0 0.0
      %4533 = vmatmul.mubr.f32.gmra.mrb[0].mxu0 %v4466
      %v4534 = vpop.f32.mrb[0].mxu0
      %v4535 = vadd.f32 0.0, %v4534
      %v4536 = vpop.f32.mrb[0].mxu0
      %v4537 = vadd.f32 0.0, %v4536
      %4538 = vdwg.mxu0
      %v4539 = vadd.f32 %v4425, %v4535
      %v4540 = vadd.f32 %v4427, %v4537
      %v4541 = vld [vmem:[%s711] sm:$0x3]
      %v4543 = vlaneseq
      %v4544 = vshrl.u32 %v4543, 7
      %v4545 = vsub.s32 0, %v4544
      %v4546 = vrot.slane %v4541, %v4545
      %v4547 = vlaneseq
      %v4548 = vshrl.u32 %v4547, 7
      %v4549 = vsub.s32 1, %v4548
      %v4550 = vrot.slane %v4541, %v4549
      %4551 = vrot.lane.b32.xlu0 %v4546, 127
      %v4552 = vpop.permute.xlu0 %4551
      %4553 = vrot.lane.b32.xlu0 %v4550, 127
      %v4554 = vpop.permute.xlu0 %4553
      %v4555 = vsel %vm726, %v4552, %v4554
      %v4559 = vmul.f32 %v4206, %v4552
      %v4560 = vmul.f32 %v4207, %v4555
      %v4561 = vmul.f32 %v4208, %v4554
      %s4562 = scalar_lea.vmem %s3, 240
      %v4563 = vld [vmem:[%s4562] sm:$0xff]
      %4567 = vrot.lane.b32.xlu0 %v4559, 1
      %v4568 = vpop.permute.xlu0 %4567
      %4569 = vrot.lane.b32.xlu0 %v4560, 1
      %v4570 = vpop.permute.xlu0 %4569
      %4571 = vrot.lane.b32.xlu0 %v4561, 1
      %v4572 = vpop.permute.xlu0 %4571
      %v4573 = vsel %vm745, %v4568, %v4570
      %v4574 = vsel %vm745, %v4570, %v4572
      %v4578 = vsel %vm433, %v4563, 0
      %4580 = vmatprep.subr.mxu0 %v4574
      %4581 = vmatpush1.msra.mxu0 %v4573
      %4582 = vmatprep.subr.mxu0 0.0
      %4583 = vmatpush1.msra.mxu0 0.0
      %4584 = vmatprep.subr.mxu0 0.0
      %4585 = vmatpush1.msra.mxu0 0.0
      %4586 = vmatprep.subr.mxu0 0.0
      %4587 = vmatpush1.msra.mxu0 0.0
      %4588 = vmatprep.subr.mxu0 0.0
      %4589 = vmatpush1.msra.mxu0 0.0
      %4590 = vmatprep.subr.mxu0 0.0
      %4591 = vmatpush1.msra.mxu0 0.0
      %4592 = vmatprep.subr.mxu0 0.0
      %4593 = vmatpush1.msra.mxu0 0.0
      %4594 = vmatprep.subr.mxu0 0.0
      %4595 = vmatpush1.msra.mxu0 0.0
      %4596 = vmatprep.subr.mxu0 0.0
      %4597 = vmatpush1.msra.mxu0 0.0
      %4598 = vmatprep.subr.mxu0 0.0
      %4599 = vmatpush1.msra.mxu0 0.0
      %4600 = vmatprep.subr.mxu0 0.0
      %4601 = vmatpush1.msra.mxu0 0.0
      %4602 = vmatprep.subr.mxu0 0.0
      %4603 = vmatpush1.msra.mxu0 0.0
      %4604 = vmatprep.subr.mxu0 0.0
      %4605 = vmatpush1.msra.mxu0 0.0
      %4606 = vmatprep.subr.mxu0 0.0
      %4607 = vmatpush1.msra.mxu0 0.0
      %4608 = vmatprep.subr.mxu0 0.0
      %4609 = vmatpush1.msra.mxu0 0.0
      %4610 = vmatprep.subr.mxu0 0.0
      %4611 = vmatpush1.msra.mxu0 0.0
      %4612 = vmatprep.subr.mxu0 0.0
      %4613 = vmatpush1.msra.mxu0 0.0
      %4614 = vmatprep.subr.mxu0 0.0
      %4615 = vmatpush1.msra.mxu0 0.0
      %4616 = vmatprep.subr.mxu0 0.0
      %4617 = vmatpush1.msra.mxu0 0.0
      %4618 = vmatprep.subr.mxu0 0.0
      %4619 = vmatpush1.msra.mxu0 0.0
      %4620 = vmatprep.subr.mxu0 0.0
      %4621 = vmatpush1.msra.mxu0 0.0
      %4622 = vmatprep.subr.mxu0 0.0
      %4623 = vmatpush1.msra.mxu0 0.0
      %4624 = vmatprep.subr.mxu0 0.0
      %4625 = vmatpush1.msra.mxu0 0.0
      %4626 = vmatprep.subr.mxu0 0.0
      %4627 = vmatpush1.msra.mxu0 0.0
      %4628 = vmatprep.subr.mxu0 0.0
      %4629 = vmatpush1.msra.mxu0 0.0
      %4630 = vmatprep.subr.mxu0 0.0
      %4631 = vmatpush1.msra.mxu0 0.0
      %4632 = vmatprep.subr.mxu0 0.0
      %4633 = vmatpush1.msra.mxu0 0.0
      %4634 = vmatprep.subr.mxu0 0.0
      %4635 = vmatpush1.msra.mxu0 0.0
      %4636 = vmatprep.subr.mxu0 0.0
      %4637 = vmatpush1.msra.mxu0 0.0
      %4638 = vmatprep.subr.mxu0 0.0
      %4639 = vmatpush1.msra.mxu0 0.0
      %4640 = vmatprep.subr.mxu0 0.0
      %4641 = vmatpush1.msra.mxu0 0.0
      %4642 = vmatprep.subr.mxu0 0.0
      %4643 = vmatpush1.msra.mxu0 0.0
      %4644 = vmatprep.mubr.f32.mxu0 0.0
      %4645 = vmatmul.mubr.f32.gmra.mrb[0].mxu0 %v4578
      %v4646 = vpop.f32.mrb[0].mxu0
      %v4647 = vadd.f32 0.0, %v4646
      %v4648 = vpop.f32.mrb[0].mxu0
      %v4649 = vadd.f32 0.0, %v4648
      %4650 = vdwg.mxu0
      %v4651 = vadd.f32 %v4539, %v4647
      %v4652 = vadd.f32 %v4540, %v4649
      %v4653 = vld [vmem:[#allocation2] sm:$0xff]
      %v4654 = vld [vmem:[#allocation2 + $0x8] sm:$0xff]
      %s4655 = scalar_lea.vmem %s3, 248
      %v4656 = vld [vmem:[%s4655] sm:$0xff]
      %v4658 = vsel %vm433, %v4656, 0
      %4660 = vmatprep.subr.mxu0 %v4654
      %4661 = vmatpush1.msra.mxu0 %v4653
      %4662 = vmatprep.subr.mxu0 0.0
      %4663 = vmatpush1.msra.mxu0 0.0
      %4664 = vmatprep.subr.mxu0 0.0
      %4665 = vmatpush1.msra.mxu0 0.0
      %4666 = vmatprep.subr.mxu0 0.0
      %4667 = vmatpush1.msra.mxu0 0.0
      %4668 = vmatprep.subr.mxu0 0.0
      %4669 = vmatpush1.msra.mxu0 0.0
      %4670 = vmatprep.subr.mxu0 0.0
      %4671 = vmatpush1.msra.mxu0 0.0
      %4672 = vmatprep.subr.mxu0 0.0
      %4673 = vmatpush1.msra.mxu0 0.0
      %4674 = vmatprep.subr.mxu0 0.0
      %4675 = vmatpush1.msra.mxu0 0.0
      %4676 = vmatprep.subr.mxu0 0.0
      %4677 = vmatpush1.msra.mxu0 0.0
      %4678 = vmatprep.subr.mxu0 0.0
      %4679 = vmatpush1.msra.mxu0 0.0
      %4680 = vmatprep.subr.mxu0 0.0
      %4681 = vmatpush1.msra.mxu0 0.0
      %4682 = vmatprep.subr.mxu0 0.0
      %4683 = vmatpush1.msra.mxu0 0.0
      %4684 = vmatprep.subr.mxu0 0.0
      %4685 = vmatpush1.msra.mxu0 0.0
      %4686 = vmatprep.subr.mxu0 0.0
      %4687 = vmatpush1.msra.mxu0 0.0
      %4688 = vmatprep.subr.mxu0 0.0
      %4689 = vmatpush1.msra.mxu0 0.0
      %4690 = vmatprep.subr.mxu0 0.0
      %4691 = vmatpush1.msra.mxu0 0.0
      %4692 = vmatprep.subr.mxu0 0.0
      %4693 = vmatpush1.msra.mxu0 0.0
      %4694 = vmatprep.subr.mxu0 0.0
      %4695 = vmatpush1.msra.mxu0 0.0
      %4696 = vmatprep.subr.mxu0 0.0
      %4697 = vmatpush1.msra.mxu0 0.0
      %4698 = vmatprep.subr.mxu0 0.0
      %4699 = vmatpush1.msra.mxu0 0.0
      %4700 = vmatprep.subr.mxu0 0.0
      %4701 = vmatpush1.msra.mxu0 0.0
      %4702 = vmatprep.subr.mxu0 0.0
      %4703 = vmatpush1.msra.mxu0 0.0
      %4704 = vmatprep.subr.mxu0 0.0
      %4705 = vmatpush1.msra.mxu0 0.0
      %4706 = vmatprep.subr.mxu0 0.0
      %4707 = vmatpush1.msra.mxu0 0.0
      %4708 = vmatprep.subr.mxu0 0.0
      %4709 = vmatpush1.msra.mxu0 0.0
      %4710 = vmatprep.subr.mxu0 0.0
      %4711 = vmatpush1.msra.mxu0 0.0
      %4712 = vmatprep.subr.mxu0 0.0
      %4713 = vmatpush1.msra.mxu0 0.0
      %4714 = vmatprep.subr.mxu0 0.0
      %4715 = vmatpush1.msra.mxu0 0.0
      %4716 = vmatprep.subr.mxu0 0.0
      %4717 = vmatpush1.msra.mxu0 0.0
      %4718 = vmatprep.subr.mxu0 0.0
      %4719 = vmatpush1.msra.mxu0 0.0
      %4720 = vmatprep.subr.mxu0 0.0
      %4721 = vmatpush1.msra.mxu0 0.0
      %4722 = vmatprep.subr.mxu0 0.0
      %4723 = vmatpush1.msra.mxu0 0.0
      %4724 = vmatprep.mubr.f32.mxu0 0.0
      %4725 = vmatmul.mubr.f32.gmra.mrb[0].mxu0 %v4658
      %v4726 = vpop.f32.mrb[0].mxu0
      %v4727 = vadd.f32 0.0, %v4726
      %v4728 = vpop.f32.mrb[0].mxu0
      %v4729 = vadd.f32 0.0, %v4728
      %4730 = vdwg.mxu0
      %v4731 = vadd.f32 %v4651, %v4727
      %v4732 = vadd.f32 %v4652, %v4729
      %v4733 = vld [vmem:[#allocation2] sm:$0xff]
      %v4734 = vld [vmem:[#allocation2 + $0x8] sm:$0xff]
      %v4735 = vld [vmem:[#allocation2 + $0x10] sm:$0xff]
      %v4736 = vld [vmem:[%s909] sm:$0x3]
      %v4738 = vlaneseq
      %v4739 = vshrl.u32 %v4738, 7
      %v4740 = vsub.s32 0, %v4739
      %v4741 = vrot.slane %v4736, %v4740
      %v4742 = vlaneseq
      %v4743 = vshrl.u32 %v4742, 7
      %v4744 = vsub.s32 1, %v4743
      %v4745 = vrot.slane %v4736, %v4744
      %4746 = vrot.lane.b32.xlu0 %v4741, 1
      %v4747 = vpop.permute.xlu0 %4746
      %4748 = vrot.lane.b32.xlu0 %v4745, 1
      %v4749 = vpop.permute.xlu0 %4748
      %v4750 = vsel %vm745, %v4747, %v4749
      %v4754 = vmul.f32 %v4733, %v4747
      %v4755 = vmul.f32 %v4734, %v4750
      %v4756 = vmul.f32 %v4735, %v4749
      %s4757 = scalar_lea.vmem %s3, 256
      %v4758 = vld [vmem:[%s4757] sm:$0xff]
      %4762 = vrot.lane.b32.xlu0 %v4754, 127
      %v4763 = vpop.permute.xlu0 %4762
      %4764 = vrot.lane.b32.xlu0 %v4755, 127
      %v4765 = vpop.permute.xlu0 %4764
      %4766 = vrot.lane.b32.xlu0 %v4756, 127
      %v4767 = vpop.permute.xlu0 %4766
      %v4768 = vsel %vm726, %v4763, %v4765
      %v4769 = vsel %vm726, %v4765, %v4767
      %v4773 = vsel %vm433, %v4758, 0
      %4775 = vmatprep.subr.mxu0 %v4769
      %4776 = vmatpush1.msra.mxu0 %v4768
      %4777 = vmatprep.subr.mxu0 0.0
      %4778 = vmatpush1.msra.mxu0 0.0
      %4779 = vmatprep.subr.mxu0 0.0
      %4780 = vmatpush1.msra.mxu0 0.0
      %4781 = vmatprep.subr.mxu0 0.0
      %4782 = vmatpush1.msra.mxu0 0.0
      %4783 = vmatprep.subr.mxu0 0.0
      %4784 = vmatpush1.msra.mxu0 0.0
      %4785 = vmatprep.subr.mxu0 0.0
      %4786 = vmatpush1.msra.mxu0 0.0
      %4787 = vmatprep.subr.mxu0 0.0
      %4788 = vmatpush1.msra.mxu0 0.0
      %4789 = vmatprep.subr.mxu0 0.0
      %4790 = vmatpush1.msra.mxu0 0.0
      %4791 = vmatprep.subr.mxu0 0.0
      %4792 = vmatpush1.msra.mxu0 0.0
      %4793 = vmatprep.subr.mxu0 0.0
      %4794 = vmatpush1.msra.mxu0 0.0
      %4795 = vmatprep.subr.mxu0 0.0
      %4796 = vmatpush1.msra.mxu0 0.0
      %4797 = vmatprep.subr.mxu0 0.0
      %4798 = vmatpush1.msra.mxu0 0.0
      %4799 = vmatprep.subr.mxu0 0.0
      %4800 = vmatpush1.msra.mxu0 0.0
      %4801 = vmatprep.subr.mxu0 0.0
      %4802 = vmatpush1.msra.mxu0 0.0
      %4803 = vmatprep.subr.mxu0 0.0
      %4804 = vmatpush1.msra.mxu0 0.0
      %4805 = vmatprep.subr.mxu0 0.0
      %4806 = vmatpush1.msra.mxu0 0.0
      %4807 = vmatprep.subr.mxu0 0.0
      %4808 = vmatpush1.msra.mxu0 0.0
      %4809 = vmatprep.subr.mxu0 0.0
      %4810 = vmatpush1.msra.mxu0 0.0
      %4811 = vmatprep.subr.mxu0 0.0
      %4812 = vmatpush1.msra.mxu0 0.0
      %4813 = vmatprep.subr.mxu0 0.0
      %4814 = vmatpush1.msra.mxu0 0.0
      %4815 = vmatprep.subr.mxu0 0.0
      %4816 = vmatpush1.msra.mxu0 0.0
      %4817 = vmatprep.subr.mxu0 0.0
      %4818 = vmatpush1.msra.mxu0 0.0
      %4819 = vmatprep.subr.mxu0 0.0
      %4820 = vmatpush1.msra.mxu0 0.0
      %4821 = vmatprep.subr.mxu0 0.0
      %4822 = vmatpush1.msra.mxu0 0.0
      %4823 = vmatprep.subr.mxu0 0.0
      %4824 = vmatpush1.msra.mxu0 0.0
      %4825 = vmatprep.subr.mxu0 0.0
      %4826 = vmatpush1.msra.mxu0 0.0
      %4827 = vmatprep.subr.mxu0 0.0
      %4828 = vmatpush1.msra.mxu0 0.0
      %4829 = vmatprep.subr.mxu0 0.0
      %4830 = vmatpush1.msra.mxu0 0.0
      %4831 = vmatprep.subr.mxu0 0.0
      %4832 = vmatpush1.msra.mxu0 0.0
      %4833 = vmatprep.subr.mxu0 0.0
      %4834 = vmatpush1.msra.mxu0 0.0
      %4835 = vmatprep.subr.mxu0 0.0
      %4836 = vmatpush1.msra.mxu0 0.0
      %4837 = vmatprep.subr.mxu0 0.0
      %4838 = vmatpush1.msra.mxu0 0.0
      %4839 = vmatprep.mubr.f32.mxu0 0.0
      %4840 = vmatmul.mubr.f32.gmra.mrb[0].mxu0 %v4773
      %v4841 = vpop.f32.mrb[0].mxu0
      %v4842 = vadd.f32 0.0, %v4841
      %v4843 = vpop.f32.mrb[0].mxu0
      %v4844 = vadd.f32 0.0, %v4843
      %4845 = vdwg.mxu0
      %v4846 = vadd.f32 %v4731, %v4842
      %v4847 = vadd.f32 %v4732, %v4844
      %v4848 = vld [vmem:[%s1022] sm:$0x3]
      %v4850 = vlaneseq
      %v4851 = vshrl.u32 %v4850, 7
      %v4852 = vsub.s32 0, %v4851
      %v4853 = vrot.slane %v4848, %v4852
      %v4854 = vlaneseq
      %v4855 = vshrl.u32 %v4854, 7
      %v4856 = vsub.s32 1, %v4855
      %v4857 = vrot.slane %v4848, %v4856
      %4858 = vrot.lane.b32.xlu0 %v4853, 15
      %v4859 = vpop.permute.xlu0 %4858
      %4860 = vrot.lane.b32.xlu0 %v4857, 15
      %v4861 = vpop.permute.xlu0 %4860
      %v4862 = vsel %vm630, %v4859, %v4861
      %v4866 = vmul.f32 %v4733, %v4859
      %v4867 = vmul.f32 %v4734, %v4862
      %v4868 = vmul.f32 %v4735, %v4861
      %s4869 = scalar_lea.vmem %s3, 264
      %v4870 = vld [vmem:[%s4869] sm:$0xff]
      %4874 = vrot.lane.b32.xlu0 %v4866, 113
      %v4875 = vpop.permute.xlu0 %4874
      %4876 = vrot.lane.b32.xlu0 %v4867, 113
      %v4877 = vpop.permute.xlu0 %4876
      %4878 = vrot.lane.b32.xlu0 %v4868, 113
      %v4879 = vpop.permute.xlu0 %4878
      %v4880 = vsel %vm611, %v4875, %v4877
      %v4881 = vsel %vm611, %v4877, %v4879
      %v4885 = vsel %vm433, %v4870, 0
      %4887 = vmatprep.subr.mxu0 %v4881
      %4888 = vmatpush1.msra.mxu0 %v4880
      %4889 = vmatprep.subr.mxu0 0.0
      %4890 = vmatpush1.msra.mxu0 0.0
      %4891 = vmatprep.subr.mxu0 0.0
      %4892 = vmatpush1.msra.mxu0 0.0
      %4893 = vmatprep.subr.mxu0 0.0
      %4894 = vmatpush1.msra.mxu0 0.0
      %4895 = vmatprep.subr.mxu0 0.0
      %4896 = vmatpush1.msra.mxu0 0.0
      %4897 = vmatprep.subr.mxu0 0.0
      %4898 = vmatpush1.msra.mxu0 0.0
      %4899 = vmatprep.subr.mxu0 0.0
      %4900 = vmatpush1.msra.mxu0 0.0
      %4901 = vmatprep.subr.mxu0 0.0
      %4902 = vmatpush1.msra.mxu0 0.0
      %4903 = vmatprep.subr.mxu0 0.0
      %4904 = vmatpush1.msra.mxu0 0.0
      %4905 = vmatprep.subr.mxu0 0.0
      %4906 = vmatpush1.msra.mxu0 0.0
      %4907 = vmatprep.subr.mxu0 0.0
      %4908 = vmatpush1.msra.mxu0 0.0
      %4909 = vmatprep.subr.mxu0 0.0
      %4910 = vmatpush1.msra.mxu0 0.0
      %4911 = vmatprep.subr.mxu0 0.0
      %4912 = vmatpush1.msra.mxu0 0.0
      %4913 = vmatprep.subr.mxu0 0.0
      %4914 = vmatpush1.msra.mxu0 0.0
      %4915 = vmatprep.subr.mxu0 0.0
      %4916 = vmatpush1.msra.mxu0 0.0
      %4917 = vmatprep.subr.mxu0 0.0
      %4918 = vmatpush1.msra.mxu0 0.0
      %4919 = vmatprep.subr.mxu0 0.0
      %4920 = vmatpush1.msra.mxu0 0.0
      %4921 = vmatprep.subr.mxu0 0.0
      %4922 = vmatpush1.msra.mxu0 0.0
      %4923 = vmatprep.subr.mxu0 0.0
      %4924 = vmatpush1.msra.mxu0 0.0
      %4925 = vmatprep.subr.mxu0 0.0
      %4926 = vmatpush1.msra.mxu0 0.0
      %4927 = vmatprep.subr.mxu0 0.0
      %4928 = vmatpush1.msra.mxu0 0.0
      %4929 = vmatprep.subr.mxu0 0.0
      %4930 = vmatpush1.msra.mxu0 0.0
      %4931 = vmatprep.subr.mxu0 0.0
      %4932 = vmatpush1.msra.mxu0 0.0
      %4933 = vmatprep.subr.mxu0 0.0
      %4934 = vmatpush1.msra.mxu0 0.0
      %4935 = vmatprep.subr.mxu0 0.0
      %4936 = vmatpush1.msra.mxu0 0.0
      %4937 = vmatprep.subr.mxu0 0.0
      %4938 = vmatpush1.msra.mxu0 0.0
      %4939 = vmatprep.subr.mxu0 0.0
      %4940 = vmatpush1.msra.mxu0 0.0
      %4941 = vmatprep.subr.mxu0 0.0
      %4942 = vmatpush1.msra.mxu0 0.0
      %4943 = vmatprep.subr.mxu0 0.0
      %4944 = vmatpush1.msra.mxu0 0.0
      %4945 = vmatprep.subr.mxu0 0.0
      %4946 = vmatpush1.msra.mxu0 0.0
      %4947 = vmatprep.subr.mxu0 0.0
      %4948 = vmatpush1.msra.mxu0 0.0
      %4949 = vmatprep.subr.mxu0 0.0
      %4950 = vmatpush1.msra.mxu0 0.0
      %4951 = vmatprep.mubr.f32.mxu0 0.0
      %4952 = vmatmul.mubr.f32.gmra.mrb[0].mxu0 %v4885
      %v4953 = vpop.f32.mrb[0].mxu0
      %v4954 = vadd.f32 0.0, %v4953
      %v4955 = vpop.f32.mrb[0].mxu0
      %v4956 = vadd.f32 0.0, %v4955
      %4957 = vdwg.mxu0
      %v4958 = vadd.f32 %v4846, %v4954
      %v4959 = vadd.f32 %v4847, %v4956
      %v4960 = vld [vmem:[%s1135] sm:$0x3]
      %v4962 = vlaneseq
      %v4963 = vshrl.u32 %v4962, 7
      %v4964 = vsub.s32 0, %v4963
      %v4965 = vrot.slane %v4960, %v4964
      %v4966 = vlaneseq
      %v4967 = vshrl.u32 %v4966, 7
      %v4968 = vsub.s32 1, %v4967
      %v4969 = vrot.slane %v4960, %v4968
      %4970 = vrot.lane.b32.xlu0 %v4965, 16
      %v4971 = vpop.permute.xlu0 %4970
      %4972 = vrot.lane.b32.xlu0 %v4969, 16
      %v4973 = vpop.permute.xlu0 %4972
      %v4974 = vsel %vm428, %v4971, %v4973
      %v4978 = vmul.f32 %v4733, %v4971
      %v4979 = vmul.f32 %v4734, %v4974
      %v4980 = vmul.f32 %v4735, %v4973
      %s4981 = scalar_lea.vmem %s3, 272
      %v4982 = vld [vmem:[%s4981] sm:$0xff]
      %4986 = vrot.lane.b32.xlu0 %v4978, 112
      %v4987 = vpop.permute.xlu0 %4986
      %4988 = vrot.lane.b32.xlu0 %v4979, 112
      %v4989 = vpop.permute.xlu0 %4988
      %4990 = vrot.lane.b32.xlu0 %v4980, 112
      %v4991 = vpop.permute.xlu0 %4990
      %v4992 = vsel %vm409, %v4987, %v4989
      %v4993 = vsel %vm409, %v4989, %v4991
      %v4997 = vsel %vm433, %v4982, 0
      %4999 = vmatprep.subr.mxu0 %v4993
      %5000 = vmatpush1.msra.mxu0 %v4992
      %5001 = vmatprep.subr.mxu0 0.0
      %5002 = vmatpush1.msra.mxu0 0.0
      %5003 = vmatprep.subr.mxu0 0.0
      %5004 = vmatpush1.msra.mxu0 0.0
      %5005 = vmatprep.subr.mxu0 0.0
      %5006 = vmatpush1.msra.mxu0 0.0
      %5007 = vmatprep.subr.mxu0 0.0
      %5008 = vmatpush1.msra.mxu0 0.0
      %5009 = vmatprep.subr.mxu0 0.0
      %5010 = vmatpush1.msra.mxu0 0.0
      %5011 = vmatprep.subr.mxu0 0.0
      %5012 = vmatpush1.msra.mxu0 0.0
      %5013 = vmatprep.subr.mxu0 0.0
      %5014 = vmatpush1.msra.mxu0 0.0
      %5015 = vmatprep.subr.mxu0 0.0
      %5016 = vmatpush1.msra.mxu0 0.0
      %5017 = vmatprep.subr.mxu0 0.0
      %5018 = vmatpush1.msra.mxu0 0.0
      %5019 = vmatprep.subr.mxu0 0.0
      %5020 = vmatpush1.msra.mxu0 0.0
      %5021 = vmatprep.subr.mxu0 0.0
      %5022 = vmatpush1.msra.mxu0 0.0
      %5023 = vmatprep.subr.mxu0 0.0
      %5024 = vmatpush1.msra.mxu0 0.0
      %5025 = vmatprep.subr.mxu0 0.0
      %5026 = vmatpush1.msra.mxu0 0.0
      %5027 = vmatprep.subr.mxu0 0.0
      %5028 = vmatpush1.msra.mxu0 0.0
      %5029 = vmatprep.subr.mxu0 0.0
      %5030 = vmatpush1.msra.mxu0 0.0
      %5031 = vmatprep.subr.mxu0 0.0
      %5032 = vmatpush1.msra.mxu0 0.0
      %5033 = vmatprep.subr.mxu0 0.0
      %5034 = vmatpush1.msra.mxu0 0.0
      %5035 = vmatprep.subr.mxu0 0.0
      %5036 = vmatpush1.msra.mxu0 0.0
      %5037 = vmatprep.subr.mxu0 0.0
      %5038 = vmatpush1.msra.mxu0 0.0
      %5039 = vmatprep.subr.mxu0 0.0
      %5040 = vmatpush1.msra.mxu0 0.0
      %5041 = vmatprep.subr.mxu0 0.0
      %5042 = vmatpush1.msra.mxu0 0.0
      %5043 = vmatprep.subr.mxu0 0.0
      %5044 = vmatpush1.msra.mxu0 0.0
      %5045 = vmatprep.subr.mxu0 0.0
      %5046 = vmatpush1.msra.mxu0 0.0
      %5047 = vmatprep.subr.mxu0 0.0
      %5048 = vmatpush1.msra.mxu0 0.0
      %5049 = vmatprep.subr.mxu0 0.0
      %5050 = vmatpush1.msra.mxu0 0.0
      %5051 = vmatprep.subr.mxu0 0.0
      %5052 = vmatpush1.msra.mxu0 0.0
      %5053 = vmatprep.subr.mxu0 0.0
      %5054 = vmatpush1.msra.mxu0 0.0
      %5055 = vmatprep.subr.mxu0 0.0
      %5056 = vmatpush1.msra.mxu0 0.0
      %5057 = vmatprep.subr.mxu0 0.0
      %5058 = vmatpush1.msra.mxu0 0.0
      %5059 = vmatprep.subr.mxu0 0.0
      %5060 = vmatpush1.msra.mxu0 0.0
      %5061 = vmatprep.subr.mxu0 0.0
      %5062 = vmatpush1.msra.mxu0 0.0
      %5063 = vmatprep.mubr.f32.mxu0 0.0
      %5064 = vmatmul.mubr.f32.gmra.mrb[0].mxu0 %v4997
      %v5065 = vpop.f32.mrb[0].mxu0
      %v5066 = vadd.f32 0.0, %v5065
      %v5067 = vpop.f32.mrb[0].mxu0
      %v5068 = vadd.f32 0.0, %v5067
      %5069 = vdwg.mxu0
      %v5070 = vadd.f32 %v4958, %v5066
      %v5071 = vadd.f32 %v4959, %v5068
      %v5072 = vld [vmem:[%s1248] sm:$0x3]
      %v5074 = vlaneseq
      %v5075 = vshrl.u32 %v5074, 7
      %v5076 = vsub.s32 0, %v5075
      %v5077 = vrot.slane %v5072, %v5076
      %v5078 = vlaneseq
      %v5079 = vshrl.u32 %v5078, 7
      %v5080 = vsub.s32 1, %v5079
      %v5081 = vrot.slane %v5072, %v5080
      %5082 = vrot.lane.b32.xlu0 %v5077, 17
      %v5083 = vpop.permute.xlu0 %5082
      %5084 = vrot.lane.b32.xlu0 %v5081, 17
      %v5085 = vpop.permute.xlu0 %5084
      %v5086 = vsel %vm517, %v5083, %v5085
      %v5090 = vmul.f32 %v4733, %v5083
      %v5091 = vmul.f32 %v4734, %v5086
      %v5092 = vmul.f32 %v4735, %v5085
      %s5093 = scalar_lea.vmem %s3, 280
      %v5094 = vld [vmem:[%s5093] sm:$0xff]
      %5098 = vrot.lane.b32.xlu0 %v5090, 111
      %v5099 = vpop.permute.xlu0 %5098
      %5100 = vrot.lane.b32.xlu0 %v5091, 111
      %v5101 = vpop.permute.xlu0 %5100
      %5102 = vrot.lane.b32.xlu0 %v5092, 111
      %v5103 = vpop.permute.xlu0 %5102
      %v5104 = vsel %vm385, %v5099, %v5101
      %v5105 = vsel %vm385, %v5101, %v5103
      %v5109 = vsel %vm433, %v5094, 0
      %5111 = vmatprep.subr.mxu0 %v5105
      %5112 = vmatpush1.msra.mxu0 %v5104
      %5113 = vmatprep.subr.mxu0 0.0
      %5114 = vmatpush1.msra.mxu0 0.0
      %5115 = vmatprep.subr.mxu0 0.0
      %5116 = vmatpush1.msra.mxu0 0.0
      %5117 = vmatprep.subr.mxu0 0.0
      %5118 = vmatpush1.msra.mxu0 0.0
      %5119 = vmatprep.subr.mxu0 0.0
      %5120 = vmatpush1.msra.mxu0 0.0
      %5121 = vmatprep.subr.mxu0 0.0
      %5122 = vmatpush1.msra.mxu0 0.0
      %5123 = vmatprep.subr.mxu0 0.0
      %5124 = vmatpush1.msra.mxu0 0.0
      %5125 = vmatprep.subr.mxu0 0.0
      %5126 = vmatpush1.msra.mxu0 0.0
      %5127 = vmatprep.subr.mxu0 0.0
      %5128 = vmatpush1.msra.mxu0 0.0
      %5129 = vmatprep.subr.mxu0 0.0
      %5130 = vmatpush1.msra.mxu0 0.0
      %5131 = vmatprep.subr.mxu0 0.0
      %5132 = vmatpush1.msra.mxu0 0.0
      %5133 = vmatprep.subr.mxu0 0.0
      %5134 = vmatpush1.msra.mxu0 0.0
      %5135 = vmatprep.subr.mxu0 0.0
      %5136 = vmatpush1.msra.mxu0 0.0
      %5137 = vmatprep.subr.mxu0 0.0
      %5138 = vmatpush1.msra.mxu0 0.0
      %5139 = vmatprep.subr.mxu0 0.0
      %5140 = vmatpush1.msra.mxu0 0.0
      %5141 = vmatprep.subr.mxu0 0.0
      %5142 = vmatpush1.msra.mxu0 0.0
      %5143 = vmatprep.subr.mxu0 0.0
      %5144 = vmatpush1.msra.mxu0 0.0
      %5145 = vmatprep.subr.mxu0 0.0
      %5146 = vmatpush1.msra.mxu0 0.0
      %5147 = vmatprep.subr.mxu0 0.0
      %5148 = vmatpush1.msra.mxu0 0.0
      %5149 = vmatprep.subr.mxu0 0.0
      %5150 = vmatpush1.msra.mxu0 0.0
      %5151 = vmatprep.subr.mxu0 0.0
      %5152 = vmatpush1.msra.mxu0 0.0
      %5153 = vmatprep.subr.mxu0 0.0
      %5154 = vmatpush1.msra.mxu0 0.0
      %5155 = vmatprep.subr.mxu0 0.0
      %5156 = vmatpush1.msra.mxu0 0.0
      %5157 = vmatprep.subr.mxu0 0.0
      %5158 = vmatpush1.msra.mxu0 0.0
      %5159 = vmatprep.subr.mxu0 0.0
      %5160 = vmatpush1.msra.mxu0 0.0
      %5161 = vmatprep.subr.mxu0 0.0
      %5162 = vmatpush1.msra.mxu0 0.0
      %5163 = vmatprep.subr.mxu0 0.0
      %5164 = vmatpush1.msra.mxu0 0.0
      %5165 = vmatprep.subr.mxu0 0.0
      %5166 = vmatpush1.msra.mxu0 0.0
      %5167 = vmatprep.subr.mxu0 0.0
      %5168 = vmatpush1.msra.mxu0 0.0
      %5169 = vmatprep.subr.mxu0 0.0
      %5170 = vmatpush1.msra.mxu0 0.0
      %5171 = vmatprep.subr.mxu0 0.0
      %5172 = vmatpush1.msra.mxu0 0.0
      %5173 = vmatprep.subr.mxu0 0.0
      %5174 = vmatpush1.msra.mxu0 0.0
      %5175 = vmatprep.mubr.f32.mxu0 0.0
      %5176 = vmatmul.mubr.f32.gmra.mrb[0].mxu0 %v5109
      %v5177 = vpop.f32.mrb[0].mxu0
      %v5178 = vadd.f32 0.0, %v5177
      %v5179 = vpop.f32.mrb[0].mxu0
      %v5180 = vadd.f32 0.0, %v5179
      %5181 = vdwg.mxu0
      %v5182 = vadd.f32 %v5070, %v5178
      %v5183 = vadd.f32 %v5071, %v5180
      %s5184 = scalar_lea.vmem %s4, 24
      %v5185 = vld [vmem:[%s5184] sm:$0xff]
      %5187 = vset.pattern.permute.xlu0 0
      %5188 = vperm.xlu0 %5187, %v5185
      %v5189 = vpop.permute.xlu0 %5188
      %v5191 = vadd.f32 %v5182, %v5189
      %v5192 = vadd.f32 %v5183, %v5189
      %vm5193 = vcmp.ge.f32.partialorder %v5191, 0.0
      %vm5194 = vcmp.ge.f32.partialorder %v5192, 0.0
      %v5195 = vmul.f32 %v5191, 0.01
      %v5196 = vmul.f32 %v5192, 0.01
      %v5197 = vsel %vm5193, %v5191, %v5195
      %v5198 = vsel %vm5194, %v5192, %v5196
      %5199 = vst [vmem:[#allocation2] sm:$0xff] %v5197
      %5200 = vst [vmem:[#allocation2 + $0x8] sm:$0xff] %v5198
      %5201 = vst [vmem:[#allocation2 + $0x10] sm:$0xff] %v5197
      %5202 = vst [vmem:[#allocation2 + $0x18] sm:$0xff] %v5198
      %v5203 = vld [vmem:[#allocation2 + $0x8] sm:$0xff]
      %v5204 = vld [vmem:[#allocation2 + $0x10] sm:$0xff]
      %v5205 = vld [vmem:[#allocation2 + $0x18] sm:$0xff]
      %v5206 = vld [vmem:[%s5] sm:$0x3]
      %v5208 = vlaneseq
      %v5209 = vshrl.u32 %v5208, 7
      %v5210 = vsub.s32 0, %v5209
      %v5211 = vrot.slane %v5206, %v5210
      %v5212 = vlaneseq
      %v5213 = vshrl.u32 %v5212, 7
      %v5214 = vsub.s32 1, %v5213
      %v5215 = vrot.slane %v5206, %v5214
      %5216 = vrot.lane.b32.xlu0 %v5211, 111
      %v5217 = vpop.permute.xlu0 %5216
      %5218 = vrot.lane.b32.xlu0 %v5215, 111
      %v5219 = vpop.permute.xlu0 %5218
      %v5220 = vsel %vm385, %v5217, %v5219
      %v5224 = vmul.f32 %v5203, %v5217
      %v5225 = vmul.f32 %v5204, %v5220
      %v5226 = vmul.f32 %v5205, %v5219
      %s5227 = scalar_lea.vmem %s3, 288
      %v5228 = vld [vmem:[%s5227] sm:$0xff]
      %v5229 = vld [vmem:[%s394] sm:$0x3]
      %v5231 = vlaneseq
      %v5232 = vshrl.u32 %v5231, 7
      %v5233 = vsub.s32 0, %v5232
      %v5234 = vrot.slane %v5229, %v5233
      %v5235 = vlaneseq
      %v5236 = vshrl.u32 %v5235, 7
      %v5237 = vsub.s32 1, %v5236
      %v5238 = vrot.slane %v5229, %v5237
      %5239 = vrot.lane.b32.xlu0 %v5234, 112
      %v5240 = vpop.permute.xlu0 %5239
      %5241 = vrot.lane.b32.xlu0 %v5238, 112
      %v5242 = vpop.permute.xlu0 %5241
      %v5243 = vsel %vm409, %v5240, %v5242
      %v5247 = vmul.f32 %v5203, %v5240
      %v5248 = vmul.f32 %v5204, %v5243
      %v5249 = vmul.f32 %v5205, %v5242
      %s5250 = scalar_lea.vmem %s3, 296
      %v5251 = vld [vmem:[%s5250] sm:$0xff]
      %5255 = vrot.lane.b32.xlu0 %v5247, 16
      %v5256 = vpop.permute.xlu0 %5255
      %5257 = vrot.lane.b32.xlu0 %v5248, 16
      %v5258 = vpop.permute.xlu0 %5257
      %5259 = vrot.lane.b32.xlu0 %v5249, 16
      %v5260 = vpop.permute.xlu0 %5259
      %v5261 = vsel %vm428, %v5256, %v5258
      %v5262 = vsel %vm428, %v5258, %v5260
      %v5266 = vsel %vm433, %v5251, 0
      %5268 = vmatprep.subr.mxu0 %v5262
      %5269 = vmatpush1.msra.mxu0 %v5261
      %5270 = vmatprep.subr.mxu0 0.0
      %5271 = vmatpush1.msra.mxu0 0.0
      %5272 = vmatprep.subr.mxu0 0.0
      %5273 = vmatpush1.msra.mxu0 0.0
      %5274 = vmatprep.subr.mxu0 0.0
      %5275 = vmatpush1.msra.mxu0 0.0
      %5276 = vmatprep.subr.mxu0 0.0
      %5277 = vmatpush1.msra.mxu0 0.0
      %5278 = vmatprep.subr.mxu0 0.0
      %5279 = vmatpush1.msra.mxu0 0.0
      %5280 = vmatprep.subr.mxu0 0.0
      %5281 = vmatpush1.msra.mxu0 0.0
      %5282 = vmatprep.subr.mxu0 0.0
      %5283 = vmatpush1.msra.mxu0 0.0
      %5284 = vmatprep.subr.mxu0 0.0
      %5285 = vmatpush1.msra.mxu0 0.0
      %5286 = vmatprep.subr.mxu0 0.0
      %5287 = vmatpush1.msra.mxu0 0.0
      %5288 = vmatprep.subr.mxu0 0.0
      %5289 = vmatpush1.msra.mxu0 0.0
      %5290 = vmatprep.subr.mxu0 0.0
      %5291 = vmatpush1.msra.mxu0 0.0
      %5292 = vmatprep.subr.mxu0 0.0
      %5293 = vmatpush1.msra.mxu0 0.0
      %5294 = vmatprep.subr.mxu0 0.0
      %5295 = vmatpush1.msra.mxu0 0.0
      %5296 = vmatprep.subr.mxu0 0.0
      %5297 = vmatpush1.msra.mxu0 0.0
      %5298 = vmatprep.subr.mxu0 0.0
      %5299 = vmatpush1.msra.mxu0 0.0
      %5300 = vmatprep.subr.mxu0 0.0
      %5301 = vmatpush1.msra.mxu0 0.0
      %5302 = vmatprep.subr.mxu0 0.0
      %5303 = vmatpush1.msra.mxu0 0.0
      %5304 = vmatprep.subr.mxu0 0.0
      %5305 = vmatpush1.msra.mxu0 0.0
      %5306 = vmatprep.subr.mxu0 0.0
      %5307 = vmatpush1.msra.mxu0 0.0
      %5308 = vmatprep.subr.mxu0 0.0
      %5309 = vmatpush1.msra.mxu0 0.0
      %5310 = vmatprep.subr.mxu0 0.0
      %5311 = vmatpush1.msra.mxu0 0.0
      %5312 = vmatprep.subr.mxu0 0.0
      %5313 = vmatpush1.msra.mxu0 0.0
      %5314 = vmatprep.subr.mxu0 0.0
      %5315 = vmatpush1.msra.mxu0 0.0
      %5316 = vmatprep.subr.mxu0 0.0
      %5317 = vmatpush1.msra.mxu0 0.0
      %5318 = vmatprep.subr.mxu0 0.0
      %5319 = vmatpush1.msra.mxu0 0.0
      %5320 = vmatprep.subr.mxu0 0.0
      %5321 = vmatpush1.msra.mxu0 0.0
      %5322 = vmatprep.subr.mxu0 0.0
      %5323 = vmatpush1.msra.mxu0 0.0
      %5324 = vmatprep.subr.mxu0 0.0
      %5325 = vmatpush1.msra.mxu0 0.0
      %5326 = vmatprep.subr.mxu0 0.0
      %5327 = vmatpush1.msra.mxu0 0.0
      %5328 = vmatprep.subr.mxu0 0.0
      %5329 = vmatpush1.msra.mxu0 0.0
      %5330 = vmatprep.subr.mxu0 0.0
      %5331 = vmatpush1.msra.mxu0 0.0
      %5332 = vmatprep.mubr.f32.mxu0 0.0
      %5333 = vmatmul.mubr.f32.gmra.mrb[0].mxu0 %v5266
      %v5334 = vpop.f32.mrb[0].mxu0
      %v5335 = vadd.f32 0.0, %v5334
      %v5336 = vpop.f32.mrb[0].mxu0
      %v5337 = vadd.f32 0.0, %v5336
      %5338 = vdwg.mxu0
      %5342 = vrot.lane.b32.xlu0 %v5224, 17
      %v5343 = vpop.permute.xlu0 %5342
      %5344 = vrot.lane.b32.xlu0 %v5225, 17
      %v5345 = vpop.permute.xlu0 %5344
      %5346 = vrot.lane.b32.xlu0 %v5226, 17
      %v5347 = vpop.permute.xlu0 %5346
      %v5348 = vsel %vm517, %v5343, %v5345
      %v5349 = vsel %vm517, %v5345, %v5347
      %v5353 = vsel %vm433, %v5228, 0
      %5355 = vmatprep.subr.mxu0 %v5349
      %5356 = vmatpush1.msra.mxu0 %v5348
      %5357 = vmatprep.subr.mxu0 0.0
      %5358 = vmatpush1.msra.mxu0 0.0
      %5359 = vmatprep.subr.mxu0 0.0
      %5360 = vmatpush1.msra.mxu0 0.0
      %5361 = vmatprep.subr.mxu0 0.0
      %5362 = vmatpush1.msra.mxu0 0.0
      %5363 = vmatprep.subr.mxu0 0.0
      %5364 = vmatpush1.msra.mxu0 0.0
      %5365 = vmatprep.subr.mxu0 0.0
      %5366 = vmatpush1.msra.mxu0 0.0
      %5367 = vmatprep.subr.mxu0 0.0
      %5368 = vmatpush1.msra.mxu0 0.0
      %5369 = vmatprep.subr.mxu0 0.0
      %5370 = vmatpush1.msra.mxu0 0.0
      %5371 = vmatprep.subr.mxu0 0.0
      %5372 = vmatpush1.msra.mxu0 0.0
      %5373 = vmatprep.subr.mxu0 0.0
      %5374 = vmatpush1.msra.mxu0 0.0
      %5375 = vmatprep.subr.mxu0 0.0
      %5376 = vmatpush1.msra.mxu0 0.0
      %5377 = vmatprep.subr.mxu0 0.0
      %5378 = vmatpush1.msra.mxu0 0.0
      %5379 = vmatprep.subr.mxu0 0.0
      %5380 = vmatpush1.msra.mxu0 0.0
      %5381 = vmatprep.subr.mxu0 0.0
      %5382 = vmatpush1.msra.mxu0 0.0
      %5383 = vmatprep.subr.mxu0 0.0
      %5384 = vmatpush1.msra.mxu0 0.0
      %5385 = vmatprep.subr.mxu0 0.0
      %5386 = vmatpush1.msra.mxu0 0.0
      %5387 = vmatprep.subr.mxu0 0.0
      %5388 = vmatpush1.msra.mxu0 0.0
      %5389 = vmatprep.subr.mxu0 0.0
      %5390 = vmatpush1.msra.mxu0 0.0
      %5391 = vmatprep.subr.mxu0 0.0
      %5392 = vmatpush1.msra.mxu0 0.0
      %5393 = vmatprep.subr.mxu0 0.0
      %5394 = vmatpush1.msra.mxu0 0.0
      %5395 = vmatprep.subr.mxu0 0.0
      %5396 = vmatpush1.msra.mxu0 0.0
      %5397 = vmatprep.subr.mxu0 0.0
      %5398 = vmatpush1.msra.mxu0 0.0
      %5399 = vmatprep.subr.mxu0 0.0
      %5400 = vmatpush1.msra.mxu0 0.0
      %5401 = vmatprep.subr.mxu0 0.0
      %5402 = vmatpush1.msra.mxu0 0.0
      %5403 = vmatprep.subr.mxu0 0.0
      %5404 = vmatpush1.msra.mxu0 0.0
      %5405 = vmatprep.subr.mxu0 0.0
      %5406 = vmatpush1.msra.mxu0 0.0
      %5407 = vmatprep.subr.mxu0 0.0
      %5408 = vmatpush1.msra.mxu0 0.0
      %5409 = vmatprep.subr.mxu0 0.0
      %5410 = vmatpush1.msra.mxu0 0.0
      %5411 = vmatprep.subr.mxu0 0.0
      %5412 = vmatpush1.msra.mxu0 0.0
      %5413 = vmatprep.subr.mxu0 0.0
      %5414 = vmatpush1.msra.mxu0 0.0
      %5415 = vmatprep.subr.mxu0 0.0
      %5416 = vmatpush1.msra.mxu0 0.0
      %5417 = vmatprep.subr.mxu0 0.0
      %5418 = vmatpush1.msra.mxu0 0.0
      %5419 = vmatprep.mubr.f32.mxu0 0.0
      %5420 = vmatmul.mubr.f32.gmra.mrb[0].mxu0 %v5353
      %v5421 = vpop.f32.mrb[0].mxu0
      %v5422 = vadd.f32 %v5335, %v5421
      %v5423 = vpop.f32.mrb[0].mxu0
      %v5424 = vadd.f32 %v5337, %v5423
      %5425 = vdwg.mxu0
      %v5426 = vld [vmem:[%s596] sm:$0x3]
      %v5428 = vlaneseq
      %v5429 = vshrl.u32 %v5428, 7
      %v5430 = vsub.s32 0, %v5429
      %v5431 = vrot.slane %v5426, %v5430
      %v5432 = vlaneseq
      %v5433 = vshrl.u32 %v5432, 7
      %v5434 = vsub.s32 1, %v5433
      %v5435 = vrot.slane %v5426, %v5434
      %5436 = vrot.lane.b32.xlu0 %v5431, 113
      %v5437 = vpop.permute.xlu0 %5436
      %5438 = vrot.lane.b32.xlu0 %v5435, 113
      %v5439 = vpop.permute.xlu0 %5438
      %v5440 = vsel %vm611, %v5437, %v5439
      %v5444 = vmul.f32 %v5203, %v5437
      %v5445 = vmul.f32 %v5204, %v5440
      %v5446 = vmul.f32 %v5205, %v5439
      %s5447 = scalar_lea.vmem %s3, 304
      %v5448 = vld [vmem:[%s5447] sm:$0xff]
      %5452 = vrot.lane.b32.xlu0 %v5444, 15
      %v5453 = vpop.permute.xlu0 %5452
      %5454 = vrot.lane.b32.xlu0 %v5445, 15
      %v5455 = vpop.permute.xlu0 %5454
      %5456 = vrot.lane.b32.xlu0 %v5446, 15
      %v5457 = vpop.permute.xlu0 %5456
      %v5458 = vsel %vm630, %v5453, %v5455
      %v5459 = vsel %vm630, %v5455, %v5457
      %v5463 = vsel %vm433, %v5448, 0
      %5465 = vmatprep.subr.mxu0 %v5459
      %5466 = vmatpush1.msra.mxu0 %v5458
      %5467 = vmatprep.subr.mxu0 0.0
      %5468 = vmatpush1.msra.mxu0 0.0
      %5469 = vmatprep.subr.mxu0 0.0
      %5470 = vmatpush1.msra.mxu0 0.0
      %5471 = vmatprep.subr.mxu0 0.0
      %5472 = vmatpush1.msra.mxu0 0.0
      %5473 = vmatprep.subr.mxu0 0.0
      %5474 = vmatpush1.msra.mxu0 0.0
      %5475 = vmatprep.subr.mxu0 0.0
      %5476 = vmatpush1.msra.mxu0 0.0
      %5477 = vmatprep.subr.mxu0 0.0
      %5478 = vmatpush1.msra.mxu0 0.0
      %5479 = vmatprep.subr.mxu0 0.0
      %5480 = vmatpush1.msra.mxu0 0.0
      %5481 = vmatprep.subr.mxu0 0.0
      %5482 = vmatpush1.msra.mxu0 0.0
      %5483 = vmatprep.subr.mxu0 0.0
      %5484 = vmatpush1.msra.mxu0 0.0
      %5485 = vmatprep.subr.mxu0 0.0
      %5486 = vmatpush1.msra.mxu0 0.0
      %5487 = vmatprep.subr.mxu0 0.0
      %5488 = vmatpush1.msra.mxu0 0.0
      %5489 = vmatprep.subr.mxu0 0.0
      %5490 = vmatpush1.msra.mxu0 0.0
      %5491 = vmatprep.subr.mxu0 0.0
      %5492 = vmatpush1.msra.mxu0 0.0
      %5493 = vmatprep.subr.mxu0 0.0
      %5494 = vmatpush1.msra.mxu0 0.0
      %5495 = vmatprep.subr.mxu0 0.0
      %5496 = vmatpush1.msra.mxu0 0.0
      %5497 = vmatprep.subr.mxu0 0.0
      %5498 = vmatpush1.msra.mxu0 0.0
      %5499 = vmatprep.subr.mxu0 0.0
      %5500 = vmatpush1.msra.mxu0 0.0
      %5501 = vmatprep.subr.mxu0 0.0
      %5502 = vmatpush1.msra.mxu0 0.0
      %5503 = vmatprep.subr.mxu0 0.0
      %5504 = vmatpush1.msra.mxu0 0.0
      %5505 = vmatprep.subr.mxu0 0.0
      %5506 = vmatpush1.msra.mxu0 0.0
      %5507 = vmatprep.subr.mxu0 0.0
      %5508 = vmatpush1.msra.mxu0 0.0
      %5509 = vmatprep.subr.mxu0 0.0
      %5510 = vmatpush1.msra.mxu0 0.0
      %5511 = vmatprep.subr.mxu0 0.0
      %5512 = vmatpush1.msra.mxu0 0.0
      %5513 = vmatprep.subr.mxu0 0.0
      %5514 = vmatpush1.msra.mxu0 0.0
      %5515 = vmatprep.subr.mxu0 0.0
      %5516 = vmatpush1.msra.mxu0 0.0
      %5517 = vmatprep.subr.mxu0 0.0
      %5518 = vmatpush1.msra.mxu0 0.0
      %5519 = vmatprep.subr.mxu0 0.0
      %5520 = vmatpush1.msra.mxu0 0.0
      %5521 = vmatprep.subr.mxu0 0.0
      %5522 = vmatpush1.msra.mxu0 0.0
      %5523 = vmatprep.subr.mxu0 0.0
      %5524 = vmatpush1.msra.mxu0 0.0
      %5525 = vmatprep.subr.mxu0 0.0
      %5526 = vmatpush1.msra.mxu0 0.0
      %5527 = vmatprep.subr.mxu0 0.0
      %5528 = vmatpush1.msra.mxu0 0.0
      %5529 = vmatprep.mubr.f32.mxu0 0.0
      %5530 = vmatmul.mubr.f32.gmra.mrb[0].mxu0 %v5463
      %v5531 = vpop.f32.mrb[0].mxu0
      %v5532 = vadd.f32 0.0, %v5531
      %v5533 = vpop.f32.mrb[0].mxu0
      %v5534 = vadd.f32 0.0, %v5533
      %5535 = vdwg.mxu0
      %v5536 = vadd.f32 %v5422, %v5532
      %v5537 = vadd.f32 %v5424, %v5534
      %v5538 = vld [vmem:[%s711] sm:$0x3]
      %v5540 = vlaneseq
      %v5541 = vshrl.u32 %v5540, 7
      %v5542 = vsub.s32 0, %v5541
      %v5543 = vrot.slane %v5538, %v5542
      %v5544 = vlaneseq
      %v5545 = vshrl.u32 %v5544, 7
      %v5546 = vsub.s32 1, %v5545
      %v5547 = vrot.slane %v5538, %v5546
      %5548 = vrot.lane.b32.xlu0 %v5543, 127
      %v5549 = vpop.permute.xlu0 %5548
      %5550 = vrot.lane.b32.xlu0 %v5547, 127
      %v5551 = vpop.permute.xlu0 %5550
      %v5552 = vsel %vm726, %v5549, %v5551
      %v5556 = vmul.f32 %v5203, %v5549
      %v5557 = vmul.f32 %v5204, %v5552
      %v5558 = vmul.f32 %v5205, %v5551
      %s5559 = scalar_lea.vmem %s3, 312
      %v5560 = vld [vmem:[%s5559] sm:$0xff]
      %5564 = vrot.lane.b32.xlu0 %v5556, 1
      %v5565 = vpop.permute.xlu0 %5564
      %5566 = vrot.lane.b32.xlu0 %v5557, 1
      %v5567 = vpop.permute.xlu0 %5566
      %5568 = vrot.lane.b32.xlu0 %v5558, 1
      %v5569 = vpop.permute.xlu0 %5568
      %v5570 = vsel %vm745, %v5565, %v5567
      %v5571 = vsel %vm745, %v5567, %v5569
      %v5575 = vsel %vm433, %v5560, 0
      %5577 = vmatprep.subr.mxu0 %v5571
      %5578 = vmatpush1.msra.mxu0 %v5570
      %5579 = vmatprep.subr.mxu0 0.0
      %5580 = vmatpush1.msra.mxu0 0.0
      %5581 = vmatprep.subr.mxu0 0.0
      %5582 = vmatpush1.msra.mxu0 0.0
      %5583 = vmatprep.subr.mxu0 0.0
      %5584 = vmatpush1.msra.mxu0 0.0
      %5585 = vmatprep.subr.mxu0 0.0
      %5586 = vmatpush1.msra.mxu0 0.0
      %5587 = vmatprep.subr.mxu0 0.0
      %5588 = vmatpush1.msra.mxu0 0.0
      %5589 = vmatprep.subr.mxu0 0.0
      %5590 = vmatpush1.msra.mxu0 0.0
      %5591 = vmatprep.subr.mxu0 0.0
      %5592 = vmatpush1.msra.mxu0 0.0
      %5593 = vmatprep.subr.mxu0 0.0
      %5594 = vmatpush1.msra.mxu0 0.0
      %5595 = vmatprep.subr.mxu0 0.0
      %5596 = vmatpush1.msra.mxu0 0.0
      %5597 = vmatprep.subr.mxu0 0.0
      %5598 = vmatpush1.msra.mxu0 0.0
      %5599 = vmatprep.subr.mxu0 0.0
      %5600 = vmatpush1.msra.mxu0 0.0
      %5601 = vmatprep.subr.mxu0 0.0
      %5602 = vmatpush1.msra.mxu0 0.0
      %5603 = vmatprep.subr.mxu0 0.0
      %5604 = vmatpush1.msra.mxu0 0.0
      %5605 = vmatprep.subr.mxu0 0.0
      %5606 = vmatpush1.msra.mxu0 0.0
      %5607 = vmatprep.subr.mxu0 0.0
      %5608 = vmatpush1.msra.mxu0 0.0
      %5609 = vmatprep.subr.mxu0 0.0
      %5610 = vmatpush1.msra.mxu0 0.0
      %5611 = vmatprep.subr.mxu0 0.0
      %5612 = vmatpush1.msra.mxu0 0.0
      %5613 = vmatprep.subr.mxu0 0.0
      %5614 = vmatpush1.msra.mxu0 0.0
      %5615 = vmatprep.subr.mxu0 0.0
      %5616 = vmatpush1.msra.mxu0 0.0
      %5617 = vmatprep.subr.mxu0 0.0
      %5618 = vmatpush1.msra.mxu0 0.0
      %5619 = vmatprep.subr.mxu0 0.0
      %5620 = vmatpush1.msra.mxu0 0.0
      %5621 = vmatprep.subr.mxu0 0.0
      %5622 = vmatpush1.msra.mxu0 0.0
      %5623 = vmatprep.subr.mxu0 0.0
      %5624 = vmatpush1.msra.mxu0 0.0
      %5625 = vmatprep.subr.mxu0 0.0
      %5626 = vmatpush1.msra.mxu0 0.0
      %5627 = vmatprep.subr.mxu0 0.0
      %5628 = vmatpush1.msra.mxu0 0.0
      %5629 = vmatprep.subr.mxu0 0.0
      %5630 = vmatpush1.msra.mxu0 0.0
      %5631 = vmatprep.subr.mxu0 0.0
      %5632 = vmatpush1.msra.mxu0 0.0
      %5633 = vmatprep.subr.mxu0 0.0
      %5634 = vmatpush1.msra.mxu0 0.0
      %5635 = vmatprep.subr.mxu0 0.0
      %5636 = vmatpush1.msra.mxu0 0.0
      %5637 = vmatprep.subr.mxu0 0.0
      %5638 = vmatpush1.msra.mxu0 0.0
      %5639 = vmatprep.subr.mxu0 0.0
      %5640 = vmatpush1.msra.mxu0 0.0
      %5641 = vmatprep.mubr.f32.mxu0 0.0
      %5642 = vmatmul.mubr.f32.gmra.mrb[0].mxu0 %v5575
      %v5643 = vpop.f32.mrb[0].mxu0
      %v5644 = vadd.f32 0.0, %v5643
      %v5645 = vpop.f32.mrb[0].mxu0
      %v5646 = vadd.f32 0.0, %v5645
      %5647 = vdwg.mxu0
      %v5648 = vadd.f32 %v5536, %v5644
      %v5649 = vadd.f32 %v5537, %v5646
      %v5650 = vld [vmem:[#allocation2] sm:$0xff]
      %v5651 = vld [vmem:[#allocation2 + $0x8] sm:$0xff]
      %s5652 = scalar_lea.vmem %s3, 320
      %v5653 = vld [vmem:[%s5652] sm:$0xff]
      %v5655 = vsel %vm433, %v5653, 0
      %5657 = vmatprep.subr.mxu0 %v5651
      %5658 = vmatpush1.msra.mxu0 %v5650
      %5659 = vmatprep.subr.mxu0 0.0
      %5660 = vmatpush1.msra.mxu0 0.0
      %5661 = vmatprep.subr.mxu0 0.0
      %5662 = vmatpush1.msra.mxu0 0.0
      %5663 = vmatprep.subr.mxu0 0.0
      %5664 = vmatpush1.msra.mxu0 0.0
      %5665 = vmatprep.subr.mxu0 0.0
      %5666 = vmatpush1.msra.mxu0 0.0
      %5667 = vmatprep.subr.mxu0 0.0
      %5668 = vmatpush1.msra.mxu0 0.0
      %5669 = vmatprep.subr.mxu0 0.0
      %5670 = vmatpush1.msra.mxu0 0.0
      %5671 = vmatprep.subr.mxu0 0.0
      %5672 = vmatpush1.msra.mxu0 0.0
      %5673 = vmatprep.subr.mxu0 0.0
      %5674 = vmatpush1.msra.mxu0 0.0
      %5675 = vmatprep.subr.mxu0 0.0
      %5676 = vmatpush1.msra.mxu0 0.0
      %5677 = vmatprep.subr.mxu0 0.0
      %5678 = vmatpush1.msra.mxu0 0.0
      %5679 = vmatprep.subr.mxu0 0.0
      %5680 = vmatpush1.msra.mxu0 0.0
      %5681 = vmatprep.subr.mxu0 0.0
      %5682 = vmatpush1.msra.mxu0 0.0
      %5683 = vmatprep.subr.mxu0 0.0
      %5684 = vmatpush1.msra.mxu0 0.0
      %5685 = vmatprep.subr.mxu0 0.0
      %5686 = vmatpush1.msra.mxu0 0.0
      %5687 = vmatprep.subr.mxu0 0.0
      %5688 = vmatpush1.msra.mxu0 0.0
      %5689 = vmatprep.subr.mxu0 0.0
      %5690 = vmatpush1.msra.mxu0 0.0
      %5691 = vmatprep.subr.mxu0 0.0
      %5692 = vmatpush1.msra.mxu0 0.0
      %5693 = vmatprep.subr.mxu0 0.0
      %5694 = vmatpush1.msra.mxu0 0.0
      %5695 = vmatprep.subr.mxu0 0.0
      %5696 = vmatpush1.msra.mxu0 0.0
      %5697 = vmatprep.subr.mxu0 0.0
      %5698 = vmatpush1.msra.mxu0 0.0
      %5699 = vmatprep.subr.mxu0 0.0
      %5700 = vmatpush1.msra.mxu0 0.0
      %5701 = vmatprep.subr.mxu0 0.0
      %5702 = vmatpush1.msra.mxu0 0.0
      %5703 = vmatprep.subr.mxu0 0.0
      %5704 = vmatpush1.msra.mxu0 0.0
      %5705 = vmatprep.subr.mxu0 0.0
      %5706 = vmatpush1.msra.mxu0 0.0
      %5707 = vmatprep.subr.mxu0 0.0
      %5708 = vmatpush1.msra.mxu0 0.0
      %5709 = vmatprep.subr.mxu0 0.0
      %5710 = vmatpush1.msra.mxu0 0.0
      %5711 = vmatprep.subr.mxu0 0.0
      %5712 = vmatpush1.msra.mxu0 0.0
      %5713 = vmatprep.subr.mxu0 0.0
      %5714 = vmatpush1.msra.mxu0 0.0
      %5715 = vmatprep.subr.mxu0 0.0
      %5716 = vmatpush1.msra.mxu0 0.0
      %5717 = vmatprep.subr.mxu0 0.0
      %5718 = vmatpush1.msra.mxu0 0.0
      %5719 = vmatprep.subr.mxu0 0.0
      %5720 = vmatpush1.msra.mxu0 0.0
      %5721 = vmatprep.mubr.f32.mxu0 0.0
      %5722 = vmatmul.mubr.f32.gmra.mrb[0].mxu0 %v5655
      %v5723 = vpop.f32.mrb[0].mxu0
      %v5724 = vadd.f32 0.0, %v5723
      %v5725 = vpop.f32.mrb[0].mxu0
      %v5726 = vadd.f32 0.0, %v5725
      %5727 = vdwg.mxu0
      %v5728 = vadd.f32 %v5648, %v5724
      %v5729 = vadd.f32 %v5649, %v5726
      %v5730 = vld [vmem:[#allocation2] sm:$0xff]
      %v5731 = vld [vmem:[#allocation2 + $0x8] sm:$0xff]
      %v5732 = vld [vmem:[#allocation2 + $0x10] sm:$0xff]
      %v5733 = vld [vmem:[%s909] sm:$0x3]
      %v5735 = vlaneseq
      %v5736 = vshrl.u32 %v5735, 7
      %v5737 = vsub.s32 0, %v5736
      %v5738 = vrot.slane %v5733, %v5737
      %v5739 = vlaneseq
      %v5740 = vshrl.u32 %v5739, 7
      %v5741 = vsub.s32 1, %v5740
      %v5742 = vrot.slane %v5733, %v5741
      %5743 = vrot.lane.b32.xlu0 %v5738, 1
      %v5744 = vpop.permute.xlu0 %5743
      %5745 = vrot.lane.b32.xlu0 %v5742, 1
      %v5746 = vpop.permute.xlu0 %5745
      %v5747 = vsel %vm745, %v5744, %v5746
      %v5751 = vmul.f32 %v5730, %v5744
      %v5752 = vmul.f32 %v5731, %v5747
      %v5753 = vmul.f32 %v5732, %v5746
      %s5754 = scalar_lea.vmem %s3, 328
      %v5755 = vld [vmem:[%s5754] sm:$0xff]
      %5759 = vrot.lane.b32.xlu0 %v5751, 127
      %v5760 = vpop.permute.xlu0 %5759
      %5761 = vrot.lane.b32.xlu0 %v5752, 127
      %v5762 = vpop.permute.xlu0 %5761
      %5763 = vrot.lane.b32.xlu0 %v5753, 127
      %v5764 = vpop.permute.xlu0 %5763
      %v5765 = vsel %vm726, %v5760, %v5762
      %v5766 = vsel %vm726, %v5762, %v5764
      %v5770 = vsel %vm433, %v5755, 0
      %5772 = vmatprep.subr.mxu0 %v5766
      %5773 = vmatpush1.msra.mxu0 %v5765
      %5774 = vmatprep.subr.mxu0 0.0
      %5775 = vmatpush1.msra.mxu0 0.0
      %5776 = vmatprep.subr.mxu0 0.0
      %5777 = vmatpush1.msra.mxu0 0.0
      %5778 = vmatprep.subr.mxu0 0.0
      %5779 = vmatpush1.msra.mxu0 0.0
      %5780 = vmatprep.subr.mxu0 0.0
      %5781 = vmatpush1.msra.mxu0 0.0
      %5782 = vmatprep.subr.mxu0 0.0
      %5783 = vmatpush1.msra.mxu0 0.0
      %5784 = vmatprep.subr.mxu0 0.0
      %5785 = vmatpush1.msra.mxu0 0.0
      %5786 = vmatprep.subr.mxu0 0.0
      %5787 = vmatpush1.msra.mxu0 0.0
      %5788 = vmatprep.subr.mxu0 0.0
      %5789 = vmatpush1.msra.mxu0 0.0
      %5790 = vmatprep.subr.mxu0 0.0
      %5791 = vmatpush1.msra.mxu0 0.0
      %5792 = vmatprep.subr.mxu0 0.0
      %5793 = vmatpush1.msra.mxu0 0.0
      %5794 = vmatprep.subr.mxu0 0.0
      %5795 = vmatpush1.msra.mxu0 0.0
      %5796 = vmatprep.subr.mxu0 0.0
      %5797 = vmatpush1.msra.mxu0 0.0
      %5798 = vmatprep.subr.mxu0 0.0
      %5799 = vmatpush1.msra.mxu0 0.0
      %5800 = vmatprep.subr.mxu0 0.0
      %5801 = vmatpush1.msra.mxu0 0.0
      %5802 = vmatprep.subr.mxu0 0.0
      %5803 = vmatpush1.msra.mxu0 0.0
      %5804 = vmatprep.subr.mxu0 0.0
      %5805 = vmatpush1.msra.mxu0 0.0
      %5806 = vmatprep.subr.mxu0 0.0
      %5807 = vmatpush1.msra.mxu0 0.0
      %5808 = vmatprep.subr.mxu0 0.0
      %5809 = vmatpush1.msra.mxu0 0.0
      %5810 = vmatprep.subr.mxu0 0.0
      %5811 = vmatpush1.msra.mxu0 0.0
      %5812 = vmatprep.subr.mxu0 0.0
      %5813 = vmatpush1.msra.mxu0 0.0
      %5814 = vmatprep.subr.mxu0 0.0
      %5815 = vmatpush1.msra.mxu0 0.0
      %5816 = vmatprep.subr.mxu0 0.0
      %5817 = vmatpush1.msra.mxu0 0.0
      %5818 = vmatprep.subr.mxu0 0.0
      %5819 = vmatpush1.msra.mxu0 0.0
      %5820 = vmatprep.subr.mxu0 0.0
      %5821 = vmatpush1.msra.mxu0 0.0
      %5822 = vmatprep.subr.mxu0 0.0
      %5823 = vmatpush1.msra.mxu0 0.0
      %5824 = vmatprep.subr.mxu0 0.0
      %5825 = vmatpush1.msra.mxu0 0.0
      %5826 = vmatprep.subr.mxu0 0.0
      %5827 = vmatpush1.msra.mxu0 0.0
      %5828 = vmatprep.subr.mxu0 0.0
      %5829 = vmatpush1.msra.mxu0 0.0
      %5830 = vmatprep.subr.mxu0 0.0
      %5831 = vmatpush1.msra.mxu0 0.0
      %5832 = vmatprep.subr.mxu0 0.0
      %5833 = vmatpush1.msra.mxu0 0.0
      %5834 = vmatprep.subr.mxu0 0.0
      %5835 = vmatpush1.msra.mxu0 0.0
      %5836 = vmatprep.mubr.f32.mxu0 0.0
      %5837 = vmatmul.mubr.f32.gmra.mrb[0].mxu0 %v5770
      %v5838 = vpop.f32.mrb[0].mxu0
      %v5839 = vadd.f32 0.0, %v5838
      %v5840 = vpop.f32.mrb[0].mxu0
      %v5841 = vadd.f32 0.0, %v5840
      %5842 = vdwg.mxu0
      %v5843 = vadd.f32 %v5728, %v5839
      %v5844 = vadd.f32 %v5729, %v5841
      %v5845 = vld [vmem:[%s1022] sm:$0x3]
      %v5847 = vlaneseq
      %v5848 = vshrl.u32 %v5847, 7
      %v5849 = vsub.s32 0, %v5848
      %v5850 = vrot.slane %v5845, %v5849
      %v5851 = vlaneseq
      %v5852 = vshrl.u32 %v5851, 7
      %v5853 = vsub.s32 1, %v5852
      %v5854 = vrot.slane %v5845, %v5853
      %5855 = vrot.lane.b32.xlu0 %v5850, 15
      %v5856 = vpop.permute.xlu0 %5855
      %5857 = vrot.lane.b32.xlu0 %v5854, 15
      %v5858 = vpop.permute.xlu0 %5857
      %v5859 = vsel %vm630, %v5856, %v5858
      %v5863 = vmul.f32 %v5730, %v5856
      %v5864 = vmul.f32 %v5731, %v5859
      %v5865 = vmul.f32 %v5732, %v5858
      %s5866 = scalar_lea.vmem %s3, 336
      %v5867 = vld [vmem:[%s5866] sm:$0xff]
      %5871 = vrot.lane.b32.xlu0 %v5863, 113
      %v5872 = vpop.permute.xlu0 %5871
      %5873 = vrot.lane.b32.xlu0 %v5864, 113
      %v5874 = vpop.permute.xlu0 %5873
      %5875 = vrot.lane.b32.xlu0 %v5865, 113
      %v5876 = vpop.permute.xlu0 %5875
      %v5877 = vsel %vm611, %v5872, %v5874
      %v5878 = vsel %vm611, %v5874, %v5876
      %v5882 = vsel %vm433, %v5867, 0
      %5884 = vmatprep.subr.mxu0 %v5878
      %5885 = vmatpush1.msra.mxu0 %v5877
      %5886 = vmatprep.subr.mxu0 0.0
      %5887 = vmatpush1.msra.mxu0 0.0
      %5888 = vmatprep.subr.mxu0 0.0
      %5889 = vmatpush1.msra.mxu0 0.0
      %5890 = vmatprep.subr.mxu0 0.0
      %5891 = vmatpush1.msra.mxu0 0.0
      %5892 = vmatprep.subr.mxu0 0.0
      %5893 = vmatpush1.msra.mxu0 0.0
      %5894 = vmatprep.subr.mxu0 0.0
      %5895 = vmatpush1.msra.mxu0 0.0
      %5896 = vmatprep.subr.mxu0 0.0
      %5897 = vmatpush1.msra.mxu0 0.0
      %5898 = vmatprep.subr.mxu0 0.0
      %5899 = vmatpush1.msra.mxu0 0.0
      %5900 = vmatprep.subr.mxu0 0.0
      %5901 = vmatpush1.msra.mxu0 0.0
      %5902 = vmatprep.subr.mxu0 0.0
      %5903 = vmatpush1.msra.mxu0 0.0
      %5904 = vmatprep.subr.mxu0 0.0
      %5905 = vmatpush1.msra.mxu0 0.0
      %5906 = vmatprep.subr.mxu0 0.0
      %5907 = vmatpush1.msra.mxu0 0.0
      %5908 = vmatprep.subr.mxu0 0.0
      %5909 = vmatpush1.msra.mxu0 0.0
      %5910 = vmatprep.subr.mxu0 0.0
      %5911 = vmatpush1.msra.mxu0 0.0
      %5912 = vmatprep.subr.mxu0 0.0
      %5913 = vmatpush1.msra.mxu0 0.0
      %5914 = vmatprep.subr.mxu0 0.0
      %5915 = vmatpush1.msra.mxu0 0.0
      %5916 = vmatprep.subr.mxu0 0.0
      %5917 = vmatpush1.msra.mxu0 0.0
      %5918 = vmatprep.subr.mxu0 0.0
      %5919 = vmatpush1.msra.mxu0 0.0
      %5920 = vmatprep.subr.mxu0 0.0
      %5921 = vmatpush1.msra.mxu0 0.0
      %5922 = vmatprep.subr.mxu0 0.0
      %5923 = vmatpush1.msra.mxu0 0.0
      %5924 = vmatprep.subr.mxu0 0.0
      %5925 = vmatpush1.msra.mxu0 0.0
      %5926 = vmatprep.subr.mxu0 0.0
      %5927 = vmatpush1.msra.mxu0 0.0
      %5928 = vmatprep.subr.mxu0 0.0
      %5929 = vmatpush1.msra.mxu0 0.0
      %5930 = vmatprep.subr.mxu0 0.0
      %5931 = vmatpush1.msra.mxu0 0.0
      %5932 = vmatprep.subr.mxu0 0.0
      %5933 = vmatpush1.msra.mxu0 0.0
      %5934 = vmatprep.subr.mxu0 0.0
      %5935 = vmatpush1.msra.mxu0 0.0
      %5936 = vmatprep.subr.mxu0 0.0
      %5937 = vmatpush1.msra.mxu0 0.0
      %5938 = vmatprep.subr.mxu0 0.0
      %5939 = vmatpush1.msra.mxu0 0.0
      %5940 = vmatprep.subr.mxu0 0.0
      %5941 = vmatpush1.msra.mxu0 0.0
      %5942 = vmatprep.subr.mxu0 0.0
      %5943 = vmatpush1.msra.mxu0 0.0
      %5944 = vmatprep.subr.mxu0 0.0
      %5945 = vmatpush1.msra.mxu0 0.0
      %5946 = vmatprep.subr.mxu0 0.0
      %5947 = vmatpush1.msra.mxu0 0.0
      %5948 = vmatprep.mubr.f32.mxu0 0.0
      %5949 = vmatmul.mubr.f32.gmra.mrb[0].mxu0 %v5882
      %v5950 = vpop.f32.mrb[0].mxu0
      %v5951 = vadd.f32 0.0, %v5950
      %v5952 = vpop.f32.mrb[0].mxu0
      %v5953 = vadd.f32 0.0, %v5952
      %5954 = vdwg.mxu0
      %v5955 = vadd.f32 %v5843, %v5951
      %v5956 = vadd.f32 %v5844, %v5953
      %v5957 = vld [vmem:[%s1135] sm:$0x3]
      %v5959 = vlaneseq
      %v5960 = vshrl.u32 %v5959, 7
      %v5961 = vsub.s32 0, %v5960
      %v5962 = vrot.slane %v5957, %v5961
      %v5963 = vlaneseq
      %v5964 = vshrl.u32 %v5963, 7
      %v5965 = vsub.s32 1, %v5964
      %v5966 = vrot.slane %v5957, %v5965
      %5967 = vrot.lane.b32.xlu0 %v5962, 16
      %v5968 = vpop.permute.xlu0 %5967
      %5969 = vrot.lane.b32.xlu0 %v5966, 16
      %v5970 = vpop.permute.xlu0 %5969
      %v5971 = vsel %vm428, %v5968, %v5970
      %v5975 = vmul.f32 %v5730, %v5968
      %v5976 = vmul.f32 %v5731, %v5971
      %v5977 = vmul.f32 %v5732, %v5970
      %s5978 = scalar_lea.vmem %s3, 344
      %v5979 = vld [vmem:[%s5978] sm:$0xff]
      %5983 = vrot.lane.b32.xlu0 %v5975, 112
      %v5984 = vpop.permute.xlu0 %5983
      %5985 = vrot.lane.b32.xlu0 %v5976, 112
      %v5986 = vpop.permute.xlu0 %5985
      %5987 = vrot.lane.b32.xlu0 %v5977, 112
      %v5988 = vpop.permute.xlu0 %5987
      %v5989 = vsel %vm409, %v5984, %v5986
      %v5990 = vsel %vm409, %v5986, %v5988
      %v5994 = vsel %vm433, %v5979, 0
      %5996 = vmatprep.subr.mxu0 %v5990
      %5997 = vmatpush1.msra.mxu0 %v5989
      %5998 = vmatprep.subr.mxu0 0.0
      %5999 = vmatpush1.msra.mxu0 0.0
      %6000 = vmatprep.subr.mxu0 0.0
      %6001 = vmatpush1.msra.mxu0 0.0
      %6002 = vmatprep.subr.mxu0 0.0
      %6003 = vmatpush1.msra.mxu0 0.0
      %6004 = vmatprep.subr.mxu0 0.0
      %6005 = vmatpush1.msra.mxu0 0.0
      %6006 = vmatprep.subr.mxu0 0.0
      %6007 = vmatpush1.msra.mxu0 0.0
      %6008 = vmatprep.subr.mxu0 0.0
      %6009 = vmatpush1.msra.mxu0 0.0
      %6010 = vmatprep.subr.mxu0 0.0
      %6011 = vmatpush1.msra.mxu0 0.0
      %6012 = vmatprep.subr.mxu0 0.0
      %6013 = vmatpush1.msra.mxu0 0.0
      %6014 = vmatprep.subr.mxu0 0.0
      %6015 = vmatpush1.msra.mxu0 0.0
      %6016 = vmatprep.subr.mxu0 0.0
      %6017 = vmatpush1.msra.mxu0 0.0
      %6018 = vmatprep.subr.mxu0 0.0
      %6019 = vmatpush1.msra.mxu0 0.0
      %6020 = vmatprep.subr.mxu0 0.0
      %6021 = vmatpush1.msra.mxu0 0.0
      %6022 = vmatprep.subr.mxu0 0.0
      %6023 = vmatpush1.msra.mxu0 0.0
      %6024 = vmatprep.subr.mxu0 0.0
      %6025 = vmatpush1.msra.mxu0 0.0
      %6026 = vmatprep.subr.mxu0 0.0
      %6027 = vmatpush1.msra.mxu0 0.0
      %6028 = vmatprep.subr.mxu0 0.0
      %6029 = vmatpush1.msra.mxu0 0.0
      %6030 = vmatprep.subr.mxu0 0.0
      %6031 = vmatpush1.msra.mxu0 0.0
      %6032 = vmatprep.subr.mxu0 0.0
      %6033 = vmatpush1.msra.mxu0 0.0
      %6034 = vmatprep.subr.mxu0 0.0
      %6035 = vmatpush1.msra.mxu0 0.0
      %6036 = vmatprep.subr.mxu0 0.0
      %6037 = vmatpush1.msra.mxu0 0.0
      %6038 = vmatprep.subr.mxu0 0.0
      %6039 = vmatpush1.msra.mxu0 0.0
      %6040 = vmatprep.subr.mxu0 0.0
      %6041 = vmatpush1.msra.mxu0 0.0
      %6042 = vmatprep.subr.mxu0 0.0
      %6043 = vmatpush1.msra.mxu0 0.0
      %6044 = vmatprep.subr.mxu0 0.0
      %6045 = vmatpush1.msra.mxu0 0.0
      %6046 = vmatprep.subr.mxu0 0.0
      %6047 = vmatpush1.msra.mxu0 0.0
      %6048 = vmatprep.subr.mxu0 0.0
      %6049 = vmatpush1.msra.mxu0 0.0
      %6050 = vmatprep.subr.mxu0 0.0
      %6051 = vmatpush1.msra.mxu0 0.0
      %6052 = vmatprep.subr.mxu0 0.0
      %6053 = vmatpush1.msra.mxu0 0.0
      %6054 = vmatprep.subr.mxu0 0.0
      %6055 = vmatpush1.msra.mxu0 0.0
      %6056 = vmatprep.subr.mxu0 0.0
      %6057 = vmatpush1.msra.mxu0 0.0
      %6058 = vmatprep.subr.mxu0 0.0
      %6059 = vmatpush1.msra.mxu0 0.0
      %6060 = vmatprep.mubr.f32.mxu0 0.0
      %6061 = vmatmul.mubr.f32.gmra.mrb[0].mxu0 %v5994
      %v6062 = vpop.f32.mrb[0].mxu0
      %v6063 = vadd.f32 0.0, %v6062
      %v6064 = vpop.f32.mrb[0].mxu0
      %v6065 = vadd.f32 0.0, %v6064
      %6066 = vdwg.mxu0
      %v6067 = vadd.f32 %v5955, %v6063
      %v6068 = vadd.f32 %v5956, %v6065
      %v6069 = vld [vmem:[%s1248] sm:$0x3]
      %v6071 = vlaneseq
      %v6072 = vshrl.u32 %v6071, 7
      %v6073 = vsub.s32 0, %v6072
      %v6074 = vrot.slane %v6069, %v6073
      %v6075 = vlaneseq
      %v6076 = vshrl.u32 %v6075, 7
      %v6077 = vsub.s32 1, %v6076
      %v6078 = vrot.slane %v6069, %v6077
      %6079 = vrot.lane.b32.xlu0 %v6074, 17
      %v6080 = vpop.permute.xlu0 %6079
      %6081 = vrot.lane.b32.xlu0 %v6078, 17
      %v6082 = vpop.permute.xlu0 %6081
      %v6083 = vsel %vm517, %v6080, %v6082
      %v6087 = vmul.f32 %v5730, %v6080
      %v6088 = vmul.f32 %v5731, %v6083
      %v6089 = vmul.f32 %v5732, %v6082
      %s6090 = scalar_lea.vmem %s3, 352
      %v6091 = vld [vmem:[%s6090] sm:$0xff]
      %6095 = vrot.lane.b32.xlu0 %v6087, 111
      %v6096 = vpop.permute.xlu0 %6095
      %6097 = vrot.lane.b32.xlu0 %v6088, 111
      %v6098 = vpop.permute.xlu0 %6097
      %6099 = vrot.lane.b32.xlu0 %v6089, 111
      %v6100 = vpop.permute.xlu0 %6099
      %v6101 = vsel %vm385, %v6096, %v6098
      %v6102 = vsel %vm385, %v6098, %v6100
      %v6106 = vsel %vm433, %v6091, 0
      %6108 = vmatprep.subr.mxu0 %v6102
      %6109 = vmatpush1.msra.mxu0 %v6101
      %6110 = vmatprep.subr.mxu0 0.0
      %6111 = vmatpush1.msra.mxu0 0.0
      %6112 = vmatprep.subr.mxu0 0.0
      %6113 = vmatpush1.msra.mxu0 0.0
      %6114 = vmatprep.subr.mxu0 0.0
      %6115 = vmatpush1.msra.mxu0 0.0
      %6116 = vmatprep.subr.mxu0 0.0
      %6117 = vmatpush1.msra.mxu0 0.0
      %6118 = vmatprep.subr.mxu0 0.0
      %6119 = vmatpush1.msra.mxu0 0.0
      %6120 = vmatprep.subr.mxu0 0.0
      %6121 = vmatpush1.msra.mxu0 0.0
      %6122 = vmatprep.subr.mxu0 0.0
      %6123 = vmatpush1.msra.mxu0 0.0
      %6124 = vmatprep.subr.mxu0 0.0
      %6125 = vmatpush1.msra.mxu0 0.0
      %6126 = vmatprep.subr.mxu0 0.0
      %6127 = vmatpush1.msra.mxu0 0.0
      %6128 = vmatprep.subr.mxu0 0.0
      %6129 = vmatpush1.msra.mxu0 0.0
      %6130 = vmatprep.subr.mxu0 0.0
      %6131 = vmatpush1.msra.mxu0 0.0
      %6132 = vmatprep.subr.mxu0 0.0
      %6133 = vmatpush1.msra.mxu0 0.0
      %6134 = vmatprep.subr.mxu0 0.0
      %6135 = vmatpush1.msra.mxu0 0.0
      %6136 = vmatprep.subr.mxu0 0.0
      %6137 = vmatpush1.msra.mxu0 0.0
      %6138 = vmatprep.subr.mxu0 0.0
      %6139 = vmatpush1.msra.mxu0 0.0
      %6140 = vmatprep.subr.mxu0 0.0
      %6141 = vmatpush1.msra.mxu0 0.0
      %6142 = vmatprep.subr.mxu0 0.0
      %6143 = vmatpush1.msra.mxu0 0.0
      %6144 = vmatprep.subr.mxu0 0.0
      %6145 = vmatpush1.msra.mxu0 0.0
      %6146 = vmatprep.subr.mxu0 0.0
      %6147 = vmatpush1.msra.mxu0 0.0
      %6148 = vmatprep.subr.mxu0 0.0
      %6149 = vmatpush1.msra.mxu0 0.0
      %6150 = vmatprep.subr.mxu0 0.0
      %6151 = vmatpush1.msra.mxu0 0.0
      %6152 = vmatprep.subr.mxu0 0.0
      %6153 = vmatpush1.msra.mxu0 0.0
      %6154 = vmatprep.subr.mxu0 0.0
      %6155 = vmatpush1.msra.mxu0 0.0
      %6156 = vmatprep.subr.mxu0 0.0
      %6157 = vmatpush1.msra.mxu0 0.0
      %6158 = vmatprep.subr.mxu0 0.0
      %6159 = vmatpush1.msra.mxu0 0.0
      %6160 = vmatprep.subr.mxu0 0.0
      %6161 = vmatpush1.msra.mxu0 0.0
      %6162 = vmatprep.subr.mxu0 0.0
      %6163 = vmatpush1.msra.mxu0 0.0
      %6164 = vmatprep.subr.mxu0 0.0
      %6165 = vmatpush1.msra.mxu0 0.0
      %6166 = vmatprep.subr.mxu0 0.0
      %6167 = vmatpush1.msra.mxu0 0.0
      %6168 = vmatprep.subr.mxu0 0.0
      %6169 = vmatpush1.msra.mxu0 0.0
      %6170 = vmatprep.subr.mxu0 0.0
      %6171 = vmatpush1.msra.mxu0 0.0
      %6172 = vmatprep.mubr.f32.mxu0 0.0
      %6173 = vmatmul.mubr.f32.gmra.mrb[0].mxu0 %v6106
      %v6174 = vpop.f32.mrb[0].mxu0
      %v6175 = vadd.f32 0.0, %v6174
      %v6176 = vpop.f32.mrb[0].mxu0
      %v6177 = vadd.f32 0.0, %v6176
      %6178 = vdwg.mxu0
      %v6179 = vadd.f32 %v6067, %v6175
      %v6180 = vadd.f32 %v6068, %v6177
      %s6181 = scalar_lea.vmem %s4, 32
      %v6182 = vld [vmem:[%s6181] sm:$0xff]
      %6184 = vset.pattern.permute.xlu0 0
      %6185 = vperm.xlu0 %6184, %v6182
      %v6186 = vpop.permute.xlu0 %6185
      %v6188 = vadd.f32 %v6179, %v6186
      %v6189 = vadd.f32 %v6180, %v6186
      %vm6190 = vcmp.ge.f32.partialorder %v6188, 0.0
      %vm6191 = vcmp.ge.f32.partialorder %v6189, 0.0
      %v6192 = vmul.f32 %v6188, 0.01
      %v6193 = vmul.f32 %v6189, 0.01
      %v6194 = vsel %vm6190, %v6188, %v6192
      %v6195 = vsel %vm6191, %v6189, %v6193
      %6196 = vst [vmem:[#allocation2] sm:$0xff] %v6194
      %6197 = vst [vmem:[#allocation2 + $0x8] sm:$0xff] %v6195
      %6198 = vst [vmem:[#allocation2 + $0x10] sm:$0xff] %v6194
      %6199 = vst [vmem:[#allocation2 + $0x18] sm:$0xff] %v6195
      %v6200 = vld [vmem:[#allocation2 + $0x8] sm:$0xff]
      %v6201 = vld [vmem:[#allocation2 + $0x10] sm:$0xff]
      %v6202 = vld [vmem:[#allocation2 + $0x18] sm:$0xff]
      %v6203 = vld [vmem:[%s5] sm:$0x3]
      %v6205 = vlaneseq
      %v6206 = vshrl.u32 %v6205, 7
      %v6207 = vsub.s32 0, %v6206
      %v6208 = vrot.slane %v6203, %v6207
      %v6209 = vlaneseq
      %v6210 = vshrl.u32 %v6209, 7
      %v6211 = vsub.s32 1, %v6210
      %v6212 = vrot.slane %v6203, %v6211
      %6213 = vrot.lane.b32.xlu0 %v6208, 111
      %v6214 = vpop.permute.xlu0 %6213
      %6215 = vrot.lane.b32.xlu0 %v6212, 111
      %v6216 = vpop.permute.xlu0 %6215
      %v6217 = vsel %vm385, %v6214, %v6216
      %v6221 = vmul.f32 %v6200, %v6214
      %v6222 = vmul.f32 %v6201, %v6217
      %v6223 = vmul.f32 %v6202, %v6216
      %s6224 = scalar_lea.vmem %s3, 360
      %v6225 = vld [vmem:[%s6224] sm:$0xff]
      %v6226 = vld [vmem:[%s394] sm:$0x3]
      %v6228 = vlaneseq
      %v6229 = vshrl.u32 %v6228, 7
      %v6230 = vsub.s32 0, %v6229
      %v6231 = vrot.slane %v6226, %v6230
      %v6232 = vlaneseq
      %v6233 = vshrl.u32 %v6232, 7
      %v6234 = vsub.s32 1, %v6233
      %v6235 = vrot.slane %v6226, %v6234
      %6236 = vrot.lane.b32.xlu0 %v6231, 112
      %v6237 = vpop.permute.xlu0 %6236
      %6238 = vrot.lane.b32.xlu0 %v6235, 112
      %v6239 = vpop.permute.xlu0 %6238
      %v6240 = vsel %vm409, %v6237, %v6239
      %v6244 = vmul.f32 %v6200, %v6237
      %v6245 = vmul.f32 %v6201, %v6240
      %v6246 = vmul.f32 %v6202, %v6239
      %s6247 = scalar_lea.vmem %s3, 368
      %v6248 = vld [vmem:[%s6247] sm:$0xff]
      %6252 = vrot.lane.b32.xlu0 %v6244, 16
      %v6253 = vpop.permute.xlu0 %6252
      %6254 = vrot.lane.b32.xlu0 %v6245, 16
      %v6255 = vpop.permute.xlu0 %6254
      %6256 = vrot.lane.b32.xlu0 %v6246, 16
      %v6257 = vpop.permute.xlu0 %6256
      %v6258 = vsel %vm428, %v6253, %v6255
      %v6259 = vsel %vm428, %v6255, %v6257
      %v6263 = vsel %vm433, %v6248, 0
      %6265 = vmatprep.subr.mxu0 %v6259
      %6266 = vmatpush1.msra.mxu0 %v6258
      %6267 = vmatprep.subr.mxu0 0.0
      %6268 = vmatpush1.msra.mxu0 0.0
      %6269 = vmatprep.subr.mxu0 0.0
      %6270 = vmatpush1.msra.mxu0 0.0
      %6271 = vmatprep.subr.mxu0 0.0
      %6272 = vmatpush1.msra.mxu0 0.0
      %6273 = vmatprep.subr.mxu0 0.0
      %6274 = vmatpush1.msra.mxu0 0.0
      %6275 = vmatprep.subr.mxu0 0.0
      %6276 = vmatpush1.msra.mxu0 0.0
      %6277 = vmatprep.subr.mxu0 0.0
      %6278 = vmatpush1.msra.mxu0 0.0
      %6279 = vmatprep.subr.mxu0 0.0
      %6280 = vmatpush1.msra.mxu0 0.0
      %6281 = vmatprep.subr.mxu0 0.0
      %6282 = vmatpush1.msra.mxu0 0.0
      %6283 = vmatprep.subr.mxu0 0.0
      %6284 = vmatpush1.msra.mxu0 0.0
      %6285 = vmatprep.subr.mxu0 0.0
      %6286 = vmatpush1.msra.mxu0 0.0
      %6287 = vmatprep.subr.mxu0 0.0
      %6288 = vmatpush1.msra.mxu0 0.0
      %6289 = vmatprep.subr.mxu0 0.0
      %6290 = vmatpush1.msra.mxu0 0.0
      %6291 = vmatprep.subr.mxu0 0.0
      %6292 = vmatpush1.msra.mxu0 0.0
      %6293 = vmatprep.subr.mxu0 0.0
      %6294 = vmatpush1.msra.mxu0 0.0
      %6295 = vmatprep.subr.mxu0 0.0
      %6296 = vmatpush1.msra.mxu0 0.0
      %6297 = vmatprep.subr.mxu0 0.0
      %6298 = vmatpush1.msra.mxu0 0.0
      %6299 = vmatprep.subr.mxu0 0.0
      %6300 = vmatpush1.msra.mxu0 0.0
      %6301 = vmatprep.subr.mxu0 0.0
      %6302 = vmatpush1.msra.mxu0 0.0
      %6303 = vmatprep.subr.mxu0 0.0
      %6304 = vmatpush1.msra.mxu0 0.0
      %6305 = vmatprep.subr.mxu0 0.0
      %6306 = vmatpush1.msra.mxu0 0.0
      %6307 = vmatprep.subr.mxu0 0.0
      %6308 = vmatpush1.msra.mxu0 0.0
      %6309 = vmatprep.subr.mxu0 0.0
      %6310 = vmatpush1.msra.mxu0 0.0
      %6311 = vmatprep.subr.mxu0 0.0
      %6312 = vmatpush1.msra.mxu0 0.0
      %6313 = vmatprep.subr.mxu0 0.0
      %6314 = vmatpush1.msra.mxu0 0.0
      %6315 = vmatprep.subr.mxu0 0.0
      %6316 = vmatpush1.msra.mxu0 0.0
      %6317 = vmatprep.subr.mxu0 0.0
      %6318 = vmatpush1.msra.mxu0 0.0
      %6319 = vmatprep.subr.mxu0 0.0
      %6320 = vmatpush1.msra.mxu0 0.0
      %6321 = vmatprep.subr.mxu0 0.0
      %6322 = vmatpush1.msra.mxu0 0.0
      %6323 = vmatprep.subr.mxu0 0.0
      %6324 = vmatpush1.msra.mxu0 0.0
      %6325 = vmatprep.subr.mxu0 0.0
      %6326 = vmatpush1.msra.mxu0 0.0
      %6327 = vmatprep.subr.mxu0 0.0
      %6328 = vmatpush1.msra.mxu0 0.0
      %6329 = vmatprep.mubr.f32.mxu0 0.0
      %6330 = vmatmul.mubr.f32.gmra.mrb[0].mxu0 %v6263
      %v6331 = vpop.f32.mrb[0].mxu0
      %v6332 = vadd.f32 0.0, %v6331
      %v6333 = vpop.f32.mrb[0].mxu0
      %v6334 = vadd.f32 0.0, %v6333
      %6335 = vdwg.mxu0
      %6339 = vrot.lane.b32.xlu0 %v6221, 17
      %v6340 = vpop.permute.xlu0 %6339
      %6341 = vrot.lane.b32.xlu0 %v6222, 17
      %v6342 = vpop.permute.xlu0 %6341
      %6343 = vrot.lane.b32.xlu0 %v6223, 17
      %v6344 = vpop.permute.xlu0 %6343
      %v6345 = vsel %vm517, %v6340, %v6342
      %v6346 = vsel %vm517, %v6342, %v6344
      %v6350 = vsel %vm433, %v6225, 0
      %6352 = vmatprep.subr.mxu0 %v6346
      %6353 = vmatpush1.msra.mxu0 %v6345
      %6354 = vmatprep.subr.mxu0 0.0
      %6355 = vmatpush1.msra.mxu0 0.0
      %6356 = vmatprep.subr.mxu0 0.0
      %6357 = vmatpush1.msra.mxu0 0.0
      %6358 = vmatprep.subr.mxu0 0.0
      %6359 = vmatpush1.msra.mxu0 0.0
      %6360 = vmatprep.subr.mxu0 0.0
      %6361 = vmatpush1.msra.mxu0 0.0
      %6362 = vmatprep.subr.mxu0 0.0
      %6363 = vmatpush1.msra.mxu0 0.0
      %6364 = vmatprep.subr.mxu0 0.0
      %6365 = vmatpush1.msra.mxu0 0.0
      %6366 = vmatprep.subr.mxu0 0.0
      %6367 = vmatpush1.msra.mxu0 0.0
      %6368 = vmatprep.subr.mxu0 0.0
      %6369 = vmatpush1.msra.mxu0 0.0
      %6370 = vmatprep.subr.mxu0 0.0
      %6371 = vmatpush1.msra.mxu0 0.0
      %6372 = vmatprep.subr.mxu0 0.0
      %6373 = vmatpush1.msra.mxu0 0.0
      %6374 = vmatprep.subr.mxu0 0.0
      %6375 = vmatpush1.msra.mxu0 0.0
      %6376 = vmatprep.subr.mxu0 0.0
      %6377 = vmatpush1.msra.mxu0 0.0
      %6378 = vmatprep.subr.mxu0 0.0
      %6379 = vmatpush1.msra.mxu0 0.0
      %6380 = vmatprep.subr.mxu0 0.0
      %6381 = vmatpush1.msra.mxu0 0.0
      %6382 = vmatprep.subr.mxu0 0.0
      %6383 = vmatpush1.msra.mxu0 0.0
      %6384 = vmatprep.subr.mxu0 0.0
      %6385 = vmatpush1.msra.mxu0 0.0
      %6386 = vmatprep.subr.mxu0 0.0
      %6387 = vmatpush1.msra.mxu0 0.0
      %6388 = vmatprep.subr.mxu0 0.0
      %6389 = vmatpush1.msra.mxu0 0.0
      %6390 = vmatprep.subr.mxu0 0.0
      %6391 = vmatpush1.msra.mxu0 0.0
      %6392 = vmatprep.subr.mxu0 0.0
      %6393 = vmatpush1.msra.mxu0 0.0
      %6394 = vmatprep.subr.mxu0 0.0
      %6395 = vmatpush1.msra.mxu0 0.0
      %6396 = vmatprep.subr.mxu0 0.0
      %6397 = vmatpush1.msra.mxu0 0.0
      %6398 = vmatprep.subr.mxu0 0.0
      %6399 = vmatpush1.msra.mxu0 0.0
      %6400 = vmatprep.subr.mxu0 0.0
      %6401 = vmatpush1.msra.mxu0 0.0
      %6402 = vmatprep.subr.mxu0 0.0
      %6403 = vmatpush1.msra.mxu0 0.0
      %6404 = vmatprep.subr.mxu0 0.0
      %6405 = vmatpush1.msra.mxu0 0.0
      %6406 = vmatprep.subr.mxu0 0.0
      %6407 = vmatpush1.msra.mxu0 0.0
      %6408 = vmatprep.subr.mxu0 0.0
      %6409 = vmatpush1.msra.mxu0 0.0
      %6410 = vmatprep.subr.mxu0 0.0
      %6411 = vmatpush1.msra.mxu0 0.0
      %6412 = vmatprep.subr.mxu0 0.0
      %6413 = vmatpush1.msra.mxu0 0.0
      %6414 = vmatprep.subr.mxu0 0.0
      %6415 = vmatpush1.msra.mxu0 0.0
      %6416 = vmatprep.mubr.f32.mxu0 0.0
      %6417 = vmatmul.mubr.f32.gmra.mrb[0].mxu0 %v6350
      %v6418 = vpop.f32.mrb[0].mxu0
      %v6419 = vadd.f32 %v6332, %v6418
      %v6420 = vpop.f32.mrb[0].mxu0
      %v6421 = vadd.f32 %v6334, %v6420
      %6422 = vdwg.mxu0
      %v6423 = vld [vmem:[%s596] sm:$0x3]
      %v6425 = vlaneseq
      %v6426 = vshrl.u32 %v6425, 7
      %v6427 = vsub.s32 0, %v6426
      %v6428 = vrot.slane %v6423, %v6427
      %v6429 = vlaneseq
      %v6430 = vshrl.u32 %v6429, 7
      %v6431 = vsub.s32 1, %v6430
      %v6432 = vrot.slane %v6423, %v6431
      %6433 = vrot.lane.b32.xlu0 %v6428, 113
      %v6434 = vpop.permute.xlu0 %6433
      %6435 = vrot.lane.b32.xlu0 %v6432, 113
      %v6436 = vpop.permute.xlu0 %6435
      %v6437 = vsel %vm611, %v6434, %v6436
      %v6441 = vmul.f32 %v6200, %v6434
      %v6442 = vmul.f32 %v6201, %v6437
      %v6443 = vmul.f32 %v6202, %v6436
      %s6444 = scalar_lea.vmem %s3, 376
      %v6445 = vld [vmem:[%s6444] sm:$0xff]
      %6449 = vrot.lane.b32.xlu0 %v6441, 15
      %v6450 = vpop.permute.xlu0 %6449
      %6451 = vrot.lane.b32.xlu0 %v6442, 15
      %v6452 = vpop.permute.xlu0 %6451
      %6453 = vrot.lane.b32.xlu0 %v6443, 15
      %v6454 = vpop.permute.xlu0 %6453
      %v6455 = vsel %vm630, %v6450, %v6452
      %v6456 = vsel %vm630, %v6452, %v6454
      %v6460 = vsel %vm433, %v6445, 0
      %6462 = vmatprep.subr.mxu0 %v6456
      %6463 = vmatpush1.msra.mxu0 %v6455
      %6464 = vmatprep.subr.mxu0 0.0
      %6465 = vmatpush1.msra.mxu0 0.0
      %6466 = vmatprep.subr.mxu0 0.0
      %6467 = vmatpush1.msra.mxu0 0.0
      %6468 = vmatprep.subr.mxu0 0.0
      %6469 = vmatpush1.msra.mxu0 0.0
      %6470 = vmatprep.subr.mxu0 0.0
      %6471 = vmatpush1.msra.mxu0 0.0
      %6472 = vmatprep.subr.mxu0 0.0
      %6473 = vmatpush1.msra.mxu0 0.0
      %6474 = vmatprep.subr.mxu0 0.0
      %6475 = vmatpush1.msra.mxu0 0.0
      %6476 = vmatprep.subr.mxu0 0.0
      %6477 = vmatpush1.msra.mxu0 0.0
      %6478 = vmatprep.subr.mxu0 0.0
      %6479 = vmatpush1.msra.mxu0 0.0
      %6480 = vmatprep.subr.mxu0 0.0
      %6481 = vmatpush1.msra.mxu0 0.0
      %6482 = vmatprep.subr.mxu0 0.0
      %6483 = vmatpush1.msra.mxu0 0.0
      %6484 = vmatprep.subr.mxu0 0.0
      %6485 = vmatpush1.msra.mxu0 0.0
      %6486 = vmatprep.subr.mxu0 0.0
      %6487 = vmatpush1.msra.mxu0 0.0
      %6488 = vmatprep.subr.mxu0 0.0
      %6489 = vmatpush1.msra.mxu0 0.0
      %6490 = vmatprep.subr.mxu0 0.0
      %6491 = vmatpush1.msra.mxu0 0.0
      %6492 = vmatprep.subr.mxu0 0.0
      %6493 = vmatpush1.msra.mxu0 0.0
      %6494 = vmatprep.subr.mxu0 0.0
      %6495 = vmatpush1.msra.mxu0 0.0
      %6496 = vmatprep.subr.mxu0 0.0
      %6497 = vmatpush1.msra.mxu0 0.0
      %6498 = vmatprep.subr.mxu0 0.0
      %6499 = vmatpush1.msra.mxu0 0.0
      %6500 = vmatprep.subr.mxu0 0.0
      %6501 = vmatpush1.msra.mxu0 0.0
      %6502 = vmatprep.subr.mxu0 0.0
      %6503 = vmatpush1.msra.mxu0 0.0
      %6504 = vmatprep.subr.mxu0 0.0
      %6505 = vmatpush1.msra.mxu0 0.0
      %6506 = vmatprep.subr.mxu0 0.0
      %6507 = vmatpush1.msra.mxu0 0.0
      %6508 = vmatprep.subr.mxu0 0.0
      %6509 = vmatpush1.msra.mxu0 0.0
      %6510 = vmatprep.subr.mxu0 0.0
      %6511 = vmatpush1.msra.mxu0 0.0
      %6512 = vmatprep.subr.mxu0 0.0
      %6513 = vmatpush1.msra.mxu0 0.0
      %6514 = vmatprep.subr.mxu0 0.0
      %6515 = vmatpush1.msra.mxu0 0.0
      %6516 = vmatprep.subr.mxu0 0.0
      %6517 = vmatpush1.msra.mxu0 0.0
      %6518 = vmatprep.subr.mxu0 0.0
      %6519 = vmatpush1.msra.mxu0 0.0
      %6520 = vmatprep.subr.mxu0 0.0
      %6521 = vmatpush1.msra.mxu0 0.0
      %6522 = vmatprep.subr.mxu0 0.0
      %6523 = vmatpush1.msra.mxu0 0.0
      %6524 = vmatprep.subr.mxu0 0.0
      %6525 = vmatpush1.msra.mxu0 0.0
      %6526 = vmatprep.mubr.f32.mxu0 0.0
      %6527 = vmatmul.mubr.f32.gmra.mrb[0].mxu0 %v6460
      %v6528 = vpop.f32.mrb[0].mxu0
      %v6529 = vadd.f32 0.0, %v6528
      %v6530 = vpop.f32.mrb[0].mxu0
      %v6531 = vadd.f32 0.0, %v6530
      %6532 = vdwg.mxu0
      %v6533 = vadd.f32 %v6419, %v6529
      %v6534 = vadd.f32 %v6421, %v6531
      %v6535 = vld [vmem:[%s711] sm:$0x3]
      %v6537 = vlaneseq
      %v6538 = vshrl.u32 %v6537, 7
      %v6539 = vsub.s32 0, %v6538
      %v6540 = vrot.slane %v6535, %v6539
      %v6541 = vlaneseq
      %v6542 = vshrl.u32 %v6541, 7
      %v6543 = vsub.s32 1, %v6542
      %v6544 = vrot.slane %v6535, %v6543
      %6545 = vrot.lane.b32.xlu0 %v6540, 127
      %v6546 = vpop.permute.xlu0 %6545
      %6547 = vrot.lane.b32.xlu0 %v6544, 127
      %v6548 = vpop.permute.xlu0 %6547
      %v6549 = vsel %vm726, %v6546, %v6548
      %v6553 = vmul.f32 %v6200, %v6546
      %v6554 = vmul.f32 %v6201, %v6549
      %v6555 = vmul.f32 %v6202, %v6548
      %s6556 = scalar_lea.vmem %s3, 384
      %v6557 = vld [vmem:[%s6556] sm:$0xff]
      %6561 = vrot.lane.b32.xlu0 %v6553, 1
      %v6562 = vpop.permute.xlu0 %6561
      %6563 = vrot.lane.b32.xlu0 %v6554, 1
      %v6564 = vpop.permute.xlu0 %6563
      %6565 = vrot.lane.b32.xlu0 %v6555, 1
      %v6566 = vpop.permute.xlu0 %6565
      %v6567 = vsel %vm745, %v6562, %v6564
      %v6568 = vsel %vm745, %v6564, %v6566
      %v6572 = vsel %vm433, %v6557, 0
      %6574 = vmatprep.subr.mxu0 %v6568
      %6575 = vmatpush1.msra.mxu0 %v6567
      %6576 = vmatprep.subr.mxu0 0.0
      %6577 = vmatpush1.msra.mxu0 0.0
      %6578 = vmatprep.subr.mxu0 0.0
      %6579 = vmatpush1.msra.mxu0 0.0
      %6580 = vmatprep.subr.mxu0 0.0
      %6581 = vmatpush1.msra.mxu0 0.0
      %6582 = vmatprep.subr.mxu0 0.0
      %6583 = vmatpush1.msra.mxu0 0.0
      %6584 = vmatprep.subr.mxu0 0.0
      %6585 = vmatpush1.msra.mxu0 0.0
      %6586 = vmatprep.subr.mxu0 0.0
      %6587 = vmatpush1.msra.mxu0 0.0
      %6588 = vmatprep.subr.mxu0 0.0
      %6589 = vmatpush1.msra.mxu0 0.0
      %6590 = vmatprep.subr.mxu0 0.0
      %6591 = vmatpush1.msra.mxu0 0.0
      %6592 = vmatprep.subr.mxu0 0.0
      %6593 = vmatpush1.msra.mxu0 0.0
      %6594 = vmatprep.subr.mxu0 0.0
      %6595 = vmatpush1.msra.mxu0 0.0
      %6596 = vmatprep.subr.mxu0 0.0
      %6597 = vmatpush1.msra.mxu0 0.0
      %6598 = vmatprep.subr.mxu0 0.0
      %6599 = vmatpush1.msra.mxu0 0.0
      %6600 = vmatprep.subr.mxu0 0.0
      %6601 = vmatpush1.msra.mxu0 0.0
      %6602 = vmatprep.subr.mxu0 0.0
      %6603 = vmatpush1.msra.mxu0 0.0
      %6604 = vmatprep.subr.mxu0 0.0
      %6605 = vmatpush1.msra.mxu0 0.0
      %6606 = vmatprep.subr.mxu0 0.0
      %6607 = vmatpush1.msra.mxu0 0.0
      %6608 = vmatprep.subr.mxu0 0.0
      %6609 = vmatpush1.msra.mxu0 0.0
      %6610 = vmatprep.subr.mxu0 0.0
      %6611 = vmatpush1.msra.mxu0 0.0
      %6612 = vmatprep.subr.mxu0 0.0
      %6613 = vmatpush1.msra.mxu0 0.0
      %6614 = vmatprep.subr.mxu0 0.0
      %6615 = vmatpush1.msra.mxu0 0.0
      %6616 = vmatprep.subr.mxu0 0.0
      %6617 = vmatpush1.msra.mxu0 0.0
      %6618 = vmatprep.subr.mxu0 0.0
      %6619 = vmatpush1.msra.mxu0 0.0
      %6620 = vmatprep.subr.mxu0 0.0
      %6621 = vmatpush1.msra.mxu0 0.0
      %6622 = vmatprep.subr.mxu0 0.0
      %6623 = vmatpush1.msra.mxu0 0.0
      %6624 = vmatprep.subr.mxu0 0.0
      %6625 = vmatpush1.msra.mxu0 0.0
      %6626 = vmatprep.subr.mxu0 0.0
      %6627 = vmatpush1.msra.mxu0 0.0
      %6628 = vmatprep.subr.mxu0 0.0
      %6629 = vmatpush1.msra.mxu0 0.0
      %6630 = vmatprep.subr.mxu0 0.0
      %6631 = vmatpush1.msra.mxu0 0.0
      %6632 = vmatprep.subr.mxu0 0.0
      %6633 = vmatpush1.msra.mxu0 0.0
      %6634 = vmatprep.subr.mxu0 0.0
      %6635 = vmatpush1.msra.mxu0 0.0
      %6636 = vmatprep.subr.mxu0 0.0
      %6637 = vmatpush1.msra.mxu0 0.0
      %6638 = vmatprep.mubr.f32.mxu0 0.0
      %6639 = vmatmul.mubr.f32.gmra.mrb[0].mxu0 %v6572
      %v6640 = vpop.f32.mrb[0].mxu0
      %v6641 = vadd.f32 0.0, %v6640
      %v6642 = vpop.f32.mrb[0].mxu0
      %v6643 = vadd.f32 0.0, %v6642
      %6644 = vdwg.mxu0
      %v6645 = vadd.f32 %v6533, %v6641
      %v6646 = vadd.f32 %v6534, %v6643
      %v6647 = vld [vmem:[#allocation2] sm:$0xff]
      %v6648 = vld [vmem:[#allocation2 + $0x8] sm:$0xff]
      %s6649 = scalar_lea.vmem %s3, 392
      %v6650 = vld [vmem:[%s6649] sm:$0xff]
      %v6652 = vsel %vm433, %v6650, 0
      %6654 = vmatprep.subr.mxu0 %v6648
      %6655 = vmatpush1.msra.mxu0 %v6647
      %6656 = vmatprep.subr.mxu0 0.0
      %6657 = vmatpush1.msra.mxu0 0.0
      %6658 = vmatprep.subr.mxu0 0.0
      %6659 = vmatpush1.msra.mxu0 0.0
      %6660 = vmatprep.subr.mxu0 0.0
      %6661 = vmatpush1.msra.mxu0 0.0
      %6662 = vmatprep.subr.mxu0 0.0
      %6663 = vmatpush1.msra.mxu0 0.0
      %6664 = vmatprep.subr.mxu0 0.0
      %6665 = vmatpush1.msra.mxu0 0.0
      %6666 = vmatprep.subr.mxu0 0.0
      %6667 = vmatpush1.msra.mxu0 0.0
      %6668 = vmatprep.subr.mxu0 0.0
      %6669 = vmatpush1.msra.mxu0 0.0
      %6670 = vmatprep.subr.mxu0 0.0
      %6671 = vmatpush1.msra.mxu0 0.0
      %6672 = vmatprep.subr.mxu0 0.0
      %6673 = vmatpush1.msra.mxu0 0.0
      %6674 = vmatprep.subr.mxu0 0.0
      %6675 = vmatpush1.msra.mxu0 0.0
      %6676 = vmatprep.subr.mxu0 0.0
      %6677 = vmatpush1.msra.mxu0 0.0
      %6678 = vmatprep.subr.mxu0 0.0
      %6679 = vmatpush1.msra.mxu0 0.0
      %6680 = vmatprep.subr.mxu0 0.0
      %6681 = vmatpush1.msra.mxu0 0.0
      %6682 = vmatprep.subr.mxu0 0.0
      %6683 = vmatpush1.msra.mxu0 0.0
      %6684 = vmatprep.subr.mxu0 0.0
      %6685 = vmatpush1.msra.mxu0 0.0
      %6686 = vmatprep.subr.mxu0 0.0
      %6687 = vmatpush1.msra.mxu0 0.0
      %6688 = vmatprep.subr.mxu0 0.0
      %6689 = vmatpush1.msra.mxu0 0.0
      %6690 = vmatprep.subr.mxu0 0.0
      %6691 = vmatpush1.msra.mxu0 0.0
      %6692 = vmatprep.subr.mxu0 0.0
      %6693 = vmatpush1.msra.mxu0 0.0
      %6694 = vmatprep.subr.mxu0 0.0
      %6695 = vmatpush1.msra.mxu0 0.0
      %6696 = vmatprep.subr.mxu0 0.0
      %6697 = vmatpush1.msra.mxu0 0.0
      %6698 = vmatprep.subr.mxu0 0.0
      %6699 = vmatpush1.msra.mxu0 0.0
      %6700 = vmatprep.subr.mxu0 0.0
      %6701 = vmatpush1.msra.mxu0 0.0
      %6702 = vmatprep.subr.mxu0 0.0
      %6703 = vmatpush1.msra.mxu0 0.0
      %6704 = vmatprep.subr.mxu0 0.0
      %6705 = vmatpush1.msra.mxu0 0.0
      %6706 = vmatprep.subr.mxu0 0.0
      %6707 = vmatpush1.msra.mxu0 0.0
      %6708 = vmatprep.subr.mxu0 0.0
      %6709 = vmatpush1.msra.mxu0 0.0
      %6710 = vmatprep.subr.mxu0 0.0
      %6711 = vmatpush1.msra.mxu0 0.0
      %6712 = vmatprep.subr.mxu0 0.0
      %6713 = vmatpush1.msra.mxu0 0.0
      %6714 = vmatprep.subr.mxu0 0.0
      %6715 = vmatpush1.msra.mxu0 0.0
      %6716 = vmatprep.subr.mxu0 0.0
      %6717 = vmatpush1.msra.mxu0 0.0
      %6718 = vmatprep.mubr.f32.mxu0 0.0
      %6719 = vmatmul.mubr.f32.gmra.mrb[0].mxu0 %v6652
      %v6720 = vpop.f32.mrb[0].mxu0
      %v6721 = vadd.f32 0.0, %v6720
      %v6722 = vpop.f32.mrb[0].mxu0
      %v6723 = vadd.f32 0.0, %v6722
      %6724 = vdwg.mxu0
      %v6725 = vadd.f32 %v6645, %v6721
      %v6726 = vadd.f32 %v6646, %v6723
      %v6727 = vld [vmem:[#allocation2] sm:$0xff]
      %v6728 = vld [vmem:[#allocation2 + $0x8] sm:$0xff]
      %v6729 = vld [vmem:[#allocation2 + $0x10] sm:$0xff]
      %v6730 = vld [vmem:[%s909] sm:$0x3]
      %v6732 = vlaneseq
      %v6733 = vshrl.u32 %v6732, 7
      %v6734 = vsub.s32 0, %v6733
      %v6735 = vrot.slane %v6730, %v6734
      %v6736 = vlaneseq
      %v6737 = vshrl.u32 %v6736, 7
      %v6738 = vsub.s32 1, %v6737
      %v6739 = vrot.slane %v6730, %v6738
      %6740 = vrot.lane.b32.xlu0 %v6735, 1
      %v6741 = vpop.permute.xlu0 %6740
      %6742 = vrot.lane.b32.xlu0 %v6739, 1
      %v6743 = vpop.permute.xlu0 %6742
      %v6744 = vsel %vm745, %v6741, %v6743
      %v6748 = vmul.f32 %v6727, %v6741
      %v6749 = vmul.f32 %v6728, %v6744
      %v6750 = vmul.f32 %v6729, %v6743
      %s6751 = scalar_lea.vmem %s3, 400
      %v6752 = vld [vmem:[%s6751] sm:$0xff]
      %6756 = vrot.lane.b32.xlu0 %v6748, 127
      %v6757 = vpop.permute.xlu0 %6756
      %6758 = vrot.lane.b32.xlu0 %v6749, 127
      %v6759 = vpop.permute.xlu0 %6758
      %6760 = vrot.lane.b32.xlu0 %v6750, 127
      %v6761 = vpop.permute.xlu0 %6760
      %v6762 = vsel %vm726, %v6757, %v6759
      %v6763 = vsel %vm726, %v6759, %v6761
      %v6767 = vsel %vm433, %v6752, 0
      %6769 = vmatprep.subr.mxu0 %v6763
      %6770 = vmatpush1.msra.mxu0 %v6762
      %6771 = vmatprep.subr.mxu0 0.0
      %6772 = vmatpush1.msra.mxu0 0.0
      %6773 = vmatprep.subr.mxu0 0.0
      %6774 = vmatpush1.msra.mxu0 0.0
      %6775 = vmatprep.subr.mxu0 0.0
      %6776 = vmatpush1.msra.mxu0 0.0
      %6777 = vmatprep.subr.mxu0 0.0
      %6778 = vmatpush1.msra.mxu0 0.0
      %6779 = vmatprep.subr.mxu0 0.0
      %6780 = vmatpush1.msra.mxu0 0.0
      %6781 = vmatprep.subr.mxu0 0.0
      %6782 = vmatpush1.msra.mxu0 0.0
      %6783 = vmatprep.subr.mxu0 0.0
      %6784 = vmatpush1.msra.mxu0 0.0
      %6785 = vmatprep.subr.mxu0 0.0
      %6786 = vmatpush1.msra.mxu0 0.0
      %6787 = vmatprep.subr.mxu0 0.0
      %6788 = vmatpush1.msra.mxu0 0.0
      %6789 = vmatprep.subr.mxu0 0.0
      %6790 = vmatpush1.msra.mxu0 0.0
      %6791 = vmatprep.subr.mxu0 0.0
      %6792 = vmatpush1.msra.mxu0 0.0
      %6793 = vmatprep.subr.mxu0 0.0
      %6794 = vmatpush1.msra.mxu0 0.0
      %6795 = vmatprep.subr.mxu0 0.0
      %6796 = vmatpush1.msra.mxu0 0.0
      %6797 = vmatprep.subr.mxu0 0.0
      %6798 = vmatpush1.msra.mxu0 0.0
      %6799 = vmatprep.subr.mxu0 0.0
      %6800 = vmatpush1.msra.mxu0 0.0
      %6801 = vmatprep.subr.mxu0 0.0
      %6802 = vmatpush1.msra.mxu0 0.0
      %6803 = vmatprep.subr.mxu0 0.0
      %6804 = vmatpush1.msra.mxu0 0.0
      %6805 = vmatprep.subr.mxu0 0.0
      %6806 = vmatpush1.msra.mxu0 0.0
      %6807 = vmatprep.subr.mxu0 0.0
      %6808 = vmatpush1.msra.mxu0 0.0
      %6809 = vmatprep.subr.mxu0 0.0
      %6810 = vmatpush1.msra.mxu0 0.0
      %6811 = vmatprep.subr.mxu0 0.0
      %6812 = vmatpush1.msra.mxu0 0.0
      %6813 = vmatprep.subr.mxu0 0.0
      %6814 = vmatpush1.msra.mxu0 0.0
      %6815 = vmatprep.subr.mxu0 0.0
      %6816 = vmatpush1.msra.mxu0 0.0
      %6817 = vmatprep.subr.mxu0 0.0
      %6818 = vmatpush1.msra.mxu0 0.0
      %6819 = vmatprep.subr.mxu0 0.0
      %6820 = vmatpush1.msra.mxu0 0.0
      %6821 = vmatprep.subr.mxu0 0.0
      %6822 = vmatpush1.msra.mxu0 0.0
      %6823 = vmatprep.subr.mxu0 0.0
      %6824 = vmatpush1.msra.mxu0 0.0
      %6825 = vmatprep.subr.mxu0 0.0
      %6826 = vmatpush1.msra.mxu0 0.0
      %6827 = vmatprep.subr.mxu0 0.0
      %6828 = vmatpush1.msra.mxu0 0.0
      %6829 = vmatprep.subr.mxu0 0.0
      %6830 = vmatpush1.msra.mxu0 0.0
      %6831 = vmatprep.subr.mxu0 0.0
      %6832 = vmatpush1.msra.mxu0 0.0
      %6833 = vmatprep.mubr.f32.mxu0 0.0
      %6834 = vmatmul.mubr.f32.gmra.mrb[0].mxu0 %v6767
      %v6835 = vpop.f32.mrb[0].mxu0
      %v6836 = vadd.f32 0.0, %v6835
      %v6837 = vpop.f32.mrb[0].mxu0
      %v6838 = vadd.f32 0.0, %v6837
      %6839 = vdwg.mxu0
      %v6840 = vadd.f32 %v6725, %v6836
      %v6841 = vadd.f32 %v6726, %v6838
      %v6842 = vld [vmem:[%s1022] sm:$0x3]
      %v6844 = vlaneseq
      %v6845 = vshrl.u32 %v6844, 7
      %v6846 = vsub.s32 0, %v6845
      %v6847 = vrot.slane %v6842, %v6846
      %v6848 = vlaneseq
      %v6849 = vshrl.u32 %v6848, 7
      %v6850 = vsub.s32 1, %v6849
      %v6851 = vrot.slane %v6842, %v6850
      %6852 = vrot.lane.b32.xlu0 %v6847, 15
      %v6853 = vpop.permute.xlu0 %6852
      %6854 = vrot.lane.b32.xlu0 %v6851, 15
      %v6855 = vpop.permute.xlu0 %6854
      %v6856 = vsel %vm630, %v6853, %v6855
      %v6860 = vmul.f32 %v6727, %v6853
      %v6861 = vmul.f32 %v6728, %v6856
      %v6862 = vmul.f32 %v6729, %v6855
      %s6863 = scalar_lea.vmem %s3, 408
      %v6864 = vld [vmem:[%s6863] sm:$0xff]
      %6868 = vrot.lane.b32.xlu0 %v6860, 113
      %v6869 = vpop.permute.xlu0 %6868
      %6870 = vrot.lane.b32.xlu0 %v6861, 113
      %v6871 = vpop.permute.xlu0 %6870
      %6872 = vrot.lane.b32.xlu0 %v6862, 113
      %v6873 = vpop.permute.xlu0 %6872
      %v6874 = vsel %vm611, %v6869, %v6871
      %v6875 = vsel %vm611, %v6871, %v6873
      %v6879 = vsel %vm433, %v6864, 0
      %6881 = vmatprep.subr.mxu0 %v6875
      %6882 = vmatpush1.msra.mxu0 %v6874
      %6883 = vmatprep.subr.mxu0 0.0
      %6884 = vmatpush1.msra.mxu0 0.0
      %6885 = vmatprep.subr.mxu0 0.0
      %6886 = vmatpush1.msra.mxu0 0.0
      %6887 = vmatprep.subr.mxu0 0.0
      %6888 = vmatpush1.msra.mxu0 0.0
      %6889 = vmatprep.subr.mxu0 0.0
      %6890 = vmatpush1.msra.mxu0 0.0
      %6891 = vmatprep.subr.mxu0 0.0
      %6892 = vmatpush1.msra.mxu0 0.0
      %6893 = vmatprep.subr.mxu0 0.0
      %6894 = vmatpush1.msra.mxu0 0.0
      %6895 = vmatprep.subr.mxu0 0.0
      %6896 = vmatpush1.msra.mxu0 0.0
      %6897 = vmatprep.subr.mxu0 0.0
      %6898 = vmatpush1.msra.mxu0 0.0
      %6899 = vmatprep.subr.mxu0 0.0
      %6900 = vmatpush1.msra.mxu0 0.0
      %6901 = vmatprep.subr.mxu0 0.0
      %6902 = vmatpush1.msra.mxu0 0.0
      %6903 = vmatprep.subr.mxu0 0.0
      %6904 = vmatpush1.msra.mxu0 0.0
      %6905 = vmatprep.subr.mxu0 0.0
      %6906 = vmatpush1.msra.mxu0 0.0
      %6907 = vmatprep.subr.mxu0 0.0
      %6908 = vmatpush1.msra.mxu0 0.0
      %6909 = vmatprep.subr.mxu0 0.0
      %6910 = vmatpush1.msra.mxu0 0.0
      %6911 = vmatprep.subr.mxu0 0.0
      %6912 = vmatpush1.msra.mxu0 0.0
      %6913 = vmatprep.subr.mxu0 0.0
      %6914 = vmatpush1.msra.mxu0 0.0
      %6915 = vmatprep.subr.mxu0 0.0
      %6916 = vmatpush1.msra.mxu0 0.0
      %6917 = vmatprep.subr.mxu0 0.0
      %6918 = vmatpush1.msra.mxu0 0.0
      %6919 = vmatprep.subr.mxu0 0.0
      %6920 = vmatpush1.msra.mxu0 0.0
      %6921 = vmatprep.subr.mxu0 0.0
      %6922 = vmatpush1.msra.mxu0 0.0
      %6923 = vmatprep.subr.mxu0 0.0
      %6924 = vmatpush1.msra.mxu0 0.0
      %6925 = vmatprep.subr.mxu0 0.0
      %6926 = vmatpush1.msra.mxu0 0.0
      %6927 = vmatprep.subr.mxu0 0.0
      %6928 = vmatpush1.msra.mxu0 0.0
      %6929 = vmatprep.subr.mxu0 0.0
      %6930 = vmatpush1.msra.mxu0 0.0
      %6931 = vmatprep.subr.mxu0 0.0
      %6932 = vmatpush1.msra.mxu0 0.0
      %6933 = vmatprep.subr.mxu0 0.0
      %6934 = vmatpush1.msra.mxu0 0.0
      %6935 = vmatprep.subr.mxu0 0.0
      %6936 = vmatpush1.msra.mxu0 0.0
      %6937 = vmatprep.subr.mxu0 0.0
      %6938 = vmatpush1.msra.mxu0 0.0
      %6939 = vmatprep.subr.mxu0 0.0
      %6940 = vmatpush1.msra.mxu0 0.0
      %6941 = vmatprep.subr.mxu0 0.0
      %6942 = vmatpush1.msra.mxu0 0.0
      %6943 = vmatprep.subr.mxu0 0.0
      %6944 = vmatpush1.msra.mxu0 0.0
      %6945 = vmatprep.mubr.f32.mxu0 0.0
      %6946 = vmatmul.mubr.f32.gmra.mrb[0].mxu0 %v6879
      %v6947 = vpop.f32.mrb[0].mxu0
      %v6948 = vadd.f32 0.0, %v6947
      %v6949 = vpop.f32.mrb[0].mxu0
      %v6950 = vadd.f32 0.0, %v6949
      %6951 = vdwg.mxu0
      %v6952 = vadd.f32 %v6840, %v6948
      %v6953 = vadd.f32 %v6841, %v6950
      %v6954 = vld [vmem:[%s1135] sm:$0x3]
      %v6956 = vlaneseq
      %v6957 = vshrl.u32 %v6956, 7
      %v6958 = vsub.s32 0, %v6957
      %v6959 = vrot.slane %v6954, %v6958
      %v6960 = vlaneseq
      %v6961 = vshrl.u32 %v6960, 7
      %v6962 = vsub.s32 1, %v6961
      %v6963 = vrot.slane %v6954, %v6962
      %6964 = vrot.lane.b32.xlu0 %v6959, 16
      %v6965 = vpop.permute.xlu0 %6964
      %6966 = vrot.lane.b32.xlu0 %v6963, 16
      %v6967 = vpop.permute.xlu0 %6966
      %v6968 = vsel %vm428, %v6965, %v6967
      %v6972 = vmul.f32 %v6727, %v6965
      %v6973 = vmul.f32 %v6728, %v6968
      %v6974 = vmul.f32 %v6729, %v6967
      %s6975 = scalar_lea.vmem %s3, 416
      %v6976 = vld [vmem:[%s6975] sm:$0xff]
      %6980 = vrot.lane.b32.xlu0 %v6972, 112
      %v6981 = vpop.permute.xlu0 %6980
      %6982 = vrot.lane.b32.xlu0 %v6973, 112
      %v6983 = vpop.permute.xlu0 %6982
      %6984 = vrot.lane.b32.xlu0 %v6974, 112
      %v6985 = vpop.permute.xlu0 %6984
      %v6986 = vsel %vm409, %v6981, %v6983
      %v6987 = vsel %vm409, %v6983, %v6985
      %v6991 = vsel %vm433, %v6976, 0
      %6993 = vmatprep.subr.mxu0 %v6987
      %6994 = vmatpush1.msra.mxu0 %v6986
      %6995 = vmatprep.subr.mxu0 0.0
      %6996 = vmatpush1.msra.mxu0 0.0
      %6997 = vmatprep.subr.mxu0 0.0
      %6998 = vmatpush1.msra.mxu0 0.0
      %6999 = vmatprep.subr.mxu0 0.0
      %7000 = vmatpush1.msra.mxu0 0.0
      %7001 = vmatprep.subr.mxu0 0.0
      %7002 = vmatpush1.msra.mxu0 0.0
      %7003 = vmatprep.subr.mxu0 0.0
      %7004 = vmatpush1.msra.mxu0 0.0
      %7005 = vmatprep.subr.mxu0 0.0
      %7006 = vmatpush1.msra.mxu0 0.0
      %7007 = vmatprep.subr.mxu0 0.0
      %7008 = vmatpush1.msra.mxu0 0.0
      %7009 = vmatprep.subr.mxu0 0.0
      %7010 = vmatpush1.msra.mxu0 0.0
      %7011 = vmatprep.subr.mxu0 0.0
      %7012 = vmatpush1.msra.mxu0 0.0
      %7013 = vmatprep.subr.mxu0 0.0
      %7014 = vmatpush1.msra.mxu0 0.0
      %7015 = vmatprep.subr.mxu0 0.0
      %7016 = vmatpush1.msra.mxu0 0.0
      %7017 = vmatprep.subr.mxu0 0.0
      %7018 = vmatpush1.msra.mxu0 0.0
      %7019 = vmatprep.subr.mxu0 0.0
      %7020 = vmatpush1.msra.mxu0 0.0
      %7021 = vmatprep.subr.mxu0 0.0
      %7022 = vmatpush1.msra.mxu0 0.0
      %7023 = vmatprep.subr.mxu0 0.0
      %7024 = vmatpush1.msra.mxu0 0.0
      %7025 = vmatprep.subr.mxu0 0.0
      %7026 = vmatpush1.msra.mxu0 0.0
      %7027 = vmatprep.subr.mxu0 0.0
      %7028 = vmatpush1.msra.mxu0 0.0
      %7029 = vmatprep.subr.mxu0 0.0
      %7030 = vmatpush1.msra.mxu0 0.0
      %7031 = vmatprep.subr.mxu0 0.0
      %7032 = vmatpush1.msra.mxu0 0.0
      %7033 = vmatprep.subr.mxu0 0.0
      %7034 = vmatpush1.msra.mxu0 0.0
      %7035 = vmatprep.subr.mxu0 0.0
      %7036 = vmatpush1.msra.mxu0 0.0
      %7037 = vmatprep.subr.mxu0 0.0
      %7038 = vmatpush1.msra.mxu0 0.0
      %7039 = vmatprep.subr.mxu0 0.0
      %7040 = vmatpush1.msra.mxu0 0.0
      %7041 = vmatprep.subr.mxu0 0.0
      %7042 = vmatpush1.msra.mxu0 0.0
      %7043 = vmatprep.subr.mxu0 0.0
      %7044 = vmatpush1.msra.mxu0 0.0
      %7045 = vmatprep.subr.mxu0 0.0
      %7046 = vmatpush1.msra.mxu0 0.0
      %7047 = vmatprep.subr.mxu0 0.0
      %7048 = vmatpush1.msra.mxu0 0.0
      %7049 = vmatprep.subr.mxu0 0.0
      %7050 = vmatpush1.msra.mxu0 0.0
      %7051 = vmatprep.subr.mxu0 0.0
      %7052 = vmatpush1.msra.mxu0 0.0
      %7053 = vmatprep.subr.mxu0 0.0
      %7054 = vmatpush1.msra.mxu0 0.0
      %7055 = vmatprep.subr.mxu0 0.0
      %7056 = vmatpush1.msra.mxu0 0.0
      %7057 = vmatprep.mubr.f32.mxu0 0.0
      %7058 = vmatmul.mubr.f32.gmra.mrb[0].mxu0 %v6991
      %v7059 = vpop.f32.mrb[0].mxu0
      %v7060 = vadd.f32 0.0, %v7059
      %v7061 = vpop.f32.mrb[0].mxu0
      %v7062 = vadd.f32 0.0, %v7061
      %7063 = vdwg.mxu0
      %v7064 = vadd.f32 %v6952, %v7060
      %v7065 = vadd.f32 %v6953, %v7062
      %v7066 = vld [vmem:[%s1248] sm:$0x3]
      %v7068 = vlaneseq
      %v7069 = vshrl.u32 %v7068, 7
      %v7070 = vsub.s32 0, %v7069
      %v7071 = vrot.slane %v7066, %v7070
      %v7072 = vlaneseq
      %v7073 = vshrl.u32 %v7072, 7
      %v7074 = vsub.s32 1, %v7073
      %v7075 = vrot.slane %v7066, %v7074
      %7076 = vrot.lane.b32.xlu0 %v7071, 17
      %v7077 = vpop.permute.xlu0 %7076
      %7078 = vrot.lane.b32.xlu0 %v7075, 17
      %v7079 = vpop.permute.xlu0 %7078
      %v7080 = vsel %vm517, %v7077, %v7079
      %v7084 = vmul.f32 %v6727, %v7077
      %v7085 = vmul.f32 %v6728, %v7080
      %v7086 = vmul.f32 %v6729, %v7079
      %s7087 = scalar_lea.vmem %s3, 424
      %v7088 = vld [vmem:[%s7087] sm:$0xff]
      %7092 = vrot.lane.b32.xlu0 %v7084, 111
      %v7093 = vpop.permute.xlu0 %7092
      %7094 = vrot.lane.b32.xlu0 %v7085, 111
      %v7095 = vpop.permute.xlu0 %7094
      %7096 = vrot.lane.b32.xlu0 %v7086, 111
      %v7097 = vpop.permute.xlu0 %7096
      %v7098 = vsel %vm385, %v7093, %v7095
      %v7099 = vsel %vm385, %v7095, %v7097
      %v7103 = vsel %vm433, %v7088, 0
      %7105 = vmatprep.subr.mxu0 %v7099
      %7106 = vmatpush1.msra.mxu0 %v7098
      %7107 = vmatprep.subr.mxu0 0.0
      %7108 = vmatpush1.msra.mxu0 0.0
      %7109 = vmatprep.subr.mxu0 0.0
      %7110 = vmatpush1.msra.mxu0 0.0
      %7111 = vmatprep.subr.mxu0 0.0
      %7112 = vmatpush1.msra.mxu0 0.0
      %7113 = vmatprep.subr.mxu0 0.0
      %7114 = vmatpush1.msra.mxu0 0.0
      %7115 = vmatprep.subr.mxu0 0.0
      %7116 = vmatpush1.msra.mxu0 0.0
      %7117 = vmatprep.subr.mxu0 0.0
      %7118 = vmatpush1.msra.mxu0 0.0
      %7119 = vmatprep.subr.mxu0 0.0
      %7120 = vmatpush1.msra.mxu0 0.0
      %7121 = vmatprep.subr.mxu0 0.0
      %7122 = vmatpush1.msra.mxu0 0.0
      %7123 = vmatprep.subr.mxu0 0.0
      %7124 = vmatpush1.msra.mxu0 0.0
      %7125 = vmatprep.subr.mxu0 0.0
      %7126 = vmatpush1.msra.mxu0 0.0
      %7127 = vmatprep.subr.mxu0 0.0
      %7128 = vmatpush1.msra.mxu0 0.0
      %7129 = vmatprep.subr.mxu0 0.0
      %7130 = vmatpush1.msra.mxu0 0.0
      %7131 = vmatprep.subr.mxu0 0.0
      %7132 = vmatpush1.msra.mxu0 0.0
      %7133 = vmatprep.subr.mxu0 0.0
      %7134 = vmatpush1.msra.mxu0 0.0
      %7135 = vmatprep.subr.mxu0 0.0
      %7136 = vmatpush1.msra.mxu0 0.0
      %7137 = vmatprep.subr.mxu0 0.0
      %7138 = vmatpush1.msra.mxu0 0.0
      %7139 = vmatprep.subr.mxu0 0.0
      %7140 = vmatpush1.msra.mxu0 0.0
      %7141 = vmatprep.subr.mxu0 0.0
      %7142 = vmatpush1.msra.mxu0 0.0
      %7143 = vmatprep.subr.mxu0 0.0
      %7144 = vmatpush1.msra.mxu0 0.0
      %7145 = vmatprep.subr.mxu0 0.0
      %7146 = vmatpush1.msra.mxu0 0.0
      %7147 = vmatprep.subr.mxu0 0.0
      %7148 = vmatpush1.msra.mxu0 0.0
      %7149 = vmatprep.subr.mxu0 0.0
      %7150 = vmatpush1.msra.mxu0 0.0
      %7151 = vmatprep.subr.mxu0 0.0
      %7152 = vmatpush1.msra.mxu0 0.0
      %7153 = vmatprep.subr.mxu0 0.0
      %7154 = vmatpush1.msra.mxu0 0.0
      %7155 = vmatprep.subr.mxu0 0.0
      %7156 = vmatpush1.msra.mxu0 0.0
      %7157 = vmatprep.subr.mxu0 0.0
      %7158 = vmatpush1.msra.mxu0 0.0
      %7159 = vmatprep.subr.mxu0 0.0
      %7160 = vmatpush1.msra.mxu0 0.0
      %7161 = vmatprep.subr.mxu0 0.0
      %7162 = vmatpush1.msra.mxu0 0.0
      %7163 = vmatprep.subr.mxu0 0.0
      %7164 = vmatpush1.msra.mxu0 0.0
      %7165 = vmatprep.subr.mxu0 0.0
      %7166 = vmatpush1.msra.mxu0 0.0
      %7167 = vmatprep.subr.mxu0 0.0
      %7168 = vmatpush1.msra.mxu0 0.0
      %7169 = vmatprep.mubr.f32.mxu0 0.0
      %7170 = vmatmul.mubr.f32.gmra.mrb[0].mxu0 %v7103
      %v7171 = vpop.f32.mrb[0].mxu0
      %v7172 = vadd.f32 0.0, %v7171
      %v7173 = vpop.f32.mrb[0].mxu0
      %v7174 = vadd.f32 0.0, %v7173
      %7175 = vdwg.mxu0
      %v7176 = vadd.f32 %v7064, %v7172
      %v7177 = vadd.f32 %v7065, %v7174
      %s7178 = scalar_lea.vmem %s4, 40
      %v7179 = vld [vmem:[%s7178] sm:$0xff]
      %7181 = vset.pattern.permute.xlu0 0
      %7182 = vperm.xlu0 %7181, %v7179
      %v7183 = vpop.permute.xlu0 %7182
      %v7185 = vadd.f32 %v7176, %v7183
      %v7186 = vadd.f32 %v7177, %v7183
      %7187 = vst [vmem:[#allocation2] sm:$0xff] %v7185
      %7188 = vst [vmem:[#allocation2 + $0x8] sm:$0xff] %v7186
      %7189 = vst [vmem:[#allocation2 + $0x10] sm:$0xff] %v7185
      %7190 = vst [vmem:[#allocation2 + $0x18] sm:$0xff] %v7186
      %v7191 = vld [vmem:[#allocation2] ss:$8 sm:$0x3]
      %v7192 = vld [vmem:[%s3368] ss:$8 sm:$0x3]
      %v7193 = vld [vmem:[%s6] sm:$0xff]
      %v7194 = vld [vmem:[%s6 + $0x8] sm:$0xff]
      %v7195 = vld [vmem:[%s6 + $0x10] sm:$0xff]
      %v7196 = vld [vmem:[%s6 + $0x18] sm:$0xff]
      %v7197 = vld [vmem:[%s6 + $0x20] sm:$0xff]
      %v7198 = vld [vmem:[%s6 + $0x28] sm:$0xff]
      %v7199 = vld [vmem:[%s6 + $0x30] sm:$0xff]
      %v7200 = vld [vmem:[%s6 + $0x38] sm:$0xff]
      %v7201 = vld [vmem:[%s6 + $0x40] sm:$0xff]
      %v7202 = vld [vmem:[%s6 + $0x48] sm:$0xff]
      %v7203 = vld [vmem:[%s6 + $0x50] sm:$0xff]
      %v7204 = vld [vmem:[%s6 + $0x58] sm:$0xff]
      %v7205 = vld [vmem:[%s6 + $0x60] sm:$0xff]
      %v7206 = vld [vmem:[%s6 + $0x68] sm:$0xff]
      %v7207 = vld [vmem:[%s6 + $0x70] sm:$0xff]
      %v7208 = vld [vmem:[%s6 + $0x78] sm:$0xff]
      %v7209 = vld [vmem:[%s6 + $0x80] sm:$0xff]
      %v7210 = vld [vmem:[%s6 + $0x88] sm:$0xff]
      %v7211 = vld [vmem:[%s6 + $0x90] sm:$0xff]
      %v7212 = vld [vmem:[%s6 + $0x98] sm:$0xff]
      %v7213 = vld [vmem:[%s6 + $0xa0] sm:$0xff]
      %v7214 = vld [vmem:[%s6 + $0xa8] sm:$0xff]
      %v7215 = vld [vmem:[%s6 + $0xb0] sm:$0xff]
      %v7216 = vld [vmem:[%s6 + $0xb8] sm:$0xff]
      %v7217 = vld [vmem:[%s6 + $0xc0] sm:$0xff]
      %v7218 = vld [vmem:[%s6 + $0xc8] sm:$0xff]
      %v7219 = vld [vmem:[%s6 + $0xd0] sm:$0xff]
      %v7220 = vld [vmem:[%s6 + $0xd8] sm:$0xff]
      %v7221 = vld [vmem:[%s6 + $0xe0] sm:$0xff]
      %v7222 = vld [vmem:[%s6 + $0xe8] sm:$0xff]
      %v7223 = vld [vmem:[%s6 + $0xf0] sm:$0xff]
      %v7224 = vld [vmem:[%s6 + $0xf8] sm:$0xff]
      %v7225 = vld [vmem:[%s6 + $0x100] sm:$0xff]
      %v7226 = vld [vmem:[%s6 + $0x108] sm:$0xff]
      %v7227 = vld [vmem:[%s6 + $0x110] sm:$0xff]
      %v7228 = vld [vmem:[%s6 + $0x118] sm:$0xff]
      %v7229 = vld [vmem:[%s6 + $0x120] sm:$0xff]
      %v7230 = vld [vmem:[%s6 + $0x128] sm:$0xff]
      %v7231 = vld [vmem:[%s6 + $0x130] sm:$0xff]
      %v7232 = vld [vmem:[%s6 + $0x138] sm:$0xff]
      %v7233 = vld [vmem:[%s6 + $0x140] sm:$0xff]
      %v7234 = vld [vmem:[%s6 + $0x148] sm:$0xff]
      %v7235 = vld [vmem:[%s6 + $0x150] sm:$0xff]
      %v7236 = vld [vmem:[%s6 + $0x158] sm:$0xff]
      %v7237 = vld [vmem:[%s6 + $0x160] sm:$0xff]
      %v7238 = vld [vmem:[%s6 + $0x168] sm:$0xff]
      %v7239 = vld [vmem:[%s6 + $0x170] sm:$0xff]
      %v7240 = vld [vmem:[%s6 + $0x178] sm:$0xff]
      %v7241 = vld [vmem:[%s6 + $0x180] sm:$0xff]
      %v7242 = vld [vmem:[%s6 + $0x188] sm:$0xff]
      %v7243 = vld [vmem:[%s6 + $0x190] sm:$0xff]
      %v7244 = vld [vmem:[%s6 + $0x198] sm:$0xff]
      %v7245 = vld [vmem:[%s6 + $0x1a0] sm:$0xff]
      %v7246 = vld [vmem:[%s6 + $0x1a8] sm:$0xff]
      %v7247 = vld [vmem:[%s6 + $0x1b0] sm:$0xff]
      %v7248 = vld [vmem:[%s6 + $0x1b8] sm:$0xff]
      %v7249 = vld [vmem:[%s6 + $0x1c0] sm:$0xff]
      %v7250 = vld [vmem:[%s6 + $0x1c8] sm:$0xff]
      %v7251 = vld [vmem:[%s6 + $0x1d0] sm:$0xff]
      %v7252 = vld [vmem:[%s6 + $0x1d8] sm:$0xff]
      %v7253 = vld [vmem:[%s6 + $0x1e0] sm:$0xff]
      %v7254 = vld [vmem:[%s6 + $0x1e8] sm:$0xff]
      %v7255 = vld [vmem:[%s6 + $0x1f0] sm:$0xff]
      %v7256 = vld [vmem:[%s6 + $0x1f8] sm:$0xff]
      %v7258 = vlaneseq
      %v7259 = vshrl.u32 %v7258, 7
      %v7260 = vsub.s32 0, %v7259
      %v7261 = vrot.slane %v7191, %v7260
      %v7262 = vlaneseq
      %v7263 = vshrl.u32 %v7262, 7
      %v7264 = vsub.s32 1, %v7263
      %v7265 = vrot.slane %v7191, %v7264
      %7268 = vmatprep.subr.mxu0 %v7194
      %7269 = vmatpush1.msra.mxu0 %v7193
      %7270 = vmatprep.subr.mxu0 %v7196
      %7271 = vmatpush1.msra.mxu0 %v7195
      %7272 = vmatprep.subr.mxu0 %v7198
      %7273 = vmatpush1.msra.mxu0 %v7197
      %7274 = vmatprep.subr.mxu0 %v7200
      %7275 = vmatpush1.msra.mxu0 %v7199
      %7276 = vmatprep.subr.mxu0 %v7202
      %7277 = vmatpush1.msra.mxu0 %v7201
      %7278 = vmatprep.subr.mxu0 %v7204
      %7279 = vmatpush1.msra.mxu0 %v7203
      %7280 = vmatprep.subr.mxu0 %v7206
      %7281 = vmatpush1.msra.mxu0 %v7205
      %7282 = vmatprep.subr.mxu0 %v7208
      %7283 = vmatpush1.msra.mxu0 %v7207
      %7284 = vmatprep.subr.mxu0 %v7210
      %7285 = vmatpush1.msra.mxu0 %v7209
      %7286 = vmatprep.subr.mxu0 %v7212
      %7287 = vmatpush1.msra.mxu0 %v7211
      %7288 = vmatprep.subr.mxu0 %v7214
      %7289 = vmatpush1.msra.mxu0 %v7213
      %7290 = vmatprep.subr.mxu0 %v7216
      %7291 = vmatpush1.msra.mxu0 %v7215
      %7292 = vmatprep.subr.mxu0 %v7218
      %7293 = vmatpush1.msra.mxu0 %v7217
      %7294 = vmatprep.subr.mxu0 %v7220
      %7295 = vmatpush1.msra.mxu0 %v7219
      %7296 = vmatprep.subr.mxu0 %v7222
      %7297 = vmatpush1.msra.mxu0 %v7221
      %7298 = vmatprep.subr.mxu0 %v7224
      %7299 = vmatpush1.msra.mxu0 %v7223
      %7300 = vmatprep.subr.mxu0 %v7226
      %7301 = vmatpush1.msra.mxu0 %v7225
      %7302 = vmatprep.subr.mxu0 %v7228
      %7303 = vmatpush1.msra.mxu0 %v7227
      %7304 = vmatprep.subr.mxu0 %v7230
      %7305 = vmatpush1.msra.mxu0 %v7229
      %7306 = vmatprep.subr.mxu0 %v7232
      %7307 = vmatpush1.msra.mxu0 %v7231
      %7308 = vmatprep.subr.mxu0 %v7234
      %7309 = vmatpush1.msra.mxu0 %v7233
      %7310 = vmatprep.subr.mxu0 %v7236
      %7311 = vmatpush1.msra.mxu0 %v7235
      %7312 = vmatprep.subr.mxu0 %v7238
      %7313 = vmatpush1.msra.mxu0 %v7237
      %7314 = vmatprep.subr.mxu0 %v7240
      %7315 = vmatpush1.msra.mxu0 %v7239
      %7316 = vmatprep.subr.mxu0 %v7242
      %7317 = vmatpush1.msra.mxu0 %v7241
      %7318 = vmatprep.subr.mxu0 %v7244
      %7319 = vmatpush1.msra.mxu0 %v7243
      %7320 = vmatprep.subr.mxu0 %v7246
      %7321 = vmatpush1.msra.mxu0 %v7245
      %7322 = vmatprep.subr.mxu0 %v7248
      %7323 = vmatpush1.msra.mxu0 %v7247
      %7324 = vmatprep.subr.mxu0 %v7250
      %7325 = vmatpush1.msra.mxu0 %v7249
      %7326 = vmatprep.subr.mxu0 %v7252
      %7327 = vmatpush1.msra.mxu0 %v7251
      %7328 = vmatprep.subr.mxu0 %v7254
      %7329 = vmatpush1.msra.mxu0 %v7253
      %7330 = vmatprep.subr.mxu0 %v7256
      %7331 = vmatpush1.msra.mxu0 %v7255
      %7332 = vmatprep.mubr.f32.mxu0 %v7265
      %7333 = vmatmul.mubr.f32.gmra.mrb[0].mxu0 %v7261
      %v7334 = vpop.f32.mrb[0].mxu0
      %v7335 = vadd.f32 0.0, %v7334
      %v7336 = vpop.f32.mrb[0].mxu0
      %v7337 = vadd.f32 0.0, %v7336
      %7338 = vdwg.mxu0
      %v7339 = vld [vmem:[%s7] sm:$0xff]
      %v7340 = vld [vmem:[%s7 + $0x8] sm:$0xff]
      %v7341 = vld [vmem:[%s7 + $0x10] sm:$0xff]
      %v7342 = vld [vmem:[%s7 + $0x18] sm:$0xff]
      %v7343 = vld [vmem:[%s7 + $0x20] sm:$0xff]
      %v7344 = vld [vmem:[%s7 + $0x28] sm:$0xff]
      %v7345 = vld [vmem:[%s7 + $0x30] sm:$0xff]
      %v7346 = vld [vmem:[%s7 + $0x38] sm:$0xff]
      %v7347 = vld [vmem:[%s7 + $0x40] sm:$0xff]
      %v7348 = vld [vmem:[%s7 + $0x48] sm:$0xff]
      %v7349 = vld [vmem:[%s7 + $0x50] sm:$0xff]
      %v7350 = vld [vmem:[%s7 + $0x58] sm:$0xff]
      %v7351 = vld [vmem:[%s7 + $0x60] sm:$0xff]
      %v7352 = vld [vmem:[%s7 + $0x68] sm:$0xff]
      %v7353 = vld [vmem:[%s7 + $0x70] sm:$0xff]
      %v7354 = vld [vmem:[%s7 + $0x78] sm:$0xff]
      %v7355 = vld [vmem:[%s7 + $0x80] sm:$0xff]
      %v7356 = vld [vmem:[%s7 + $0x88] sm:$0xff]
      %v7357 = vld [vmem:[%s7 + $0x90] sm:$0xff]
      %v7358 = vld [vmem:[%s7 + $0x98] sm:$0xff]
      %v7359 = vld [vmem:[%s7 + $0xa0] sm:$0xff]
      %v7360 = vld [vmem:[%s7 + $0xa8] sm:$0xff]
      %v7361 = vld [vmem:[%s7 + $0xb0] sm:$0xff]
      %v7362 = vld [vmem:[%s7 + $0xb8] sm:$0xff]
      %v7363 = vld [vmem:[%s7 + $0xc0] sm:$0xff]
      %v7364 = vld [vmem:[%s7 + $0xc8] sm:$0xff]
      %v7365 = vld [vmem:[%s7 + $0xd0] sm:$0xff]
      %v7366 = vld [vmem:[%s7 + $0xd8] sm:$0xff]
      %v7367 = vld [vmem:[%s7 + $0xe0] sm:$0xff]
      %v7368 = vld [vmem:[%s7 + $0xe8] sm:$0xff]
      %v7369 = vld [vmem:[%s7 + $0xf0] sm:$0xff]
      %v7370 = vld [vmem:[%s7 + $0xf8] sm:$0xff]
      %v7371 = vld [vmem:[%s7 + $0x100] sm:$0xff]
      %v7372 = vld [vmem:[%s7 + $0x108] sm:$0xff]
      %v7373 = vld [vmem:[%s7 + $0x110] sm:$0xff]
      %v7374 = vld [vmem:[%s7 + $0x118] sm:$0xff]
      %v7375 = vld [vmem:[%s7 + $0x120] sm:$0xff]
      %v7376 = vld [vmem:[%s7 + $0x128] sm:$0xff]
      %v7377 = vld [vmem:[%s7 + $0x130] sm:$0xff]
      %v7378 = vld [vmem:[%s7 + $0x138] sm:$0xff]
      %v7379 = vld [vmem:[%s7 + $0x140] sm:$0xff]
      %v7380 = vld [vmem:[%s7 + $0x148] sm:$0xff]
      %v7381 = vld [vmem:[%s7 + $0x150] sm:$0xff]
      %v7382 = vld [vmem:[%s7 + $0x158] sm:$0xff]
      %v7383 = vld [vmem:[%s7 + $0x160] sm:$0xff]
      %v7384 = vld [vmem:[%s7 + $0x168] sm:$0xff]
      %v7385 = vld [vmem:[%s7 + $0x170] sm:$0xff]
      %v7386 = vld [vmem:[%s7 + $0x178] sm:$0xff]
      %v7387 = vld [vmem:[%s7 + $0x180] sm:$0xff]
      %v7388 = vld [vmem:[%s7 + $0x188] sm:$0xff]
      %v7389 = vld [vmem:[%s7 + $0x190] sm:$0xff]
      %v7390 = vld [vmem:[%s7 + $0x198] sm:$0xff]
      %v7391 = vld [vmem:[%s7 + $0x1a0] sm:$0xff]
      %v7392 = vld [vmem:[%s7 + $0x1a8] sm:$0xff]
      %v7393 = vld [vmem:[%s7 + $0x1b0] sm:$0xff]
      %v7394 = vld [vmem:[%s7 + $0x1b8] sm:$0xff]
      %v7395 = vld [vmem:[%s7 + $0x1c0] sm:$0xff]
      %v7396 = vld [vmem:[%s7 + $0x1c8] sm:$0xff]
      %v7397 = vld [vmem:[%s7 + $0x1d0] sm:$0xff]
      %v7398 = vld [vmem:[%s7 + $0x1d8] sm:$0xff]
      %v7399 = vld [vmem:[%s7 + $0x1e0] sm:$0xff]
      %v7400 = vld [vmem:[%s7 + $0x1e8] sm:$0xff]
      %v7401 = vld [vmem:[%s7 + $0x1f0] sm:$0xff]
      %v7402 = vld [vmem:[%s7 + $0x1f8] sm:$0xff]
      %v7404 = vlaneseq
      %v7405 = vshrl.u32 %v7404, 7
      %v7406 = vsub.s32 0, %v7405
      %v7407 = vrot.slane %v7192, %v7406
      %v7408 = vlaneseq
      %v7409 = vshrl.u32 %v7408, 7
      %v7410 = vsub.s32 1, %v7409
      %v7411 = vrot.slane %v7192, %v7410
      %7414 = vmatprep.subr.mxu0 %v7340
      %7415 = vmatpush1.msra.mxu0 %v7339
      %7416 = vmatprep.subr.mxu0 %v7342
      %7417 = vmatpush1.msra.mxu0 %v7341
      %7418 = vmatprep.subr.mxu0 %v7344
      %7419 = vmatpush1.msra.mxu0 %v7343
      %7420 = vmatprep.subr.mxu0 %v7346
      %7421 = vmatpush1.msra.mxu0 %v7345
      %7422 = vmatprep.subr.mxu0 %v7348
      %7423 = vmatpush1.msra.mxu0 %v7347
      %7424 = vmatprep.subr.mxu0 %v7350
      %7425 = vmatpush1.msra.mxu0 %v7349
      %7426 = vmatprep.subr.mxu0 %v7352
      %7427 = vmatpush1.msra.mxu0 %v7351
      %7428 = vmatprep.subr.mxu0 %v7354
      %7429 = vmatpush1.msra.mxu0 %v7353
      %7430 = vmatprep.subr.mxu0 %v7356
      %7431 = vmatpush1.msra.mxu0 %v7355
      %7432 = vmatprep.subr.mxu0 %v7358
      %7433 = vmatpush1.msra.mxu0 %v7357
      %7434 = vmatprep.subr.mxu0 %v7360
      %7435 = vmatpush1.msra.mxu0 %v7359
      %7436 = vmatprep.subr.mxu0 %v7362
      %7437 = vmatpush1.msra.mxu0 %v7361
      %7438 = vmatprep.subr.mxu0 %v7364
      %7439 = vmatpush1.msra.mxu0 %v7363
      %7440 = vmatprep.subr.mxu0 %v7366
      %7441 = vmatpush1.msra.mxu0 %v7365
      %7442 = vmatprep.subr.mxu0 %v7368
      %7443 = vmatpush1.msra.mxu0 %v7367
      %7444 = vmatprep.subr.mxu0 %v7370
      %7445 = vmatpush1.msra.mxu0 %v7369
      %7446 = vmatprep.subr.mxu0 %v7372
      %7447 = vmatpush1.msra.mxu0 %v7371
      %7448 = vmatprep.subr.mxu0 %v7374
      %7449 = vmatpush1.msra.mxu0 %v7373
      %7450 = vmatprep.subr.mxu0 %v7376
      %7451 = vmatpush1.msra.mxu0 %v7375
      %7452 = vmatprep.subr.mxu0 %v7378
      %7453 = vmatpush1.msra.mxu0 %v7377
      %7454 = vmatprep.subr.mxu0 %v7380
      %7455 = vmatpush1.msra.mxu0 %v7379
      %7456 = vmatprep.subr.mxu0 %v7382
      %7457 = vmatpush1.msra.mxu0 %v7381
      %7458 = vmatprep.subr.mxu0 %v7384
      %7459 = vmatpush1.msra.mxu0 %v7383
      %7460 = vmatprep.subr.mxu0 %v7386
      %7461 = vmatpush1.msra.mxu0 %v7385
      %7462 = vmatprep.subr.mxu0 %v7388
      %7463 = vmatpush1.msra.mxu0 %v7387
      %7464 = vmatprep.subr.mxu0 %v7390
      %7465 = vmatpush1.msra.mxu0 %v7389
      %7466 = vmatprep.subr.mxu0 %v7392
      %7467 = vmatpush1.msra.mxu0 %v7391
      %7468 = vmatprep.subr.mxu0 %v7394
      %7469 = vmatpush1.msra.mxu0 %v7393
      %7470 = vmatprep.subr.mxu0 %v7396
      %7471 = vmatpush1.msra.mxu0 %v7395
      %7472 = vmatprep.subr.mxu0 %v7398
      %7473 = vmatpush1.msra.mxu0 %v7397
      %7474 = vmatprep.subr.mxu0 %v7400
      %7475 = vmatpush1.msra.mxu0 %v7399
      %7476 = vmatprep.subr.mxu0 %v7402
      %7477 = vmatpush1.msra.mxu0 %v7401
      %7478 = vmatprep.mubr.f32.mxu0 %v7411
      %7479 = vmatmul.mubr.f32.gmra.mrb[0].mxu0 %v7407
      %v7480 = vpop.f32.mrb[0].mxu0
      %v7481 = vadd.f32 0.0, %v7480
      %v7482 = vpop.f32.mrb[0].mxu0
      %v7483 = vadd.f32 0.0, %v7482
      %7484 = vdwg.mxu0
      %v7485 = vsub.f32 %v7335, %v7481
      %v7486 = vsub.f32 %v7337, %v7483
      %7487 = vmatprep.subr.mxu0 %v7194
      %7488 = vmatpush1.msra.mxu0 %v7193
      %7489 = vmatprep.subr.mxu0 %v7196
      %7490 = vmatpush1.msra.mxu0 %v7195
      %7491 = vmatprep.subr.mxu0 %v7198
      %7492 = vmatpush1.msra.mxu0 %v7197
      %7493 = vmatprep.subr.mxu0 %v7200
      %7494 = vmatpush1.msra.mxu0 %v7199
      %7495 = vmatprep.subr.mxu0 %v7202
      %7496 = vmatpush1.msra.mxu0 %v7201
      %7497 = vmatprep.subr.mxu0 %v7204
      %7498 = vmatpush1.msra.mxu0 %v7203
      %7499 = vmatprep.subr.mxu0 %v7206
      %7500 = vmatpush1.msra.mxu0 %v7205
      %7501 = vmatprep.subr.mxu0 %v7208
      %7502 = vmatpush1.msra.mxu0 %v7207
      %7503 = vmatprep.subr.mxu0 %v7210
      %7504 = vmatpush1.msra.mxu0 %v7209
      %7505 = vmatprep.subr.mxu0 %v7212
      %7506 = vmatpush1.msra.mxu0 %v7211
      %7507 = vmatprep.subr.mxu0 %v7214
      %7508 = vmatpush1.msra.mxu0 %v7213
      %7509 = vmatprep.subr.mxu0 %v7216
      %7510 = vmatpush1.msra.mxu0 %v7215
      %7511 = vmatprep.subr.mxu0 %v7218
      %7512 = vmatpush1.msra.mxu0 %v7217
      %7513 = vmatprep.subr.mxu0 %v7220
      %7514 = vmatpush1.msra.mxu0 %v7219
      %7515 = vmatprep.subr.mxu0 %v7222
      %7516 = vmatpush1.msra.mxu0 %v7221
      %7517 = vmatprep.subr.mxu0 %v7224
      %7518 = vmatpush1.msra.mxu0 %v7223
      %7519 = vmatprep.subr.mxu0 %v7226
      %7520 = vmatpush1.msra.mxu0 %v7225
      %7521 = vmatprep.subr.mxu0 %v7228
      %7522 = vmatpush1.msra.mxu0 %v7227
      %7523 = vmatprep.subr.mxu0 %v7230
      %7524 = vmatpush1.msra.mxu0 %v7229
      %7525 = vmatprep.subr.mxu0 %v7232
      %7526 = vmatpush1.msra.mxu0 %v7231
      %7527 = vmatprep.subr.mxu0 %v7234
      %7528 = vmatpush1.msra.mxu0 %v7233
      %7529 = vmatprep.subr.mxu0 %v7236
      %7530 = vmatpush1.msra.mxu0 %v7235
      %7531 = vmatprep.subr.mxu0 %v7238
      %7532 = vmatpush1.msra.mxu0 %v7237
      %7533 = vmatprep.subr.mxu0 %v7240
      %7534 = vmatpush1.msra.mxu0 %v7239
      %7535 = vmatprep.subr.mxu0 %v7242
      %7536 = vmatpush1.msra.mxu0 %v7241
      %7537 = vmatprep.subr.mxu0 %v7244
      %7538 = vmatpush1.msra.mxu0 %v7243
      %7539 = vmatprep.subr.mxu0 %v7246
      %7540 = vmatpush1.msra.mxu0 %v7245
      %7541 = vmatprep.subr.mxu0 %v7248
      %7542 = vmatpush1.msra.mxu0 %v7247
      %7543 = vmatprep.subr.mxu0 %v7250
      %7544 = vmatpush1.msra.mxu0 %v7249
      %7545 = vmatprep.subr.mxu0 %v7252
      %7546 = vmatpush1.msra.mxu0 %v7251
      %7547 = vmatprep.subr.mxu0 %v7254
      %7548 = vmatpush1.msra.mxu0 %v7253
      %7549 = vmatprep.subr.mxu0 %v7256
      %7550 = vmatpush1.msra.mxu0 %v7255
      %7551 = vmatprep.mubr.f32.mxu0 %v7411
      %7552 = vmatmul.mubr.f32.gmra.mrb[0].mxu0 %v7407
      %v7553 = vpop.f32.mrb[0].mxu0
      %v7554 = vadd.f32 0.0, %v7553
      %v7555 = vpop.f32.mrb[0].mxu0
      %v7556 = vadd.f32 0.0, %v7555
      %7557 = vdwg.mxu0
      %7558 = vmatprep.subr.mxu0 %v7340
      %7559 = vmatpush1.msra.mxu0 %v7339
      %7560 = vmatprep.subr.mxu0 %v7342
      %7561 = vmatpush1.msra.mxu0 %v7341
      %7562 = vmatprep.subr.mxu0 %v7344
      %7563 = vmatpush1.msra.mxu0 %v7343
      %7564 = vmatprep.subr.mxu0 %v7346
      %7565 = vmatpush1.msra.mxu0 %v7345
      %7566 = vmatprep.subr.mxu0 %v7348
      %7567 = vmatpush1.msra.mxu0 %v7347
      %7568 = vmatprep.subr.mxu0 %v7350
      %7569 = vmatpush1.msra.mxu0 %v7349
      %7570 = vmatprep.subr.mxu0 %v7352
      %7571 = vmatpush1.msra.mxu0 %v7351
      %7572 = vmatprep.subr.mxu0 %v7354
      %7573 = vmatpush1.msra.mxu0 %v7353
      %7574 = vmatprep.subr.mxu0 %v7356
      %7575 = vmatpush1.msra.mxu0 %v7355
      %7576 = vmatprep.subr.mxu0 %v7358
      %7577 = vmatpush1.msra.mxu0 %v7357
      %7578 = vmatprep.subr.mxu0 %v7360
      %7579 = vmatpush1.msra.mxu0 %v7359
      %7580 = vmatprep.subr.mxu0 %v7362
      %7581 = vmatpush1.msra.mxu0 %v7361
      %7582 = vmatprep.subr.mxu0 %v7364
      %7583 = vmatpush1.msra.mxu0 %v7363
      %7584 = vmatprep.subr.mxu0 %v7366
      %7585 = vmatpush1.msra.mxu0 %v7365
      %7586 = vmatprep.subr.mxu0 %v7368
      %7587 = vmatpush1.msra.mxu0 %v7367
      %7588 = vmatprep.subr.mxu0 %v7370
      %7589 = vmatpush1.msra.mxu0 %v7369
      %7590 = vmatprep.subr.mxu0 %v7372
      %7591 = vmatpush1.msra.mxu0 %v7371
      %7592 = vmatprep.subr.mxu0 %v7374
      %7593 = vmatpush1.msra.mxu0 %v7373
      %7594 = vmatprep.subr.mxu0 %v7376
      %7595 = vmatpush1.msra.mxu0 %v7375
      %7596 = vmatprep.subr.mxu0 %v7378
      %7597 = vmatpush1.msra.mxu0 %v7377
      %7598 = vmatprep.subr.mxu0 %v7380
      %7599 = vmatpush1.msra.mxu0 %v7379
      %7600 = vmatprep.subr.mxu0 %v7382
      %7601 = vmatpush1.msra.mxu0 %v7381
      %7602 = vmatprep.subr.mxu0 %v7384
      %7603 = vmatpush1.msra.mxu0 %v7383
      %7604 = vmatprep.subr.mxu0 %v7386
      %7605 = vmatpush1.msra.mxu0 %v7385
      %7606 = vmatprep.subr.mxu0 %v7388
      %7607 = vmatpush1.msra.mxu0 %v7387
      %7608 = vmatprep.subr.mxu0 %v7390
      %7609 = vmatpush1.msra.mxu0 %v7389
      %7610 = vmatprep.subr.mxu0 %v7392
      %7611 = vmatpush1.msra.mxu0 %v7391
      %7612 = vmatprep.subr.mxu0 %v7394
      %7613 = vmatpush1.msra.mxu0 %v7393
      %7614 = vmatprep.subr.mxu0 %v7396
      %7615 = vmatpush1.msra.mxu0 %v7395
      %7616 = vmatprep.subr.mxu0 %v7398
      %7617 = vmatpush1.msra.mxu0 %v7397
      %7618 = vmatprep.subr.mxu0 %v7400
      %7619 = vmatpush1.msra.mxu0 %v7399
      %7620 = vmatprep.subr.mxu0 %v7402
      %7621 = vmatpush1.msra.mxu0 %v7401
      %7622 = vmatprep.mubr.f32.mxu0 %v7265
      %7623 = vmatmul.mubr.f32.gmra.mrb[0].mxu0 %v7261
      %v7624 = vpop.f32.mrb[0].mxu0
      %v7625 = vadd.f32 %v7554, %v7624
      %v7626 = vpop.f32.mrb[0].mxu0
      %v7627 = vadd.f32 %v7556, %v7626
      %7628 = vdwg.mxu0
      %v7631 = vcombine.low %v7485, %v7486
      %v7633 = vunpack.c.l.s4 1966171168
      %v7634 = vunpack.c.0.s8 %v7633
      %v7635 = vlaneseq
      %v7636 = vshrl.u32 %v7635, 7
      %v7637 = vsub.s32 %v7634, %v7636
      %v7638 = vrot.slane %v7631, %v7637
      %v7640 = vunpack.c.l.s4 1966171168
      %v7641 = vunpack.c.0.s8 %v7640
      %v7642 = vlaneseq
      %v7643 = vshrl.u32 %v7642, 7
      %v7644 = vsub.s32 %v7641, %v7643
      %v7645 = vrot.slane %v7638, %v7644
      %v7647 = vmul.f32 %v344, %v7645
      %v7648 = vadd.f32 %v7647, %v3825
      %v7651 = vcombine.low %v7625, %v7627
      %v7653 = vunpack.c.l.s4 1966171168
      %v7654 = vunpack.c.0.s8 %v7653
      %v7655 = vlaneseq
      %v7656 = vshrl.u32 %v7655, 7
      %v7657 = vsub.s32 %v7654, %v7656
      %v7658 = vrot.slane %v7651, %v7657
      %v7660 = vunpack.c.l.s4 1966171168
      %v7661 = vunpack.c.0.s8 %v7660
      %v7662 = vlaneseq
      %v7663 = vshrl.u32 %v7662, 7
      %v7664 = vsub.s32 %v7661, %v7663
      %v7665 = vrot.slane %v7658, %v7664
      %v7667 = vmul.f32 %v344, %v7665
      %v7668 = vadd.f32 %v7667, %v3846
      %v7670 = vlaneseq
      %v7671 = vshrl.u32 %v7670, 7
      %v7672 = vsub.s32 0, %v7671
      %v7673 = vrot.slane %v7668, %v7672
      %v7674 = vlaneseq
      %v7675 = vshrl.u32 %v7674, 7
      %v7676 = vsub.s32 1, %v7675
      %v7677 = vrot.slane %v7668, %v7676
      %7680 = vmatprep.subr.mxu0 %v7340
      %7681 = vmatpush1.msra.mxu0 %v7339
      %7682 = vmatprep.subr.mxu0 %v7342
      %7683 = vmatpush1.msra.mxu0 %v7341
      %7684 = vmatprep.subr.mxu0 %v7344
      %7685 = vmatpush1.msra.mxu0 %v7343
      %7686 = vmatprep.subr.mxu0 %v7346
      %7687 = vmatpush1.msra.mxu0 %v7345
      %7688 = vmatprep.subr.mxu0 %v7348
      %7689 = vmatpush1.msra.mxu0 %v7347
      %7690 = vmatprep.subr.mxu0 %v7350
      %7691 = vmatpush1.msra.mxu0 %v7349
      %7692 = vmatprep.subr.mxu0 %v7352
      %7693 = vmatpush1.msra.mxu0 %v7351
      %7694 = vmatprep.subr.mxu0 %v7354
      %7695 = vmatpush1.msra.mxu0 %v7353
      %7696 = vmatprep.subr.mxu0 %v7356
      %7697 = vmatpush1.msra.mxu0 %v7355
      %7698 = vmatprep.subr.mxu0 %v7358
      %7699 = vmatpush1.msra.mxu0 %v7357
      %7700 = vmatprep.subr.mxu0 %v7360
      %7701 = vmatpush1.msra.mxu0 %v7359
      %7702 = vmatprep.subr.mxu0 %v7362
      %7703 = vmatpush1.msra.mxu0 %v7361
      %7704 = vmatprep.subr.mxu0 %v7364
      %7705 = vmatpush1.msra.mxu0 %v7363
      %7706 = vmatprep.subr.mxu0 %v7366
      %7707 = vmatpush1.msra.mxu0 %v7365
      %7708 = vmatprep.subr.mxu0 %v7368
      %7709 = vmatpush1.msra.mxu0 %v7367
      %7710 = vmatprep.subr.mxu0 %v7370
      %7711 = vmatpush1.msra.mxu0 %v7369
      %7712 = vmatprep.subr.mxu0 %v7372
      %7713 = vmatpush1.msra.mxu0 %v7371
      %7714 = vmatprep.subr.mxu0 %v7374
      %7715 = vmatpush1.msra.mxu0 %v7373
      %7716 = vmatprep.subr.mxu0 %v7376
      %7717 = vmatpush1.msra.mxu0 %v7375
      %7718 = vmatprep.subr.mxu0 %v7378
      %7719 = vmatpush1.msra.mxu0 %v7377
      %7720 = vmatprep.subr.mxu0 %v7380
      %7721 = vmatpush1.msra.mxu0 %v7379
      %7722 = vmatprep.subr.mxu0 %v7382
      %7723 = vmatpush1.msra.mxu0 %v7381
      %7724 = vmatprep.subr.mxu0 %v7384
      %7725 = vmatpush1.msra.mxu0 %v7383
      %7726 = vmatprep.subr.mxu0 %v7386
      %7727 = vmatpush1.msra.mxu0 %v7385
      %7728 = vmatprep.subr.mxu0 %v7388
      %7729 = vmatpush1.msra.mxu0 %v7387
      %7730 = vmatprep.subr.mxu0 %v7390
      %7731 = vmatpush1.msra.mxu0 %v7389
      %7732 = vmatprep.subr.mxu0 %v7392
      %7733 = vmatpush1.msra.mxu0 %v7391
      %7734 = vmatprep.subr.mxu0 %v7394
      %7735 = vmatpush1.msra.mxu0 %v7393
      %7736 = vmatprep.subr.mxu0 %v7396
      %7737 = vmatpush1.msra.mxu0 %v7395
      %7738 = vmatprep.subr.mxu0 %v7398
      %7739 = vmatpush1.msra.mxu0 %v7397
      %7740 = vmatprep.subr.mxu0 %v7400
      %7741 = vmatpush1.msra.mxu0 %v7399
      %7742 = vmatprep.subr.mxu0 %v7402
      %7743 = vmatpush1.msra.mxu0 %v7401
      %7744 = vmatprep.mubr.f32.mxu0 %v7677
      %7745 = vmatmul.mubr.f32.gmra.mrb[0].mxu0 %v7673
      %v7746 = vpop.f32.mrb[0].mxu0
      %v7747 = vadd.f32 0.0, %v7746
      %v7748 = vpop.f32.mrb[0].mxu0
      %v7749 = vadd.f32 0.0, %v7748
      %7750 = vdwg.mxu0
      %v7752 = vlaneseq
      %v7753 = vshrl.u32 %v7752, 7
      %v7754 = vsub.s32 0, %v7753
      %v7755 = vrot.slane %v7648, %v7754
      %v7756 = vlaneseq
      %v7757 = vshrl.u32 %v7756, 7
      %v7758 = vsub.s32 1, %v7757
      %v7759 = vrot.slane %v7648, %v7758
      %7762 = vmatprep.subr.mxu0 %v7194
      %7763 = vmatpush1.msra.mxu0 %v7193
      %7764 = vmatprep.subr.mxu0 %v7196
      %7765 = vmatpush1.msra.mxu0 %v7195
      %7766 = vmatprep.subr.mxu0 %v7198
      %7767 = vmatpush1.msra.mxu0 %v7197
      %7768 = vmatprep.subr.mxu0 %v7200
      %7769 = vmatpush1.msra.mxu0 %v7199
      %7770 = vmatprep.subr.mxu0 %v7202
      %7771 = vmatpush1.msra.mxu0 %v7201
      %7772 = vmatprep.subr.mxu0 %v7204
      %7773 = vmatpush1.msra.mxu0 %v7203
      %7774 = vmatprep.subr.mxu0 %v7206
      %7775 = vmatpush1.msra.mxu0 %v7205
      %7776 = vmatprep.subr.mxu0 %v7208
      %7777 = vmatpush1.msra.mxu0 %v7207
      %7778 = vmatprep.subr.mxu0 %v7210
      %7779 = vmatpush1.msra.mxu0 %v7209
      %7780 = vmatprep.subr.mxu0 %v7212
      %7781 = vmatpush1.msra.mxu0 %v7211
      %7782 = vmatprep.subr.mxu0 %v7214
      %7783 = vmatpush1.msra.mxu0 %v7213
      %7784 = vmatprep.subr.mxu0 %v7216
      %7785 = vmatpush1.msra.mxu0 %v7215
      %7786 = vmatprep.subr.mxu0 %v7218
      %7787 = vmatpush1.msra.mxu0 %v7217
      %7788 = vmatprep.subr.mxu0 %v7220
      %7789 = vmatpush1.msra.mxu0 %v7219
      %7790 = vmatprep.subr.mxu0 %v7222
      %7791 = vmatpush1.msra.mxu0 %v7221
      %7792 = vmatprep.subr.mxu0 %v7224
      %7793 = vmatpush1.msra.mxu0 %v7223
      %7794 = vmatprep.subr.mxu0 %v7226
      %7795 = vmatpush1.msra.mxu0 %v7225
      %7796 = vmatprep.subr.mxu0 %v7228
      %7797 = vmatpush1.msra.mxu0 %v7227
      %7798 = vmatprep.subr.mxu0 %v7230
      %7799 = vmatpush1.msra.mxu0 %v7229
      %7800 = vmatprep.subr.mxu0 %v7232
      %7801 = vmatpush1.msra.mxu0 %v7231
      %7802 = vmatprep.subr.mxu0 %v7234
      %7803 = vmatpush1.msra.mxu0 %v7233
      %7804 = vmatprep.subr.mxu0 %v7236
      %7805 = vmatpush1.msra.mxu0 %v7235
      %7806 = vmatprep.subr.mxu0 %v7238
      %7807 = vmatpush1.msra.mxu0 %v7237
      %7808 = vmatprep.subr.mxu0 %v7240
      %7809 = vmatpush1.msra.mxu0 %v7239
      %7810 = vmatprep.subr.mxu0 %v7242
      %7811 = vmatpush1.msra.mxu0 %v7241
      %7812 = vmatprep.subr.mxu0 %v7244
      %7813 = vmatpush1.msra.mxu0 %v7243
      %7814 = vmatprep.subr.mxu0 %v7246
      %7815 = vmatpush1.msra.mxu0 %v7245
      %7816 = vmatprep.subr.mxu0 %v7248
      %7817 = vmatpush1.msra.mxu0 %v7247
      %7818 = vmatprep.subr.mxu0 %v7250
      %7819 = vmatpush1.msra.mxu0 %v7249
      %7820 = vmatprep.subr.mxu0 %v7252
      %7821 = vmatpush1.msra.mxu0 %v7251
      %7822 = vmatprep.subr.mxu0 %v7254
      %7823 = vmatpush1.msra.mxu0 %v7253
      %7824 = vmatprep.subr.mxu0 %v7256
      %7825 = vmatpush1.msra.mxu0 %v7255
      %7826 = vmatprep.mubr.f32.mxu0 %v7759
      %7827 = vmatmul.mubr.f32.gmra.mrb[0].mxu0 %v7755
      %v7828 = vpop.f32.mrb[0].mxu0
      %v7829 = vadd.f32 %v7747, %v7828
      %v7830 = vpop.f32.mrb[0].mxu0
      %v7831 = vadd.f32 %v7749, %v7830
      %7832 = vdwg.mxu0
      %7833 = vmatprep.subr.mxu0 %v7194
      %7834 = vmatpush1.msra.mxu0 %v7193
      %7835 = vmatprep.subr.mxu0 %v7196
      %7836 = vmatpush1.msra.mxu0 %v7195
      %7837 = vmatprep.subr.mxu0 %v7198
      %7838 = vmatpush1.msra.mxu0 %v7197
      %7839 = vmatprep.subr.mxu0 %v7200
      %7840 = vmatpush1.msra.mxu0 %v7199
      %7841 = vmatprep.subr.mxu0 %v7202
      %7842 = vmatpush1.msra.mxu0 %v7201
      %7843 = vmatprep.subr.mxu0 %v7204
      %7844 = vmatpush1.msra.mxu0 %v7203
      %7845 = vmatprep.subr.mxu0 %v7206
      %7846 = vmatpush1.msra.mxu0 %v7205
      %7847 = vmatprep.subr.mxu0 %v7208
      %7848 = vmatpush1.msra.mxu0 %v7207
      %7849 = vmatprep.subr.mxu0 %v7210
      %7850 = vmatpush1.msra.mxu0 %v7209
      %7851 = vmatprep.subr.mxu0 %v7212
      %7852 = vmatpush1.msra.mxu0 %v7211
      %7853 = vmatprep.subr.mxu0 %v7214
      %7854 = vmatpush1.msra.mxu0 %v7213
      %7855 = vmatprep.subr.mxu0 %v7216
      %7856 = vmatpush1.msra.mxu0 %v7215
      %7857 = vmatprep.subr.mxu0 %v7218
      %7858 = vmatpush1.msra.mxu0 %v7217
      %7859 = vmatprep.subr.mxu0 %v7220
      %7860 = vmatpush1.msra.mxu0 %v7219
      %7861 = vmatprep.subr.mxu0 %v7222
      %7862 = vmatpush1.msra.mxu0 %v7221
      %7863 = vmatprep.subr.mxu0 %v7224
      %7864 = vmatpush1.msra.mxu0 %v7223
      %7865 = vmatprep.subr.mxu0 %v7226
      %7866 = vmatpush1.msra.mxu0 %v7225
      %7867 = vmatprep.subr.mxu0 %v7228
      %7868 = vmatpush1.msra.mxu0 %v7227
      %7869 = vmatprep.subr.mxu0 %v7230
      %7870 = vmatpush1.msra.mxu0 %v7229
      %7871 = vmatprep.subr.mxu0 %v7232
      %7872 = vmatpush1.msra.mxu0 %v7231
      %7873 = vmatprep.subr.mxu0 %v7234
      %7874 = vmatpush1.msra.mxu0 %v7233
      %7875 = vmatprep.subr.mxu0 %v7236
      %7876 = vmatpush1.msra.mxu0 %v7235
      %7877 = vmatprep.subr.mxu0 %v7238
      %7878 = vmatpush1.msra.mxu0 %v7237
      %7879 = vmatprep.subr.mxu0 %v7240
      %7880 = vmatpush1.msra.mxu0 %v7239
      %7881 = vmatprep.subr.mxu0 %v7242
      %7882 = vmatpush1.msra.mxu0 %v7241
      %7883 = vmatprep.subr.mxu0 %v7244
      %7884 = vmatpush1.msra.mxu0 %v7243
      %7885 = vmatprep.subr.mxu0 %v7246
      %7886 = vmatpush1.msra.mxu0 %v7245
      %7887 = vmatprep.subr.mxu0 %v7248
      %7888 = vmatpush1.msra.mxu0 %v7247
      %7889 = vmatprep.subr.mxu0 %v7250
      %7890 = vmatpush1.msra.mxu0 %v7249
      %7891 = vmatprep.subr.mxu0 %v7252
      %7892 = vmatpush1.msra.mxu0 %v7251
      %7893 = vmatprep.subr.mxu0 %v7254
      %7894 = vmatpush1.msra.mxu0 %v7253
      %7895 = vmatprep.subr.mxu0 %v7256
      %7896 = vmatpush1.msra.mxu0 %v7255
      %7897 = vmatprep.mubr.f32.mxu0 %v7677
      %7898 = vmatmul.mubr.f32.gmra.mrb[0].mxu0 %v7673
      %v7899 = vpop.f32.mrb[0].mxu0
      %v7900 = vadd.f32 0.0, %v7899
      %v7901 = vpop.f32.mrb[0].mxu0
      %v7902 = vadd.f32 0.0, %v7901
      %7903 = vdwg.mxu0
      %7904 = vmatprep.subr.mxu0 %v7340
      %7905 = vmatpush1.msra.mxu0 %v7339
      %7906 = vmatprep.subr.mxu0 %v7342
      %7907 = vmatpush1.msra.mxu0 %v7341
      %7908 = vmatprep.subr.mxu0 %v7344
      %7909 = vmatpush1.msra.mxu0 %v7343
      %7910 = vmatprep.subr.mxu0 %v7346
      %7911 = vmatpush1.msra.mxu0 %v7345
      %7912 = vmatprep.subr.mxu0 %v7348
      %7913 = vmatpush1.msra.mxu0 %v7347
      %7914 = vmatprep.subr.mxu0 %v7350
      %7915 = vmatpush1.msra.mxu0 %v7349
      %7916 = vmatprep.subr.mxu0 %v7352
      %7917 = vmatpush1.msra.mxu0 %v7351
      %7918 = vmatprep.subr.mxu0 %v7354
      %7919 = vmatpush1.msra.mxu0 %v7353
      %7920 = vmatprep.subr.mxu0 %v7356
      %7921 = vmatpush1.msra.mxu0 %v7355
      %7922 = vmatprep.subr.mxu0 %v7358
      %7923 = vmatpush1.msra.mxu0 %v7357
      %7924 = vmatprep.subr.mxu0 %v7360
      %7925 = vmatpush1.msra.mxu0 %v7359
      %7926 = vmatprep.subr.mxu0 %v7362
      %7927 = vmatpush1.msra.mxu0 %v7361
      %7928 = vmatprep.subr.mxu0 %v7364
      %7929 = vmatpush1.msra.mxu0 %v7363
      %7930 = vmatprep.subr.mxu0 %v7366
      %7931 = vmatpush1.msra.mxu0 %v7365
      %7932 = vmatprep.subr.mxu0 %v7368
      %7933 = vmatpush1.msra.mxu0 %v7367
      %7934 = vmatprep.subr.mxu0 %v7370
      %7935 = vmatpush1.msra.mxu0 %v7369
      %7936 = vmatprep.subr.mxu0 %v7372
      %7937 = vmatpush1.msra.mxu0 %v7371
      %7938 = vmatprep.subr.mxu0 %v7374
      %7939 = vmatpush1.msra.mxu0 %v7373
      %7940 = vmatprep.subr.mxu0 %v7376
      %7941 = vmatpush1.msra.mxu0 %v7375
      %7942 = vmatprep.subr.mxu0 %v7378
      %7943 = vmatpush1.msra.mxu0 %v7377
      %7944 = vmatprep.subr.mxu0 %v7380
      %7945 = vmatpush1.msra.mxu0 %v7379
      %7946 = vmatprep.subr.mxu0 %v7382
      %7947 = vmatpush1.msra.mxu0 %v7381
      %7948 = vmatprep.subr.mxu0 %v7384
      %7949 = vmatpush1.msra.mxu0 %v7383
      %7950 = vmatprep.subr.mxu0 %v7386
      %7951 = vmatpush1.msra.mxu0 %v7385
      %7952 = vmatprep.subr.mxu0 %v7388
      %7953 = vmatpush1.msra.mxu0 %v7387
      %7954 = vmatprep.subr.mxu0 %v7390
      %7955 = vmatpush1.msra.mxu0 %v7389
      %7956 = vmatprep.subr.mxu0 %v7392
      %7957 = vmatpush1.msra.mxu0 %v7391
      %7958 = vmatprep.subr.mxu0 %v7394
      %7959 = vmatpush1.msra.mxu0 %v7393
      %7960 = vmatprep.subr.mxu0 %v7396
      %7961 = vmatpush1.msra.mxu0 %v7395
      %7962 = vmatprep.subr.mxu0 %v7398
      %7963 = vmatpush1.msra.mxu0 %v7397
      %7964 = vmatprep.subr.mxu0 %v7400
      %7965 = vmatpush1.msra.mxu0 %v7399
      %7966 = vmatprep.subr.mxu0 %v7402
      %7967 = vmatpush1.msra.mxu0 %v7401
      %7968 = vmatprep.mubr.f32.mxu0 %v7759
      %7969 = vmatmul.mubr.f32.gmra.mrb[0].mxu0 %v7755
      %v7970 = vpop.f32.mrb[0].mxu0
      %v7971 = vadd.f32 0.0, %v7970
      %v7972 = vpop.f32.mrb[0].mxu0
      %v7973 = vadd.f32 0.0, %v7972
      %7974 = vdwg.mxu0
      %v7975 = vsub.f32 %v7900, %v7971
      %v7976 = vsub.f32 %v7902, %v7973
      %v7979 = vcombine.low %v7829, %v7831
      %v7981 = vunpack.c.l.s4 1966171168
      %v7982 = vunpack.c.0.s8 %v7981
      %v7983 = vlaneseq
      %v7984 = vshrl.u32 %v7983, 7
      %v7985 = vsub.s32 %v7982, %v7984
      %v7986 = vrot.slane %v7979, %v7985
      %v7988 = vunpack.c.l.s4 1966171168
      %v7989 = vunpack.c.0.s8 %v7988
      %v7990 = vlaneseq
      %v7991 = vshrl.u32 %v7990, 7
      %v7992 = vsub.s32 %v7989, %v7991
      %v7993 = vrot.slane %v7986, %v7992
      %7995 = vst.msk [vmem:[#allocation2] ss:$8 sm:$0x3] %vm4177, %v7993
      %7996 = vst.msk [vmem:[#allocation2] ss:$8 sm:$0x0] %vm4177, %v7993
      %7997 = vst.msk [vmem:[%s4180] ss:$8 sm:$0x3] %vm4177, %v7993
      %7998 = vst.msk [vmem:[%s4180] ss:$8 sm:$0x0] %vm4177, %v7993
      %v8001 = vcombine.low %v7975, %v7976
      %v8003 = vunpack.c.l.s4 1966171168
      %v8004 = vunpack.c.0.s8 %v8003
      %v8005 = vlaneseq
      %v8006 = vshrl.u32 %v8005, 7
      %v8007 = vsub.s32 %v8004, %v8006
      %v8008 = vrot.slane %v8001, %v8007
      %v8010 = vunpack.c.l.s4 1966171168
      %v8011 = vunpack.c.0.s8 %v8010
      %v8012 = vlaneseq
      %v8013 = vshrl.u32 %v8012, 7
      %v8014 = vsub.s32 %v8011, %v8013
      %v8015 = vrot.slane %v8008, %v8014
      %8017 = vst.msk [vmem:[%s3368] ss:$8 sm:$0x3] %vm4177, %v8015
      %8018 = vst.msk [vmem:[%s3368] ss:$8 sm:$0x0] %vm4177, %v8015
      %8019 = vst.msk [vmem:[%s4203] ss:$8 sm:$0x3] %vm4177, %v8015
      %8020 = vst.msk [vmem:[%s4203] ss:$8 sm:$0x0] %vm4177, %v8015
      %v8021 = vld [vmem:[#allocation2] sm:$0x3]
      %v8022 = vld [vmem:[#allocation2 + $0x8] sm:$0x3]
      %v8025 = vcombine.low %v8021, %v8022
      %v8027 = vunpack.c.l.s4 1983009808
      %v8028 = vunpack.c.0.s8 %v8027
      %v8029 = vlaneseq
      %v8030 = vshrl.u32 %v8029, 7
      %v8031 = vsub.s32 %v8028, %v8030
      %v8032 = vrot.slane %v8025, %v8031
      %8034 = vst [vmem:[%s342] sm:$0xf] %v8032
      %p8035 = scmp.lt.s32.totalorder %s19, 1
      %s8036 = scalar_select %p8035, %s19, 1
      %s8037 = smul.addr %s8036, 2
      %s8038 = smul.addr %s8037, 2
      %s8039 = scalar_lea.vmem %s8, %s8038
      // Predicated region
      $region53: #{recnet_forward_pallas.1} parent=51 // pred_check
        %p8040 = pneg %p220
      $region54: #{recnet_forward_pallas.1} parent=51 // pred_check_branch
        %8042 = sbr.rel (%p8040) target = $region56
      $region55: #{recnet_forward_pallas.1} parent=51 // pred_region
        _
      $region56: #{recnet_forward_pallas.1} parent=51 // pred_fallthru
        _
    $region52: #{recnet_forward_pallas.1} parent=5 // pred_fallthru
      _
    %p8043 = scmp.le.s32.totalorder 2, %s14
    // Predicated region
    $region57: #{recnet_forward_pallas.1} parent=5 // pred_check
      %p8044 = pneg %p8043
    $region58: #{recnet_forward_pallas.1} parent=5 // pred_check_branch
      %8046 = sbr.rel (%p8044) target = $region60
    $region59: #{recnet_forward_pallas.1} parent=5 // pred_region
      %s8047 = ssub.s32 %s14, 2
      // Predicated region
      $region61: #{recnet_forward_pallas.1} parent=59 // pred_check
        %p8048 = pneg %p226
      $region62: #{recnet_forward_pallas.1} parent=59 // pred_check_branch
        %8050 = sbr.rel (%p8048) target = $region64
      $region63: #{recnet_forward_pallas.1} parent=59 // pred_region
        %p8051 = scmp.lt.s32.totalorder %s20, 1
        %s8052 = scalar_select %p8051, %s20, 1
        %s8053 = smul.addr %s8052, 2
        %s8054 = smul.addr %s8053, 2
        %s8055 = scalar_lea.vmem %s8, %s8054
      $region64: #{recnet_forward_pallas.1} parent=59 // pred_fallthru
        _
    $region60: #{recnet_forward_pallas.1} parent=5 // pred_fallthru
      _
  $region6: #{recnet_forward_pallas.1} parent=0 // loop_footer
    %s18 = sadd.s32 1, %s14
  $region7: #{recnet_forward_pallas.1} parent=0 // loop_footer_branch
    %13 = sbr.rel target = $region3
  $region8: #{recnet_forward_pallas.1} parent=0 // loop_exit
    _

</llo_original>
